<compile_context>
chip_gen: v7x
topology: tpu7x:2x2x1
jax: 0.10.0
libtpu: 0.0.40
codegen_flags: <defaults>
</compile_context>

<pallas_src>
from functools import partial

import jax
import jax.numpy as jnp
from jax.experimental import pallas as pl
from jax.experimental.pallas import tpu as pltpu


# --------------------------------------------------------------------------
# Kernel helpers (traced inside the Pallas kernel body)
# --------------------------------------------------------------------------
def _conv3x3(pad_ref, w_ref, H, W, Cout):
    """3x3, stride-1 conv over the (H+2, W+2, Cin) padded VMEM scratch.

    Returns an (H*W, Cout) f32 accumulator.  Weights w_ref are (9, Cin, Cout)
    bf16 with the WS scale already folded in.
    """
    Cin = pad_ref.shape[-1]
    acc = jnp.zeros((H * W, Cout), jnp.float32)
    for kh in range(3):
        for kw in range(3):
            patch = pad_ref[kh:kh + H, kw:kw + W, :].reshape(H * W, Cin)
            acc = acc + jnp.dot(
                patch.astype(jnp.bfloat16),          # bf16 MXU operands,
                w_ref[kh * 3 + kw],                  # f32 accumulation
                preferred_element_type=jnp.float32)
    return acc


def _inorm_mod(x_flat, scale, bias, eps):
    """InstanceNorm2d (biased var, no affine) + AdaIN modulation.

    x_flat: (H*W, C) f32; scale/bias: (1, C) f32 (precomputed style linears).
    """
    mean = jnp.mean(x_flat, axis=0, keepdims=True)
    ctr = x_flat - mean
    var = jnp.mean(ctr * ctr, axis=0, keepdims=True)
    inv = jax.lax.rsqrt(var + eps)
    return ctr * (inv * scale) + bias


# --------------------------------------------------------------------------
# Fused GenBlock kernel (one batch element per grid step)
# --------------------------------------------------------------------------
def _genblock_kernel(x_ref, n1_ref, n2_ref, ss1_ref, sb1_ref, ss2_ref, sb2_ref,
                     w1_ref, b1_ref, nw1_ref, w2_ref, b2_ref, nw2_ref,
                     o_ref, pad1_ref, pad2_ref, *, negslope, eps):
    # x_ref : (1, H, W, Cin)          input tile
    # n*_ref: (1, H*W, 1)             per-pixel noise
    # ss/sb : (1, 1, Cout)            AdaIN style scale / bias for this sample
    # w*_ref: (9, C, Cout) bf16       scale-folded conv taps
    # b*_ref, nw*_ref: (1, Cout)      conv bias / InjectNoise weight
    # o_ref : (1, H*W, Cout)          output tile (spatially flattened)
    _, H, W, Cin = x_ref.shape
    Cout = o_ref.shape[2]

    # ---- stage 1: WSConv1 + InjectNoise1 + LeakyReLU + AdaIN1 -------------
    # Halo handled entirely in VMEM (no HBM pad copy).
    pad1_ref[...] = jnp.zeros_like(pad1_ref)
    pad1_ref[1:H + 1, 1:W + 1, :] = x_ref[0]
    acc = _conv3x3(pad1_ref, w1_ref, H, W, Cout)
    acc = acc + b1_ref[...]                               # conv bias
    acc = acc + nw1_ref[...] * n1_ref[0]                  # x + weight * noise
    acc = jnp.where(acc >= 0.0, acc, negslope * acc)      # LeakyReLU(0.2)
    acc = _inorm_mod(acc, ss1_ref[0], sb1_ref[0], eps)    # AdaIN1

    # ---- stage 2: WSConv2 + InjectNoise2 + LeakyReLU + AdaIN2 -------------
    # Intermediate activation stays resident in VMEM (no HBM round trip).
    pad2_ref[...] = jnp.zeros_like(pad2_ref)
    pad2_ref[1:H + 1, 1:W + 1, :] = acc.reshape(H, W, Cout)
    acc = _conv3x3(pad2_ref, w2_ref, H, W, Cout)
    acc = acc + b2_ref[...]
    acc = acc + nw2_ref[...] * n2_ref[0]
    acc = jnp.where(acc >= 0.0, acc, negslope * acc)
    acc = _inorm_mod(acc, ss2_ref[0], sb2_ref[0], eps)

    o_ref[0, ...] = acc.astype(o_ref.dtype)


# --------------------------------------------------------------------------
# Wrapper
# --------------------------------------------------------------------------
@jax.jit
def gen_block(x_nchw, w, noise1_nchw, noise2_nchw, params):
    """GenBlock.forward for NCHW input / (N, w_dim) latent."""
    N, Cin, H, W = x_nchw.shape
    Cout = params["conv1_w"].shape[0]

    # WSConv2d scales (static Python floats derived from static shapes).
    s1 = (2.0 / (Cin * 3 ** 2)) ** 0.5
    s2 = (2.0 / (Cout * 3 ** 2)) ** 0.5

    # NCHW -> NHWC (channels on the lane axis); flatten noise spatially.
    x = jnp.transpose(x_nchw, (0, 2, 3, 1))
    n1 = jnp.transpose(noise1_nchw, (0, 2, 3, 1)).reshape(N, H * W, 1)
    n2 = jnp.transpose(noise2_nchw, (0, 2, 3, 1)).reshape(N, H * W, 1)

    # Fold WS scale into the tiny weights; pre-cast to bf16 for the MXU.
    # OIHW -> (kh, kw, in, out) -> (9, in, out).
    w1 = (jnp.transpose(params["conv1_w"], (2, 3, 1, 0)).reshape(9, Cin, Cout)
          * s1).astype(jnp.bfloat16)
    w2 = (jnp.transpose(params["conv2_w"], (2, 3, 1, 0)).reshape(9, Cout, Cout)
          * s2).astype(jnp.bfloat16)
    b1 = params["conv1_b"].reshape(1, Cout)
    b2 = params["conv2_b"].reshape(1, Cout)
    nw1 = params["noise1_w"].reshape(1, Cout)
    nw2 = params["noise2_w"].reshape(1, Cout)

    # AdaIN style linears: tiny (N, w_dim) x (w_dim, Cout) -- computed once
    # here and fed per batch element into the fused kernel.
    ss1 = (w @ params["ss1_w"].T + params["ss1_b"]).reshape(N, 1, Cout)
    sb1 = (w @ params["sb1_w"].T + params["sb1_b"]).reshape(N, 1, Cout)
    ss2 = (w @ params["ss2_w"].T + params["ss2_b"]).reshape(N, 1, Cout)
    sb2 = (w @ params["sb2_w"].T + params["sb2_b"]).reshape(N, 1, Cout)

    kernel = partial(_genblock_kernel, negslope=0.2, eps=1e-5)

    out_flat = pl.pallas_call(
        kernel,
        out_shape=jax.ShapeDtypeStruct((N, H * W, Cout), x.dtype),
        grid=(N,),
        in_specs=[
            pl.BlockSpec((1, H, W, Cin), lambda n: (n, 0, 0, 0)),   # x
            pl.BlockSpec((1, H * W, 1), lambda n: (n, 0, 0)),       # noise1
            pl.BlockSpec((1, H * W, 1), lambda n: (n, 0, 0)),       # noise2
            pl.BlockSpec((1, 1, Cout), lambda n: (n, 0, 0)),        # style scale 1
            pl.BlockSpec((1, 1, Cout), lambda n: (n, 0, 0)),        # style bias 1
            pl.BlockSpec((1, 1, Cout), lambda n: (n, 0, 0)),        # style scale 2
            pl.BlockSpec((1, 1, Cout), lambda n: (n, 0, 0)),        # style bias 2
            pl.BlockSpec((9, Cin, Cout), lambda n: (0, 0, 0)),      # conv1 weights
            pl.BlockSpec((1, Cout), lambda n: (0, 0)),              # conv1 bias
            pl.BlockSpec((1, Cout), lambda n: (0, 0)),              # noise1 weight
            pl.BlockSpec((9, Cout, Cout), lambda n: (0, 0, 0)),     # conv2 weights
            pl.BlockSpec((1, Cout), lambda n: (0, 0)),              # conv2 bias
            pl.BlockSpec((1, Cout), lambda n: (0, 0)),              # noise2 weight
        ],
        out_specs=pl.BlockSpec((1, H * W, Cout), lambda n: (n, 0, 0)),
        scratch_shapes=[
            pltpu.VMEM((H + 2, W + 2, Cin), jnp.float32),   # padded input
            pltpu.VMEM((H + 2, W + 2, Cout), jnp.float32),  # padded intermediate
        ],
        compiler_params=pltpu.CompilerParams(
            dimension_semantics=("parallel",),
            vmem_limit_bytes=64 * 1024 * 1024,
        ),
    )(x, n1, n2, ss1, sb1, ss2, sb2, w1, b1, nw1, w2, b2, nw2)

    out = out_flat.reshape(N, H, W, Cout)
    return jnp.transpose(out, (0, 3, 1, 2))                 # NHWC -> NCHW


# --------------------------------------------------------------------------
# Parameter init (mirrors the PyTorch module's parameter shapes)
# --------------------------------------------------------------------------
def init_genblock_params(key, in_ch, out_ch, w_dim):
    ks = jax.random.split(key, 8)
    return {
        "conv1_w": jax.random.normal(ks[0], (out_ch, in_ch, 3, 3), jnp.float32),
        "conv1_b": jnp.zeros((out_ch,), jnp.float32),
        "conv2_w": jax.random.normal(ks[1], (out_ch, out_ch, 3, 3), jnp.float32),
        "conv2_b": jnp.zeros((out_ch,), jnp.float32),
        # InjectNoise weights are zero-init in the module; use nonzero values
        # here so the noise path is actually exercised by the check.
        "noise1_w": 0.1 * jax.random.normal(ks[2], (out_ch,), jnp.float32),
        "noise2_w": 0.1 * jax.random.normal(ks[3], (out_ch,), jnp.float32),
        "ss1_w": 0.2 * jax.random.normal(ks[4], (out_ch, w_dim), jnp.float32),
        "ss1_b": jnp.ones((out_ch,), jnp.float32),
        "sb1_w": 0.2 * jax.random.normal(ks[5], (out_ch, w_dim), jnp.float32),
        "sb1_b": jnp.zeros((out_ch,), jnp.float32),
        "ss2_w": 0.2 * jax.random.normal(ks[6], (out_ch, w_dim), jnp.float32),
        "ss2_b": jnp.ones((out_ch,), jnp.float32),
        "sb2_w": 0.2 * jax.random.normal(ks[7], (out_ch, w_dim), jnp.float32),
        "sb2_b": jnp.zeros((out_ch,), jnp.float32),
    }


# --------------------------------------------------------------------------
# Plain-JAX reference mirroring the PyTorch semantics (for checking)
# --------------------------------------------------------------------------
def _reference_genblock(x, w, noise1, noise2, params):
    Cin = x.shape[1]
    Cout = params["conv1_w"].shape[0]
    s1 = (2.0 / (Cin * 9)) ** 0.5
    s2 = (2.0 / (Cout * 9)) ** 0.5

    def wsconv(v, wgt, b, s):
        # Same numerics as the kernel: scale folded into weights, bf16 operands,
        # f32 accumulation.
        y = jax.lax.conv_general_dilated(
            v.astype(jnp.bfloat16), (wgt * s).astype(jnp.bfloat16),
            window_strides=(1, 1), padding=((1, 1), (1, 1)),
            dimension_numbers=("NCHW", "OIHW", "NCHW"),
            preferred_element_type=jnp.float32)
        return y + b.reshape(1, -1, 1, 1)

    def lrelu(v):
        return jnp.where(v >= 0, v, 0.2 * v)

    def adain(v, scale_w, scale_b, bias_w, bias_b):
        mean = jnp.mean(v, axis=(2, 3), keepdims=True)
        var = jnp.mean((v - mean) ** 2, axis=(2, 3), keepdims=True)
        normed = (v - mean) * jax.lax.rsqrt(var + 1e-5)
        ss = (w @ scale_w.T + scale_b).reshape(v.shape[0], -1, 1, 1)
        sb = (w @ bias_w.T + bias_b).reshape(v.shape[0], -1, 1, 1)
        return normed * ss + sb

    out = wsconv(x, params["conv1_w"], params["conv1_b"], s1)
    out = out + params["noise1_w"].reshape(1, -1, 1, 1) * noise1
    out = lrelu(out)
    out = adain(out, params["ss1_w"], params["ss1_b"], params["sb1_w"], params["sb1_b"])
    out = wsconv(out, params["conv2_w"], params["conv2_b"], s2)
    out = out + params["noise2_w"].reshape(1, -1, 1, 1) * noise2
    out = lrelu(out)
    out = adain(out, params["ss2_w"], params["ss2_b"], params["sb2_w"], params["sb2_b"])
    return out


if __name__ == "__main__":
    key = jax.random.PRNGKey(0)
    kx, kw, kn1, kn2, kp = jax.random.split(key, 5)

    N, Cin, Cout, HW, WDIM = 2, 4, 8, 16, 8
    x = jax.random.normal(kx, (N, Cin, HW, HW), jnp.float32)      # NCHW
    w = jax.random.normal(kw, (N, WDIM), jnp.float32)             # latent
    # InjectNoise draws fresh randn each forward; draw it here so the kernel
    # and the reference see identical noise.
    noise1 = jax.random.normal(kn1, (N, 1, HW, HW), jnp.float32)
    noise2 = jax.random.normal(kn2, (N, 1, HW, HW), jnp.float32)

    params = init_genblock_params(kp, Cin, Cout, WDIM)

    out = gen_block(x, w, noise1, noise2, params)
    out = jax.block_until_ready(out)

    ref = _reference_genblock(x, w, noise1, noise2, params)
    assert out.shape == (N, Cout, HW, HW), out.shape
    max_err = float(jnp.max(jnp.abs(out - ref)))
    assert jnp.allclose(out, ref, atol=1e-3, rtol=1e-3), f"mismatch: {max_err}"

    print("KERNEL_OK")
</pallas_src>

<mosaic_0001>
module attributes {stable_mosaic.version = 11 : i64} {
  func.func @_genblock_kernel(%arg0: i32, %arg1: memref<1x16x16x4xf32, #tpu.memory_space<vmem>>, %arg2: memref<1x256x1xf32, #tpu.memory_space<vmem>>, %arg3: memref<1x256x1xf32, #tpu.memory_space<vmem>>, %arg4: memref<1x1x8xf32, #tpu.memory_space<vmem>>, %arg5: memref<1x1x8xf32, #tpu.memory_space<vmem>>, %arg6: memref<1x1x8xf32, #tpu.memory_space<vmem>>, %arg7: memref<1x1x8xf32, #tpu.memory_space<vmem>>, %arg8: memref<9x4x8xbf16, #tpu.memory_space<vmem>>, %arg9: memref<1x8xf32, #tpu.memory_space<vmem>>, %arg10: memref<1x8xf32, #tpu.memory_space<vmem>>, %arg11: memref<9x8x8xbf16, #tpu.memory_space<vmem>>, %arg12: memref<1x8xf32, #tpu.memory_space<vmem>>, %arg13: memref<1x8xf32, #tpu.memory_space<vmem>>, %arg14: memref<1x256x8xf32, #tpu.memory_space<vmem>>, %arg15: memref<18x18x4xf32, #tpu.memory_space<vmem>>, %arg16: memref<18x18x8xf32, #tpu.memory_space<vmem>>) attributes {dimension_semantics = [#tpu.dimension_semantics<parallel>], iteration_bounds = array<i64: 2>, scalar_prefetch = 0 : i64, scratch_operands = 2 : i64, tpu.core_type = #tpu.core_type<tc>, window_params = [{transform_indices = @transform_0, window_bounds = array<i64: 1, 16, 16, 4>}, {transform_indices = @transform_1, window_bounds = array<i64: 1, 256, 1>}, {transform_indices = @transform_2, window_bounds = array<i64: 1, 256, 1>}, {transform_indices = @transform_3, window_bounds = array<i64: 1, 1, 8>}, {transform_indices = @transform_4, window_bounds = array<i64: 1, 1, 8>}, {transform_indices = @transform_5, window_bounds = array<i64: 1, 1, 8>}, {transform_indices = @transform_6, window_bounds = array<i64: 1, 1, 8>}, {pipeline_mode = #tpu.pipeline_mode<synchronous>, transform_indices = @transform_7, window_bounds = array<i64: 9, 4, 8>}, {pipeline_mode = #tpu.pipeline_mode<synchronous>, transform_indices = @transform_8, window_bounds = array<i64: 1, 8>}, {pipeline_mode = #tpu.pipeline_mode<synchronous>, transform_indices = @transform_9, window_bounds = array<i64: 1, 8>}, {pipeline_mode = #tpu.pipeline_mode<synchronous>, transform_indices = @transform_10, window_bounds = array<i64: 9, 8, 8>}, {pipeline_mode = #tpu.pipeline_mode<synchronous>, transform_indices = @transform_11, window_bounds = array<i64: 1, 8>}, {pipeline_mode = #tpu.pipeline_mode<synchronous>, transform_indices = @transform_12, window_bounds = array<i64: 1, 8>}, {transform_indices = @transform_13, window_bounds = array<i64: 1, 256, 8>}]} {
    %cst = arith.constant 0.000000e+00 : f32
    %0 = vector.broadcast %cst : f32 to vector<18x18x4xf32>
    %c0 = arith.constant 0 : index
    %c0_0 = arith.constant 0 : index
    %c0_1 = arith.constant 0 : index
    %1 = vector.load %arg15[%c0, %c0_0, %c0_1] : memref<18x18x4xf32, #tpu.memory_space<vmem>>, vector<18x18x4xf32>
    tpu.vector_store %arg15[%c0, %c0_0, %c0_1], %0 {strides = array<i32>} : memref<18x18x4xf32, #tpu.memory_space<vmem>>, vector<18x18x4xf32>,
    %c0_2 = arith.constant 0 : index
    %c0_3 = arith.constant 0 : index
    %c0_4 = arith.constant 0 : index
    %c0_5 = arith.constant 0 : index
    %2 = vector.load %arg1[%c0_2, %c0_3, %c0_4, %c0_5] : memref<1x16x16x4xf32, #tpu.memory_space<vmem>>, vector<1x16x16x4xf32>
    %3 = vector.shape_cast %2 : vector<1x16x16x4xf32> to vector<16x16x4xf32>
    %c1 = arith.constant 1 : index
    %c1_6 = arith.constant 1 : index
    %c0_7 = arith.constant 0 : index
    %4 = vector.load %arg15[%c1, %c1_6, %c0_7] : memref<18x18x4xf32, #tpu.memory_space<vmem>>, vector<16x16x4xf32>
    tpu.vector_store %arg15[%c1, %c1_6, %c0_7], %3 {strides = array<i32>} : memref<18x18x4xf32, #tpu.memory_space<vmem>>, vector<16x16x4xf32>,
    %cst_8 = arith.constant 0.000000e+00 : f32
    %5 = vector.broadcast %cst_8 : f32 to vector<256x8xf32>
    %c0_9 = arith.constant 0 : index
    %c0_10 = arith.constant 0 : index
    %c0_11 = arith.constant 0 : index
    %6 = vector.load %arg15[%c0_9, %c0_10, %c0_11] : memref<18x18x4xf32, #tpu.memory_space<vmem>>, vector<16x16x4xf32>
    %7 = vector.shape_cast %6 : vector<16x16x4xf32> to vector<256x4xf32>
    %8 = arith.truncf %7 : vector<256x4xf32> to vector<256x4xbf16>
    %c0_12 = arith.constant 0 : index
    %c0_13 = arith.constant 0 : index
    %c0_14 = arith.constant 0 : index
    %9 = vector.load %arg8[%c0_12, %c0_13, %c0_14] : memref<9x4x8xbf16, #tpu.memory_space<vmem>>, vector<1x4x8xbf16>
    %10 = vector.shape_cast %9 : vector<1x4x8xbf16> to vector<4x8xbf16>
    %cst_15 = arith.constant dense<0.000000e+00> : vector<256x8xf32>
    %11 = tpu.matmul %8, %10, %cst_15 {dimension_numbers = #tpu.dot_dimension_numbers<[1], [0], [0], [1], [0, 0, 1, 1], [], []>} : vector<256x4xbf16>, vector<4x8xbf16>, vector<256x8xf32> -> vector<256x8xf32>
    %12 = arith.addf %5, %11 : vector<256x8xf32>
    %c0_16 = arith.constant 0 : index
    %c1_17 = arith.constant 1 : index
    %c0_18 = arith.constant 0 : index
    %13 = vector.load %arg15[%c0_16, %c1_17, %c0_18] : memref<18x18x4xf32, #tpu.memory_space<vmem>>, vector<16x16x4xf32>
    %14 = vector.shape_cast %13 : vector<16x16x4xf32> to vector<256x4xf32>
    %15 = arith.truncf %14 : vector<256x4xf32> to vector<256x4xbf16>
    %c1_19 = arith.constant 1 : index
    %c0_20 = arith.constant 0 : index
    %c0_21 = arith.constant 0 : index
    %16 = vector.load %arg8[%c1_19, %c0_20, %c0_21] : memref<9x4x8xbf16, #tpu.memory_space<vmem>>, vector<1x4x8xbf16>
    %17 = vector.shape_cast %16 : vector<1x4x8xbf16> to vector<4x8xbf16>
    %cst_22 = arith.constant dense<0.000000e+00> : vector<256x8xf32>
    %18 = tpu.matmul %15, %17, %cst_22 {dimension_numbers = #tpu.dot_dimension_numbers<[1], [0], [0], [1], [0, 0, 1, 1], [], []>} : vector<256x4xbf16>, vector<4x8xbf16>, vector<256x8xf32> -> vector<256x8xf32>
    %19 = arith.addf %12, %18 : vector<256x8xf32>
    %c0_23 = arith.constant 0 : index
    %c2 = arith.constant 2 : index
    %c0_24 = arith.constant 0 : index
    %20 = vector.load %arg15[%c0_23, %c2, %c0_24] : memref<18x18x4xf32, #tpu.memory_space<vmem>>, vector<16x16x4xf32>
    %21 = vector.shape_cast %20 : vector<16x16x4xf32> to vector<256x4xf32>
    %22 = arith.truncf %21 : vector<256x4xf32> to vector<256x4xbf16>
    %c2_25 = arith.constant 2 : index
    %c0_26 = arith.constant 0 : index
    %c0_27 = arith.constant 0 : index
    %23 = vector.load %arg8[%c2_25, %c0_26, %c0_27] : memref<9x4x8xbf16, #tpu.memory_space<vmem>>, vector<1x4x8xbf16>
    %24 = vector.shape_cast %23 : vector<1x4x8xbf16> to vector<4x8xbf16>
    %cst_28 = arith.constant dense<0.000000e+00> : vector<256x8xf32>
    %25 = tpu.matmul %22, %24, %cst_28 {dimension_numbers = #tpu.dot_dimension_numbers<[1], [0], [0], [1], [0, 0, 1, 1], [], []>} : vector<256x4xbf16>, vector<4x8xbf16>, vector<256x8xf32> -> vector<256x8xf32>
    %26 = arith.addf %19, %25 : vector<256x8xf32>
    %c1_29 = arith.constant 1 : index
    %c0_30 = arith.constant 0 : index
    %c0_31 = arith.constant 0 : index
    %27 = vector.load %arg15[%c1_29, %c0_30, %c0_31] : memref<18x18x4xf32, #tpu.memory_space<vmem>>, vector<16x16x4xf32>
    %28 = vector.shape_cast %27 : vector<16x16x4xf32> to vector<256x4xf32>
    %29 = arith.truncf %28 : vector<256x4xf32> to vector<256x4xbf16>
    %c3 = arith.constant 3 : index
    %c0_32 = arith.constant 0 : index
    %c0_33 = arith.constant 0 : index
    %30 = vector.load %arg8[%c3, %c0_32, %c0_33] : memref<9x4x8xbf16, #tpu.memory_space<vmem>>, vector<1x4x8xbf16>
    %31 = vector.shape_cast %30 : vector<1x4x8xbf16> to vector<4x8xbf16>
    %cst_34 = arith.constant dense<0.000000e+00> : vector<256x8xf32>
    %32 = tpu.matmul %29, %31, %cst_34 {dimension_numbers = #tpu.dot_dimension_numbers<[1], [0], [0], [1], [0, 0, 1, 1], [], []>} : vector<256x4xbf16>, vector<4x8xbf16>, vector<256x8xf32> -> vector<256x8xf32>
    %33 = arith.addf %26, %32 : vector<256x8xf32>
    %c1_35 = arith.constant 1 : index
    %c1_36 = arith.constant 1 : index
    %c0_37 = arith.constant 0 : index
    %34 = vector.load %arg15[%c1_35, %c1_36, %c0_37] : memref<18x18x4xf32, #tpu.memory_space<vmem>>, vector<16x16x4xf32>
    %35 = vector.shape_cast %34 : vector<16x16x4xf32> to vector<256x4xf32>
    %36 = arith.truncf %35 : vector<256x4xf32> to vector<256x4xbf16>
    %c4 = arith.constant 4 : index
    %c0_38 = arith.constant 0 : index
    %c0_39 = arith.constant 0 : index
    %37 = vector.load %arg8[%c4, %c0_38, %c0_39] : memref<9x4x8xbf16, #tpu.memory_space<vmem>>, vector<1x4x8xbf16>
    %38 = vector.shape_cast %37 : vector<1x4x8xbf16> to vector<4x8xbf16>
    %cst_40 = arith.constant dense<0.000000e+00> : vector<256x8xf32>
    %39 = tpu.matmul %36, %38, %cst_40 {dimension_numbers = #tpu.dot_dimension_numbers<[1], [0], [0], [1], [0, 0, 1, 1], [], []>} : vector<256x4xbf16>, vector<4x8xbf16>, vector<256x8xf32> -> vector<256x8xf32>
    %40 = arith.addf %33, %39 : vector<256x8xf32>
    %c1_41 = arith.constant 1 : index
    %c2_42 = arith.constant 2 : index
    %c0_43 = arith.constant 0 : index
    %41 = vector.load %arg15[%c1_41, %c2_42, %c0_43] : memref<18x18x4xf32, #tpu.memory_space<vmem>>, vector<16x16x4xf32>
    %42 = vector.shape_cast %41 : vector<16x16x4xf32> to vector<256x4xf32>
    %43 = arith.truncf %42 : vector<256x4xf32> to vector<256x4xbf16>
    %c5 = arith.constant 5 : index
    %c0_44 = arith.constant 0 : index
    %c0_45 = arith.constant 0 : index
    %44 = vector.load %arg8[%c5, %c0_44, %c0_45] : memref<9x4x8xbf16, #tpu.memory_space<vmem>>, vector<1x4x8xbf16>
    %45 = vector.shape_cast %44 : vector<1x4x8xbf16> to vector<4x8xbf16>
    %cst_46 = arith.constant dense<0.000000e+00> : vector<256x8xf32>
    %46 = tpu.matmul %43, %45, %cst_46 {dimension_numbers = #tpu.dot_dimension_numbers<[1], [0], [0], [1], [0, 0, 1, 1], [], []>} : vector<256x4xbf16>, vector<4x8xbf16>, vector<256x8xf32> -> vector<256x8xf32>
    %47 = arith.addf %40, %46 : vector<256x8xf32>
    %c2_47 = arith.constant 2 : index
    %c0_48 = arith.constant 0 : index
    %c0_49 = arith.constant 0 : index
    %48 = vector.load %arg15[%c2_47, %c0_48, %c0_49] : memref<18x18x4xf32, #tpu.memory_space<vmem>>, vector<16x16x4xf32>
    %49 = vector.shape_cast %48 : vector<16x16x4xf32> to vector<256x4xf32>
    %50 = arith.truncf %49 : vector<256x4xf32> to vector<256x4xbf16>
    %c6 = arith.constant 6 : index
    %c0_50 = arith.constant 0 : index
    %c0_51 = arith.constant 0 : index
    %51 = vector.load %arg8[%c6, %c0_50, %c0_51] : memref<9x4x8xbf16, #tpu.memory_space<vmem>>, vector<1x4x8xbf16>
    %52 = vector.shape_cast %51 : vector<1x4x8xbf16> to vector<4x8xbf16>
    %cst_52 = arith.constant dense<0.000000e+00> : vector<256x8xf32>
    %53 = tpu.matmul %50, %52, %cst_52 {dimension_numbers = #tpu.dot_dimension_numbers<[1], [0], [0], [1], [0, 0, 1, 1], [], []>} : vector<256x4xbf16>, vector<4x8xbf16>, vector<256x8xf32> -> vector<256x8xf32>
    %54 = arith.addf %47, %53 : vector<256x8xf32>
    %c2_53 = arith.constant 2 : index
    %c1_54 = arith.constant 1 : index
    %c0_55 = arith.constant 0 : index
    %55 = vector.load %arg15[%c2_53, %c1_54, %c0_55] : memref<18x18x4xf32, #tpu.memory_space<vmem>>, vector<16x16x4xf32>
    %56 = vector.shape_cast %55 : vector<16x16x4xf32> to vector<256x4xf32>
    %57 = arith.truncf %56 : vector<256x4xf32> to vector<256x4xbf16>
    %c7 = arith.constant 7 : index
    %c0_56 = arith.constant 0 : index
    %c0_57 = arith.constant 0 : index
    %58 = vector.load %arg8[%c7, %c0_56, %c0_57] : memref<9x4x8xbf16, #tpu.memory_space<vmem>>, vector<1x4x8xbf16>
    %59 = vector.shape_cast %58 : vector<1x4x8xbf16> to vector<4x8xbf16>
    %cst_58 = arith.constant dense<0.000000e+00> : vector<256x8xf32>
    %60 = tpu.matmul %57, %59, %cst_58 {dimension_numbers = #tpu.dot_dimension_numbers<[1], [0], [0], [1], [0, 0, 1, 1], [], []>} : vector<256x4xbf16>, vector<4x8xbf16>, vector<256x8xf32> -> vector<256x8xf32>
    %61 = arith.addf %54, %60 : vector<256x8xf32>
    %c2_59 = arith.constant 2 : index
    %c2_60 = arith.constant 2 : index
    %c0_61 = arith.constant 0 : index
    %62 = vector.load %arg15[%c2_59, %c2_60, %c0_61] : memref<18x18x4xf32, #tpu.memory_space<vmem>>, vector<16x16x4xf32>
    %63 = vector.shape_cast %62 : vector<16x16x4xf32> to vector<256x4xf32>
    %64 = arith.truncf %63 : vector<256x4xf32> to vector<256x4xbf16>
    %c8 = arith.constant 8 : index
    %c0_62 = arith.constant 0 : index
    %c0_63 = arith.constant 0 : index
    %65 = vector.load %arg8[%c8, %c0_62, %c0_63] : memref<9x4x8xbf16, #tpu.memory_space<vmem>>, vector<1x4x8xbf16>
    %66 = vector.shape_cast %65 : vector<1x4x8xbf16> to vector<4x8xbf16>
    %cst_64 = arith.constant dense<0.000000e+00> : vector<256x8xf32>
    %67 = tpu.matmul %64, %66, %cst_64 {dimension_numbers = #tpu.dot_dimension_numbers<[1], [0], [0], [1], [0, 0, 1, 1], [], []>} : vector<256x4xbf16>, vector<4x8xbf16>, vector<256x8xf32> -> vector<256x8xf32>
    %68 = arith.addf %61, %67 : vector<256x8xf32>
    %c0_65 = arith.constant 0 : index
    %c0_66 = arith.constant 0 : index
    %69 = vector.load %arg9[%c0_65, %c0_66] : memref<1x8xf32, #tpu.memory_space<vmem>>, vector<1x8xf32>
    %70 = vector.broadcast %69 : vector<1x8xf32> to vector<256x8xf32>
    %71 = arith.addf %68, %70 : vector<256x8xf32>
    %c0_67 = arith.constant 0 : index
    %c0_68 = arith.constant 0 : index
    %72 = vector.load %arg10[%c0_67, %c0_68] : memref<1x8xf32, #tpu.memory_space<vmem>>, vector<1x8xf32>
    %c0_69 = arith.constant 0 : index
    %c0_70 = arith.constant 0 : index
    %c0_71 = arith.constant 0 : index
    %73 = vector.load %arg2[%c0_69, %c0_70, %c0_71] : memref<1x256x1xf32, #tpu.memory_space<vmem>>, vector<1x256x1xf32>
    %74 = vector.shape_cast %73 : vector<1x256x1xf32> to vector<256x1xf32>
    %75 = vector.broadcast %72 : vector<1x8xf32> to vector<256x8xf32>
    %76 = vector.broadcast %74 : vector<256x1xf32> to vector<256x8xf32>
    %77 = arith.mulf %75, %76 : vector<256x8xf32>
    %78 = arith.addf %71, %77 : vector<256x8xf32>
    %cst_72 = arith.constant 0.000000e+00 : f32
    %79 = vector.broadcast %cst_72 : f32 to vector<256x8xf32>
    %80 = arith.cmpf oge, %78, %79 : vector<256x8xf32>
    %cst_73 = arith.constant 2.000000e-01 : f32
    %81 = vector.broadcast %cst_73 : f32 to vector<256x8xf32>
    %82 = arith.mulf %81, %78 : vector<256x8xf32>
    %83 = arith.select %80, %78, %82 : vector<256x8xi1>, vector<256x8xf32>
    %c0_74 = arith.constant 0 : index
    %c0_75 = arith.constant 0 : index
    %c0_76 = arith.constant 0 : index
    %84 = vector.load %arg4[%c0_74, %c0_75, %c0_76] : memref<1x1x8xf32, #tpu.memory_space<vmem>>, vector<1x1x8xf32>
    %85 = vector.shape_cast %84 : vector<1x1x8xf32> to vector<1x8xf32>
    %c0_77 = arith.constant 0 : index
    %c0_78 = arith.constant 0 : index
    %c0_79 = arith.constant 0 : index
    %86 = vector.load %arg5[%c0_77, %c0_78, %c0_79] : memref<1x1x8xf32, #tpu.memory_space<vmem>>, vector<1x1x8xf32>
    %87 = vector.shape_cast %86 : vector<1x1x8xf32> to vector<1x8xf32>
    %cst_80 = arith.constant dense<0.000000e+00> : vector<8xf32>
    %88 = vector.multi_reduction <add>, %83, %cst_80 [0] : vector<256x8xf32> to vector<8xf32>
    %89 = vector.shape_cast %88 : vector<8xf32> to vector<1x8xf32>
    %cst_81 = arith.constant 2.560000e+02 : f32
    %90 = vector.broadcast %cst_81 : f32 to vector<1x8xf32>
    %91 = arith.divf %89, %90 : vector<1x8xf32>
    %92 = vector.broadcast %91 : vector<1x8xf32> to vector<256x8xf32>
    %93 = arith.subf %83, %92 : vector<256x8xf32>
    %94 = arith.mulf %93, %93 : vector<256x8xf32>
    %cst_82 = arith.constant dense<0.000000e+00> : vector<8xf32>
    %95 = vector.multi_reduction <add>, %94, %cst_82 [0] : vector<256x8xf32> to vector<8xf32>
    %96 = vector.shape_cast %95 : vector<8xf32> to vector<1x8xf32>
    %cst_83 = arith.constant 2.560000e+02 : f32
    %97 = vector.broadcast %cst_83 : f32 to vector<1x8xf32>
    %98 = arith.divf %96, %97 : vector<1x8xf32>
    %cst_84 = arith.constant 9.99999974E-6 : f32
    %99 = vector.broadcast %cst_84 : f32 to vector<1x8xf32>
    %100 = arith.addf %98, %99 : vector<1x8xf32>
    %101 = math.rsqrt %100 : vector<1x8xf32>
    %102 = arith.mulf %101, %85 : vector<1x8xf32>
    %103 = vector.broadcast %102 : vector<1x8xf32> to vector<256x8xf32>
    %104 = arith.mulf %93, %103 : vector<256x8xf32>
    %105 = vector.broadcast %87 : vector<1x8xf32> to vector<256x8xf32>
    %106 = arith.addf %104, %105 : vector<256x8xf32>
    %cst_85 = arith.constant 0.000000e+00 : f32
    %107 = vector.broadcast %cst_85 : f32 to vector<18x18x8xf32>
    %c0_86 = arith.constant 0 : index
    %c0_87 = arith.constant 0 : index
    %c0_88 = arith.constant 0 : index
    %108 = vector.load %arg16[%c0_86, %c0_87, %c0_88] : memref<18x18x8xf32, #tpu.memory_space<vmem>>, vector<18x18x8xf32>
    tpu.vector_store %arg16[%c0_86, %c0_87, %c0_88], %107 {strides = array<i32>} : memref<18x18x8xf32, #tpu.memory_space<vmem>>, vector<18x18x8xf32>,
    %109 = vector.shape_cast %106 : vector<256x8xf32> to vector<16x16x8xf32>
    %c1_89 = arith.constant 1 : index
    %c1_90 = arith.constant 1 : index
    %c0_91 = arith.constant 0 : index
    %110 = vector.load %arg16[%c1_89, %c1_90, %c0_91] : memref<18x18x8xf32, #tpu.memory_space<vmem>>, vector<16x16x8xf32>
    tpu.vector_store %arg16[%c1_89, %c1_90, %c0_91], %109 {strides = array<i32>} : memref<18x18x8xf32, #tpu.memory_space<vmem>>, vector<16x16x8xf32>,
    %cst_92 = arith.constant 0.000000e+00 : f32
    %111 = vector.broadcast %cst_92 : f32 to vector<256x8xf32>
    %c0_93 = arith.constant 0 : index
    %c0_94 = arith.constant 0 : index
    %c0_95 = arith.constant 0 : index
    %112 = vector.load %arg16[%c0_93, %c0_94, %c0_95] : memref<18x18x8xf32, #tpu.memory_space<vmem>>, vector<16x16x8xf32>
    %113 = vector.shape_cast %112 : vector<16x16x8xf32> to vector<256x8xf32>
    %114 = arith.truncf %113 : vector<256x8xf32> to vector<256x8xbf16>
    %c0_96 = arith.constant 0 : index
    %c0_97 = arith.constant 0 : index
    %c0_98 = arith.constant 0 : index
    %115 = vector.load %arg11[%c0_96, %c0_97, %c0_98] : memref<9x8x8xbf16, #tpu.memory_space<vmem>>, vector<1x8x8xbf16>
    %116 = vector.shape_cast %115 : vector<1x8x8xbf16> to vector<8x8xbf16>
    %cst_99 = arith.constant dense<0.000000e+00> : vector<256x8xf32>
    %117 = tpu.matmul %114, %116, %cst_99 {dimension_numbers = #tpu.dot_dimension_numbers<[1], [0], [0], [1], [0, 0, 1, 1], [], []>} : vector<256x8xbf16>, vector<8x8xbf16>, vector<256x8xf32> -> vector<256x8xf32>
    %118 = arith.addf %111, %117 : vector<256x8xf32>
    %c0_100 = arith.constant 0 : index
    %c1_101 = arith.constant 1 : index
    %c0_102 = arith.constant 0 : index
    %119 = vector.load %arg16[%c0_100, %c1_101, %c0_102] : memref<18x18x8xf32, #tpu.memory_space<vmem>>, vector<16x16x8xf32>
    %120 = vector.shape_cast %119 : vector<16x16x8xf32> to vector<256x8xf32>
    %121 = arith.truncf %120 : vector<256x8xf32> to vector<256x8xbf16>
    %c1_103 = arith.constant 1 : index
    %c0_104 = arith.constant 0 : index
    %c0_105 = arith.constant 0 : index
    %122 = vector.load %arg11[%c1_103, %c0_104, %c0_105] : memref<9x8x8xbf16, #tpu.memory_space<vmem>>, vector<1x8x8xbf16>
    %123 = vector.shape_cast %122 : vector<1x8x8xbf16> to vector<8x8xbf16>
    %cst_106 = arith.constant dense<0.000000e+00> : vector<256x8xf32>
    %124 = tpu.matmul %121, %123, %cst_106 {dimension_numbers = #tpu.dot_dimension_numbers<[1], [0], [0], [1], [0, 0, 1, 1], [], []>} : vector<256x8xbf16>, vector<8x8xbf16>, vector<256x8xf32> -> vector<256x8xf32>
    %125 = arith.addf %118, %124 : vector<256x8xf32>
    %c0_107 = arith.constant 0 : index
    %c2_108 = arith.constant 2 : index
    %c0_109 = arith.constant 0 : index
    %126 = vector.load %arg16[%c0_107, %c2_108, %c0_109] : memref<18x18x8xf32, #tpu.memory_space<vmem>>, vector<16x16x8xf32>
    %127 = vector.shape_cast %126 : vector<16x16x8xf32> to vector<256x8xf32>
    %128 = arith.truncf %127 : vector<256x8xf32> to vector<256x8xbf16>
    %c2_110 = arith.constant 2 : index
    %c0_111 = arith.constant 0 : index
    %c0_112 = arith.constant 0 : index
    %129 = vector.load %arg11[%c2_110, %c0_111, %c0_112] : memref<9x8x8xbf16, #tpu.memory_space<vmem>>, vector<1x8x8xbf16>
    %130 = vector.shape_cast %129 : vector<1x8x8xbf16> to vector<8x8xbf16>
    %cst_113 = arith.constant dense<0.000000e+00> : vector<256x8xf32>
    %131 = tpu.matmul %128, %130, %cst_113 {dimension_numbers = #tpu.dot_dimension_numbers<[1], [0], [0], [1], [0, 0, 1, 1], [], []>} : vector<256x8xbf16>, vector<8x8xbf16>, vector<256x8xf32> -> vector<256x8xf32>
    %132 = arith.addf %125, %131 : vector<256x8xf32>
    %c1_114 = arith.constant 1 : index
    %c0_115 = arith.constant 0 : index
    %c0_116 = arith.constant 0 : index
    %133 = vector.load %arg16[%c1_114, %c0_115, %c0_116] : memref<18x18x8xf32, #tpu.memory_space<vmem>>, vector<16x16x8xf32>
    %134 = vector.shape_cast %133 : vector<16x16x8xf32> to vector<256x8xf32>
    %135 = arith.truncf %134 : vector<256x8xf32> to vector<256x8xbf16>
    %c3_117 = arith.constant 3 : index
    %c0_118 = arith.constant 0 : index
    %c0_119 = arith.constant 0 : index
    %136 = vector.load %arg11[%c3_117, %c0_118, %c0_119] : memref<9x8x8xbf16, #tpu.memory_space<vmem>>, vector<1x8x8xbf16>
    %137 = vector.shape_cast %136 : vector<1x8x8xbf16> to vector<8x8xbf16>
    %cst_120 = arith.constant dense<0.000000e+00> : vector<256x8xf32>
    %138 = tpu.matmul %135, %137, %cst_120 {dimension_numbers = #tpu.dot_dimension_numbers<[1], [0], [0], [1], [0, 0, 1, 1], [], []>} : vector<256x8xbf16>, vector<8x8xbf16>, vector<256x8xf32> -> vector<256x8xf32>
    %139 = arith.addf %132, %138 : vector<256x8xf32>
    %c1_121 = arith.constant 1 : index
    %c1_122 = arith.constant 1 : index
    %c0_123 = arith.constant 0 : index
    %140 = vector.load %arg16[%c1_121, %c1_122, %c0_123] : memref<18x18x8xf32, #tpu.memory_space<vmem>>, vector<16x16x8xf32>
    %141 = vector.shape_cast %140 : vector<16x16x8xf32> to vector<256x8xf32>
    %142 = arith.truncf %141 : vector<256x8xf32> to vector<256x8xbf16>
    %c4_124 = arith.constant 4 : index
    %c0_125 = arith.constant 0 : index
    %c0_126 = arith.constant 0 : index
    %143 = vector.load %arg11[%c4_124, %c0_125, %c0_126] : memref<9x8x8xbf16, #tpu.memory_space<vmem>>, vector<1x8x8xbf16>
    %144 = vector.shape_cast %143 : vector<1x8x8xbf16> to vector<8x8xbf16>
    %cst_127 = arith.constant dense<0.000000e+00> : vector<256x8xf32>
    %145 = tpu.matmul %142, %144, %cst_127 {dimension_numbers = #tpu.dot_dimension_numbers<[1], [0], [0], [1], [0, 0, 1, 1], [], []>} : vector<256x8xbf16>, vector<8x8xbf16>, vector<256x8xf32> -> vector<256x8xf32>
    %146 = arith.addf %139, %145 : vector<256x8xf32>
    %c1_128 = arith.constant 1 : index
    %c2_129 = arith.constant 2 : index
    %c0_130 = arith.constant 0 : index
    %147 = vector.load %arg16[%c1_128, %c2_129, %c0_130] : memref<18x18x8xf32, #tpu.memory_space<vmem>>, vector<16x16x8xf32>
    %148 = vector.shape_cast %147 : vector<16x16x8xf32> to vector<256x8xf32>
    %149 = arith.truncf %148 : vector<256x8xf32> to vector<256x8xbf16>
    %c5_131 = arith.constant 5 : index
    %c0_132 = arith.constant 0 : index
    %c0_133 = arith.constant 0 : index
    %150 = vector.load %arg11[%c5_131, %c0_132, %c0_133] : memref<9x8x8xbf16, #tpu.memory_space<vmem>>, vector<1x8x8xbf16>
    %151 = vector.shape_cast %150 : vector<1x8x8xbf16> to vector<8x8xbf16>
    %cst_134 = arith.constant dense<0.000000e+00> : vector<256x8xf32>
    %152 = tpu.matmul %149, %151, %cst_134 {dimension_numbers = #tpu.dot_dimension_numbers<[1], [0], [0], [1], [0, 0, 1, 1], [], []>} : vector<256x8xbf16>, vector<8x8xbf16>, vector<256x8xf32> -> vector<256x8xf32>
    %153 = arith.addf %146, %152 : vector<256x8xf32>
    %c2_135 = arith.constant 2 : index
    %c0_136 = arith.constant 0 : index
    %c0_137 = arith.constant 0 : index
    %154 = vector.load %arg16[%c2_135, %c0_136, %c0_137] : memref<18x18x8xf32, #tpu.memory_space<vmem>>, vector<16x16x8xf32>
    %155 = vector.shape_cast %154 : vector<16x16x8xf32> to vector<256x8xf32>
    %156 = arith.truncf %155 : vector<256x8xf32> to vector<256x8xbf16>
    %c6_138 = arith.constant 6 : index
    %c0_139 = arith.constant 0 : index
    %c0_140 = arith.constant 0 : index
    %157 = vector.load %arg11[%c6_138, %c0_139, %c0_140] : memref<9x8x8xbf16, #tpu.memory_space<vmem>>, vector<1x8x8xbf16>
    %158 = vector.shape_cast %157 : vector<1x8x8xbf16> to vector<8x8xbf16>
    %cst_141 = arith.constant dense<0.000000e+00> : vector<256x8xf32>
    %159 = tpu.matmul %156, %158, %cst_141 {dimension_numbers = #tpu.dot_dimension_numbers<[1], [0], [0], [1], [0, 0, 1, 1], [], []>} : vector<256x8xbf16>, vector<8x8xbf16>, vector<256x8xf32> -> vector<256x8xf32>
    %160 = arith.addf %153, %159 : vector<256x8xf32>
    %c2_142 = arith.constant 2 : index
    %c1_143 = arith.constant 1 : index
    %c0_144 = arith.constant 0 : index
    %161 = vector.load %arg16[%c2_142, %c1_143, %c0_144] : memref<18x18x8xf32, #tpu.memory_space<vmem>>, vector<16x16x8xf32>
    %162 = vector.shape_cast %161 : vector<16x16x8xf32> to vector<256x8xf32>
    %163 = arith.truncf %162 : vector<256x8xf32> to vector<256x8xbf16>
    %c7_145 = arith.constant 7 : index
    %c0_146 = arith.constant 0 : index
    %c0_147 = arith.constant 0 : index
    %164 = vector.load %arg11[%c7_145, %c0_146, %c0_147] : memref<9x8x8xbf16, #tpu.memory_space<vmem>>, vector<1x8x8xbf16>
    %165 = vector.shape_cast %164 : vector<1x8x8xbf16> to vector<8x8xbf16>
    %cst_148 = arith.constant dense<0.000000e+00> : vector<256x8xf32>
    %166 = tpu.matmul %163, %165, %cst_148 {dimension_numbers = #tpu.dot_dimension_numbers<[1], [0], [0], [1], [0, 0, 1, 1], [], []>} : vector<256x8xbf16>, vector<8x8xbf16>, vector<256x8xf32> -> vector<256x8xf32>
    %167 = arith.addf %160, %166 : vector<256x8xf32>
    %c2_149 = arith.constant 2 : index
    %c2_150 = arith.constant 2 : index
    %c0_151 = arith.constant 0 : index
    %168 = vector.load %arg16[%c2_149, %c2_150, %c0_151] : memref<18x18x8xf32, #tpu.memory_space<vmem>>, vector<16x16x8xf32>
    %169 = vector.shape_cast %168 : vector<16x16x8xf32> to vector<256x8xf32>
    %170 = arith.truncf %169 : vector<256x8xf32> to vector<256x8xbf16>
    %c8_152 = arith.constant 8 : index
    %c0_153 = arith.constant 0 : index
    %c0_154 = arith.constant 0 : index
    %171 = vector.load %arg11[%c8_152, %c0_153, %c0_154] : memref<9x8x8xbf16, #tpu.memory_space<vmem>>, vector<1x8x8xbf16>
    %172 = vector.shape_cast %171 : vector<1x8x8xbf16> to vector<8x8xbf16>
    %cst_155 = arith.constant dense<0.000000e+00> : vector<256x8xf32>
    %173 = tpu.matmul %170, %172, %cst_155 {dimension_numbers = #tpu.dot_dimension_numbers<[1], [0], [0], [1], [0, 0, 1, 1], [], []>} : vector<256x8xbf16>, vector<8x8xbf16>, vector<256x8xf32> -> vector<256x8xf32>
    %174 = arith.addf %167, %173 : vector<256x8xf32>
    %c0_156 = arith.constant 0 : index
    %c0_157 = arith.constant 0 : index
    %175 = vector.load %arg12[%c0_156, %c0_157] : memref<1x8xf32, #tpu.memory_space<vmem>>, vector<1x8xf32>
    %176 = vector.broadcast %175 : vector<1x8xf32> to vector<256x8xf32>
    %177 = arith.addf %174, %176 : vector<256x8xf32>
    %c0_158 = arith.constant 0 : index
    %c0_159 = arith.constant 0 : index
    %178 = vector.load %arg13[%c0_158, %c0_159] : memref<1x8xf32, #tpu.memory_space<vmem>>, vector<1x8xf32>
    %c0_160 = arith.constant 0 : index
    %c0_161 = arith.constant 0 : index
    %c0_162 = arith.constant 0 : index
    %179 = vector.load %arg3[%c0_160, %c0_161, %c0_162] : memref<1x256x1xf32, #tpu.memory_space<vmem>>, vector<1x256x1xf32>
    %180 = vector.shape_cast %179 : vector<1x256x1xf32> to vector<256x1xf32>
    %181 = vector.broadcast %178 : vector<1x8xf32> to vector<256x8xf32>
    %182 = vector.broadcast %180 : vector<256x1xf32> to vector<256x8xf32>
    %183 = arith.mulf %181, %182 : vector<256x8xf32>
    %184 = arith.addf %177, %183 : vector<256x8xf32>
    %cst_163 = arith.constant 0.000000e+00 : f32
    %185 = vector.broadcast %cst_163 : f32 to vector<256x8xf32>
    %186 = arith.cmpf oge, %184, %185 : vector<256x8xf32>
    %cst_164 = arith.constant 2.000000e-01 : f32
    %187 = vector.broadcast %cst_164 : f32 to vector<256x8xf32>
    %188 = arith.mulf %187, %184 : vector<256x8xf32>
    %189 = arith.select %186, %184, %188 : vector<256x8xi1>, vector<256x8xf32>
    %c0_165 = arith.constant 0 : index
    %c0_166 = arith.constant 0 : index
    %c0_167 = arith.constant 0 : index
    %190 = vector.load %arg6[%c0_165, %c0_166, %c0_167] : memref<1x1x8xf32, #tpu.memory_space<vmem>>, vector<1x1x8xf32>
    %191 = vector.shape_cast %190 : vector<1x1x8xf32> to vector<1x8xf32>
    %c0_168 = arith.constant 0 : index
    %c0_169 = arith.constant 0 : index
    %c0_170 = arith.constant 0 : index
    %192 = vector.load %arg7[%c0_168, %c0_169, %c0_170] : memref<1x1x8xf32, #tpu.memory_space<vmem>>, vector<1x1x8xf32>
    %193 = vector.shape_cast %192 : vector<1x1x8xf32> to vector<1x8xf32>
    %cst_171 = arith.constant dense<0.000000e+00> : vector<8xf32>
    %194 = vector.multi_reduction <add>, %189, %cst_171 [0] : vector<256x8xf32> to vector<8xf32>
    %195 = vector.shape_cast %194 : vector<8xf32> to vector<1x8xf32>
    %cst_172 = arith.constant 2.560000e+02 : f32
    %196 = vector.broadcast %cst_172 : f32 to vector<1x8xf32>
    %197 = arith.divf %195, %196 : vector<1x8xf32>
    %198 = vector.broadcast %197 : vector<1x8xf32> to vector<256x8xf32>
    %199 = arith.subf %189, %198 : vector<256x8xf32>
    %200 = arith.mulf %199, %199 : vector<256x8xf32>
    %cst_173 = arith.constant dense<0.000000e+00> : vector<8xf32>
    %201 = vector.multi_reduction <add>, %200, %cst_173 [0] : vector<256x8xf32> to vector<8xf32>
    %202 = vector.shape_cast %201 : vector<8xf32> to vector<1x8xf32>
    %cst_174 = arith.constant 2.560000e+02 : f32
    %203 = vector.broadcast %cst_174 : f32 to vector<1x8xf32>
    %204 = arith.divf %202, %203 : vector<1x8xf32>
    %cst_175 = arith.constant 9.99999974E-6 : f32
    %205 = vector.broadcast %cst_175 : f32 to vector<1x8xf32>
    %206 = arith.addf %204, %205 : vector<1x8xf32>
    %207 = math.rsqrt %206 : vector<1x8xf32>
    %208 = arith.mulf %207, %191 : vector<1x8xf32>
    %209 = vector.broadcast %208 : vector<1x8xf32> to vector<256x8xf32>
    %210 = arith.mulf %199, %209 : vector<256x8xf32>
    %211 = vector.broadcast %193 : vector<1x8xf32> to vector<256x8xf32>
    %212 = arith.addf %210, %211 : vector<256x8xf32>
    %c0_176 = arith.constant 0 : index
    %c0_177 = arith.constant 0 : index
    %c0_178 = arith.constant 0 : index
    %213 = vector.load %arg14[%c0_176, %c0_177, %c0_178] : memref<1x256x8xf32, #tpu.memory_space<vmem>>, vector<1x256x8xf32>
    %214 = vector.shape_cast %213 : vector<1x256x8xf32> to vector<256x8xf32>
    %215 = vector.shape_cast %212 : vector<256x8xf32> to vector<1x256x8xf32>
    tpu.vector_store %arg14[%c0_176, %c0_177, %c0_178], %215 {strides = array<i32>} : memref<1x256x8xf32, #tpu.memory_space<vmem>>, vector<1x256x8xf32>,
    return
  }
  func.func @transform_0(%arg0: i32) -> (i32, i32, i32, i32) {
    %c0_i32 = arith.constant 0 : i32
    %c0_i32_0 = arith.constant 0 : i32
    %c0_i32_1 = arith.constant 0 : i32
    %c0_i32_2 = arith.constant 0 : i32
    return %arg0, %c0_i32, %c0_i32_0, %c0_i32_1 : i32, i32, i32, i32
  }
  func.func @transform_1(%arg0: i32) -> (i32, i32, i32) {
    %c0_i32 = arith.constant 0 : i32
    %c0_i32_0 = arith.constant 0 : i32
    %c0_i32_1 = arith.constant 0 : i32
    return %arg0, %c0_i32, %c0_i32_0 : i32, i32, i32
  }
  func.func @transform_2(%arg0: i32) -> (i32, i32, i32) {
    %c0_i32 = arith.constant 0 : i32
    %c0_i32_0 = arith.constant 0 : i32
    %c0_i32_1 = arith.constant 0 : i32
    return %arg0, %c0_i32, %c0_i32_0 : i32, i32, i32
  }
  func.func @transform_3(%arg0: i32) -> (i32, i32, i32) {
    %c0_i32 = arith.constant 0 : i32
    %c0_i32_0 = arith.constant 0 : i32
    %c0_i32_1 = arith.constant 0 : i32
    return %arg0, %c0_i32, %c0_i32_0 : i32, i32, i32
  }
  func.func @transform_4(%arg0: i32) -> (i32, i32, i32) {
    %c0_i32 = arith.constant 0 : i32
    %c0_i32_0 = arith.constant 0 : i32
    %c0_i32_1 = arith.constant 0 : i32
    return %arg0, %c0_i32, %c0_i32_0 : i32, i32, i32
  }
  func.func @transform_5(%arg0: i32) -> (i32, i32, i32) {
    %c0_i32 = arith.constant 0 : i32
    %c0_i32_0 = arith.constant 0 : i32
    %c0_i32_1 = arith.constant 0 : i32
    return %arg0, %c0_i32, %c0_i32_0 : i32, i32, i32
  }
  func.func @transform_6(%arg0: i32) -> (i32, i32, i32) {
    %c0_i32 = arith.constant 0 : i32
    %c0_i32_0 = arith.constant 0 : i32
    %c0_i32_1 = arith.constant 0 : i32
    return %arg0, %c0_i32, %c0_i32_0 : i32, i32, i32
  }
  func.func @transform_7(%arg0: i32) -> (i32, i32, i32) {
    %c0_i32 = arith.constant 0 : i32
    %c0_i32_0 = arith.constant 0 : i32
    %c0_i32_1 = arith.constant 0 : i32
    %c0_i32_2 = arith.constant 0 : i32
    return %c0_i32, %c0_i32_0, %c0_i32_1 : i32, i32, i32
  }
  func.func @transform_8(%arg0: i32) -> (i32, i32) {
    %c0_i32 = arith.constant 0 : i32
    %c0_i32_0 = arith.constant 0 : i32
    %c0_i32_1 = arith.constant 0 : i32
    return %c0_i32, %c0_i32_0 : i32, i32
  }
  func.func @transform_9(%arg0: i32) -> (i32, i32) {
    %c0_i32 = arith.constant 0 : i32
    %c0_i32_0 = arith.constant 0 : i32
    %c0_i32_1 = arith.constant 0 : i32
    return %c0_i32, %c0_i32_0 : i32, i32
  }
  func.func @transform_10(%arg0: i32) -> (i32, i32, i32) {
    %c0_i32 = arith.constant 0 : i32
    %c0_i32_0 = arith.constant 0 : i32
    %c0_i32_1 = arith.constant 0 : i32
    %c0_i32_2 = arith.constant 0 : i32
    return %c0_i32, %c0_i32_0, %c0_i32_1 : i32, i32, i32
  }
  func.func @transform_11(%arg0: i32) -> (i32, i32) {
    %c0_i32 = arith.constant 0 : i32
    %c0_i32_0 = arith.constant 0 : i32
    %c0_i32_1 = arith.constant 0 : i32
    return %c0_i32, %c0_i32_0 : i32, i32
  }
  func.func @transform_12(%arg0: i32) -> (i32, i32) {
    %c0_i32 = arith.constant 0 : i32
    %c0_i32_0 = arith.constant 0 : i32
    %c0_i32_1 = arith.constant 0 : i32
    return %c0_i32, %c0_i32_0 : i32, i32
  }
  func.func @transform_13(%arg0: i32) -> (i32, i32, i32) {
    %c0_i32 = arith.constant 0 : i32
    %c0_i32_0 = arith.constant 0 : i32
    %c0_i32_1 = arith.constant 0 : i32
    return %arg0, %c0_i32, %c0_i32_0 : i32, i32, i32
  }
}

</mosaic_0001>

<llo_original>
// kernel: gen_block.1
$region0: #{gen_block.1}
  #allocation0 [shape = 'u32[]', space=smem, size = 0x4, offset = 0x4, fixed_abs, tag = 'smem constant byte address 0x4 - core index']
  #allocation1 [shape = 'u32[144,128]{1,0:T(1,128)}', space=vmem, size = 0x12000, scoped, tag = 'internal scratch']
  #allocation2 [shape = 'f32[18,18,4]{2,1,0:T(8,128)}', space=vmem, size = 0x36000, scoped, tag = 'scratch operand']
  #allocation3 [shape = 'f32[18,18,8]{2,1,0:T(8,128)}', space=vmem, size = 0x36000, scoped, tag = 'scratch operand']
  %s0 = inlined_call_operand.hbm [shape: f32[2,16,16,4], index: 0, kind: input, shape index: {}]
  %s1 = inlined_call_operand.hbm [shape: f32[2,256,1], index: 1, kind: input, shape index: {}]
  %s2 = inlined_call_operand.hbm [shape: f32[2,256,1], index: 2, kind: input, shape index: {}]
  %s3 = inlined_call_operand.hbm [shape: f32[2,1,8], index: 3, kind: input, shape index: {}]
  %s4 = inlined_call_operand.hbm [shape: f32[2,1,8], index: 4, kind: input, shape index: {}]
  %s5 = inlined_call_operand.hbm [shape: f32[2,1,8], index: 5, kind: input, shape index: {}]
  %s6 = inlined_call_operand.hbm [shape: f32[2,1,8], index: 6, kind: input, shape index: {}]
  %s7 = inlined_call_operand.hbm [shape: bf16[9,4,8], index: 7, kind: input, shape index: {}]
  %s8 = inlined_call_operand.hbm [shape: f32[1,8], index: 8, kind: input, shape index: {}]
  %s9 = inlined_call_operand.hbm [shape: f32[1,8], index: 9, kind: input, shape index: {}]
  %s10 = inlined_call_operand.hbm [shape: bf16[9,8,8], index: 10, kind: input, shape index: {}]
  %s11 = inlined_call_operand.hbm [shape: f32[1,8], index: 11, kind: input, shape index: {}]
  %s12 = inlined_call_operand.hbm [shape: f32[1,8], index: 12, kind: input, shape index: {}]
  %s13 = inlined_call_operand.hbm [shape: f32[2,256,8], index: 13, kind: output, shape index: {}]
  %s14 = sld [smem:[#allocation0]]
  $region137: #{gen_block.1} parent=0
    _
  %s16 = ssub.s32 1, %s14
  %s17 = scalar_select 0, %s16, %s14
  $region1: #{gen_block.1} parent=0
    #allocation4 [shape = 'u8[262144]{0}', space=vmem, size = 0x40000, scoped, tag = 'input window, operand 0']
    #allocation5 [shape = 's32[2]{0}', space=sflag, size = 0x8, scoped, tag = 'scoped memory for gen_block.1']
    #allocation6 [shape = 's32[2]{0}', space=sflag, size = 0x8, scoped, tag = 'scoped memory for gen_block.1']
    #allocation7 [shape = 'u8[262144]{0}', space=vmem, size = 0x40000, scoped, tag = 'input window, operand 1']
    #allocation8 [shape = 's32[2]{0}', space=sflag, size = 0x8, scoped, tag = 'scoped memory for gen_block.1']
    #allocation9 [shape = 'u8[262144]{0}', space=vmem, size = 0x40000, scoped, tag = 'input window, operand 2']
    #allocation10 [shape = 'u8[1024]{0}', space=vmem, size = 0x400, scoped, tag = 'input window, operand 3']
    #allocation11 [shape = 's32[2]{0}', space=sflag, size = 0x8, scoped, tag = 'scoped memory for gen_block.1']
    #allocation12 [shape = 'u8[1024]{0}', space=vmem, size = 0x400, scoped, tag = 'input window, operand 4']
    #allocation13 [shape = 'u8[1024]{0}', space=vmem, size = 0x400, scoped, tag = 'input window, operand 5']
    #allocation14 [shape = 's32[2]{0}', space=sflag, size = 0x8, scoped, tag = 'scoped memory for gen_block.1']
    #allocation15 [shape = 'u8[1024]{0}', space=vmem, size = 0x400, scoped, tag = 'input window, operand 6']
    #allocation16 [shape = 'u8[9216]{0}', space=vmem, size = 0x2400, scoped, tag = 'input window, operand 7, single buffered']
    #allocation17 [shape = 's32[1]{0}', space=sflag, size = 0x4, scoped, tag = 'scoped memory for gen_block.1']
    #allocation18 [shape = 'u8[512]{0}', space=vmem, size = 0x400, scoped, tag = 'input window, operand 8, single buffered']
    #allocation19 [shape = 'u8[512]{0}', space=vmem, size = 0x400, scoped, tag = 'input window, operand 9, single buffered']
    #allocation20 [shape = 's32[1]{0}', space=sflag, size = 0x4, scoped, tag = 'scoped memory for gen_block.1']
    #allocation21 [shape = 'u8[18432]{0}', space=vmem, size = 0x4800, scoped, tag = 'input window, operand 10, single buffered']
    #allocation22 [shape = 'u8[512]{0}', space=vmem, size = 0x400, scoped, tag = 'input window, operand 11, single buffered']
    #allocation23 [shape = 's32[1]{0}', space=sflag, size = 0x4, scoped, tag = 'scoped memory for gen_block.1']
    #allocation24 [shape = 'u8[512]{0}', space=vmem, size = 0x400, scoped, tag = 'input window, operand 12, single buffered']
    #allocation25 [shape = 'u8[262144]{0}', space=vmem, size = 0x40000, scoped, tag = 'output window, operand 0']
    %18 = vsyncpa [#allocation5], 0
    %s19 = scalar_lea.sflag [#allocation5], 1
    %20 = vsyncpa %s19, 0
    %21 = vsyncpa [#allocation8], 0
    %s22 = scalar_lea.sflag [#allocation8], 1
    %23 = vsyncpa %s22, 0
    %24 = vsyncpa [#allocation11], 0
    %s25 = scalar_lea.sflag [#allocation11], 1
    %26 = vsyncpa %s25, 0
    %27 = vsyncpa [#allocation14], 0
    %s28 = scalar_lea.sflag [#allocation14], 1
    %29 = vsyncpa %s28, 0
    %30 = vsyncpa [#allocation17], 0
    %31 = vsyncpa [#allocation20], 0
    %32 = vsyncpa [#allocation23], 0
    %33 = vsyncpa [#allocation6], 0
    %s34 = scalar_lea.sflag [#allocation6], 1
    %35 = vsyncpa %s34, 0
    loop: start=0, step=1, limit=4
    $region2: #{gen_block.1} parent=1 // loop_pre_header
      _
    $region3: #{gen_block.1} parent=1 // loop_header
      %s37 = sphi 0, %s41
      %p38 = scmp.ge.s32.totalorder %s37, 4
      %s47 = sphi 0, %s49
      %s50 = sphi 0, %s47
      %s51 = sphi 0, %s50
      %s67 = sphi 0, %s51
      %s73 = sphi 0, %s75
      %s76 = sphi 0, %s73
      %s77 = sphi 0, %s76
      %s93 = sphi 0, %s77
      %s99 = sphi 0, %s101
      %s102 = sphi 0, %s99
      %s103 = sphi 0, %s102
      %s119 = sphi 0, %s103
      %s125 = sphi 0, %s127
      %s128 = sphi 0, %s125
      %s129 = sphi 0, %s128
      %s145 = sphi 0, %s129
      %s151 = sphi 0, %s153
      %s154 = sphi 0, %s151
      %s155 = sphi 0, %s154
      %s171 = sphi 0, %s155
      %s177 = sphi 0, %s179
      %s180 = sphi 0, %s177
      %s181 = sphi 0, %s180
      %s197 = sphi 0, %s181
      %s203 = sphi 0, %s205
      %s206 = sphi 0, %s203
      %s207 = sphi 0, %s206
      %s223 = sphi 0, %s207
      %s227 = sphi 0, %s227
      %s229 = sphi 0, %s227
      %s230 = sphi 0, %s229
      %s244 = sphi 0, %s230
      %s248 = sphi 0, %s248
      %s250 = sphi 0, %s248
      %s251 = sphi 0, %s250
      %s265 = sphi 0, %s251
      %s269 = sphi 0, %s269
      %s271 = sphi 0, %s269
      %s272 = sphi 0, %s271
      %s286 = sphi 0, %s272
      %s290 = sphi 0, %s290
      %s292 = sphi 0, %s290
      %s293 = sphi 0, %s292
      %s307 = sphi 0, %s293
      %s311 = sphi 0, %s311
      %s313 = sphi 0, %s311
      %s314 = sphi 0, %s313
      %s328 = sphi 0, %s314
      %s332 = sphi 0, %s332
      %s334 = sphi 0, %s332
      %s335 = sphi 0, %s334
      %s349 = sphi 0, %s335
      %s355 = sphi 0, %s357
      %s358 = sphi 0, %s355
      %s359 = sphi 0, %s358
      %s375 = sphi 0, %s359
    $region4: #{gen_block.1} parent=1 // loop_header_branch
      %40 = sbr.rel (%p38) target = $region8
    $region5: #{gen_block.1} parent=1 // loop_body
      %s42 = ssub.s32 %s37, 1
      %s43 = ssub.s32 %s37, 2
      %s44 = sadd.s32 %s37, 1
      %s45 = ssub.s32 %s37, %s44
      %p46 = scmp.eq.s32.totalorder %s45, 0
      %s48 = sadd.s32 %s47, 1
      %s49 = scalar_select %p46, %s47, %s48
      %p52 = pneg %p46
      %p53 = scmp.eq.s32.totalorder %s37, 1
      %p54 = por %p52, %p53
      %p55 = scmp.ne.s32.totalorder %s47, %s50
      %p56 = scmp.eq.s32.totalorder %s37, 0
      %p57 = por %p55, %p56
      %p58 = scmp.ne.s32.totalorder %s47, %s50
      %p59 = scmp.eq.s32.totalorder %s42, 1
      %p60 = por %p58, %p59
      %p61 = scmp.ne.s32.totalorder %s50, %s51
      %p62 = scmp.eq.s32.totalorder %s42, 0
      %p63 = por %p61, %p62
      %p64 = scmp.ne.s32.totalorder %s50, %s51
      %p65 = scmp.eq.s32.totalorder %s43, 1
      %p66 = por %p64, %p65
      %p68 = scmp.ne.s32.totalorder %s51, %s67
      %p69 = scmp.eq.s32.totalorder %s43, 0
      %p70 = por %p68, %p69
      %s71 = ssub.s32 %s37, %s44
      %p72 = scmp.eq.s32.totalorder %s71, 0
      %s74 = sadd.s32 %s73, 1
      %s75 = scalar_select %p72, %s73, %s74
      %p78 = pneg %p72
      %p79 = scmp.eq.s32.totalorder %s37, 1
      %p80 = por %p78, %p79
      %p81 = scmp.ne.s32.totalorder %s73, %s76
      %p82 = scmp.eq.s32.totalorder %s37, 0
      %p83 = por %p81, %p82
      %p84 = scmp.ne.s32.totalorder %s73, %s76
      %p85 = scmp.eq.s32.totalorder %s42, 1
      %p86 = por %p84, %p85
      %p87 = scmp.ne.s32.totalorder %s76, %s77
      %p88 = scmp.eq.s32.totalorder %s42, 0
      %p89 = por %p87, %p88
      %p90 = scmp.ne.s32.totalorder %s76, %s77
      %p91 = scmp.eq.s32.totalorder %s43, 1
      %p92 = por %p90, %p91
      %p94 = scmp.ne.s32.totalorder %s77, %s93
      %p95 = scmp.eq.s32.totalorder %s43, 0
      %p96 = por %p94, %p95
      %s97 = ssub.s32 %s37, %s44
      %p98 = scmp.eq.s32.totalorder %s97, 0
      %s100 = sadd.s32 %s99, 1
      %s101 = scalar_select %p98, %s99, %s100
      %p104 = pneg %p98
      %p105 = scmp.eq.s32.totalorder %s37, 1
      %p106 = por %p104, %p105
      %p107 = scmp.ne.s32.totalorder %s99, %s102
      %p108 = scmp.eq.s32.totalorder %s37, 0
      %p109 = por %p107, %p108
      %p110 = scmp.ne.s32.totalorder %s99, %s102
      %p111 = scmp.eq.s32.totalorder %s42, 1
      %p112 = por %p110, %p111
      %p113 = scmp.ne.s32.totalorder %s102, %s103
      %p114 = scmp.eq.s32.totalorder %s42, 0
      %p115 = por %p113, %p114
      %p116 = scmp.ne.s32.totalorder %s102, %s103
      %p117 = scmp.eq.s32.totalorder %s43, 1
      %p118 = por %p116, %p117
      %p120 = scmp.ne.s32.totalorder %s103, %s119
      %p121 = scmp.eq.s32.totalorder %s43, 0
      %p122 = por %p120, %p121
      %s123 = ssub.s32 %s37, %s44
      %p124 = scmp.eq.s32.totalorder %s123, 0
      %s126 = sadd.s32 %s125, 1
      %s127 = scalar_select %p124, %s125, %s126
      %p130 = pneg %p124
      %p131 = scmp.eq.s32.totalorder %s37, 1
      %p132 = por %p130, %p131
      %p133 = scmp.ne.s32.totalorder %s125, %s128
      %p134 = scmp.eq.s32.totalorder %s37, 0
      %p135 = por %p133, %p134
      %p136 = scmp.ne.s32.totalorder %s125, %s128
      %p137 = scmp.eq.s32.totalorder %s42, 1
      %p138 = por %p136, %p137
      %p139 = scmp.ne.s32.totalorder %s128, %s129
      %p140 = scmp.eq.s32.totalorder %s42, 0
      %p141 = por %p139, %p140
      %p142 = scmp.ne.s32.totalorder %s128, %s129
      %p143 = scmp.eq.s32.totalorder %s43, 1
      %p144 = por %p142, %p143
      %p146 = scmp.ne.s32.totalorder %s129, %s145
      %p147 = scmp.eq.s32.totalorder %s43, 0
      %p148 = por %p146, %p147
      %s149 = ssub.s32 %s37, %s44
      %p150 = scmp.eq.s32.totalorder %s149, 0
      %s152 = sadd.s32 %s151, 1
      %s153 = scalar_select %p150, %s151, %s152
      %p156 = pneg %p150
      %p157 = scmp.eq.s32.totalorder %s37, 1
      %p158 = por %p156, %p157
      %p159 = scmp.ne.s32.totalorder %s151, %s154
      %p160 = scmp.eq.s32.totalorder %s37, 0
      %p161 = por %p159, %p160
      %p162 = scmp.ne.s32.totalorder %s151, %s154
      %p163 = scmp.eq.s32.totalorder %s42, 1
      %p164 = por %p162, %p163
      %p165 = scmp.ne.s32.totalorder %s154, %s155
      %p166 = scmp.eq.s32.totalorder %s42, 0
      %p167 = por %p165, %p166
      %p168 = scmp.ne.s32.totalorder %s154, %s155
      %p169 = scmp.eq.s32.totalorder %s43, 1
      %p170 = por %p168, %p169
      %p172 = scmp.ne.s32.totalorder %s155, %s171
      %p173 = scmp.eq.s32.totalorder %s43, 0
      %p174 = por %p172, %p173
      %s175 = ssub.s32 %s37, %s44
      %p176 = scmp.eq.s32.totalorder %s175, 0
      %s178 = sadd.s32 %s177, 1
      %s179 = scalar_select %p176, %s177, %s178
      %p182 = pneg %p176
      %p183 = scmp.eq.s32.totalorder %s37, 1
      %p184 = por %p182, %p183
      %p185 = scmp.ne.s32.totalorder %s177, %s180
      %p186 = scmp.eq.s32.totalorder %s37, 0
      %p187 = por %p185, %p186
      %p188 = scmp.ne.s32.totalorder %s177, %s180
      %p189 = scmp.eq.s32.totalorder %s42, 1
      %p190 = por %p188, %p189
      %p191 = scmp.ne.s32.totalorder %s180, %s181
      %p192 = scmp.eq.s32.totalorder %s42, 0
      %p193 = por %p191, %p192
      %p194 = scmp.ne.s32.totalorder %s180, %s181
      %p195 = scmp.eq.s32.totalorder %s43, 1
      %p196 = por %p194, %p195
      %p198 = scmp.ne.s32.totalorder %s181, %s197
      %p199 = scmp.eq.s32.totalorder %s43, 0
      %p200 = por %p198, %p199
      %s201 = ssub.s32 %s37, %s44
      %p202 = scmp.eq.s32.totalorder %s201, 0
      %s204 = sadd.s32 %s203, 1
      %s205 = scalar_select %p202, %s203, %s204
      %p208 = pneg %p202
      %p209 = scmp.eq.s32.totalorder %s37, 1
      %p210 = por %p208, %p209
      %p211 = scmp.ne.s32.totalorder %s203, %s206
      %p212 = scmp.eq.s32.totalorder %s37, 0
      %p213 = por %p211, %p212
      %p214 = scmp.ne.s32.totalorder %s203, %s206
      %p215 = scmp.eq.s32.totalorder %s42, 1
      %p216 = por %p214, %p215
      %p217 = scmp.ne.s32.totalorder %s206, %s207
      %p218 = scmp.eq.s32.totalorder %s42, 0
      %p219 = por %p217, %p218
      %p220 = scmp.ne.s32.totalorder %s206, %s207
      %p221 = scmp.eq.s32.totalorder %s43, 1
      %p222 = por %p220, %p221
      %p224 = scmp.ne.s32.totalorder %s207, %s223
      %p225 = scmp.eq.s32.totalorder %s43, 0
      %p226 = por %p224, %p225
      %s228 = sadd.s32 %s227, 1
      %p231 = scmp.eq.s32.totalorder %s37, 1
      %p232 = scmp.ne.s32.totalorder %s227, %s229
      %p233 = scmp.eq.s32.totalorder %s37, 0
      %p234 = por %p232, %p233
      %p235 = scmp.ne.s32.totalorder %s227, %s229
      %p236 = scmp.eq.s32.totalorder %s42, 1
      %p237 = por %p235, %p236
      %p238 = scmp.ne.s32.totalorder %s229, %s230
      %p239 = scmp.eq.s32.totalorder %s42, 0
      %p240 = por %p238, %p239
      %p241 = scmp.ne.s32.totalorder %s229, %s230
      %p242 = scmp.eq.s32.totalorder %s43, 1
      %p243 = por %p241, %p242
      %p245 = scmp.ne.s32.totalorder %s230, %s244
      %p246 = scmp.eq.s32.totalorder %s43, 0
      %p247 = por %p245, %p246
      %s249 = sadd.s32 %s248, 1
      %p252 = scmp.eq.s32.totalorder %s37, 1
      %p253 = scmp.ne.s32.totalorder %s248, %s250
      %p254 = scmp.eq.s32.totalorder %s37, 0
      %p255 = por %p253, %p254
      %p256 = scmp.ne.s32.totalorder %s248, %s250
      %p257 = scmp.eq.s32.totalorder %s42, 1
      %p258 = por %p256, %p257
      %p259 = scmp.ne.s32.totalorder %s250, %s251
      %p260 = scmp.eq.s32.totalorder %s42, 0
      %p261 = por %p259, %p260
      %p262 = scmp.ne.s32.totalorder %s250, %s251
      %p263 = scmp.eq.s32.totalorder %s43, 1
      %p264 = por %p262, %p263
      %p266 = scmp.ne.s32.totalorder %s251, %s265
      %p267 = scmp.eq.s32.totalorder %s43, 0
      %p268 = por %p266, %p267
      %s270 = sadd.s32 %s269, 1
      %p273 = scmp.eq.s32.totalorder %s37, 1
      %p274 = scmp.ne.s32.totalorder %s269, %s271
      %p275 = scmp.eq.s32.totalorder %s37, 0
      %p276 = por %p274, %p275
      %p277 = scmp.ne.s32.totalorder %s269, %s271
      %p278 = scmp.eq.s32.totalorder %s42, 1
      %p279 = por %p277, %p278
      %p280 = scmp.ne.s32.totalorder %s271, %s272
      %p281 = scmp.eq.s32.totalorder %s42, 0
      %p282 = por %p280, %p281
      %p283 = scmp.ne.s32.totalorder %s271, %s272
      %p284 = scmp.eq.s32.totalorder %s43, 1
      %p285 = por %p283, %p284
      %p287 = scmp.ne.s32.totalorder %s272, %s286
      %p288 = scmp.eq.s32.totalorder %s43, 0
      %p289 = por %p287, %p288
      %s291 = sadd.s32 %s290, 1
      %p294 = scmp.eq.s32.totalorder %s37, 1
      %p295 = scmp.ne.s32.totalorder %s290, %s292
      %p296 = scmp.eq.s32.totalorder %s37, 0
      %p297 = por %p295, %p296
      %p298 = scmp.ne.s32.totalorder %s290, %s292
      %p299 = scmp.eq.s32.totalorder %s42, 1
      %p300 = por %p298, %p299
      %p301 = scmp.ne.s32.totalorder %s292, %s293
      %p302 = scmp.eq.s32.totalorder %s42, 0
      %p303 = por %p301, %p302
      %p304 = scmp.ne.s32.totalorder %s292, %s293
      %p305 = scmp.eq.s32.totalorder %s43, 1
      %p306 = por %p304, %p305
      %p308 = scmp.ne.s32.totalorder %s293, %s307
      %p309 = scmp.eq.s32.totalorder %s43, 0
      %p310 = por %p308, %p309
      %s312 = sadd.s32 %s311, 1
      %p315 = scmp.eq.s32.totalorder %s37, 1
      %p316 = scmp.ne.s32.totalorder %s311, %s313
      %p317 = scmp.eq.s32.totalorder %s37, 0
      %p318 = por %p316, %p317
      %p319 = scmp.ne.s32.totalorder %s311, %s313
      %p320 = scmp.eq.s32.totalorder %s42, 1
      %p321 = por %p319, %p320
      %p322 = scmp.ne.s32.totalorder %s313, %s314
      %p323 = scmp.eq.s32.totalorder %s42, 0
      %p324 = por %p322, %p323
      %p325 = scmp.ne.s32.totalorder %s313, %s314
      %p326 = scmp.eq.s32.totalorder %s43, 1
      %p327 = por %p325, %p326
      %p329 = scmp.ne.s32.totalorder %s314, %s328
      %p330 = scmp.eq.s32.totalorder %s43, 0
      %p331 = por %p329, %p330
      %s333 = sadd.s32 %s332, 1
      %p336 = scmp.eq.s32.totalorder %s37, 1
      %p337 = scmp.ne.s32.totalorder %s332, %s334
      %p338 = scmp.eq.s32.totalorder %s37, 0
      %p339 = por %p337, %p338
      %p340 = scmp.ne.s32.totalorder %s332, %s334
      %p341 = scmp.eq.s32.totalorder %s42, 1
      %p342 = por %p340, %p341
      %p343 = scmp.ne.s32.totalorder %s334, %s335
      %p344 = scmp.eq.s32.totalorder %s42, 0
      %p345 = por %p343, %p344
      %p346 = scmp.ne.s32.totalorder %s334, %s335
      %p347 = scmp.eq.s32.totalorder %s43, 1
      %p348 = por %p346, %p347
      %p350 = scmp.ne.s32.totalorder %s335, %s349
      %p351 = scmp.eq.s32.totalorder %s43, 0
      %p352 = por %p350, %p351
      %s353 = ssub.s32 %s37, %s44
      %p354 = scmp.eq.s32.totalorder %s353, 0
      %s356 = sadd.s32 %s355, 1
      %s357 = scalar_select %p354, %s355, %s356
      %p360 = pneg %p354
      %p361 = scmp.eq.s32.totalorder %s37, 1
      %p362 = por %p360, %p361
      %p363 = scmp.ne.s32.totalorder %s355, %s358
      %p364 = scmp.eq.s32.totalorder %s37, 0
      %p365 = por %p363, %p364
      %p366 = scmp.ne.s32.totalorder %s355, %s358
      %p367 = scmp.eq.s32.totalorder %s42, 1
      %p368 = por %p366, %p367
      %p369 = scmp.ne.s32.totalorder %s358, %s359
      %p370 = scmp.eq.s32.totalorder %s42, 0
      %p371 = por %p369, %p370
      %p372 = scmp.ne.s32.totalorder %s358, %s359
      %p373 = scmp.eq.s32.totalorder %s43, 1
      %p374 = por %p372, %p373
      %p376 = scmp.ne.s32.totalorder %s359, %s375
      %p377 = scmp.eq.s32.totalorder %s43, 0
      %p378 = por %p376, %p377
      %p379 = scmp.le.s32.totalorder 1, %s37
      %p380 = scmp.lt.s32.totalorder %s37, 3
      %p381 = pnand %p379, %p380
      %p382 = pneg %p381
      // Predicated region
      $region9: #{gen_block.1} parent=5 // pred_check
        _
      $region10: #{gen_block.1} parent=5 // pred_check_branch
        %384 = sbr.rel (%p381) target = $region12
      $region11: #{gen_block.1} parent=5 // pred_region
        %s385 = ssub.s32 %s37, 1
        // Predicated region
        $region13: #{gen_block.1} parent=11 // pred_check
          %p386 = pneg %p240
        $region14: #{gen_block.1} parent=11 // pred_check_branch
          %388 = sbr.rel (%p386) target = $region16
        $region15: #{gen_block.1} parent=11 // pred_region
          %s390 = ssub.s32 288, 288
          %391 = vsyncadd [#allocation17], %s390
          %s392 = sshll.u32 [#allocation16], 4
          %s393 = int_to_ptr.vmem [resolvable:$true] %s392
          %398 = dma.hbm_to_vmem [thread:$0]  %s7, 288, %s393, [#allocation17], 32, 32, 2
        $region16: #{gen_block.1} parent=11 // pred_fallthru
          _
        // Predicated region
        $region17: #{gen_block.1} parent=11 // pred_check
          %p399 = pneg %p261
        $region18: #{gen_block.1} parent=11 // pred_check_branch
          %401 = sbr.rel (%p399) target = $region20
        $region19: #{gen_block.1} parent=11 // pred_region
          %s403 = ssub.s32 16, 16
          %404 = vsyncadd [#allocation17], %s403
          %s406 = sshll.u32 [#allocation18], 4
          %s407 = int_to_ptr.vmem [resolvable:$true] %s406
          %409 = dma.hbm_to_vmem [thread:$0]  %s8, 16, %s407, [#allocation17]
        $region20: #{gen_block.1} parent=11 // pred_fallthru
          _
        // Predicated region
        $region21: #{gen_block.1} parent=11 // pred_check
          %p410 = pneg %p282
        $region22: #{gen_block.1} parent=11 // pred_check_branch
          %412 = sbr.rel (%p410) target = $region24
        $region23: #{gen_block.1} parent=11 // pred_region
          %s414 = ssub.s32 16, 16
          %415 = vsyncadd [#allocation20], %s414
          %s417 = sshll.u32 [#allocation19], 4
          %s418 = int_to_ptr.vmem [resolvable:$true] %s417
          %420 = dma.hbm_to_vmem [thread:$0]  %s9, 16, %s418, [#allocation20]
        $region24: #{gen_block.1} parent=11 // pred_fallthru
          _
        // Predicated region
        $region25: #{gen_block.1} parent=11 // pred_check
          %p421 = pneg %p303
        $region26: #{gen_block.1} parent=11 // pred_check_branch
          %423 = sbr.rel (%p421) target = $region28
        $region27: #{gen_block.1} parent=11 // pred_region
          %s425 = ssub.s32 576, 576
          %426 = vsyncadd [#allocation20], %s425
          %s427 = sshll.u32 [#allocation21], 4
          %s428 = int_to_ptr.vmem [resolvable:$true] %s427
          %433 = dma.hbm_to_vmem [thread:$0]  %s10, 576, %s428, [#allocation20], 64, 64, 4
        $region28: #{gen_block.1} parent=11 // pred_fallthru
          _
        // Predicated region
        $region29: #{gen_block.1} parent=11 // pred_check
          %p434 = pneg %p324
        $region30: #{gen_block.1} parent=11 // pred_check_branch
          %436 = sbr.rel (%p434) target = $region32
        $region31: #{gen_block.1} parent=11 // pred_region
          %s438 = ssub.s32 16, 16
          %439 = vsyncadd [#allocation23], %s438
          %s441 = sshll.u32 [#allocation22], 4
          %s442 = int_to_ptr.vmem [resolvable:$true] %s441
          %444 = dma.hbm_to_vmem [thread:$0]  %s11, 16, %s442, [#allocation23]
        $region32: #{gen_block.1} parent=11 // pred_fallthru
          _
        // Predicated region
        $region33: #{gen_block.1} parent=11 // pred_check
          %p445 = pneg %p345
        $region34: #{gen_block.1} parent=11 // pred_check_branch
          %447 = sbr.rel (%p445) target = $region36
        $region35: #{gen_block.1} parent=11 // pred_region
          %s449 = ssub.s32 16, 16
          %450 = vsyncadd [#allocation23], %s449
          %s452 = sshll.u32 [#allocation24], 4
          %s453 = int_to_ptr.vmem [resolvable:$true] %s452
          %455 = dma.hbm_to_vmem [thread:$0]  %s12, 16, %s453, [#allocation23]
        $region36: #{gen_block.1} parent=11 // pred_fallthru
          _
      $region12: #{gen_block.1} parent=5 // pred_fallthru
        _
      %p456 = scmp.lt.s32.totalorder %s37, 2
      // Predicated region
      $region37: #{gen_block.1} parent=5 // pred_check
        %p457 = pneg %p456
      $region38: #{gen_block.1} parent=5 // pred_check_branch
        %459 = sbr.rel (%p457) target = $region40
      $region39: #{gen_block.1} parent=5 // pred_region
        // Predicated region
        $region41: #{gen_block.1} parent=39 // pred_check
          %p460 = pneg %p57
        $region42: #{gen_block.1} parent=39 // pred_check_branch
          %462 = sbr.rel (%p460) target = $region44
        $region43: #{gen_block.1} parent=39 // pred_region
          %s463 = sand.u32 %s47, 1
          %s464 = scalar_lea.sflag [#allocation5], %s463
          %s465 = sand.u32 %s47, 1
          %s466 = smul.addr %s465, 256
          %s467 = scalar_lea.vmem [#allocation4], %s466
          %s469 = ssub.s32 4096, 4096
          %470 = vsyncadd %s464, %s469
          %s471 = smul.addr %s37, 32
          %s472 = smul.addr %s471, 128
          %s473 = scalar_lea.hbm %s0, %s472
          %s474 = sshll.u32 %s467, 4
          %s475 = int_to_ptr.vmem [resolvable:$true] %s474
          %480 = dma.hbm_to_vmem [thread:$0]  %s473, 4096, %s475, %s464, 128, 128, 8
        $region44: #{gen_block.1} parent=39 // pred_fallthru
          _
        // Predicated region
        $region45: #{gen_block.1} parent=39 // pred_check
          %p481 = pneg %p83
        $region46: #{gen_block.1} parent=39 // pred_check_branch
          %483 = sbr.rel (%p481) target = $region48
        $region47: #{gen_block.1} parent=39 // pred_region
          %s484 = sand.u32 %s37, 1
          %s485 = scalar_lea.sflag [#allocation8], %s484
          %s486 = sand.u32 %s73, 1
          %s487 = smul.addr %s486, 256
          %s488 = scalar_lea.vmem [#allocation7], %s487
          %s490 = ssub.s32 4096, 4096
          %491 = vsyncadd %s485, %s490
          %s492 = smul.addr %s37, 32
          %s493 = smul.addr %s492, 128
          %s494 = scalar_lea.hbm %s1, %s493
          %s495 = sshll.u32 %s488, 4
          %s496 = int_to_ptr.vmem [resolvable:$true] %s495
          %501 = dma.hbm_to_vmem [thread:$0]  %s494, 4096, %s496, %s485, 128, 128, 8
        $region48: #{gen_block.1} parent=39 // pred_fallthru
          _
        // Predicated region
        $region49: #{gen_block.1} parent=39 // pred_check
          %p502 = pneg %p109
        $region50: #{gen_block.1} parent=39 // pred_check_branch
          %504 = sbr.rel (%p502) target = $region52
        $region51: #{gen_block.1} parent=39 // pred_region
          %s505 = sand.u32 %s37, 1
          %s506 = scalar_lea.sflag [#allocation8], %s505
          %s507 = sand.u32 %s99, 1
          %s508 = smul.addr %s507, 256
          %s509 = scalar_lea.vmem [#allocation9], %s508
          %s511 = ssub.s32 4096, 4096
          %512 = vsyncadd %s506, %s511
          %s513 = smul.addr %s37, 32
          %s514 = smul.addr %s513, 128
          %s515 = scalar_lea.hbm %s2, %s514
          %s516 = sshll.u32 %s509, 4
          %s517 = int_to_ptr.vmem [resolvable:$true] %s516
          %522 = dma.hbm_to_vmem [thread:$0]  %s515, 4096, %s517, %s506, 128, 128, 8
        $region52: #{gen_block.1} parent=39 // pred_fallthru
          _
        // Predicated region
        $region53: #{gen_block.1} parent=39 // pred_check
          %p523 = pneg %p135
        $region54: #{gen_block.1} parent=39 // pred_check_branch
          %525 = sbr.rel (%p523) target = $region56
        $region55: #{gen_block.1} parent=39 // pred_region
          %s526 = sand.u32 %s37, 1
          %s527 = scalar_lea.sflag [#allocation11], %s526
          %s528 = sand.u32 %s125, 1
          %s529 = scalar_lea.vmem [#allocation10], %s528
          %s531 = ssub.s32 16, 16
          %532 = vsyncadd %s527, %s531
          %s533 = smul.addr %s37, 16
          %s534 = scalar_lea.hbm %s3, %s533
          %s536 = sshll.u32 %s529, 4
          %s537 = int_to_ptr.vmem [resolvable:$true] %s536
          %539 = dma.hbm_to_vmem [thread:$0]  %s534, 16, %s537, %s527
        $region56: #{gen_block.1} parent=39 // pred_fallthru
          _
        // Predicated region
        $region57: #{gen_block.1} parent=39 // pred_check
          %p540 = pneg %p161
        $region58: #{gen_block.1} parent=39 // pred_check_branch
          %542 = sbr.rel (%p540) target = $region60
        $region59: #{gen_block.1} parent=39 // pred_region
          %s543 = sand.u32 %s37, 1
          %s544 = scalar_lea.sflag [#allocation11], %s543
          %s545 = sand.u32 %s151, 1
          %s546 = scalar_lea.vmem [#allocation12], %s545
          %s548 = ssub.s32 16, 16
          %549 = vsyncadd %s544, %s548
          %s550 = smul.addr %s37, 16
          %s551 = scalar_lea.hbm %s4, %s550
          %s553 = sshll.u32 %s546, 4
          %s554 = int_to_ptr.vmem [resolvable:$true] %s553
          %556 = dma.hbm_to_vmem [thread:$0]  %s551, 16, %s554, %s544
        $region60: #{gen_block.1} parent=39 // pred_fallthru
          _
        // Predicated region
        $region61: #{gen_block.1} parent=39 // pred_check
          %p557 = pneg %p187
        $region62: #{gen_block.1} parent=39 // pred_check_branch
          %559 = sbr.rel (%p557) target = $region64
        $region63: #{gen_block.1} parent=39 // pred_region
          %s560 = sand.u32 %s37, 1
          %s561 = scalar_lea.sflag [#allocation14], %s560
          %s562 = sand.u32 %s177, 1
          %s563 = scalar_lea.vmem [#allocation13], %s562
          %s565 = ssub.s32 16, 16
          %566 = vsyncadd %s561, %s565
          %s567 = smul.addr %s37, 16
          %s568 = scalar_lea.hbm %s5, %s567
          %s570 = sshll.u32 %s563, 4
          %s571 = int_to_ptr.vmem [resolvable:$true] %s570
          %573 = dma.hbm_to_vmem [thread:$0]  %s568, 16, %s571, %s561
        $region64: #{gen_block.1} parent=39 // pred_fallthru
          _
        // Predicated region
        $region65: #{gen_block.1} parent=39 // pred_check
          %p574 = pneg %p213
        $region66: #{gen_block.1} parent=39 // pred_check_branch
          %576 = sbr.rel (%p574) target = $region68
        $region67: #{gen_block.1} parent=39 // pred_region
          %s577 = sand.u32 %s37, 1
          %s578 = scalar_lea.sflag [#allocation14], %s577
          %s579 = sand.u32 %s203, 1
          %s580 = scalar_lea.vmem [#allocation15], %s579
          %s582 = ssub.s32 16, 16
          %583 = vsyncadd %s578, %s582
          %s584 = smul.addr %s37, 16
          %s585 = scalar_lea.hbm %s6, %s584
          %s587 = sshll.u32 %s580, 4
          %s588 = int_to_ptr.vmem [resolvable:$true] %s587
          %590 = dma.hbm_to_vmem [thread:$0]  %s585, 16, %s588, %s578
        $region68: #{gen_block.1} parent=39 // pred_fallthru
          _
      $region40: #{gen_block.1} parent=5 // pred_fallthru
        _
      %p591 = scmp.le.s32.totalorder 1, %s37
      %p592 = scmp.lt.s32.totalorder %s37, 3
      %p593 = pnand %p591, %p592
      %p594 = pneg %p593
      // Predicated region
      $region69: #{gen_block.1} parent=5 // pred_check
        _
      $region70: #{gen_block.1} parent=5 // pred_check_branch
        %596 = sbr.rel (%p593) target = $region72
      $region71: #{gen_block.1} parent=5 // pred_region
        %s597 = ssub.s32 %s37, 1
        %s598 = sand.u32 %s50, 1
        %s599 = scalar_lea.sflag [#allocation5], %s598
        %s600 = sand.u32 %s50, 1
        %s601 = smul.addr %s600, 256
        %s602 = scalar_lea.vmem [#allocation4], %s601
        // Predicated region
        $region73: #{gen_block.1} parent=71 // pred_check
          %p603 = pneg %p63
        $region74: #{gen_block.1} parent=71 // pred_check_branch
          %605 = sbr.rel (%p603) target = $region76
        $region75: #{gen_block.1} parent=71 // pred_region
          %606 = dma.done %s599, 4096
        $region76: #{gen_block.1} parent=71 // pred_fallthru
          _
        %s607 = sand.u32 %s42, 1
        %s608 = scalar_lea.sflag [#allocation8], %s607
        %s609 = sand.u32 %s76, 1
        %s610 = smul.addr %s609, 256
        %s611 = scalar_lea.vmem [#allocation7], %s610
        // Predicated region
        $region77: #{gen_block.1} parent=71 // pred_check
          %p612 = pneg %p89
        $region78: #{gen_block.1} parent=71 // pred_check_branch
          %614 = sbr.rel (%p612) target = $region80
        $region79: #{gen_block.1} parent=71 // pred_region
          %615 = dma.done %s608, 4096
        $region80: #{gen_block.1} parent=71 // pred_fallthru
          _
        %s616 = sand.u32 %s42, 1
        %s617 = scalar_lea.sflag [#allocation8], %s616
        %s618 = sand.u32 %s102, 1
        %s619 = smul.addr %s618, 256
        %s620 = scalar_lea.vmem [#allocation9], %s619
        // Predicated region
        $region81: #{gen_block.1} parent=71 // pred_check
          %p621 = pneg %p115
        $region82: #{gen_block.1} parent=71 // pred_check_branch
          %623 = sbr.rel (%p621) target = $region84
        $region83: #{gen_block.1} parent=71 // pred_region
          %624 = dma.done %s617, 4096
        $region84: #{gen_block.1} parent=71 // pred_fallthru
          _
        %s625 = sand.u32 %s42, 1
        %s626 = scalar_lea.sflag [#allocation11], %s625
        %s627 = sand.u32 %s128, 1
        %s628 = scalar_lea.vmem [#allocation10], %s627
        // Predicated region
        $region85: #{gen_block.1} parent=71 // pred_check
          %p629 = pneg %p141
        $region86: #{gen_block.1} parent=71 // pred_check_branch
          %631 = sbr.rel (%p629) target = $region88
        $region87: #{gen_block.1} parent=71 // pred_region
          %632 = dma.done %s626, 16
        $region88: #{gen_block.1} parent=71 // pred_fallthru
          _
        %s633 = sand.u32 %s42, 1
        %s634 = scalar_lea.sflag [#allocation11], %s633
        %s635 = sand.u32 %s154, 1
        %s636 = scalar_lea.vmem [#allocation12], %s635
        // Predicated region
        $region89: #{gen_block.1} parent=71 // pred_check
          %p637 = pneg %p167
        $region90: #{gen_block.1} parent=71 // pred_check_branch
          %639 = sbr.rel (%p637) target = $region92
        $region91: #{gen_block.1} parent=71 // pred_region
          %640 = dma.done %s634, 16
        $region92: #{gen_block.1} parent=71 // pred_fallthru
          _
        %s641 = sand.u32 %s42, 1
        %s642 = scalar_lea.sflag [#allocation14], %s641
        %s643 = sand.u32 %s180, 1
        %s644 = scalar_lea.vmem [#allocation13], %s643
        // Predicated region
        $region93: #{gen_block.1} parent=71 // pred_check
          %p645 = pneg %p193
        $region94: #{gen_block.1} parent=71 // pred_check_branch
          %647 = sbr.rel (%p645) target = $region96
        $region95: #{gen_block.1} parent=71 // pred_region
          %648 = dma.done %s642, 16
        $region96: #{gen_block.1} parent=71 // pred_fallthru
          _
        %s649 = sand.u32 %s42, 1
        %s650 = scalar_lea.sflag [#allocation14], %s649
        %s651 = sand.u32 %s206, 1
        %s652 = scalar_lea.vmem [#allocation15], %s651
        // Predicated region
        $region97: #{gen_block.1} parent=71 // pred_check
          %p653 = pneg %p219
        $region98: #{gen_block.1} parent=71 // pred_check_branch
          %655 = sbr.rel (%p653) target = $region100
        $region99: #{gen_block.1} parent=71 // pred_region
          %656 = dma.done %s650, 16
        $region100: #{gen_block.1} parent=71 // pred_fallthru
          _
        // Predicated region
        $region101: #{gen_block.1} parent=71 // pred_check
          %p657 = pneg %p240
        $region102: #{gen_block.1} parent=71 // pred_check_branch
          %659 = sbr.rel (%p657) target = $region104
        $region103: #{gen_block.1} parent=71 // pred_region
          %660 = dma.done [#allocation17], 288
        $region104: #{gen_block.1} parent=71 // pred_fallthru
          _
        // Predicated region
        $region105: #{gen_block.1} parent=71 // pred_check
          %p661 = pneg %p261
        $region106: #{gen_block.1} parent=71 // pred_check_branch
          %663 = sbr.rel (%p661) target = $region108
        $region107: #{gen_block.1} parent=71 // pred_region
          %664 = dma.done [#allocation17], 16
        $region108: #{gen_block.1} parent=71 // pred_fallthru
          _
        // Predicated region
        $region109: #{gen_block.1} parent=71 // pred_check
          %p665 = pneg %p282
        $region110: #{gen_block.1} parent=71 // pred_check_branch
          %667 = sbr.rel (%p665) target = $region112
        $region111: #{gen_block.1} parent=71 // pred_region
          %668 = dma.done [#allocation20], 16
        $region112: #{gen_block.1} parent=71 // pred_fallthru
          _
        // Predicated region
        $region113: #{gen_block.1} parent=71 // pred_check
          %p669 = pneg %p303
        $region114: #{gen_block.1} parent=71 // pred_check_branch
          %671 = sbr.rel (%p669) target = $region116
        $region115: #{gen_block.1} parent=71 // pred_region
          %672 = dma.done [#allocation20], 576
        $region116: #{gen_block.1} parent=71 // pred_fallthru
          _
        // Predicated region
        $region117: #{gen_block.1} parent=71 // pred_check
          %p673 = pneg %p324
        $region118: #{gen_block.1} parent=71 // pred_check_branch
          %675 = sbr.rel (%p673) target = $region120
        $region119: #{gen_block.1} parent=71 // pred_region
          %676 = dma.done [#allocation23], 16
        $region120: #{gen_block.1} parent=71 // pred_fallthru
          _
        // Predicated region
        $region121: #{gen_block.1} parent=71 // pred_check
          %p677 = pneg %p345
        $region122: #{gen_block.1} parent=71 // pred_check_branch
          %679 = sbr.rel (%p677) target = $region124
        $region123: #{gen_block.1} parent=71 // pred_region
          %680 = dma.done [#allocation23], 16
        $region124: #{gen_block.1} parent=71 // pred_fallthru
          _
        %s681 = sand.u32 %s50, 1
        %s682 = scalar_lea.sflag [#allocation5], %s681
        %s683 = sand.u32 %s50, 1
        %s684 = smul.addr %s683, 256
        %s685 = scalar_lea.vmem [#allocation4], %s684
        %p686 = pneg %p63
        %p687 = pneg %p60
        %s688 = sand.u32 %s42, 1
        %s689 = scalar_lea.sflag [#allocation8], %s688
        %s690 = sand.u32 %s76, 1
        %s691 = smul.addr %s690, 256
        %s692 = scalar_lea.vmem [#allocation7], %s691
        %p693 = pneg %p89
        %p694 = pneg %p86
        %s695 = sand.u32 %s42, 1
        %s696 = scalar_lea.sflag [#allocation8], %s695
        %s697 = sand.u32 %s102, 1
        %s698 = smul.addr %s697, 256
        %s699 = scalar_lea.vmem [#allocation9], %s698
        %p700 = pneg %p115
        %p701 = pneg %p112
        %s702 = sand.u32 %s42, 1
        %s703 = scalar_lea.sflag [#allocation11], %s702
        %s704 = sand.u32 %s128, 1
        %s705 = scalar_lea.vmem [#allocation10], %s704
        %p706 = pneg %p141
        %p707 = pneg %p138
        %s708 = sand.u32 %s42, 1
        %s709 = scalar_lea.sflag [#allocation11], %s708
        %s710 = sand.u32 %s154, 1
        %s711 = scalar_lea.vmem [#allocation12], %s710
        %p712 = pneg %p167
        %p713 = pneg %p164
        %s714 = sand.u32 %s42, 1
        %s715 = scalar_lea.sflag [#allocation14], %s714
        %s716 = sand.u32 %s180, 1
        %s717 = scalar_lea.vmem [#allocation13], %s716
        %p718 = pneg %p193
        %p719 = pneg %p190
        %s720 = sand.u32 %s42, 1
        %s721 = scalar_lea.sflag [#allocation14], %s720
        %s722 = sand.u32 %s206, 1
        %s723 = scalar_lea.vmem [#allocation15], %s722
        %p724 = pneg %p219
        %p725 = pneg %p216
        %p726 = pneg %p240
        %p727 = pneg %p237
        %p728 = pneg %p261
        %p729 = pneg %p258
        %p730 = pneg %p282
        %p731 = pneg %p279
        %p732 = pneg %p303
        %p733 = pneg %p300
        %p734 = pneg %p324
        %p735 = pneg %p321
        %p736 = pneg %p345
        %p737 = pneg %p342
        %p738 = pneg %p371
        %p739 = pneg %p368
        %s740 = sand.u32 %s358, 1
        %s741 = scalar_lea.sflag [#allocation6], %s740
        %s742 = sand.u32 %s358, 1
        %s743 = smul.addr %s742, 256
        %s744 = scalar_lea.vmem [#allocation25], %s743
        %vm746 = vcmask 31744
        %747 = vst.msk [vmem:[#allocation2] sm:$0xff] %vm746, 0.0
        %748 = vst.msk [vmem:[#allocation2 + $0x8] sm:$0xff] %vm746, 0.0
        %vm749 = vcmask 25600
        %750 = vst.msk [vmem:[#allocation2 + $0x10] sm:$0x3] %vm749, 0.0
        %751 = vst.msk [vmem:[#allocation2 + $0x18] sm:$0xff] %vm746, 0.0
        %752 = vst.msk [vmem:[#allocation2 + $0x20] sm:$0xff] %vm746, 0.0
        %753 = vst.msk [vmem:[#allocation2 + $0x28] sm:$0x3] %vm749, 0.0
        %754 = vst.msk [vmem:[#allocation2 + $0x30] sm:$0xff] %vm746, 0.0
        %755 = vst.msk [vmem:[#allocation2 + $0x38] sm:$0xff] %vm746, 0.0
        %756 = vst.msk [vmem:[#allocation2 + $0x40] sm:$0x3] %vm749, 0.0
        %757 = vst.msk [vmem:[#allocation2 + $0x48] sm:$0xff] %vm746, 0.0
        %758 = vst.msk [vmem:[#allocation2 + $0x50] sm:$0xff] %vm746, 0.0
        %759 = vst.msk [vmem:[#allocation2 + $0x58] sm:$0x3] %vm749, 0.0
        %760 = vst.msk [vmem:[#allocation2 + $0x60] sm:$0xff] %vm746, 0.0
        %761 = vst.msk [vmem:[#allocation2 + $0x68] sm:$0xff] %vm746, 0.0
        %762 = vst.msk [vmem:[#allocation2 + $0x70] sm:$0x3] %vm749, 0.0
        %763 = vst.msk [vmem:[#allocation2 + $0x78] sm:$0xff] %vm746, 0.0
        %764 = vst.msk [vmem:[#allocation2 + $0x80] sm:$0xff] %vm746, 0.0
        %765 = vst.msk [vmem:[#allocation2 + $0x88] sm:$0x3] %vm749, 0.0
        %766 = vst.msk [vmem:[#allocation2 + $0x90] sm:$0xff] %vm746, 0.0
        %767 = vst.msk [vmem:[#allocation2 + $0x98] sm:$0xff] %vm746, 0.0
        %768 = vst.msk [vmem:[#allocation2 + $0xa0] sm:$0x3] %vm749, 0.0
        %769 = vst.msk [vmem:[#allocation2 + $0xa8] sm:$0xff] %vm746, 0.0
        %770 = vst.msk [vmem:[#allocation2 + $0xb0] sm:$0xff] %vm746, 0.0
        %771 = vst.msk [vmem:[#allocation2 + $0xb8] sm:$0x3] %vm749, 0.0
        %772 = vst.msk [vmem:[#allocation2 + $0xc0] sm:$0xff] %vm746, 0.0
        %773 = vst.msk [vmem:[#allocation2 + $0xc8] sm:$0xff] %vm746, 0.0
        %774 = vst.msk [vmem:[#allocation2 + $0xd0] sm:$0x3] %vm749, 0.0
        %775 = vst.msk [vmem:[#allocation2 + $0xd8] sm:$0xff] %vm746, 0.0
        %776 = vst.msk [vmem:[#allocation2 + $0xe0] sm:$0xff] %vm746, 0.0
        %777 = vst.msk [vmem:[#allocation2 + $0xe8] sm:$0x3] %vm749, 0.0
        %778 = vst.msk [vmem:[#allocation2 + $0xf0] sm:$0xff] %vm746, 0.0
        %779 = vst.msk [vmem:[#allocation2 + $0xf8] sm:$0xff] %vm746, 0.0
        %780 = vst.msk [vmem:[#allocation2 + $0x100] sm:$0x3] %vm749, 0.0
        %781 = vst.msk [vmem:[#allocation2 + $0x108] sm:$0xff] %vm746, 0.0
        %782 = vst.msk [vmem:[#allocation2 + $0x110] sm:$0xff] %vm746, 0.0
        %783 = vst.msk [vmem:[#allocation2 + $0x118] sm:$0x3] %vm749, 0.0
        %784 = vst.msk [vmem:[#allocation2 + $0x120] sm:$0xff] %vm746, 0.0
        %785 = vst.msk [vmem:[#allocation2 + $0x128] sm:$0xff] %vm746, 0.0
        %786 = vst.msk [vmem:[#allocation2 + $0x130] sm:$0x3] %vm749, 0.0
        %787 = vst.msk [vmem:[#allocation2 + $0x138] sm:$0xff] %vm746, 0.0
        %788 = vst.msk [vmem:[#allocation2 + $0x140] sm:$0xff] %vm746, 0.0
        %789 = vst.msk [vmem:[#allocation2 + $0x148] sm:$0x3] %vm749, 0.0
        %790 = vst.msk [vmem:[#allocation2 + $0x150] sm:$0xff] %vm746, 0.0
        %791 = vst.msk [vmem:[#allocation2 + $0x158] sm:$0xff] %vm746, 0.0
        %792 = vst.msk [vmem:[#allocation2 + $0x160] sm:$0x3] %vm749, 0.0
        %793 = vst.msk [vmem:[#allocation2 + $0x168] sm:$0xff] %vm746, 0.0
        %794 = vst.msk [vmem:[#allocation2 + $0x170] sm:$0xff] %vm746, 0.0
        %795 = vst.msk [vmem:[#allocation2 + $0x178] sm:$0x3] %vm749, 0.0
        %796 = vst.msk [vmem:[#allocation2 + $0x180] sm:$0xff] %vm746, 0.0
        %797 = vst.msk [vmem:[#allocation2 + $0x188] sm:$0xff] %vm746, 0.0
        %798 = vst.msk [vmem:[#allocation2 + $0x190] sm:$0x3] %vm749, 0.0
        %799 = vst.msk [vmem:[#allocation2 + $0x198] sm:$0xff] %vm746, 0.0
        %800 = vst.msk [vmem:[#allocation2 + $0x1a0] sm:$0xff] %vm746, 0.0
        %801 = vst.msk [vmem:[#allocation2 + $0x1a8] sm:$0x3] %vm749, 0.0
        %v802 = vld [vmem:[%s602] sm:$0xff]
        %v803 = vld [vmem:[%s602 + $0x8] sm:$0xff]
        %v804 = vld [vmem:[%s602 + $0x10] sm:$0xff]
        %v805 = vld [vmem:[%s602 + $0x18] sm:$0xff]
        %v806 = vld [vmem:[%s602 + $0x20] sm:$0xff]
        %v807 = vld [vmem:[%s602 + $0x28] sm:$0xff]
        %v808 = vld [vmem:[%s602 + $0x30] sm:$0xff]
        %v809 = vld [vmem:[%s602 + $0x38] sm:$0xff]
        %v810 = vld [vmem:[%s602 + $0x40] sm:$0xff]
        %v811 = vld [vmem:[%s602 + $0x48] sm:$0xff]
        %v812 = vld [vmem:[%s602 + $0x50] sm:$0xff]
        %v813 = vld [vmem:[%s602 + $0x58] sm:$0xff]
        %v814 = vld [vmem:[%s602 + $0x60] sm:$0xff]
        %v815 = vld [vmem:[%s602 + $0x68] sm:$0xff]
        %v816 = vld [vmem:[%s602 + $0x70] sm:$0xff]
        %v817 = vld [vmem:[%s602 + $0x78] sm:$0xff]
        %v818 = vld [vmem:[%s602 + $0x80] sm:$0xff]
        %v819 = vld [vmem:[%s602 + $0x88] sm:$0xff]
        %v820 = vld [vmem:[%s602 + $0x90] sm:$0xff]
        %v821 = vld [vmem:[%s602 + $0x98] sm:$0xff]
        %v822 = vld [vmem:[%s602 + $0xa0] sm:$0xff]
        %v823 = vld [vmem:[%s602 + $0xa8] sm:$0xff]
        %v824 = vld [vmem:[%s602 + $0xb0] sm:$0xff]
        %v825 = vld [vmem:[%s602 + $0xb8] sm:$0xff]
        %v826 = vld [vmem:[%s602 + $0xc0] sm:$0xff]
        %v827 = vld [vmem:[%s602 + $0xc8] sm:$0xff]
        %v828 = vld [vmem:[%s602 + $0xd0] sm:$0xff]
        %v829 = vld [vmem:[%s602 + $0xd8] sm:$0xff]
        %v830 = vld [vmem:[%s602 + $0xe0] sm:$0xff]
        %v831 = vld [vmem:[%s602 + $0xe8] sm:$0xff]
        %v832 = vld [vmem:[%s602 + $0xf0] sm:$0xff]
        %v833 = vld [vmem:[%s602 + $0xf8] sm:$0xff]
        %s834 = scalar_lea.vmem [#allocation2], 24
        %835 = vst.msk [vmem:[%s834 + $0x1] sm:$0xff] %vm746, %v802
        %836 = vst.msk [vmem:[%s834 + $0x9] sm:$0xff] %vm746, %v803
        %837 = vst.msk [vmem:[%s834 + $0x19] sm:$0xff] %vm746, %v804
        %838 = vst.msk [vmem:[%s834 + $0x21] sm:$0xff] %vm746, %v805
        %839 = vst.msk [vmem:[%s834 + $0x31] sm:$0xff] %vm746, %v806
        %840 = vst.msk [vmem:[%s834 + $0x39] sm:$0xff] %vm746, %v807
        %841 = vst.msk [vmem:[%s834 + $0x49] sm:$0xff] %vm746, %v808
        %842 = vst.msk [vmem:[%s834 + $0x51] sm:$0xff] %vm746, %v809
        %843 = vst.msk [vmem:[%s834 + $0x61] sm:$0xff] %vm746, %v810
        %844 = vst.msk [vmem:[%s834 + $0x69] sm:$0xff] %vm746, %v811
        %845 = vst.msk [vmem:[%s834 + $0x79] sm:$0xff] %vm746, %v812
        %846 = vst.msk [vmem:[%s834 + $0x81] sm:$0xff] %vm746, %v813
        %847 = vst.msk [vmem:[%s834 + $0x91] sm:$0xff] %vm746, %v814
        %848 = vst.msk [vmem:[%s834 + $0x99] sm:$0xff] %vm746, %v815
        %849 = vst.msk [vmem:[%s834 + $0xa9] sm:$0xff] %vm746, %v816
        %850 = vst.msk [vmem:[%s834 + $0xb1] sm:$0xff] %vm746, %v817
        %851 = vst.msk [vmem:[%s834 + $0xc1] sm:$0xff] %vm746, %v818
        %852 = vst.msk [vmem:[%s834 + $0xc9] sm:$0xff] %vm746, %v819
        %853 = vst.msk [vmem:[%s834 + $0xd9] sm:$0xff] %vm746, %v820
        %854 = vst.msk [vmem:[%s834 + $0xe1] sm:$0xff] %vm746, %v821
        %855 = vst.msk [vmem:[%s834 + $0xf1] sm:$0xff] %vm746, %v822
        %856 = vst.msk [vmem:[%s834 + $0xf9] sm:$0xff] %vm746, %v823
        %857 = vst.msk [vmem:[%s834 + $0x109] sm:$0xff] %vm746, %v824
        %858 = vst.msk [vmem:[%s834 + $0x111] sm:$0xff] %vm746, %v825
        %859 = vst.msk [vmem:[%s834 + $0x121] sm:$0xff] %vm746, %v826
        %860 = vst.msk [vmem:[%s834 + $0x129] sm:$0xff] %vm746, %v827
        %861 = vst.msk [vmem:[%s834 + $0x139] sm:$0xff] %vm746, %v828
        %862 = vst.msk [vmem:[%s834 + $0x141] sm:$0xff] %vm746, %v829
        %863 = vst.msk [vmem:[%s834 + $0x151] sm:$0xff] %vm746, %v830
        %864 = vst.msk [vmem:[%s834 + $0x159] sm:$0xff] %vm746, %v831
        %865 = vst.msk [vmem:[%s834 + $0x169] sm:$0xff] %vm746, %v832
        %866 = vst.msk [vmem:[%s834 + $0x171] sm:$0xff] %vm746, %v833
        %v867 = vld [vmem:[#allocation2] sm:$0xff]
        %v868 = vld [vmem:[#allocation2 + $0x8] sm:$0xff]
        %v869 = vld [vmem:[#allocation2 + $0x18] sm:$0xff]
        %v870 = vld [vmem:[#allocation2 + $0x20] sm:$0xff]
        %v871 = vld [vmem:[#allocation2 + $0x30] sm:$0xff]
        %v872 = vld [vmem:[#allocation2 + $0x38] sm:$0xff]
        %v873 = vld [vmem:[#allocation2 + $0x48] sm:$0xff]
        %v874 = vld [vmem:[#allocation2 + $0x50] sm:$0xff]
        %v875 = vld [vmem:[#allocation2 + $0x60] sm:$0xff]
        %v876 = vld [vmem:[#allocation2 + $0x68] sm:$0xff]
        %v877 = vld [vmem:[#allocation2 + $0x78] sm:$0xff]
        %v878 = vld [vmem:[#allocation2 + $0x80] sm:$0xff]
        %v879 = vld [vmem:[#allocation2 + $0x90] sm:$0xff]
        %v880 = vld [vmem:[#allocation2 + $0x98] sm:$0xff]
        %v881 = vld [vmem:[#allocation2 + $0xa8] sm:$0xff]
        %v882 = vld [vmem:[#allocation2 + $0xb0] sm:$0xff]
        %v883 = vld [vmem:[#allocation2 + $0xc0] sm:$0xff]
        %v884 = vld [vmem:[#allocation2 + $0xc8] sm:$0xff]
        %v885 = vld [vmem:[#allocation2 + $0xd8] sm:$0xff]
        %v886 = vld [vmem:[#allocation2 + $0xe0] sm:$0xff]
        %v887 = vld [vmem:[#allocation2 + $0xf0] sm:$0xff]
        %v888 = vld [vmem:[#allocation2 + $0xf8] sm:$0xff]
        %v889 = vld [vmem:[#allocation2 + $0x108] sm:$0xff]
        %v890 = vld [vmem:[#allocation2 + $0x110] sm:$0xff]
        %v891 = vld [vmem:[#allocation2 + $0x120] sm:$0xff]
        %v892 = vld [vmem:[#allocation2 + $0x128] sm:$0xff]
        %v893 = vld [vmem:[#allocation2 + $0x138] sm:$0xff]
        %v894 = vld [vmem:[#allocation2 + $0x140] sm:$0xff]
        %v895 = vld [vmem:[#allocation2 + $0x150] sm:$0xff]
        %v896 = vld [vmem:[#allocation2 + $0x158] sm:$0xff]
        %v897 = vld [vmem:[#allocation2 + $0x168] sm:$0xff]
        %v898 = vld [vmem:[#allocation2 + $0x170] sm:$0xff]
        %v899 = vpack.c.bf16 %v868, %v867
        %v900 = vpack.c.bf16 %v870, %v869
        %v901 = vpack.c.bf16 %v872, %v871
        %v902 = vpack.c.bf16 %v874, %v873
        %v903 = vpack.c.bf16 %v876, %v875
        %v904 = vpack.c.bf16 %v878, %v877
        %v905 = vpack.c.bf16 %v880, %v879
        %v906 = vpack.c.bf16 %v882, %v881
        %v907 = vpack.c.bf16 %v884, %v883
        %v908 = vpack.c.bf16 %v886, %v885
        %v909 = vpack.c.bf16 %v888, %v887
        %v910 = vpack.c.bf16 %v890, %v889
        %v911 = vpack.c.bf16 %v892, %v891
        %v912 = vpack.c.bf16 %v894, %v893
        %v913 = vpack.c.bf16 %v896, %v895
        %v914 = vpack.c.bf16 %v898, %v897
        %v915 = vld [vmem:[#allocation16] sm:$0x3]
        %v916 = vld [vmem:[#allocation2 + $0x1] sm:$0xff]
        %v917 = vld [vmem:[#allocation2 + $0x9] sm:$0xff]
        %v918 = vld [vmem:[#allocation2 + $0x19] sm:$0xff]
        %v919 = vld [vmem:[#allocation2 + $0x21] sm:$0xff]
        %v920 = vld [vmem:[#allocation2 + $0x31] sm:$0xff]
        %v921 = vld [vmem:[#allocation2 + $0x39] sm:$0xff]
        %v922 = vld [vmem:[#allocation2 + $0x49] sm:$0xff]
        %v923 = vld [vmem:[#allocation2 + $0x51] sm:$0xff]
        %v924 = vld [vmem:[#allocation2 + $0x61] sm:$0xff]
        %v925 = vld [vmem:[#allocation2 + $0x69] sm:$0xff]
        %v926 = vld [vmem:[#allocation2 + $0x79] sm:$0xff]
        %v927 = vld [vmem:[#allocation2 + $0x81] sm:$0xff]
        %v928 = vld [vmem:[#allocation2 + $0x91] sm:$0xff]
        %v929 = vld [vmem:[#allocation2 + $0x99] sm:$0xff]
        %v930 = vld [vmem:[#allocation2 + $0xa9] sm:$0xff]
        %v931 = vld [vmem:[#allocation2 + $0xb1] sm:$0xff]
        %v932 = vld [vmem:[#allocation2 + $0xc1] sm:$0xff]
        %v933 = vld [vmem:[#allocation2 + $0xc9] sm:$0xff]
        %v934 = vld [vmem:[#allocation2 + $0xd9] sm:$0xff]
        %v935 = vld [vmem:[#allocation2 + $0xe1] sm:$0xff]
        %v936 = vld [vmem:[#allocation2 + $0xf1] sm:$0xff]
        %v937 = vld [vmem:[#allocation2 + $0xf9] sm:$0xff]
        %v938 = vld [vmem:[#allocation2 + $0x109] sm:$0xff]
        %v939 = vld [vmem:[#allocation2 + $0x111] sm:$0xff]
        %v940 = vld [vmem:[#allocation2 + $0x121] sm:$0xff]
        %v941 = vld [vmem:[#allocation2 + $0x129] sm:$0xff]
        %v942 = vld [vmem:[#allocation2 + $0x139] sm:$0xff]
        %v943 = vld [vmem:[#allocation2 + $0x141] sm:$0xff]
        %v944 = vld [vmem:[#allocation2 + $0x151] sm:$0xff]
        %v945 = vld [vmem:[#allocation2 + $0x159] sm:$0xff]
        %v946 = vld [vmem:[#allocation2 + $0x169] sm:$0xff]
        %v947 = vld [vmem:[#allocation2 + $0x171] sm:$0xff]
        %v948 = vpack.c.bf16 %v917, %v916
        %v949 = vpack.c.bf16 %v919, %v918
        %v950 = vpack.c.bf16 %v921, %v920
        %v951 = vpack.c.bf16 %v923, %v922
        %v952 = vpack.c.bf16 %v925, %v924
        %v953 = vpack.c.bf16 %v927, %v926
        %v954 = vpack.c.bf16 %v929, %v928
        %v955 = vpack.c.bf16 %v931, %v930
        %v956 = vpack.c.bf16 %v933, %v932
        %v957 = vpack.c.bf16 %v935, %v934
        %v958 = vpack.c.bf16 %v937, %v936
        %v959 = vpack.c.bf16 %v939, %v938
        %v960 = vpack.c.bf16 %v941, %v940
        %v961 = vpack.c.bf16 %v943, %v942
        %v962 = vpack.c.bf16 %v945, %v944
        %v963 = vpack.c.bf16 %v947, %v946
        %s964 = scalar_lea.vmem [#allocation16], 2
        %v965 = vld [vmem:[%s964] sm:$0x3]
        %v967 = vsel %vm746, %v948, 0
        %v970 = vsel %vm746, %v949, 0
        %v973 = vsel %vm746, %v950, 0
        %v976 = vsel %vm746, %v951, 0
        %v979 = vsel %vm746, %v952, 0
        %v982 = vsel %vm746, %v953, 0
        %v985 = vsel %vm746, %v954, 0
        %v988 = vsel %vm746, %v955, 0
        %v991 = vsel %vm746, %v956, 0
        %v994 = vsel %vm746, %v957, 0
        %v997 = vsel %vm746, %v958, 0
        %v1000 = vsel %vm746, %v959, 0
        %v1003 = vsel %vm746, %v960, 0
        %v1006 = vsel %vm746, %v961, 0
        %v1009 = vsel %vm746, %v962, 0
        %v1012 = vsel %vm746, %v963, 0
        %vm1014 = vcmask 1041408
        %v1016 = vsel %vm1014, %v965, 0
        %1018 = vmatprep.subr.bf16.mxu0 0
        %1019 = vmatpush1.bf16.msra.mxu0 %v1016
        %1020 = vmatprep.subr.bf16.mxu0 0
        %1021 = vmatpush1.bf16.msra.mxu0 0
        %1022 = vmatprep.subr.bf16.mxu0 0
        %1023 = vmatpush1.bf16.msra.mxu0 0
        %1024 = vmatprep.subr.bf16.mxu0 0
        %1025 = vmatpush1.bf16.msra.mxu0 0
        %1026 = vmatprep.subr.bf16.mxu0 0
        %1027 = vmatpush1.bf16.msra.mxu0 0
        %1028 = vmatprep.subr.bf16.mxu0 0
        %1029 = vmatpush1.bf16.msra.mxu0 0
        %1030 = vmatprep.subr.bf16.mxu0 0
        %1031 = vmatpush1.bf16.msra.mxu0 0
        %1032 = vmatprep.subr.bf16.mxu0 0
        %1033 = vmatpush1.bf16.msra.mxu0 0
        %1034 = vmatprep.subr.bf16.mxu0 0
        %1035 = vmatpush1.bf16.msra.mxu0 0
        %1036 = vmatprep.subr.bf16.mxu0 0
        %1037 = vmatpush1.bf16.msra.mxu0 0
        %1038 = vmatprep.subr.bf16.mxu0 0
        %1039 = vmatpush1.bf16.msra.mxu0 0
        %1040 = vmatprep.subr.bf16.mxu0 0
        %1041 = vmatpush1.bf16.msra.mxu0 0
        %1042 = vmatprep.subr.bf16.mxu0 0
        %1043 = vmatpush1.bf16.msra.mxu0 0
        %1044 = vmatprep.subr.bf16.mxu0 0
        %1045 = vmatpush1.bf16.msra.mxu0 0
        %1046 = vmatprep.subr.bf16.mxu0 0
        %1047 = vmatpush1.bf16.msra.mxu0 0
        %1048 = vmatprep.subr.bf16.mxu0 0
        %1049 = vmatpush1.bf16.msra.mxu0 0
        %1050 = vmatprep.mubr.bf16.mxu0 0
        %1051 = vmatmul.mubr.bf16.gmra.mrb[0].mxu0 %v967
        %v1052 = vpop.f32.mrb[0].mxu0
        %v1053 = vadd.f32 0.0, %v1052
        %v1054 = vpop.f32.mrb[0].mxu0
        %v1055 = vpop.f32.mrb[0].mxu0
        %v1056 = vadd.f32 0.0, %v1055
        %v1057 = vpop.f32.mrb[0].mxu0
        %1058 = vmatprep.mubr.bf16.mxu0 0
        %1059 = vmatmul.mubr.bf16.gmra.mrb[0].mxu0 %v970
        %v1060 = vpop.f32.mrb[0].mxu0
        %v1061 = vadd.f32 0.0, %v1060
        %v1062 = vpop.f32.mrb[0].mxu0
        %v1063 = vpop.f32.mrb[0].mxu0
        %v1064 = vadd.f32 0.0, %v1063
        %v1065 = vpop.f32.mrb[0].mxu0
        %1066 = vmatprep.mubr.bf16.mxu0 0
        %1067 = vmatmul.mubr.bf16.gmra.mrb[0].mxu0 %v973
        %v1068 = vpop.f32.mrb[0].mxu0
        %v1069 = vadd.f32 0.0, %v1068
        %v1070 = vpop.f32.mrb[0].mxu0
        %v1071 = vpop.f32.mrb[0].mxu0
        %v1072 = vadd.f32 0.0, %v1071
        %v1073 = vpop.f32.mrb[0].mxu0
        %1074 = vmatprep.mubr.bf16.mxu0 0
        %1075 = vmatmul.mubr.bf16.gmra.mrb[0].mxu0 %v976
        %v1076 = vpop.f32.mrb[0].mxu0
        %v1077 = vadd.f32 0.0, %v1076
        %v1078 = vpop.f32.mrb[0].mxu0
        %v1079 = vpop.f32.mrb[0].mxu0
        %v1080 = vadd.f32 0.0, %v1079
        %v1081 = vpop.f32.mrb[0].mxu0
        %1082 = vmatprep.mubr.bf16.mxu0 0
        %1083 = vmatmul.mubr.bf16.gmra.mrb[0].mxu0 %v979
        %v1084 = vpop.f32.mrb[0].mxu0
        %v1085 = vadd.f32 0.0, %v1084
        %v1086 = vpop.f32.mrb[0].mxu0
        %v1087 = vpop.f32.mrb[0].mxu0
        %v1088 = vadd.f32 0.0, %v1087
        %v1089 = vpop.f32.mrb[0].mxu0
        %1090 = vmatprep.mubr.bf16.mxu0 0
        %1091 = vmatmul.mubr.bf16.gmra.mrb[0].mxu0 %v982
        %v1092 = vpop.f32.mrb[0].mxu0
        %v1093 = vadd.f32 0.0, %v1092
        %v1094 = vpop.f32.mrb[0].mxu0
        %v1095 = vpop.f32.mrb[0].mxu0
        %v1096 = vadd.f32 0.0, %v1095
        %v1097 = vpop.f32.mrb[0].mxu0
        %1098 = vmatprep.mubr.bf16.mxu0 0
        %1099 = vmatmul.mubr.bf16.gmra.mrb[0].mxu0 %v985
        %v1100 = vpop.f32.mrb[0].mxu0
        %v1101 = vadd.f32 0.0, %v1100
        %v1102 = vpop.f32.mrb[0].mxu0
        %v1103 = vpop.f32.mrb[0].mxu0
        %v1104 = vadd.f32 0.0, %v1103
        %v1105 = vpop.f32.mrb[0].mxu0
        %1106 = vmatprep.mubr.bf16.mxu0 0
        %1107 = vmatmul.mubr.bf16.gmra.mrb[0].mxu0 %v988
        %v1108 = vpop.f32.mrb[0].mxu0
        %v1109 = vadd.f32 0.0, %v1108
        %v1110 = vpop.f32.mrb[0].mxu0
        %v1111 = vpop.f32.mrb[0].mxu0
        %v1112 = vadd.f32 0.0, %v1111
        %v1113 = vpop.f32.mrb[0].mxu0
        %1114 = vmatprep.mubr.bf16.mxu0 0
        %1115 = vmatmul.mubr.bf16.gmra.mrb[0].mxu0 %v991
        %v1116 = vpop.f32.mrb[0].mxu0
        %v1117 = vadd.f32 0.0, %v1116
        %v1118 = vpop.f32.mrb[0].mxu0
        %v1119 = vpop.f32.mrb[0].mxu0
        %v1120 = vadd.f32 0.0, %v1119
        %v1121 = vpop.f32.mrb[0].mxu0
        %1122 = vmatprep.mubr.bf16.mxu0 0
        %1123 = vmatmul.mubr.bf16.gmra.mrb[0].mxu0 %v994
        %v1124 = vpop.f32.mrb[0].mxu0
        %v1125 = vadd.f32 0.0, %v1124
        %v1126 = vpop.f32.mrb[0].mxu0
        %v1127 = vpop.f32.mrb[0].mxu0
        %v1128 = vadd.f32 0.0, %v1127
        %v1129 = vpop.f32.mrb[0].mxu0
        %1130 = vmatprep.mubr.bf16.mxu0 0
        %1131 = vmatmul.mubr.bf16.gmra.mrb[0].mxu0 %v997
        %v1132 = vpop.f32.mrb[0].mxu0
        %v1133 = vadd.f32 0.0, %v1132
        %v1134 = vpop.f32.mrb[0].mxu0
        %v1135 = vpop.f32.mrb[0].mxu0
        %v1136 = vadd.f32 0.0, %v1135
        %v1137 = vpop.f32.mrb[0].mxu0
        %1138 = vmatprep.mubr.bf16.mxu0 0
        %1139 = vmatmul.mubr.bf16.gmra.mrb[0].mxu0 %v1000
        %v1140 = vpop.f32.mrb[0].mxu0
        %v1141 = vadd.f32 0.0, %v1140
        %v1142 = vpop.f32.mrb[0].mxu0
        %v1143 = vpop.f32.mrb[0].mxu0
        %v1144 = vadd.f32 0.0, %v1143
        %v1145 = vpop.f32.mrb[0].mxu0
        %1146 = vmatprep.mubr.bf16.mxu0 0
        %1147 = vmatmul.mubr.bf16.gmra.mrb[0].mxu0 %v1003
        %v1148 = vpop.f32.mrb[0].mxu0
        %v1149 = vadd.f32 0.0, %v1148
        %v1150 = vpop.f32.mrb[0].mxu0
        %v1151 = vpop.f32.mrb[0].mxu0
        %v1152 = vadd.f32 0.0, %v1151
        %v1153 = vpop.f32.mrb[0].mxu0
        %1154 = vmatprep.mubr.bf16.mxu0 0
        %1155 = vmatmul.mubr.bf16.gmra.mrb[0].mxu0 %v1006
        %v1156 = vpop.f32.mrb[0].mxu0
        %v1157 = vadd.f32 0.0, %v1156
        %v1158 = vpop.f32.mrb[0].mxu0
        %v1159 = vpop.f32.mrb[0].mxu0
        %v1160 = vadd.f32 0.0, %v1159
        %v1161 = vpop.f32.mrb[0].mxu0
        %1162 = vmatprep.mubr.bf16.mxu0 0
        %1163 = vmatmul.mubr.bf16.gmra.mrb[0].mxu0 %v1009
        %v1164 = vpop.f32.mrb[0].mxu0
        %v1165 = vadd.f32 0.0, %v1164
        %v1166 = vpop.f32.mrb[0].mxu0
        %v1167 = vpop.f32.mrb[0].mxu0
        %v1168 = vadd.f32 0.0, %v1167
        %v1169 = vpop.f32.mrb[0].mxu0
        %1170 = vmatprep.mubr.bf16.mxu0 0
        %1171 = vmatmul.mubr.bf16.gmra.mrb[0].mxu0 %v1012
        %v1172 = vpop.f32.mrb[0].mxu0
        %v1173 = vadd.f32 0.0, %v1172
        %v1174 = vpop.f32.mrb[0].mxu0
        %v1175 = vpop.f32.mrb[0].mxu0
        %v1176 = vadd.f32 0.0, %v1175
        %v1177 = vpop.f32.mrb[0].mxu0
        %1178 = vdwg.mxu0
        %v1180 = vsel %vm746, %v899, 0
        %v1183 = vsel %vm746, %v900, 0
        %v1186 = vsel %vm746, %v901, 0
        %v1189 = vsel %vm746, %v902, 0
        %v1192 = vsel %vm746, %v903, 0
        %v1195 = vsel %vm746, %v904, 0
        %v1198 = vsel %vm746, %v905, 0
        %v1201 = vsel %vm746, %v906, 0
        %v1204 = vsel %vm746, %v907, 0
        %v1207 = vsel %vm746, %v908, 0
        %v1210 = vsel %vm746, %v909, 0
        %v1213 = vsel %vm746, %v910, 0
        %v1216 = vsel %vm746, %v911, 0
        %v1219 = vsel %vm746, %v912, 0
        %v1222 = vsel %vm746, %v913, 0
        %v1225 = vsel %vm746, %v914, 0
        %v1228 = vsel %vm1014, %v915, 0
        %1230 = vmatprep.subr.bf16.mxu0 0
        %1231 = vmatpush1.bf16.msra.mxu0 %v1228
        %1232 = vmatprep.subr.bf16.mxu0 0
        %1233 = vmatpush1.bf16.msra.mxu0 0
        %1234 = vmatprep.subr.bf16.mxu0 0
        %1235 = vmatpush1.bf16.msra.mxu0 0
        %1236 = vmatprep.subr.bf16.mxu0 0
        %1237 = vmatpush1.bf16.msra.mxu0 0
        %1238 = vmatprep.subr.bf16.mxu0 0
        %1239 = vmatpush1.bf16.msra.mxu0 0
        %1240 = vmatprep.subr.bf16.mxu0 0
        %1241 = vmatpush1.bf16.msra.mxu0 0
        %1242 = vmatprep.subr.bf16.mxu0 0
        %1243 = vmatpush1.bf16.msra.mxu0 0
        %1244 = vmatprep.subr.bf16.mxu0 0
        %1245 = vmatpush1.bf16.msra.mxu0 0
        %1246 = vmatprep.subr.bf16.mxu0 0
        %1247 = vmatpush1.bf16.msra.mxu0 0
        %1248 = vmatprep.subr.bf16.mxu0 0
        %1249 = vmatpush1.bf16.msra.mxu0 0
        %1250 = vmatprep.subr.bf16.mxu0 0
        %1251 = vmatpush1.bf16.msra.mxu0 0
        %1252 = vmatprep.subr.bf16.mxu0 0
        %1253 = vmatpush1.bf16.msra.mxu0 0
        %1254 = vmatprep.subr.bf16.mxu0 0
        %1255 = vmatpush1.bf16.msra.mxu0 0
        %1256 = vmatprep.subr.bf16.mxu0 0
        %1257 = vmatpush1.bf16.msra.mxu0 0
        %1258 = vmatprep.subr.bf16.mxu0 0
        %1259 = vmatpush1.bf16.msra.mxu0 0
        %1260 = vmatprep.subr.bf16.mxu0 0
        %1261 = vmatpush1.bf16.msra.mxu0 0
        %1262 = vmatprep.mubr.bf16.mxu0 0
        %1263 = vmatmul.mubr.bf16.gmra.mrb[0].mxu0 %v1180
        %v1264 = vpop.f32.mrb[0].mxu0
        %v1265 = vadd.f32 %v1053, %v1264
        %v1266 = vpop.f32.mrb[0].mxu0
        %v1267 = vpop.f32.mrb[0].mxu0
        %v1268 = vadd.f32 %v1056, %v1267
        %v1269 = vpop.f32.mrb[0].mxu0
        %1270 = vmatprep.mubr.bf16.mxu0 0
        %1271 = vmatmul.mubr.bf16.gmra.mrb[0].mxu0 %v1183
        %v1272 = vpop.f32.mrb[0].mxu0
        %v1273 = vadd.f32 %v1061, %v1272
        %v1274 = vpop.f32.mrb[0].mxu0
        %v1275 = vpop.f32.mrb[0].mxu0
        %v1276 = vadd.f32 %v1064, %v1275
        %v1277 = vpop.f32.mrb[0].mxu0
        %1278 = vmatprep.mubr.bf16.mxu0 0
        %1279 = vmatmul.mubr.bf16.gmra.mrb[0].mxu0 %v1186
        %v1280 = vpop.f32.mrb[0].mxu0
        %v1281 = vadd.f32 %v1069, %v1280
        %v1282 = vpop.f32.mrb[0].mxu0
        %v1283 = vpop.f32.mrb[0].mxu0
        %v1284 = vadd.f32 %v1072, %v1283
        %v1285 = vpop.f32.mrb[0].mxu0
        %1286 = vmatprep.mubr.bf16.mxu0 0
        %1287 = vmatmul.mubr.bf16.gmra.mrb[0].mxu0 %v1189
        %v1288 = vpop.f32.mrb[0].mxu0
        %v1289 = vadd.f32 %v1077, %v1288
        %v1290 = vpop.f32.mrb[0].mxu0
        %v1291 = vpop.f32.mrb[0].mxu0
        %v1292 = vadd.f32 %v1080, %v1291
        %v1293 = vpop.f32.mrb[0].mxu0
        %1294 = vmatprep.mubr.bf16.mxu0 0
        %1295 = vmatmul.mubr.bf16.gmra.mrb[0].mxu0 %v1192
        %v1296 = vpop.f32.mrb[0].mxu0
        %v1297 = vadd.f32 %v1085, %v1296
        %v1298 = vpop.f32.mrb[0].mxu0
        %v1299 = vpop.f32.mrb[0].mxu0
        %v1300 = vadd.f32 %v1088, %v1299
        %v1301 = vpop.f32.mrb[0].mxu0
        %1302 = vmatprep.mubr.bf16.mxu0 0
        %1303 = vmatmul.mubr.bf16.gmra.mrb[0].mxu0 %v1195
        %v1304 = vpop.f32.mrb[0].mxu0
        %v1305 = vadd.f32 %v1093, %v1304
        %v1306 = vpop.f32.mrb[0].mxu0
        %v1307 = vpop.f32.mrb[0].mxu0
        %v1308 = vadd.f32 %v1096, %v1307
        %v1309 = vpop.f32.mrb[0].mxu0
        %1310 = vmatprep.mubr.bf16.mxu0 0
        %1311 = vmatmul.mubr.bf16.gmra.mrb[0].mxu0 %v1198
        %v1312 = vpop.f32.mrb[0].mxu0
        %v1313 = vadd.f32 %v1101, %v1312
        %v1314 = vpop.f32.mrb[0].mxu0
        %v1315 = vpop.f32.mrb[0].mxu0
        %v1316 = vadd.f32 %v1104, %v1315
        %v1317 = vpop.f32.mrb[0].mxu0
        %1318 = vmatprep.mubr.bf16.mxu0 0
        %1319 = vmatmul.mubr.bf16.gmra.mrb[0].mxu0 %v1201
        %v1320 = vpop.f32.mrb[0].mxu0
        %v1321 = vadd.f32 %v1109, %v1320
        %v1322 = vpop.f32.mrb[0].mxu0
        %v1323 = vpop.f32.mrb[0].mxu0
        %v1324 = vadd.f32 %v1112, %v1323
        %v1325 = vpop.f32.mrb[0].mxu0
        %1326 = vmatprep.mubr.bf16.mxu0 0
        %1327 = vmatmul.mubr.bf16.gmra.mrb[0].mxu0 %v1204
        %v1328 = vpop.f32.mrb[0].mxu0
        %v1329 = vadd.f32 %v1117, %v1328
        %v1330 = vpop.f32.mrb[0].mxu0
        %v1331 = vpop.f32.mrb[0].mxu0
        %v1332 = vadd.f32 %v1120, %v1331
        %v1333 = vpop.f32.mrb[0].mxu0
        %1334 = vmatprep.mubr.bf16.mxu0 0
        %1335 = vmatmul.mubr.bf16.gmra.mrb[0].mxu0 %v1207
        %v1336 = vpop.f32.mrb[0].mxu0
        %v1337 = vadd.f32 %v1125, %v1336
        %v1338 = vpop.f32.mrb[0].mxu0
        %v1339 = vpop.f32.mrb[0].mxu0
        %v1340 = vadd.f32 %v1128, %v1339
        %v1341 = vpop.f32.mrb[0].mxu0
        %1342 = vmatprep.mubr.bf16.mxu0 0
        %1343 = vmatmul.mubr.bf16.gmra.mrb[0].mxu0 %v1210
        %v1344 = vpop.f32.mrb[0].mxu0
        %v1345 = vadd.f32 %v1133, %v1344
        %v1346 = vpop.f32.mrb[0].mxu0
        %v1347 = vpop.f32.mrb[0].mxu0
        %v1348 = vadd.f32 %v1136, %v1347
        %v1349 = vpop.f32.mrb[0].mxu0
        %1350 = vmatprep.mubr.bf16.mxu0 0
        %1351 = vmatmul.mubr.bf16.gmra.mrb[0].mxu0 %v1213
        %v1352 = vpop.f32.mrb[0].mxu0
        %v1353 = vadd.f32 %v1141, %v1352
        %v1354 = vpop.f32.mrb[0].mxu0
        %v1355 = vpop.f32.mrb[0].mxu0
        %v1356 = vadd.f32 %v1144, %v1355
        %v1357 = vpop.f32.mrb[0].mxu0
        %1358 = vmatprep.mubr.bf16.mxu0 0
        %1359 = vmatmul.mubr.bf16.gmra.mrb[0].mxu0 %v1216
        %v1360 = vpop.f32.mrb[0].mxu0
        %v1361 = vadd.f32 %v1149, %v1360
        %v1362 = vpop.f32.mrb[0].mxu0
        %v1363 = vpop.f32.mrb[0].mxu0
        %v1364 = vadd.f32 %v1152, %v1363
        %v1365 = vpop.f32.mrb[0].mxu0
        %1366 = vmatprep.mubr.bf16.mxu0 0
        %1367 = vmatmul.mubr.bf16.gmra.mrb[0].mxu0 %v1219
        %v1368 = vpop.f32.mrb[0].mxu0
        %v1369 = vadd.f32 %v1157, %v1368
        %v1370 = vpop.f32.mrb[0].mxu0
        %v1371 = vpop.f32.mrb[0].mxu0
        %v1372 = vadd.f32 %v1160, %v1371
        %v1373 = vpop.f32.mrb[0].mxu0
        %1374 = vmatprep.mubr.bf16.mxu0 0
        %1375 = vmatmul.mubr.bf16.gmra.mrb[0].mxu0 %v1222
        %v1376 = vpop.f32.mrb[0].mxu0
        %v1377 = vadd.f32 %v1165, %v1376
        %v1378 = vpop.f32.mrb[0].mxu0
        %v1379 = vpop.f32.mrb[0].mxu0
        %v1380 = vadd.f32 %v1168, %v1379
        %v1381 = vpop.f32.mrb[0].mxu0
        %1382 = vmatprep.mubr.bf16.mxu0 0
        %1383 = vmatmul.mubr.bf16.gmra.mrb[0].mxu0 %v1225
        %v1384 = vpop.f32.mrb[0].mxu0
        %v1385 = vadd.f32 %v1173, %v1384
        %v1386 = vpop.f32.mrb[0].mxu0
        %v1387 = vpop.f32.mrb[0].mxu0
        %v1388 = vadd.f32 %v1176, %v1387
        %v1389 = vpop.f32.mrb[0].mxu0
        %1390 = vdwg.mxu0
        %v1391 = vld [vmem:[#allocation2 + $0x2] sm:$0xff]
        %v1392 = vld [vmem:[#allocation2 + $0xa] sm:$0xff]
        %v1393 = vld [vmem:[#allocation2 + $0x1a] sm:$0xff]
        %v1394 = vld [vmem:[#allocation2 + $0x22] sm:$0xff]
        %v1395 = vld [vmem:[#allocation2 + $0x32] sm:$0xff]
        %v1396 = vld [vmem:[#allocation2 + $0x3a] sm:$0xff]
        %v1397 = vld [vmem:[#allocation2 + $0x4a] sm:$0xff]
        %v1398 = vld [vmem:[#allocation2 + $0x52] sm:$0xff]
        %v1399 = vld [vmem:[#allocation2 + $0x62] sm:$0xff]
        %v1400 = vld [vmem:[#allocation2 + $0x6a] sm:$0xff]
        %v1401 = vld [vmem:[#allocation2 + $0x7a] sm:$0xff]
        %v1402 = vld [vmem:[#allocation2 + $0x82] sm:$0xff]
        %v1403 = vld [vmem:[#allocation2 + $0x92] sm:$0xff]
        %v1404 = vld [vmem:[#allocation2 + $0x9a] sm:$0xff]
        %v1405 = vld [vmem:[#allocation2 + $0xaa] sm:$0xff]
        %v1406 = vld [vmem:[#allocation2 + $0xb2] sm:$0xff]
        %v1407 = vld [vmem:[#allocation2 + $0xc2] sm:$0xff]
        %v1408 = vld [vmem:[#allocation2 + $0xca] sm:$0xff]
        %v1409 = vld [vmem:[#allocation2 + $0xda] sm:$0xff]
        %v1410 = vld [vmem:[#allocation2 + $0xe2] sm:$0xff]
        %v1411 = vld [vmem:[#allocation2 + $0xf2] sm:$0xff]
        %v1412 = vld [vmem:[#allocation2 + $0xfa] sm:$0xff]
        %v1413 = vld [vmem:[#allocation2 + $0x10a] sm:$0xff]
        %v1414 = vld [vmem:[#allocation2 + $0x112] sm:$0xff]
        %v1415 = vld [vmem:[#allocation2 + $0x122] sm:$0xff]
        %v1416 = vld [vmem:[#allocation2 + $0x12a] sm:$0xff]
        %v1417 = vld [vmem:[#allocation2 + $0x13a] sm:$0xff]
        %v1418 = vld [vmem:[#allocation2 + $0x142] sm:$0xff]
        %v1419 = vld [vmem:[#allocation2 + $0x152] sm:$0xff]
        %v1420 = vld [vmem:[#allocation2 + $0x15a] sm:$0xff]
        %v1421 = vld [vmem:[#allocation2 + $0x16a] sm:$0xff]
        %v1422 = vld [vmem:[#allocation2 + $0x172] sm:$0xff]
        %v1423 = vpack.c.bf16 %v1392, %v1391
        %v1424 = vpack.c.bf16 %v1394, %v1393
        %v1425 = vpack.c.bf16 %v1396, %v1395
        %v1426 = vpack.c.bf16 %v1398, %v1397
        %v1427 = vpack.c.bf16 %v1400, %v1399
        %v1428 = vpack.c.bf16 %v1402, %v1401
        %v1429 = vpack.c.bf16 %v1404, %v1403
        %v1430 = vpack.c.bf16 %v1406, %v1405
        %v1431 = vpack.c.bf16 %v1408, %v1407
        %v1432 = vpack.c.bf16 %v1410, %v1409
        %v1433 = vpack.c.bf16 %v1412, %v1411
        %v1434 = vpack.c.bf16 %v1414, %v1413
        %v1435 = vpack.c.bf16 %v1416, %v1415
        %v1436 = vpack.c.bf16 %v1418, %v1417
        %v1437 = vpack.c.bf16 %v1420, %v1419
        %v1438 = vpack.c.bf16 %v1422, %v1421
        %s1439 = scalar_lea.vmem [#allocation16], 4
        %v1440 = vld [vmem:[%s1439] sm:$0x3]
        %v1442 = vsel %vm746, %v1423, 0
        %v1445 = vsel %vm746, %v1424, 0
        %v1448 = vsel %vm746, %v1425, 0
        %v1451 = vsel %vm746, %v1426, 0
        %v1454 = vsel %vm746, %v1427, 0
        %v1457 = vsel %vm746, %v1428, 0
        %v1460 = vsel %vm746, %v1429, 0
        %v1463 = vsel %vm746, %v1430, 0
        %v1466 = vsel %vm746, %v1431, 0
        %v1469 = vsel %vm746, %v1432, 0
        %v1472 = vsel %vm746, %v1433, 0
        %v1475 = vsel %vm746, %v1434, 0
        %v1478 = vsel %vm746, %v1435, 0
        %v1481 = vsel %vm746, %v1436, 0
        %v1484 = vsel %vm746, %v1437, 0
        %v1487 = vsel %vm746, %v1438, 0
        %v1490 = vsel %vm1014, %v1440, 0
        %1492 = vmatprep.subr.bf16.mxu0 0
        %1493 = vmatpush1.bf16.msra.mxu0 %v1490
        %1494 = vmatprep.subr.bf16.mxu0 0
        %1495 = vmatpush1.bf16.msra.mxu0 0
        %1496 = vmatprep.subr.bf16.mxu0 0
        %1497 = vmatpush1.bf16.msra.mxu0 0
        %1498 = vmatprep.subr.bf16.mxu0 0
        %1499 = vmatpush1.bf16.msra.mxu0 0
        %1500 = vmatprep.subr.bf16.mxu0 0
        %1501 = vmatpush1.bf16.msra.mxu0 0
        %1502 = vmatprep.subr.bf16.mxu0 0
        %1503 = vmatpush1.bf16.msra.mxu0 0
        %1504 = vmatprep.subr.bf16.mxu0 0
        %1505 = vmatpush1.bf16.msra.mxu0 0
        %1506 = vmatprep.subr.bf16.mxu0 0
        %1507 = vmatpush1.bf16.msra.mxu0 0
        %1508 = vmatprep.subr.bf16.mxu0 0
        %1509 = vmatpush1.bf16.msra.mxu0 0
        %1510 = vmatprep.subr.bf16.mxu0 0
        %1511 = vmatpush1.bf16.msra.mxu0 0
        %1512 = vmatprep.subr.bf16.mxu0 0
        %1513 = vmatpush1.bf16.msra.mxu0 0
        %1514 = vmatprep.subr.bf16.mxu0 0
        %1515 = vmatpush1.bf16.msra.mxu0 0
        %1516 = vmatprep.subr.bf16.mxu0 0
        %1517 = vmatpush1.bf16.msra.mxu0 0
        %1518 = vmatprep.subr.bf16.mxu0 0
        %1519 = vmatpush1.bf16.msra.mxu0 0
        %1520 = vmatprep.subr.bf16.mxu0 0
        %1521 = vmatpush1.bf16.msra.mxu0 0
        %1522 = vmatprep.subr.bf16.mxu0 0
        %1523 = vmatpush1.bf16.msra.mxu0 0
        %1524 = vmatprep.mubr.bf16.mxu0 0
        %1525 = vmatmul.mubr.bf16.gmra.mrb[0].mxu0 %v1442
        %v1526 = vpop.f32.mrb[0].mxu0
        %v1527 = vadd.f32 0.0, %v1526
        %v1528 = vpop.f32.mrb[0].mxu0
        %v1529 = vpop.f32.mrb[0].mxu0
        %v1530 = vadd.f32 0.0, %v1529
        %v1531 = vpop.f32.mrb[0].mxu0
        %1532 = vmatprep.mubr.bf16.mxu0 0
        %1533 = vmatmul.mubr.bf16.gmra.mrb[0].mxu0 %v1445
        %v1534 = vpop.f32.mrb[0].mxu0
        %v1535 = vadd.f32 0.0, %v1534
        %v1536 = vpop.f32.mrb[0].mxu0
        %v1537 = vpop.f32.mrb[0].mxu0
        %v1538 = vadd.f32 0.0, %v1537
        %v1539 = vpop.f32.mrb[0].mxu0
        %1540 = vmatprep.mubr.bf16.mxu0 0
        %1541 = vmatmul.mubr.bf16.gmra.mrb[0].mxu0 %v1448
        %v1542 = vpop.f32.mrb[0].mxu0
        %v1543 = vadd.f32 0.0, %v1542
        %v1544 = vpop.f32.mrb[0].mxu0
        %v1545 = vpop.f32.mrb[0].mxu0
        %v1546 = vadd.f32 0.0, %v1545
        %v1547 = vpop.f32.mrb[0].mxu0
        %1548 = vmatprep.mubr.bf16.mxu0 0
        %1549 = vmatmul.mubr.bf16.gmra.mrb[0].mxu0 %v1451
        %v1550 = vpop.f32.mrb[0].mxu0
        %v1551 = vadd.f32 0.0, %v1550
        %v1552 = vpop.f32.mrb[0].mxu0
        %v1553 = vpop.f32.mrb[0].mxu0
        %v1554 = vadd.f32 0.0, %v1553
        %v1555 = vpop.f32.mrb[0].mxu0
        %1556 = vmatprep.mubr.bf16.mxu0 0
        %1557 = vmatmul.mubr.bf16.gmra.mrb[0].mxu0 %v1454
        %v1558 = vpop.f32.mrb[0].mxu0
        %v1559 = vadd.f32 0.0, %v1558
        %v1560 = vpop.f32.mrb[0].mxu0
        %v1561 = vpop.f32.mrb[0].mxu0
        %v1562 = vadd.f32 0.0, %v1561
        %v1563 = vpop.f32.mrb[0].mxu0
        %1564 = vmatprep.mubr.bf16.mxu0 0
        %1565 = vmatmul.mubr.bf16.gmra.mrb[0].mxu0 %v1457
        %v1566 = vpop.f32.mrb[0].mxu0
        %v1567 = vadd.f32 0.0, %v1566
        %v1568 = vpop.f32.mrb[0].mxu0
        %v1569 = vpop.f32.mrb[0].mxu0
        %v1570 = vadd.f32 0.0, %v1569
        %v1571 = vpop.f32.mrb[0].mxu0
        %1572 = vmatprep.mubr.bf16.mxu0 0
        %1573 = vmatmul.mubr.bf16.gmra.mrb[0].mxu0 %v1460
        %v1574 = vpop.f32.mrb[0].mxu0
        %v1575 = vadd.f32 0.0, %v1574
        %v1576 = vpop.f32.mrb[0].mxu0
        %v1577 = vpop.f32.mrb[0].mxu0
        %v1578 = vadd.f32 0.0, %v1577
        %v1579 = vpop.f32.mrb[0].mxu0
        %1580 = vmatprep.mubr.bf16.mxu0 0
        %1581 = vmatmul.mubr.bf16.gmra.mrb[0].mxu0 %v1463
        %v1582 = vpop.f32.mrb[0].mxu0
        %v1583 = vadd.f32 0.0, %v1582
        %v1584 = vpop.f32.mrb[0].mxu0
        %v1585 = vpop.f32.mrb[0].mxu0
        %v1586 = vadd.f32 0.0, %v1585
        %v1587 = vpop.f32.mrb[0].mxu0
        %1588 = vmatprep.mubr.bf16.mxu0 0
        %1589 = vmatmul.mubr.bf16.gmra.mrb[0].mxu0 %v1466
        %v1590 = vpop.f32.mrb[0].mxu0
        %v1591 = vadd.f32 0.0, %v1590
        %v1592 = vpop.f32.mrb[0].mxu0
        %v1593 = vpop.f32.mrb[0].mxu0
        %v1594 = vadd.f32 0.0, %v1593
        %v1595 = vpop.f32.mrb[0].mxu0
        %1596 = vmatprep.mubr.bf16.mxu0 0
        %1597 = vmatmul.mubr.bf16.gmra.mrb[0].mxu0 %v1469
        %v1598 = vpop.f32.mrb[0].mxu0
        %v1599 = vadd.f32 0.0, %v1598
        %v1600 = vpop.f32.mrb[0].mxu0
        %v1601 = vpop.f32.mrb[0].mxu0
        %v1602 = vadd.f32 0.0, %v1601
        %v1603 = vpop.f32.mrb[0].mxu0
        %1604 = vmatprep.mubr.bf16.mxu0 0
        %1605 = vmatmul.mubr.bf16.gmra.mrb[0].mxu0 %v1472
        %v1606 = vpop.f32.mrb[0].mxu0
        %v1607 = vadd.f32 0.0, %v1606
        %v1608 = vpop.f32.mrb[0].mxu0
        %v1609 = vpop.f32.mrb[0].mxu0
        %v1610 = vadd.f32 0.0, %v1609
        %v1611 = vpop.f32.mrb[0].mxu0
        %1612 = vmatprep.mubr.bf16.mxu0 0
        %1613 = vmatmul.mubr.bf16.gmra.mrb[0].mxu0 %v1475
        %v1614 = vpop.f32.mrb[0].mxu0
        %v1615 = vadd.f32 0.0, %v1614
        %v1616 = vpop.f32.mrb[0].mxu0
        %v1617 = vpop.f32.mrb[0].mxu0
        %v1618 = vadd.f32 0.0, %v1617
        %v1619 = vpop.f32.mrb[0].mxu0
        %1620 = vmatprep.mubr.bf16.mxu0 0
        %1621 = vmatmul.mubr.bf16.gmra.mrb[0].mxu0 %v1478
        %v1622 = vpop.f32.mrb[0].mxu0
        %v1623 = vadd.f32 0.0, %v1622
        %v1624 = vpop.f32.mrb[0].mxu0
        %v1625 = vpop.f32.mrb[0].mxu0
        %v1626 = vadd.f32 0.0, %v1625
        %v1627 = vpop.f32.mrb[0].mxu0
        %1628 = vmatprep.mubr.bf16.mxu0 0
        %1629 = vmatmul.mubr.bf16.gmra.mrb[0].mxu0 %v1481
        %v1630 = vpop.f32.mrb[0].mxu0
        %v1631 = vadd.f32 0.0, %v1630
        %v1632 = vpop.f32.mrb[0].mxu0
        %v1633 = vpop.f32.mrb[0].mxu0
        %v1634 = vadd.f32 0.0, %v1633
        %v1635 = vpop.f32.mrb[0].mxu0
        %1636 = vmatprep.mubr.bf16.mxu0 0
        %1637 = vmatmul.mubr.bf16.gmra.mrb[0].mxu0 %v1484
        %v1638 = vpop.f32.mrb[0].mxu0
        %v1639 = vadd.f32 0.0, %v1638
        %v1640 = vpop.f32.mrb[0].mxu0
        %v1641 = vpop.f32.mrb[0].mxu0
        %v1642 = vadd.f32 0.0, %v1641
        %v1643 = vpop.f32.mrb[0].mxu0
        %1644 = vmatprep.mubr.bf16.mxu0 0
        %1645 = vmatmul.mubr.bf16.gmra.mrb[0].mxu0 %v1487
        %v1646 = vpop.f32.mrb[0].mxu0
        %v1647 = vadd.f32 0.0, %v1646
        %v1648 = vpop.f32.mrb[0].mxu0
        %v1649 = vpop.f32.mrb[0].mxu0
        %v1650 = vadd.f32 0.0, %v1649
        %v1651 = vpop.f32.mrb[0].mxu0
        %1652 = vdwg.mxu0
        %v1653 = vadd.f32 %v1265, %v1527
        %v1654 = vadd.f32 %v1268, %v1530
        %v1655 = vadd.f32 %v1273, %v1535
        %v1656 = vadd.f32 %v1276, %v1538
        %v1657 = vadd.f32 %v1281, %v1543
        %v1658 = vadd.f32 %v1284, %v1546
        %v1659 = vadd.f32 %v1289, %v1551
        %v1660 = vadd.f32 %v1292, %v1554
        %v1661 = vadd.f32 %v1297, %v1559
        %v1662 = vadd.f32 %v1300, %v1562
        %v1663 = vadd.f32 %v1305, %v1567
        %v1664 = vadd.f32 %v1308, %v1570
        %v1665 = vadd.f32 %v1313, %v1575
        %v1666 = vadd.f32 %v1316, %v1578
        %v1667 = vadd.f32 %v1321, %v1583
        %v1668 = vadd.f32 %v1324, %v1586
        %v1669 = vadd.f32 %v1329, %v1591
        %v1670 = vadd.f32 %v1332, %v1594
        %v1671 = vadd.f32 %v1337, %v1599
        %v1672 = vadd.f32 %v1340, %v1602
        %v1673 = vadd.f32 %v1345, %v1607
        %v1674 = vadd.f32 %v1348, %v1610
        %v1675 = vadd.f32 %v1353, %v1615
        %v1676 = vadd.f32 %v1356, %v1618
        %v1677 = vadd.f32 %v1361, %v1623
        %v1678 = vadd.f32 %v1364, %v1626
        %v1679 = vadd.f32 %v1369, %v1631
        %v1680 = vadd.f32 %v1372, %v1634
        %v1681 = vadd.f32 %v1377, %v1639
        %v1682 = vadd.f32 %v1380, %v1642
        %v1683 = vadd.f32 %v1385, %v1647
        %v1684 = vadd.f32 %v1388, %v1650
        %v1685 = vld [vmem:[%s834] sm:$0xff]
        %v1686 = vld [vmem:[%s834 + $0x8] sm:$0xff]
        %v1687 = vld [vmem:[%s834 + $0x18] sm:$0xff]
        %v1688 = vld [vmem:[%s834 + $0x20] sm:$0xff]
        %v1689 = vld [vmem:[%s834 + $0x30] sm:$0xff]
        %v1690 = vld [vmem:[%s834 + $0x38] sm:$0xff]
        %v1691 = vld [vmem:[%s834 + $0x48] sm:$0xff]
        %v1692 = vld [vmem:[%s834 + $0x50] sm:$0xff]
        %v1693 = vld [vmem:[%s834 + $0x60] sm:$0xff]
        %v1694 = vld [vmem:[%s834 + $0x68] sm:$0xff]
        %v1695 = vld [vmem:[%s834 + $0x78] sm:$0xff]
        %v1696 = vld [vmem:[%s834 + $0x80] sm:$0xff]
        %v1697 = vld [vmem:[%s834 + $0x90] sm:$0xff]
        %v1698 = vld [vmem:[%s834 + $0x98] sm:$0xff]
        %v1699 = vld [vmem:[%s834 + $0xa8] sm:$0xff]
        %v1700 = vld [vmem:[%s834 + $0xb0] sm:$0xff]
        %v1701 = vld [vmem:[%s834 + $0xc0] sm:$0xff]
        %v1702 = vld [vmem:[%s834 + $0xc8] sm:$0xff]
        %v1703 = vld [vmem:[%s834 + $0xd8] sm:$0xff]
        %v1704 = vld [vmem:[%s834 + $0xe0] sm:$0xff]
        %v1705 = vld [vmem:[%s834 + $0xf0] sm:$0xff]
        %v1706 = vld [vmem:[%s834 + $0xf8] sm:$0xff]
        %v1707 = vld [vmem:[%s834 + $0x108] sm:$0xff]
        %v1708 = vld [vmem:[%s834 + $0x110] sm:$0xff]
        %v1709 = vld [vmem:[%s834 + $0x120] sm:$0xff]
        %v1710 = vld [vmem:[%s834 + $0x128] sm:$0xff]
        %v1711 = vld [vmem:[%s834 + $0x138] sm:$0xff]
        %v1712 = vld [vmem:[%s834 + $0x140] sm:$0xff]
        %v1713 = vld [vmem:[%s834 + $0x150] sm:$0xff]
        %v1714 = vld [vmem:[%s834 + $0x158] sm:$0xff]
        %v1715 = vld [vmem:[%s834 + $0x168] sm:$0xff]
        %v1716 = vld [vmem:[%s834 + $0x170] sm:$0xff]
        %v1717 = vpack.c.bf16 %v1686, %v1685
        %v1718 = vpack.c.bf16 %v1688, %v1687
        %v1719 = vpack.c.bf16 %v1690, %v1689
        %v1720 = vpack.c.bf16 %v1692, %v1691
        %v1721 = vpack.c.bf16 %v1694, %v1693
        %v1722 = vpack.c.bf16 %v1696, %v1695
        %v1723 = vpack.c.bf16 %v1698, %v1697
        %v1724 = vpack.c.bf16 %v1700, %v1699
        %v1725 = vpack.c.bf16 %v1702, %v1701
        %v1726 = vpack.c.bf16 %v1704, %v1703
        %v1727 = vpack.c.bf16 %v1706, %v1705
        %v1728 = vpack.c.bf16 %v1708, %v1707
        %v1729 = vpack.c.bf16 %v1710, %v1709
        %v1730 = vpack.c.bf16 %v1712, %v1711
        %v1731 = vpack.c.bf16 %v1714, %v1713
        %v1732 = vpack.c.bf16 %v1716, %v1715
        %s1733 = scalar_lea.vmem [#allocation16], 6
        %v1734 = vld [vmem:[%s1733] sm:$0x3]
        %v1736 = vsel %vm746, %v1717, 0
        %v1739 = vsel %vm746, %v1718, 0
        %v1742 = vsel %vm746, %v1719, 0
        %v1745 = vsel %vm746, %v1720, 0
        %v1748 = vsel %vm746, %v1721, 0
        %v1751 = vsel %vm746, %v1722, 0
        %v1754 = vsel %vm746, %v1723, 0
        %v1757 = vsel %vm746, %v1724, 0
        %v1760 = vsel %vm746, %v1725, 0
        %v1763 = vsel %vm746, %v1726, 0
        %v1766 = vsel %vm746, %v1727, 0
        %v1769 = vsel %vm746, %v1728, 0
        %v1772 = vsel %vm746, %v1729, 0
        %v1775 = vsel %vm746, %v1730, 0
        %v1778 = vsel %vm746, %v1731, 0
        %v1781 = vsel %vm746, %v1732, 0
        %v1784 = vsel %vm1014, %v1734, 0
        %1786 = vmatprep.subr.bf16.mxu0 0
        %1787 = vmatpush1.bf16.msra.mxu0 %v1784
        %1788 = vmatprep.subr.bf16.mxu0 0
        %1789 = vmatpush1.bf16.msra.mxu0 0
        %1790 = vmatprep.subr.bf16.mxu0 0
        %1791 = vmatpush1.bf16.msra.mxu0 0
        %1792 = vmatprep.subr.bf16.mxu0 0
        %1793 = vmatpush1.bf16.msra.mxu0 0
        %1794 = vmatprep.subr.bf16.mxu0 0
        %1795 = vmatpush1.bf16.msra.mxu0 0
        %1796 = vmatprep.subr.bf16.mxu0 0
        %1797 = vmatpush1.bf16.msra.mxu0 0
        %1798 = vmatprep.subr.bf16.mxu0 0
        %1799 = vmatpush1.bf16.msra.mxu0 0
        %1800 = vmatprep.subr.bf16.mxu0 0
        %1801 = vmatpush1.bf16.msra.mxu0 0
        %1802 = vmatprep.subr.bf16.mxu0 0
        %1803 = vmatpush1.bf16.msra.mxu0 0
        %1804 = vmatprep.subr.bf16.mxu0 0
        %1805 = vmatpush1.bf16.msra.mxu0 0
        %1806 = vmatprep.subr.bf16.mxu0 0
        %1807 = vmatpush1.bf16.msra.mxu0 0
        %1808 = vmatprep.subr.bf16.mxu0 0
        %1809 = vmatpush1.bf16.msra.mxu0 0
        %1810 = vmatprep.subr.bf16.mxu0 0
        %1811 = vmatpush1.bf16.msra.mxu0 0
        %1812 = vmatprep.subr.bf16.mxu0 0
        %1813 = vmatpush1.bf16.msra.mxu0 0
        %1814 = vmatprep.subr.bf16.mxu0 0
        %1815 = vmatpush1.bf16.msra.mxu0 0
        %1816 = vmatprep.subr.bf16.mxu0 0
        %1817 = vmatpush1.bf16.msra.mxu0 0
        %1818 = vmatprep.mubr.bf16.mxu0 0
        %1819 = vmatmul.mubr.bf16.gmra.mrb[0].mxu0 %v1736
        %v1820 = vpop.f32.mrb[0].mxu0
        %v1821 = vadd.f32 0.0, %v1820
        %v1822 = vpop.f32.mrb[0].mxu0
        %v1823 = vpop.f32.mrb[0].mxu0
        %v1824 = vadd.f32 0.0, %v1823
        %v1825 = vpop.f32.mrb[0].mxu0
        %1826 = vmatprep.mubr.bf16.mxu0 0
        %1827 = vmatmul.mubr.bf16.gmra.mrb[0].mxu0 %v1739
        %v1828 = vpop.f32.mrb[0].mxu0
        %v1829 = vadd.f32 0.0, %v1828
        %v1830 = vpop.f32.mrb[0].mxu0
        %v1831 = vpop.f32.mrb[0].mxu0
        %v1832 = vadd.f32 0.0, %v1831
        %v1833 = vpop.f32.mrb[0].mxu0
        %1834 = vmatprep.mubr.bf16.mxu0 0
        %1835 = vmatmul.mubr.bf16.gmra.mrb[0].mxu0 %v1742
        %v1836 = vpop.f32.mrb[0].mxu0
        %v1837 = vadd.f32 0.0, %v1836
        %v1838 = vpop.f32.mrb[0].mxu0
        %v1839 = vpop.f32.mrb[0].mxu0
        %v1840 = vadd.f32 0.0, %v1839
        %v1841 = vpop.f32.mrb[0].mxu0
        %1842 = vmatprep.mubr.bf16.mxu0 0
        %1843 = vmatmul.mubr.bf16.gmra.mrb[0].mxu0 %v1745
        %v1844 = vpop.f32.mrb[0].mxu0
        %v1845 = vadd.f32 0.0, %v1844
        %v1846 = vpop.f32.mrb[0].mxu0
        %v1847 = vpop.f32.mrb[0].mxu0
        %v1848 = vadd.f32 0.0, %v1847
        %v1849 = vpop.f32.mrb[0].mxu0
        %1850 = vmatprep.mubr.bf16.mxu0 0
        %1851 = vmatmul.mubr.bf16.gmra.mrb[0].mxu0 %v1748
        %v1852 = vpop.f32.mrb[0].mxu0
        %v1853 = vadd.f32 0.0, %v1852
        %v1854 = vpop.f32.mrb[0].mxu0
        %v1855 = vpop.f32.mrb[0].mxu0
        %v1856 = vadd.f32 0.0, %v1855
        %v1857 = vpop.f32.mrb[0].mxu0
        %1858 = vmatprep.mubr.bf16.mxu0 0
        %1859 = vmatmul.mubr.bf16.gmra.mrb[0].mxu0 %v1751
        %v1860 = vpop.f32.mrb[0].mxu0
        %v1861 = vadd.f32 0.0, %v1860
        %v1862 = vpop.f32.mrb[0].mxu0
        %v1863 = vpop.f32.mrb[0].mxu0
        %v1864 = vadd.f32 0.0, %v1863
        %v1865 = vpop.f32.mrb[0].mxu0
        %1866 = vmatprep.mubr.bf16.mxu0 0
        %1867 = vmatmul.mubr.bf16.gmra.mrb[0].mxu0 %v1754
        %v1868 = vpop.f32.mrb[0].mxu0
        %v1869 = vadd.f32 0.0, %v1868
        %v1870 = vpop.f32.mrb[0].mxu0
        %v1871 = vpop.f32.mrb[0].mxu0
        %v1872 = vadd.f32 0.0, %v1871
        %v1873 = vpop.f32.mrb[0].mxu0
        %1874 = vmatprep.mubr.bf16.mxu0 0
        %1875 = vmatmul.mubr.bf16.gmra.mrb[0].mxu0 %v1757
        %v1876 = vpop.f32.mrb[0].mxu0
        %v1877 = vadd.f32 0.0, %v1876
        %v1878 = vpop.f32.mrb[0].mxu0
        %v1879 = vpop.f32.mrb[0].mxu0
        %v1880 = vadd.f32 0.0, %v1879
        %v1881 = vpop.f32.mrb[0].mxu0
        %1882 = vmatprep.mubr.bf16.mxu0 0
        %1883 = vmatmul.mubr.bf16.gmra.mrb[0].mxu0 %v1760
        %v1884 = vpop.f32.mrb[0].mxu0
        %v1885 = vadd.f32 0.0, %v1884
        %v1886 = vpop.f32.mrb[0].mxu0
        %v1887 = vpop.f32.mrb[0].mxu0
        %v1888 = vadd.f32 0.0, %v1887
        %v1889 = vpop.f32.mrb[0].mxu0
        %1890 = vmatprep.mubr.bf16.mxu0 0
        %1891 = vmatmul.mubr.bf16.gmra.mrb[0].mxu0 %v1763
        %v1892 = vpop.f32.mrb[0].mxu0
        %v1893 = vadd.f32 0.0, %v1892
        %v1894 = vpop.f32.mrb[0].mxu0
        %v1895 = vpop.f32.mrb[0].mxu0
        %v1896 = vadd.f32 0.0, %v1895
        %v1897 = vpop.f32.mrb[0].mxu0
        %1898 = vmatprep.mubr.bf16.mxu0 0
        %1899 = vmatmul.mubr.bf16.gmra.mrb[0].mxu0 %v1766
        %v1900 = vpop.f32.mrb[0].mxu0
        %v1901 = vadd.f32 0.0, %v1900
        %v1902 = vpop.f32.mrb[0].mxu0
        %v1903 = vpop.f32.mrb[0].mxu0
        %v1904 = vadd.f32 0.0, %v1903
        %v1905 = vpop.f32.mrb[0].mxu0
        %1906 = vmatprep.mubr.bf16.mxu0 0
        %1907 = vmatmul.mubr.bf16.gmra.mrb[0].mxu0 %v1769
        %v1908 = vpop.f32.mrb[0].mxu0
        %v1909 = vadd.f32 0.0, %v1908
        %v1910 = vpop.f32.mrb[0].mxu0
        %v1911 = vpop.f32.mrb[0].mxu0
        %v1912 = vadd.f32 0.0, %v1911
        %v1913 = vpop.f32.mrb[0].mxu0
        %1914 = vmatprep.mubr.bf16.mxu0 0
        %1915 = vmatmul.mubr.bf16.gmra.mrb[0].mxu0 %v1772
        %v1916 = vpop.f32.mrb[0].mxu0
        %v1917 = vadd.f32 0.0, %v1916
        %v1918 = vpop.f32.mrb[0].mxu0
        %v1919 = vpop.f32.mrb[0].mxu0
        %v1920 = vadd.f32 0.0, %v1919
        %v1921 = vpop.f32.mrb[0].mxu0
        %1922 = vmatprep.mubr.bf16.mxu0 0
        %1923 = vmatmul.mubr.bf16.gmra.mrb[0].mxu0 %v1775
        %v1924 = vpop.f32.mrb[0].mxu0
        %v1925 = vadd.f32 0.0, %v1924
        %v1926 = vpop.f32.mrb[0].mxu0
        %v1927 = vpop.f32.mrb[0].mxu0
        %v1928 = vadd.f32 0.0, %v1927
        %v1929 = vpop.f32.mrb[0].mxu0
        %1930 = vmatprep.mubr.bf16.mxu0 0
        %1931 = vmatmul.mubr.bf16.gmra.mrb[0].mxu0 %v1778
        %v1932 = vpop.f32.mrb[0].mxu0
        %v1933 = vadd.f32 0.0, %v1932
        %v1934 = vpop.f32.mrb[0].mxu0
        %v1935 = vpop.f32.mrb[0].mxu0
        %v1936 = vadd.f32 0.0, %v1935
        %v1937 = vpop.f32.mrb[0].mxu0
        %1938 = vmatprep.mubr.bf16.mxu0 0
        %1939 = vmatmul.mubr.bf16.gmra.mrb[0].mxu0 %v1781
        %v1940 = vpop.f32.mrb[0].mxu0
        %v1941 = vadd.f32 0.0, %v1940
        %v1942 = vpop.f32.mrb[0].mxu0
        %v1943 = vpop.f32.mrb[0].mxu0
        %v1944 = vadd.f32 0.0, %v1943
        %v1945 = vpop.f32.mrb[0].mxu0
        %1946 = vdwg.mxu0
        %v1947 = vadd.f32 %v1653, %v1821
        %v1948 = vadd.f32 %v1654, %v1824
        %v1949 = vadd.f32 %v1655, %v1829
        %v1950 = vadd.f32 %v1656, %v1832
        %v1951 = vadd.f32 %v1657, %v1837
        %v1952 = vadd.f32 %v1658, %v1840
        %v1953 = vadd.f32 %v1659, %v1845
        %v1954 = vadd.f32 %v1660, %v1848
        %v1955 = vadd.f32 %v1661, %v1853
        %v1956 = vadd.f32 %v1662, %v1856
        %v1957 = vadd.f32 %v1663, %v1861
        %v1958 = vadd.f32 %v1664, %v1864
        %v1959 = vadd.f32 %v1665, %v1869
        %v1960 = vadd.f32 %v1666, %v1872
        %v1961 = vadd.f32 %v1667, %v1877
        %v1962 = vadd.f32 %v1668, %v1880
        %v1963 = vadd.f32 %v1669, %v1885
        %v1964 = vadd.f32 %v1670, %v1888
        %v1965 = vadd.f32 %v1671, %v1893
        %v1966 = vadd.f32 %v1672, %v1896
        %v1967 = vadd.f32 %v1673, %v1901
        %v1968 = vadd.f32 %v1674, %v1904
        %v1969 = vadd.f32 %v1675, %v1909
        %v1970 = vadd.f32 %v1676, %v1912
        %v1971 = vadd.f32 %v1677, %v1917
        %v1972 = vadd.f32 %v1678, %v1920
        %v1973 = vadd.f32 %v1679, %v1925
        %v1974 = vadd.f32 %v1680, %v1928
        %v1975 = vadd.f32 %v1681, %v1933
        %v1976 = vadd.f32 %v1682, %v1936
        %v1977 = vadd.f32 %v1683, %v1941
        %v1978 = vadd.f32 %v1684, %v1944
        %v1979 = vld [vmem:[%s834 + $0x1] sm:$0xff]
        %v1980 = vld [vmem:[%s834 + $0x9] sm:$0xff]
        %v1981 = vld [vmem:[%s834 + $0x19] sm:$0xff]
        %v1982 = vld [vmem:[%s834 + $0x21] sm:$0xff]
        %v1983 = vld [vmem:[%s834 + $0x31] sm:$0xff]
        %v1984 = vld [vmem:[%s834 + $0x39] sm:$0xff]
        %v1985 = vld [vmem:[%s834 + $0x49] sm:$0xff]
        %v1986 = vld [vmem:[%s834 + $0x51] sm:$0xff]
        %v1987 = vld [vmem:[%s834 + $0x61] sm:$0xff]
        %v1988 = vld [vmem:[%s834 + $0x69] sm:$0xff]
        %v1989 = vld [vmem:[%s834 + $0x79] sm:$0xff]
        %v1990 = vld [vmem:[%s834 + $0x81] sm:$0xff]
        %v1991 = vld [vmem:[%s834 + $0x91] sm:$0xff]
        %v1992 = vld [vmem:[%s834 + $0x99] sm:$0xff]
        %v1993 = vld [vmem:[%s834 + $0xa9] sm:$0xff]
        %v1994 = vld [vmem:[%s834 + $0xb1] sm:$0xff]
        %v1995 = vld [vmem:[%s834 + $0xc1] sm:$0xff]
        %v1996 = vld [vmem:[%s834 + $0xc9] sm:$0xff]
        %v1997 = vld [vmem:[%s834 + $0xd9] sm:$0xff]
        %v1998 = vld [vmem:[%s834 + $0xe1] sm:$0xff]
        %v1999 = vld [vmem:[%s834 + $0xf1] sm:$0xff]
        %v2000 = vld [vmem:[%s834 + $0xf9] sm:$0xff]
        %v2001 = vld [vmem:[%s834 + $0x109] sm:$0xff]
        %v2002 = vld [vmem:[%s834 + $0x111] sm:$0xff]
        %v2003 = vld [vmem:[%s834 + $0x121] sm:$0xff]
        %v2004 = vld [vmem:[%s834 + $0x129] sm:$0xff]
        %v2005 = vld [vmem:[%s834 + $0x139] sm:$0xff]
        %v2006 = vld [vmem:[%s834 + $0x141] sm:$0xff]
        %v2007 = vld [vmem:[%s834 + $0x151] sm:$0xff]
        %v2008 = vld [vmem:[%s834 + $0x159] sm:$0xff]
        %v2009 = vld [vmem:[%s834 + $0x169] sm:$0xff]
        %v2010 = vld [vmem:[%s834 + $0x171] sm:$0xff]
        %v2011 = vpack.c.bf16 %v1980, %v1979
        %v2012 = vpack.c.bf16 %v1982, %v1981
        %v2013 = vpack.c.bf16 %v1984, %v1983
        %v2014 = vpack.c.bf16 %v1986, %v1985
        %v2015 = vpack.c.bf16 %v1988, %v1987
        %v2016 = vpack.c.bf16 %v1990, %v1989
        %v2017 = vpack.c.bf16 %v1992, %v1991
        %v2018 = vpack.c.bf16 %v1994, %v1993
        %v2019 = vpack.c.bf16 %v1996, %v1995
        %v2020 = vpack.c.bf16 %v1998, %v1997
        %v2021 = vpack.c.bf16 %v2000, %v1999
        %v2022 = vpack.c.bf16 %v2002, %v2001
        %v2023 = vpack.c.bf16 %v2004, %v2003
        %v2024 = vpack.c.bf16 %v2006, %v2005
        %v2025 = vpack.c.bf16 %v2008, %v2007
        %v2026 = vpack.c.bf16 %v2010, %v2009
        %s2027 = scalar_lea.vmem [#allocation16], 8
        %v2028 = vld [vmem:[%s2027] sm:$0x3]
        %v2030 = vsel %vm746, %v2011, 0
        %v2033 = vsel %vm746, %v2012, 0
        %v2036 = vsel %vm746, %v2013, 0
        %v2039 = vsel %vm746, %v2014, 0
        %v2042 = vsel %vm746, %v2015, 0
        %v2045 = vsel %vm746, %v2016, 0
        %v2048 = vsel %vm746, %v2017, 0
        %v2051 = vsel %vm746, %v2018, 0
        %v2054 = vsel %vm746, %v2019, 0
        %v2057 = vsel %vm746, %v2020, 0
        %v2060 = vsel %vm746, %v2021, 0
        %v2063 = vsel %vm746, %v2022, 0
        %v2066 = vsel %vm746, %v2023, 0
        %v2069 = vsel %vm746, %v2024, 0
        %v2072 = vsel %vm746, %v2025, 0
        %v2075 = vsel %vm746, %v2026, 0
        %v2078 = vsel %vm1014, %v2028, 0
        %2080 = vmatprep.subr.bf16.mxu0 0
        %2081 = vmatpush1.bf16.msra.mxu0 %v2078
        %2082 = vmatprep.subr.bf16.mxu0 0
        %2083 = vmatpush1.bf16.msra.mxu0 0
        %2084 = vmatprep.subr.bf16.mxu0 0
        %2085 = vmatpush1.bf16.msra.mxu0 0
        %2086 = vmatprep.subr.bf16.mxu0 0
        %2087 = vmatpush1.bf16.msra.mxu0 0
        %2088 = vmatprep.subr.bf16.mxu0 0
        %2089 = vmatpush1.bf16.msra.mxu0 0
        %2090 = vmatprep.subr.bf16.mxu0 0
        %2091 = vmatpush1.bf16.msra.mxu0 0
        %2092 = vmatprep.subr.bf16.mxu0 0
        %2093 = vmatpush1.bf16.msra.mxu0 0
        %2094 = vmatprep.subr.bf16.mxu0 0
        %2095 = vmatpush1.bf16.msra.mxu0 0
        %2096 = vmatprep.subr.bf16.mxu0 0
        %2097 = vmatpush1.bf16.msra.mxu0 0
        %2098 = vmatprep.subr.bf16.mxu0 0
        %2099 = vmatpush1.bf16.msra.mxu0 0
        %2100 = vmatprep.subr.bf16.mxu0 0
        %2101 = vmatpush1.bf16.msra.mxu0 0
        %2102 = vmatprep.subr.bf16.mxu0 0
        %2103 = vmatpush1.bf16.msra.mxu0 0
        %2104 = vmatprep.subr.bf16.mxu0 0
        %2105 = vmatpush1.bf16.msra.mxu0 0
        %2106 = vmatprep.subr.bf16.mxu0 0
        %2107 = vmatpush1.bf16.msra.mxu0 0
        %2108 = vmatprep.subr.bf16.mxu0 0
        %2109 = vmatpush1.bf16.msra.mxu0 0
        %2110 = vmatprep.subr.bf16.mxu0 0
        %2111 = vmatpush1.bf16.msra.mxu0 0
        %2112 = vmatprep.mubr.bf16.mxu0 0
        %2113 = vmatmul.mubr.bf16.gmra.mrb[0].mxu0 %v2030
        %v2114 = vpop.f32.mrb[0].mxu0
        %v2115 = vadd.f32 0.0, %v2114
        %v2116 = vpop.f32.mrb[0].mxu0
        %v2117 = vpop.f32.mrb[0].mxu0
        %v2118 = vadd.f32 0.0, %v2117
        %v2119 = vpop.f32.mrb[0].mxu0
        %2120 = vmatprep.mubr.bf16.mxu0 0
        %2121 = vmatmul.mubr.bf16.gmra.mrb[0].mxu0 %v2033
        %v2122 = vpop.f32.mrb[0].mxu0
        %v2123 = vadd.f32 0.0, %v2122
        %v2124 = vpop.f32.mrb[0].mxu0
        %v2125 = vpop.f32.mrb[0].mxu0
        %v2126 = vadd.f32 0.0, %v2125
        %v2127 = vpop.f32.mrb[0].mxu0
        %2128 = vmatprep.mubr.bf16.mxu0 0
        %2129 = vmatmul.mubr.bf16.gmra.mrb[0].mxu0 %v2036
        %v2130 = vpop.f32.mrb[0].mxu0
        %v2131 = vadd.f32 0.0, %v2130
        %v2132 = vpop.f32.mrb[0].mxu0
        %v2133 = vpop.f32.mrb[0].mxu0
        %v2134 = vadd.f32 0.0, %v2133
        %v2135 = vpop.f32.mrb[0].mxu0
        %2136 = vmatprep.mubr.bf16.mxu0 0
        %2137 = vmatmul.mubr.bf16.gmra.mrb[0].mxu0 %v2039
        %v2138 = vpop.f32.mrb[0].mxu0
        %v2139 = vadd.f32 0.0, %v2138
        %v2140 = vpop.f32.mrb[0].mxu0
        %v2141 = vpop.f32.mrb[0].mxu0
        %v2142 = vadd.f32 0.0, %v2141
        %v2143 = vpop.f32.mrb[0].mxu0
        %2144 = vmatprep.mubr.bf16.mxu0 0
        %2145 = vmatmul.mubr.bf16.gmra.mrb[0].mxu0 %v2042
        %v2146 = vpop.f32.mrb[0].mxu0
        %v2147 = vadd.f32 0.0, %v2146
        %v2148 = vpop.f32.mrb[0].mxu0
        %v2149 = vpop.f32.mrb[0].mxu0
        %v2150 = vadd.f32 0.0, %v2149
        %v2151 = vpop.f32.mrb[0].mxu0
        %2152 = vmatprep.mubr.bf16.mxu0 0
        %2153 = vmatmul.mubr.bf16.gmra.mrb[0].mxu0 %v2045
        %v2154 = vpop.f32.mrb[0].mxu0
        %v2155 = vadd.f32 0.0, %v2154
        %v2156 = vpop.f32.mrb[0].mxu0
        %v2157 = vpop.f32.mrb[0].mxu0
        %v2158 = vadd.f32 0.0, %v2157
        %v2159 = vpop.f32.mrb[0].mxu0
        %2160 = vmatprep.mubr.bf16.mxu0 0
        %2161 = vmatmul.mubr.bf16.gmra.mrb[0].mxu0 %v2048
        %v2162 = vpop.f32.mrb[0].mxu0
        %v2163 = vadd.f32 0.0, %v2162
        %v2164 = vpop.f32.mrb[0].mxu0
        %v2165 = vpop.f32.mrb[0].mxu0
        %v2166 = vadd.f32 0.0, %v2165
        %v2167 = vpop.f32.mrb[0].mxu0
        %2168 = vmatprep.mubr.bf16.mxu0 0
        %2169 = vmatmul.mubr.bf16.gmra.mrb[0].mxu0 %v2051
        %v2170 = vpop.f32.mrb[0].mxu0
        %v2171 = vadd.f32 0.0, %v2170
        %v2172 = vpop.f32.mrb[0].mxu0
        %v2173 = vpop.f32.mrb[0].mxu0
        %v2174 = vadd.f32 0.0, %v2173
        %v2175 = vpop.f32.mrb[0].mxu0
        %2176 = vmatprep.mubr.bf16.mxu0 0
        %2177 = vmatmul.mubr.bf16.gmra.mrb[0].mxu0 %v2054
        %v2178 = vpop.f32.mrb[0].mxu0
        %v2179 = vadd.f32 0.0, %v2178
        %v2180 = vpop.f32.mrb[0].mxu0
        %v2181 = vpop.f32.mrb[0].mxu0
        %v2182 = vadd.f32 0.0, %v2181
        %v2183 = vpop.f32.mrb[0].mxu0
        %2184 = vmatprep.mubr.bf16.mxu0 0
        %2185 = vmatmul.mubr.bf16.gmra.mrb[0].mxu0 %v2057
        %v2186 = vpop.f32.mrb[0].mxu0
        %v2187 = vadd.f32 0.0, %v2186
        %v2188 = vpop.f32.mrb[0].mxu0
        %v2189 = vpop.f32.mrb[0].mxu0
        %v2190 = vadd.f32 0.0, %v2189
        %v2191 = vpop.f32.mrb[0].mxu0
        %2192 = vmatprep.mubr.bf16.mxu0 0
        %2193 = vmatmul.mubr.bf16.gmra.mrb[0].mxu0 %v2060
        %v2194 = vpop.f32.mrb[0].mxu0
        %v2195 = vadd.f32 0.0, %v2194
        %v2196 = vpop.f32.mrb[0].mxu0
        %v2197 = vpop.f32.mrb[0].mxu0
        %v2198 = vadd.f32 0.0, %v2197
        %v2199 = vpop.f32.mrb[0].mxu0
        %2200 = vmatprep.mubr.bf16.mxu0 0
        %2201 = vmatmul.mubr.bf16.gmra.mrb[0].mxu0 %v2063
        %v2202 = vpop.f32.mrb[0].mxu0
        %v2203 = vadd.f32 0.0, %v2202
        %v2204 = vpop.f32.mrb[0].mxu0
        %v2205 = vpop.f32.mrb[0].mxu0
        %v2206 = vadd.f32 0.0, %v2205
        %v2207 = vpop.f32.mrb[0].mxu0
        %2208 = vmatprep.mubr.bf16.mxu0 0
        %2209 = vmatmul.mubr.bf16.gmra.mrb[0].mxu0 %v2066
        %v2210 = vpop.f32.mrb[0].mxu0
        %v2211 = vadd.f32 0.0, %v2210
        %v2212 = vpop.f32.mrb[0].mxu0
        %v2213 = vpop.f32.mrb[0].mxu0
        %v2214 = vadd.f32 0.0, %v2213
        %v2215 = vpop.f32.mrb[0].mxu0
        %2216 = vmatprep.mubr.bf16.mxu0 0
        %2217 = vmatmul.mubr.bf16.gmra.mrb[0].mxu0 %v2069
        %v2218 = vpop.f32.mrb[0].mxu0
        %v2219 = vadd.f32 0.0, %v2218
        %v2220 = vpop.f32.mrb[0].mxu0
        %v2221 = vpop.f32.mrb[0].mxu0
        %v2222 = vadd.f32 0.0, %v2221
        %v2223 = vpop.f32.mrb[0].mxu0
        %2224 = vmatprep.mubr.bf16.mxu0 0
        %2225 = vmatmul.mubr.bf16.gmra.mrb[0].mxu0 %v2072
        %v2226 = vpop.f32.mrb[0].mxu0
        %v2227 = vadd.f32 0.0, %v2226
        %v2228 = vpop.f32.mrb[0].mxu0
        %v2229 = vpop.f32.mrb[0].mxu0
        %v2230 = vadd.f32 0.0, %v2229
        %v2231 = vpop.f32.mrb[0].mxu0
        %2232 = vmatprep.mubr.bf16.mxu0 0
        %2233 = vmatmul.mubr.bf16.gmra.mrb[0].mxu0 %v2075
        %v2234 = vpop.f32.mrb[0].mxu0
        %v2235 = vadd.f32 0.0, %v2234
        %v2236 = vpop.f32.mrb[0].mxu0
        %v2237 = vpop.f32.mrb[0].mxu0
        %v2238 = vadd.f32 0.0, %v2237
        %v2239 = vpop.f32.mrb[0].mxu0
        %2240 = vdwg.mxu0
        %v2241 = vadd.f32 %v1947, %v2115
        %v2242 = vadd.f32 %v1948, %v2118
        %v2243 = vadd.f32 %v1949, %v2123
        %v2244 = vadd.f32 %v1950, %v2126
        %v2245 = vadd.f32 %v1951, %v2131
        %v2246 = vadd.f32 %v1952, %v2134
        %v2247 = vadd.f32 %v1953, %v2139
        %v2248 = vadd.f32 %v1954, %v2142
        %v2249 = vadd.f32 %v1955, %v2147
        %v2250 = vadd.f32 %v1956, %v2150
        %v2251 = vadd.f32 %v1957, %v2155
        %v2252 = vadd.f32 %v1958, %v2158
        %v2253 = vadd.f32 %v1959, %v2163
        %v2254 = vadd.f32 %v1960, %v2166
        %v2255 = vadd.f32 %v1961, %v2171
        %v2256 = vadd.f32 %v1962, %v2174
        %v2257 = vadd.f32 %v1963, %v2179
        %v2258 = vadd.f32 %v1964, %v2182
        %v2259 = vadd.f32 %v1965, %v2187
        %v2260 = vadd.f32 %v1966, %v2190
        %v2261 = vadd.f32 %v1967, %v2195
        %v2262 = vadd.f32 %v1968, %v2198
        %v2263 = vadd.f32 %v1969, %v2203
        %v2264 = vadd.f32 %v1970, %v2206
        %v2265 = vadd.f32 %v1971, %v2211
        %v2266 = vadd.f32 %v1972, %v2214
        %v2267 = vadd.f32 %v1973, %v2219
        %v2268 = vadd.f32 %v1974, %v2222
        %v2269 = vadd.f32 %v1975, %v2227
        %v2270 = vadd.f32 %v1976, %v2230
        %v2271 = vadd.f32 %v1977, %v2235
        %v2272 = vadd.f32 %v1978, %v2238
        %v2273 = vld [vmem:[%s834 + $0x2] sm:$0xff]
        %v2274 = vld [vmem:[%s834 + $0xa] sm:$0xff]
        %v2275 = vld [vmem:[%s834 + $0x1a] sm:$0xff]
        %v2276 = vld [vmem:[%s834 + $0x22] sm:$0xff]
        %v2277 = vld [vmem:[%s834 + $0x32] sm:$0xff]
        %v2278 = vld [vmem:[%s834 + $0x3a] sm:$0xff]
        %v2279 = vld [vmem:[%s834 + $0x4a] sm:$0xff]
        %v2280 = vld [vmem:[%s834 + $0x52] sm:$0xff]
        %v2281 = vld [vmem:[%s834 + $0x62] sm:$0xff]
        %v2282 = vld [vmem:[%s834 + $0x6a] sm:$0xff]
        %v2283 = vld [vmem:[%s834 + $0x7a] sm:$0xff]
        %v2284 = vld [vmem:[%s834 + $0x82] sm:$0xff]
        %v2285 = vld [vmem:[%s834 + $0x92] sm:$0xff]
        %v2286 = vld [vmem:[%s834 + $0x9a] sm:$0xff]
        %v2287 = vld [vmem:[%s834 + $0xaa] sm:$0xff]
        %v2288 = vld [vmem:[%s834 + $0xb2] sm:$0xff]
        %v2289 = vld [vmem:[%s834 + $0xc2] sm:$0xff]
        %v2290 = vld [vmem:[%s834 + $0xca] sm:$0xff]
        %v2291 = vld [vmem:[%s834 + $0xda] sm:$0xff]
        %v2292 = vld [vmem:[%s834 + $0xe2] sm:$0xff]
        %v2293 = vld [vmem:[%s834 + $0xf2] sm:$0xff]
        %v2294 = vld [vmem:[%s834 + $0xfa] sm:$0xff]
        %v2295 = vld [vmem:[%s834 + $0x10a] sm:$0xff]
        %v2296 = vld [vmem:[%s834 + $0x112] sm:$0xff]
        %v2297 = vld [vmem:[%s834 + $0x122] sm:$0xff]
        %v2298 = vld [vmem:[%s834 + $0x12a] sm:$0xff]
        %v2299 = vld [vmem:[%s834 + $0x13a] sm:$0xff]
        %v2300 = vld [vmem:[%s834 + $0x142] sm:$0xff]
        %v2301 = vld [vmem:[%s834 + $0x152] sm:$0xff]
        %v2302 = vld [vmem:[%s834 + $0x15a] sm:$0xff]
        %v2303 = vld [vmem:[%s834 + $0x16a] sm:$0xff]
        %v2304 = vld [vmem:[%s834 + $0x172] sm:$0xff]
        %v2305 = vpack.c.bf16 %v2274, %v2273
        %v2306 = vpack.c.bf16 %v2276, %v2275
        %v2307 = vpack.c.bf16 %v2278, %v2277
        %v2308 = vpack.c.bf16 %v2280, %v2279
        %v2309 = vpack.c.bf16 %v2282, %v2281
        %v2310 = vpack.c.bf16 %v2284, %v2283
        %v2311 = vpack.c.bf16 %v2286, %v2285
        %v2312 = vpack.c.bf16 %v2288, %v2287
        %v2313 = vpack.c.bf16 %v2290, %v2289
        %v2314 = vpack.c.bf16 %v2292, %v2291
        %v2315 = vpack.c.bf16 %v2294, %v2293
        %v2316 = vpack.c.bf16 %v2296, %v2295
        %v2317 = vpack.c.bf16 %v2298, %v2297
        %v2318 = vpack.c.bf16 %v2300, %v2299
        %v2319 = vpack.c.bf16 %v2302, %v2301
        %v2320 = vpack.c.bf16 %v2304, %v2303
        %s2321 = scalar_lea.vmem [#allocation16], 10
        %v2322 = vld [vmem:[%s2321] sm:$0x3]
        %v2324 = vsel %vm746, %v2305, 0
        %v2327 = vsel %vm746, %v2306, 0
        %v2330 = vsel %vm746, %v2307, 0
        %v2333 = vsel %vm746, %v2308, 0
        %v2336 = vsel %vm746, %v2309, 0
        %v2339 = vsel %vm746, %v2310, 0
        %v2342 = vsel %vm746, %v2311, 0
        %v2345 = vsel %vm746, %v2312, 0
        %v2348 = vsel %vm746, %v2313, 0
        %v2351 = vsel %vm746, %v2314, 0
        %v2354 = vsel %vm746, %v2315, 0
        %v2357 = vsel %vm746, %v2316, 0
        %v2360 = vsel %vm746, %v2317, 0
        %v2363 = vsel %vm746, %v2318, 0
        %v2366 = vsel %vm746, %v2319, 0
        %v2369 = vsel %vm746, %v2320, 0
        %v2372 = vsel %vm1014, %v2322, 0
        %2374 = vmatprep.subr.bf16.mxu0 0
        %2375 = vmatpush1.bf16.msra.mxu0 %v2372
        %2376 = vmatprep.subr.bf16.mxu0 0
        %2377 = vmatpush1.bf16.msra.mxu0 0
        %2378 = vmatprep.subr.bf16.mxu0 0
        %2379 = vmatpush1.bf16.msra.mxu0 0
        %2380 = vmatprep.subr.bf16.mxu0 0
        %2381 = vmatpush1.bf16.msra.mxu0 0
        %2382 = vmatprep.subr.bf16.mxu0 0
        %2383 = vmatpush1.bf16.msra.mxu0 0
        %2384 = vmatprep.subr.bf16.mxu0 0
        %2385 = vmatpush1.bf16.msra.mxu0 0
        %2386 = vmatprep.subr.bf16.mxu0 0
        %2387 = vmatpush1.bf16.msra.mxu0 0
        %2388 = vmatprep.subr.bf16.mxu0 0
        %2389 = vmatpush1.bf16.msra.mxu0 0
        %2390 = vmatprep.subr.bf16.mxu0 0
        %2391 = vmatpush1.bf16.msra.mxu0 0
        %2392 = vmatprep.subr.bf16.mxu0 0
        %2393 = vmatpush1.bf16.msra.mxu0 0
        %2394 = vmatprep.subr.bf16.mxu0 0
        %2395 = vmatpush1.bf16.msra.mxu0 0
        %2396 = vmatprep.subr.bf16.mxu0 0
        %2397 = vmatpush1.bf16.msra.mxu0 0
        %2398 = vmatprep.subr.bf16.mxu0 0
        %2399 = vmatpush1.bf16.msra.mxu0 0
        %2400 = vmatprep.subr.bf16.mxu0 0
        %2401 = vmatpush1.bf16.msra.mxu0 0
        %2402 = vmatprep.subr.bf16.mxu0 0
        %2403 = vmatpush1.bf16.msra.mxu0 0
        %2404 = vmatprep.subr.bf16.mxu0 0
        %2405 = vmatpush1.bf16.msra.mxu0 0
        %2406 = vmatprep.mubr.bf16.mxu0 0
        %2407 = vmatmul.mubr.bf16.gmra.mrb[0].mxu0 %v2324
        %v2408 = vpop.f32.mrb[0].mxu0
        %v2409 = vadd.f32 0.0, %v2408
        %v2410 = vpop.f32.mrb[0].mxu0
        %v2411 = vpop.f32.mrb[0].mxu0
        %v2412 = vadd.f32 0.0, %v2411
        %v2413 = vpop.f32.mrb[0].mxu0
        %2414 = vmatprep.mubr.bf16.mxu0 0
        %2415 = vmatmul.mubr.bf16.gmra.mrb[0].mxu0 %v2327
        %v2416 = vpop.f32.mrb[0].mxu0
        %v2417 = vadd.f32 0.0, %v2416
        %v2418 = vpop.f32.mrb[0].mxu0
        %v2419 = vpop.f32.mrb[0].mxu0
        %v2420 = vadd.f32 0.0, %v2419
        %v2421 = vpop.f32.mrb[0].mxu0
        %2422 = vmatprep.mubr.bf16.mxu0 0
        %2423 = vmatmul.mubr.bf16.gmra.mrb[0].mxu0 %v2330
        %v2424 = vpop.f32.mrb[0].mxu0
        %v2425 = vadd.f32 0.0, %v2424
        %v2426 = vpop.f32.mrb[0].mxu0
        %v2427 = vpop.f32.mrb[0].mxu0
        %v2428 = vadd.f32 0.0, %v2427
        %v2429 = vpop.f32.mrb[0].mxu0
        %2430 = vmatprep.mubr.bf16.mxu0 0
        %2431 = vmatmul.mubr.bf16.gmra.mrb[0].mxu0 %v2333
        %v2432 = vpop.f32.mrb[0].mxu0
        %v2433 = vadd.f32 0.0, %v2432
        %v2434 = vpop.f32.mrb[0].mxu0
        %v2435 = vpop.f32.mrb[0].mxu0
        %v2436 = vadd.f32 0.0, %v2435
        %v2437 = vpop.f32.mrb[0].mxu0
        %2438 = vmatprep.mubr.bf16.mxu0 0
        %2439 = vmatmul.mubr.bf16.gmra.mrb[0].mxu0 %v2336
        %v2440 = vpop.f32.mrb[0].mxu0
        %v2441 = vadd.f32 0.0, %v2440
        %v2442 = vpop.f32.mrb[0].mxu0
        %v2443 = vpop.f32.mrb[0].mxu0
        %v2444 = vadd.f32 0.0, %v2443
        %v2445 = vpop.f32.mrb[0].mxu0
        %2446 = vmatprep.mubr.bf16.mxu0 0
        %2447 = vmatmul.mubr.bf16.gmra.mrb[0].mxu0 %v2339
        %v2448 = vpop.f32.mrb[0].mxu0
        %v2449 = vadd.f32 0.0, %v2448
        %v2450 = vpop.f32.mrb[0].mxu0
        %v2451 = vpop.f32.mrb[0].mxu0
        %v2452 = vadd.f32 0.0, %v2451
        %v2453 = vpop.f32.mrb[0].mxu0
        %2454 = vmatprep.mubr.bf16.mxu0 0
        %2455 = vmatmul.mubr.bf16.gmra.mrb[0].mxu0 %v2342
        %v2456 = vpop.f32.mrb[0].mxu0
        %v2457 = vadd.f32 0.0, %v2456
        %v2458 = vpop.f32.mrb[0].mxu0
        %v2459 = vpop.f32.mrb[0].mxu0
        %v2460 = vadd.f32 0.0, %v2459
        %v2461 = vpop.f32.mrb[0].mxu0
        %2462 = vmatprep.mubr.bf16.mxu0 0
        %2463 = vmatmul.mubr.bf16.gmra.mrb[0].mxu0 %v2345
        %v2464 = vpop.f32.mrb[0].mxu0
        %v2465 = vadd.f32 0.0, %v2464
        %v2466 = vpop.f32.mrb[0].mxu0
        %v2467 = vpop.f32.mrb[0].mxu0
        %v2468 = vadd.f32 0.0, %v2467
        %v2469 = vpop.f32.mrb[0].mxu0
        %2470 = vmatprep.mubr.bf16.mxu0 0
        %2471 = vmatmul.mubr.bf16.gmra.mrb[0].mxu0 %v2348
        %v2472 = vpop.f32.mrb[0].mxu0
        %v2473 = vadd.f32 0.0, %v2472
        %v2474 = vpop.f32.mrb[0].mxu0
        %v2475 = vpop.f32.mrb[0].mxu0
        %v2476 = vadd.f32 0.0, %v2475
        %v2477 = vpop.f32.mrb[0].mxu0
        %2478 = vmatprep.mubr.bf16.mxu0 0
        %2479 = vmatmul.mubr.bf16.gmra.mrb[0].mxu0 %v2351
        %v2480 = vpop.f32.mrb[0].mxu0
        %v2481 = vadd.f32 0.0, %v2480
        %v2482 = vpop.f32.mrb[0].mxu0
        %v2483 = vpop.f32.mrb[0].mxu0
        %v2484 = vadd.f32 0.0, %v2483
        %v2485 = vpop.f32.mrb[0].mxu0
        %2486 = vmatprep.mubr.bf16.mxu0 0
        %2487 = vmatmul.mubr.bf16.gmra.mrb[0].mxu0 %v2354
        %v2488 = vpop.f32.mrb[0].mxu0
        %v2489 = vadd.f32 0.0, %v2488
        %v2490 = vpop.f32.mrb[0].mxu0
        %v2491 = vpop.f32.mrb[0].mxu0
        %v2492 = vadd.f32 0.0, %v2491
        %v2493 = vpop.f32.mrb[0].mxu0
        %2494 = vmatprep.mubr.bf16.mxu0 0
        %2495 = vmatmul.mubr.bf16.gmra.mrb[0].mxu0 %v2357
        %v2496 = vpop.f32.mrb[0].mxu0
        %v2497 = vadd.f32 0.0, %v2496
        %v2498 = vpop.f32.mrb[0].mxu0
        %v2499 = vpop.f32.mrb[0].mxu0
        %v2500 = vadd.f32 0.0, %v2499
        %v2501 = vpop.f32.mrb[0].mxu0
        %2502 = vmatprep.mubr.bf16.mxu0 0
        %2503 = vmatmul.mubr.bf16.gmra.mrb[0].mxu0 %v2360
        %v2504 = vpop.f32.mrb[0].mxu0
        %v2505 = vadd.f32 0.0, %v2504
        %v2506 = vpop.f32.mrb[0].mxu0
        %v2507 = vpop.f32.mrb[0].mxu0
        %v2508 = vadd.f32 0.0, %v2507
        %v2509 = vpop.f32.mrb[0].mxu0
        %2510 = vmatprep.mubr.bf16.mxu0 0
        %2511 = vmatmul.mubr.bf16.gmra.mrb[0].mxu0 %v2363
        %v2512 = vpop.f32.mrb[0].mxu0
        %v2513 = vadd.f32 0.0, %v2512
        %v2514 = vpop.f32.mrb[0].mxu0
        %v2515 = vpop.f32.mrb[0].mxu0
        %v2516 = vadd.f32 0.0, %v2515
        %v2517 = vpop.f32.mrb[0].mxu0
        %2518 = vmatprep.mubr.bf16.mxu0 0
        %2519 = vmatmul.mubr.bf16.gmra.mrb[0].mxu0 %v2366
        %v2520 = vpop.f32.mrb[0].mxu0
        %v2521 = vadd.f32 0.0, %v2520
        %v2522 = vpop.f32.mrb[0].mxu0
        %v2523 = vpop.f32.mrb[0].mxu0
        %v2524 = vadd.f32 0.0, %v2523
        %v2525 = vpop.f32.mrb[0].mxu0
        %2526 = vmatprep.mubr.bf16.mxu0 0
        %2527 = vmatmul.mubr.bf16.gmra.mrb[0].mxu0 %v2369
        %v2528 = vpop.f32.mrb[0].mxu0
        %v2529 = vadd.f32 0.0, %v2528
        %v2530 = vpop.f32.mrb[0].mxu0
        %v2531 = vpop.f32.mrb[0].mxu0
        %v2532 = vadd.f32 0.0, %v2531
        %v2533 = vpop.f32.mrb[0].mxu0
        %2534 = vdwg.mxu0
        %v2535 = vadd.f32 %v2241, %v2409
        %v2536 = vadd.f32 %v2242, %v2412
        %v2537 = vadd.f32 %v2243, %v2417
        %v2538 = vadd.f32 %v2244, %v2420
        %v2539 = vadd.f32 %v2245, %v2425
        %v2540 = vadd.f32 %v2246, %v2428
        %v2541 = vadd.f32 %v2247, %v2433
        %v2542 = vadd.f32 %v2248, %v2436
        %v2543 = vadd.f32 %v2249, %v2441
        %v2544 = vadd.f32 %v2250, %v2444
        %v2545 = vadd.f32 %v2251, %v2449
        %v2546 = vadd.f32 %v2252, %v2452
        %v2547 = vadd.f32 %v2253, %v2457
        %v2548 = vadd.f32 %v2254, %v2460
        %v2549 = vadd.f32 %v2255, %v2465
        %v2550 = vadd.f32 %v2256, %v2468
        %v2551 = vadd.f32 %v2257, %v2473
        %v2552 = vadd.f32 %v2258, %v2476
        %v2553 = vadd.f32 %v2259, %v2481
        %v2554 = vadd.f32 %v2260, %v2484
        %v2555 = vadd.f32 %v2261, %v2489
        %v2556 = vadd.f32 %v2262, %v2492
        %v2557 = vadd.f32 %v2263, %v2497
        %v2558 = vadd.f32 %v2264, %v2500
        %v2559 = vadd.f32 %v2265, %v2505
        %v2560 = vadd.f32 %v2266, %v2508
        %v2561 = vadd.f32 %v2267, %v2513
        %v2562 = vadd.f32 %v2268, %v2516
        %v2563 = vadd.f32 %v2269, %v2521
        %v2564 = vadd.f32 %v2270, %v2524
        %v2565 = vadd.f32 %v2271, %v2529
        %v2566 = vadd.f32 %v2272, %v2532
        %s2567 = scalar_lea.vmem [#allocation2], 48
        %v2568 = vld [vmem:[%s2567] sm:$0xff]
        %v2569 = vld [vmem:[%s2567 + $0x8] sm:$0xff]
        %v2570 = vld [vmem:[%s2567 + $0x18] sm:$0xff]
        %v2571 = vld [vmem:[%s2567 + $0x20] sm:$0xff]
        %v2572 = vld [vmem:[%s2567 + $0x30] sm:$0xff]
        %v2573 = vld [vmem:[%s2567 + $0x38] sm:$0xff]
        %v2574 = vld [vmem:[%s2567 + $0x48] sm:$0xff]
        %v2575 = vld [vmem:[%s2567 + $0x50] sm:$0xff]
        %v2576 = vld [vmem:[%s2567 + $0x60] sm:$0xff]
        %v2577 = vld [vmem:[%s2567 + $0x68] sm:$0xff]
        %v2578 = vld [vmem:[%s2567 + $0x78] sm:$0xff]
        %v2579 = vld [vmem:[%s2567 + $0x80] sm:$0xff]
        %v2580 = vld [vmem:[%s2567 + $0x90] sm:$0xff]
        %v2581 = vld [vmem:[%s2567 + $0x98] sm:$0xff]
        %v2582 = vld [vmem:[%s2567 + $0xa8] sm:$0xff]
        %v2583 = vld [vmem:[%s2567 + $0xb0] sm:$0xff]
        %v2584 = vld [vmem:[%s2567 + $0xc0] sm:$0xff]
        %v2585 = vld [vmem:[%s2567 + $0xc8] sm:$0xff]
        %v2586 = vld [vmem:[%s2567 + $0xd8] sm:$0xff]
        %v2587 = vld [vmem:[%s2567 + $0xe0] sm:$0xff]
        %v2588 = vld [vmem:[%s2567 + $0xf0] sm:$0xff]
        %v2589 = vld [vmem:[%s2567 + $0xf8] sm:$0xff]
        %v2590 = vld [vmem:[%s2567 + $0x108] sm:$0xff]
        %v2591 = vld [vmem:[%s2567 + $0x110] sm:$0xff]
        %v2592 = vld [vmem:[%s2567 + $0x120] sm:$0xff]
        %v2593 = vld [vmem:[%s2567 + $0x128] sm:$0xff]
        %v2594 = vld [vmem:[%s2567 + $0x138] sm:$0xff]
        %v2595 = vld [vmem:[%s2567 + $0x140] sm:$0xff]
        %v2596 = vld [vmem:[%s2567 + $0x150] sm:$0xff]
        %v2597 = vld [vmem:[%s2567 + $0x158] sm:$0xff]
        %v2598 = vld [vmem:[%s2567 + $0x168] sm:$0xff]
        %v2599 = vld [vmem:[%s2567 + $0x170] sm:$0xff]
        %v2600 = vpack.c.bf16 %v2569, %v2568
        %v2601 = vpack.c.bf16 %v2571, %v2570
        %v2602 = vpack.c.bf16 %v2573, %v2572
        %v2603 = vpack.c.bf16 %v2575, %v2574
        %v2604 = vpack.c.bf16 %v2577, %v2576
        %v2605 = vpack.c.bf16 %v2579, %v2578
        %v2606 = vpack.c.bf16 %v2581, %v2580
        %v2607 = vpack.c.bf16 %v2583, %v2582
        %v2608 = vpack.c.bf16 %v2585, %v2584
        %v2609 = vpack.c.bf16 %v2587, %v2586
        %v2610 = vpack.c.bf16 %v2589, %v2588
        %v2611 = vpack.c.bf16 %v2591, %v2590
        %v2612 = vpack.c.bf16 %v2593, %v2592
        %v2613 = vpack.c.bf16 %v2595, %v2594
        %v2614 = vpack.c.bf16 %v2597, %v2596
        %v2615 = vpack.c.bf16 %v2599, %v2598
        %s2616 = scalar_lea.vmem [#allocation16], 12
        %v2617 = vld [vmem:[%s2616] sm:$0x3]
        %v2619 = vsel %vm746, %v2600, 0
        %v2622 = vsel %vm746, %v2601, 0
        %v2625 = vsel %vm746, %v2602, 0
        %v2628 = vsel %vm746, %v2603, 0
        %v2631 = vsel %vm746, %v2604, 0
        %v2634 = vsel %vm746, %v2605, 0
        %v2637 = vsel %vm746, %v2606, 0
        %v2640 = vsel %vm746, %v2607, 0
        %v2643 = vsel %vm746, %v2608, 0
        %v2646 = vsel %vm746, %v2609, 0
        %v2649 = vsel %vm746, %v2610, 0
        %v2652 = vsel %vm746, %v2611, 0
        %v2655 = vsel %vm746, %v2612, 0
        %v2658 = vsel %vm746, %v2613, 0
        %v2661 = vsel %vm746, %v2614, 0
        %v2664 = vsel %vm746, %v2615, 0
        %v2667 = vsel %vm1014, %v2617, 0
        %2669 = vmatprep.subr.bf16.mxu0 0
        %2670 = vmatpush1.bf16.msra.mxu0 %v2667
        %2671 = vmatprep.subr.bf16.mxu0 0
        %2672 = vmatpush1.bf16.msra.mxu0 0
        %2673 = vmatprep.subr.bf16.mxu0 0
        %2674 = vmatpush1.bf16.msra.mxu0 0
        %2675 = vmatprep.subr.bf16.mxu0 0
        %2676 = vmatpush1.bf16.msra.mxu0 0
        %2677 = vmatprep.subr.bf16.mxu0 0
        %2678 = vmatpush1.bf16.msra.mxu0 0
        %2679 = vmatprep.subr.bf16.mxu0 0
        %2680 = vmatpush1.bf16.msra.mxu0 0
        %2681 = vmatprep.subr.bf16.mxu0 0
        %2682 = vmatpush1.bf16.msra.mxu0 0
        %2683 = vmatprep.subr.bf16.mxu0 0
        %2684 = vmatpush1.bf16.msra.mxu0 0
        %2685 = vmatprep.subr.bf16.mxu0 0
        %2686 = vmatpush1.bf16.msra.mxu0 0
        %2687 = vmatprep.subr.bf16.mxu0 0
        %2688 = vmatpush1.bf16.msra.mxu0 0
        %2689 = vmatprep.subr.bf16.mxu0 0
        %2690 = vmatpush1.bf16.msra.mxu0 0
        %2691 = vmatprep.subr.bf16.mxu0 0
        %2692 = vmatpush1.bf16.msra.mxu0 0
        %2693 = vmatprep.subr.bf16.mxu0 0
        %2694 = vmatpush1.bf16.msra.mxu0 0
        %2695 = vmatprep.subr.bf16.mxu0 0
        %2696 = vmatpush1.bf16.msra.mxu0 0
        %2697 = vmatprep.subr.bf16.mxu0 0
        %2698 = vmatpush1.bf16.msra.mxu0 0
        %2699 = vmatprep.subr.bf16.mxu0 0
        %2700 = vmatpush1.bf16.msra.mxu0 0
        %2701 = vmatprep.mubr.bf16.mxu0 0
        %2702 = vmatmul.mubr.bf16.gmra.mrb[0].mxu0 %v2619
        %v2703 = vpop.f32.mrb[0].mxu0
        %v2704 = vadd.f32 0.0, %v2703
        %v2705 = vpop.f32.mrb[0].mxu0
        %v2706 = vpop.f32.mrb[0].mxu0
        %v2707 = vadd.f32 0.0, %v2706
        %v2708 = vpop.f32.mrb[0].mxu0
        %2709 = vmatprep.mubr.bf16.mxu0 0
        %2710 = vmatmul.mubr.bf16.gmra.mrb[0].mxu0 %v2622
        %v2711 = vpop.f32.mrb[0].mxu0
        %v2712 = vadd.f32 0.0, %v2711
        %v2713 = vpop.f32.mrb[0].mxu0
        %v2714 = vpop.f32.mrb[0].mxu0
        %v2715 = vadd.f32 0.0, %v2714
        %v2716 = vpop.f32.mrb[0].mxu0
        %2717 = vmatprep.mubr.bf16.mxu0 0
        %2718 = vmatmul.mubr.bf16.gmra.mrb[0].mxu0 %v2625
        %v2719 = vpop.f32.mrb[0].mxu0
        %v2720 = vadd.f32 0.0, %v2719
        %v2721 = vpop.f32.mrb[0].mxu0
        %v2722 = vpop.f32.mrb[0].mxu0
        %v2723 = vadd.f32 0.0, %v2722
        %v2724 = vpop.f32.mrb[0].mxu0
        %2725 = vmatprep.mubr.bf16.mxu0 0
        %2726 = vmatmul.mubr.bf16.gmra.mrb[0].mxu0 %v2628
        %v2727 = vpop.f32.mrb[0].mxu0
        %v2728 = vadd.f32 0.0, %v2727
        %v2729 = vpop.f32.mrb[0].mxu0
        %v2730 = vpop.f32.mrb[0].mxu0
        %v2731 = vadd.f32 0.0, %v2730
        %v2732 = vpop.f32.mrb[0].mxu0
        %2733 = vmatprep.mubr.bf16.mxu0 0
        %2734 = vmatmul.mubr.bf16.gmra.mrb[0].mxu0 %v2631
        %v2735 = vpop.f32.mrb[0].mxu0
        %v2736 = vadd.f32 0.0, %v2735
        %v2737 = vpop.f32.mrb[0].mxu0
        %v2738 = vpop.f32.mrb[0].mxu0
        %v2739 = vadd.f32 0.0, %v2738
        %v2740 = vpop.f32.mrb[0].mxu0
        %2741 = vmatprep.mubr.bf16.mxu0 0
        %2742 = vmatmul.mubr.bf16.gmra.mrb[0].mxu0 %v2634
        %v2743 = vpop.f32.mrb[0].mxu0
        %v2744 = vadd.f32 0.0, %v2743
        %v2745 = vpop.f32.mrb[0].mxu0
        %v2746 = vpop.f32.mrb[0].mxu0
        %v2747 = vadd.f32 0.0, %v2746
        %v2748 = vpop.f32.mrb[0].mxu0
        %2749 = vmatprep.mubr.bf16.mxu0 0
        %2750 = vmatmul.mubr.bf16.gmra.mrb[0].mxu0 %v2637
        %v2751 = vpop.f32.mrb[0].mxu0
        %v2752 = vadd.f32 0.0, %v2751
        %v2753 = vpop.f32.mrb[0].mxu0
        %v2754 = vpop.f32.mrb[0].mxu0
        %v2755 = vadd.f32 0.0, %v2754
        %v2756 = vpop.f32.mrb[0].mxu0
        %2757 = vmatprep.mubr.bf16.mxu0 0
        %2758 = vmatmul.mubr.bf16.gmra.mrb[0].mxu0 %v2640
        %v2759 = vpop.f32.mrb[0].mxu0
        %v2760 = vadd.f32 0.0, %v2759
        %v2761 = vpop.f32.mrb[0].mxu0
        %v2762 = vpop.f32.mrb[0].mxu0
        %v2763 = vadd.f32 0.0, %v2762
        %v2764 = vpop.f32.mrb[0].mxu0
        %2765 = vmatprep.mubr.bf16.mxu0 0
        %2766 = vmatmul.mubr.bf16.gmra.mrb[0].mxu0 %v2643
        %v2767 = vpop.f32.mrb[0].mxu0
        %v2768 = vadd.f32 0.0, %v2767
        %v2769 = vpop.f32.mrb[0].mxu0
        %v2770 = vpop.f32.mrb[0].mxu0
        %v2771 = vadd.f32 0.0, %v2770
        %v2772 = vpop.f32.mrb[0].mxu0
        %2773 = vmatprep.mubr.bf16.mxu0 0
        %2774 = vmatmul.mubr.bf16.gmra.mrb[0].mxu0 %v2646
        %v2775 = vpop.f32.mrb[0].mxu0
        %v2776 = vadd.f32 0.0, %v2775
        %v2777 = vpop.f32.mrb[0].mxu0
        %v2778 = vpop.f32.mrb[0].mxu0
        %v2779 = vadd.f32 0.0, %v2778
        %v2780 = vpop.f32.mrb[0].mxu0
        %2781 = vmatprep.mubr.bf16.mxu0 0
        %2782 = vmatmul.mubr.bf16.gmra.mrb[0].mxu0 %v2649
        %v2783 = vpop.f32.mrb[0].mxu0
        %v2784 = vadd.f32 0.0, %v2783
        %v2785 = vpop.f32.mrb[0].mxu0
        %v2786 = vpop.f32.mrb[0].mxu0
        %v2787 = vadd.f32 0.0, %v2786
        %v2788 = vpop.f32.mrb[0].mxu0
        %2789 = vmatprep.mubr.bf16.mxu0 0
        %2790 = vmatmul.mubr.bf16.gmra.mrb[0].mxu0 %v2652
        %v2791 = vpop.f32.mrb[0].mxu0
        %v2792 = vadd.f32 0.0, %v2791
        %v2793 = vpop.f32.mrb[0].mxu0
        %v2794 = vpop.f32.mrb[0].mxu0
        %v2795 = vadd.f32 0.0, %v2794
        %v2796 = vpop.f32.mrb[0].mxu0
        %2797 = vmatprep.mubr.bf16.mxu0 0
        %2798 = vmatmul.mubr.bf16.gmra.mrb[0].mxu0 %v2655
        %v2799 = vpop.f32.mrb[0].mxu0
        %v2800 = vadd.f32 0.0, %v2799
        %v2801 = vpop.f32.mrb[0].mxu0
        %v2802 = vpop.f32.mrb[0].mxu0
        %v2803 = vadd.f32 0.0, %v2802
        %v2804 = vpop.f32.mrb[0].mxu0
        %2805 = vmatprep.mubr.bf16.mxu0 0
        %2806 = vmatmul.mubr.bf16.gmra.mrb[0].mxu0 %v2658
        %v2807 = vpop.f32.mrb[0].mxu0
        %v2808 = vadd.f32 0.0, %v2807
        %v2809 = vpop.f32.mrb[0].mxu0
        %v2810 = vpop.f32.mrb[0].mxu0
        %v2811 = vadd.f32 0.0, %v2810
        %v2812 = vpop.f32.mrb[0].mxu0
        %2813 = vmatprep.mubr.bf16.mxu0 0
        %2814 = vmatmul.mubr.bf16.gmra.mrb[0].mxu0 %v2661
        %v2815 = vpop.f32.mrb[0].mxu0
        %v2816 = vadd.f32 0.0, %v2815
        %v2817 = vpop.f32.mrb[0].mxu0
        %v2818 = vpop.f32.mrb[0].mxu0
        %v2819 = vadd.f32 0.0, %v2818
        %v2820 = vpop.f32.mrb[0].mxu0
        %2821 = vmatprep.mubr.bf16.mxu0 0
        %2822 = vmatmul.mubr.bf16.gmra.mrb[0].mxu0 %v2664
        %v2823 = vpop.f32.mrb[0].mxu0
        %v2824 = vadd.f32 0.0, %v2823
        %v2825 = vpop.f32.mrb[0].mxu0
        %v2826 = vpop.f32.mrb[0].mxu0
        %v2827 = vadd.f32 0.0, %v2826
        %v2828 = vpop.f32.mrb[0].mxu0
        %2829 = vdwg.mxu0
        %v2830 = vadd.f32 %v2535, %v2704
        %v2831 = vadd.f32 %v2536, %v2707
        %v2832 = vadd.f32 %v2537, %v2712
        %v2833 = vadd.f32 %v2538, %v2715
        %v2834 = vadd.f32 %v2539, %v2720
        %v2835 = vadd.f32 %v2540, %v2723
        %v2836 = vadd.f32 %v2541, %v2728
        %v2837 = vadd.f32 %v2542, %v2731
        %v2838 = vadd.f32 %v2543, %v2736
        %v2839 = vadd.f32 %v2544, %v2739
        %v2840 = vadd.f32 %v2545, %v2744
        %v2841 = vadd.f32 %v2546, %v2747
        %v2842 = vadd.f32 %v2547, %v2752
        %v2843 = vadd.f32 %v2548, %v2755
        %v2844 = vadd.f32 %v2549, %v2760
        %v2845 = vadd.f32 %v2550, %v2763
        %v2846 = vadd.f32 %v2551, %v2768
        %v2847 = vadd.f32 %v2552, %v2771
        %v2848 = vadd.f32 %v2553, %v2776
        %v2849 = vadd.f32 %v2554, %v2779
        %v2850 = vadd.f32 %v2555, %v2784
        %v2851 = vadd.f32 %v2556, %v2787
        %v2852 = vadd.f32 %v2557, %v2792
        %v2853 = vadd.f32 %v2558, %v2795
        %v2854 = vadd.f32 %v2559, %v2800
        %v2855 = vadd.f32 %v2560, %v2803
        %v2856 = vadd.f32 %v2561, %v2808
        %v2857 = vadd.f32 %v2562, %v2811
        %v2858 = vadd.f32 %v2563, %v2816
        %v2859 = vadd.f32 %v2564, %v2819
        %v2860 = vadd.f32 %v2565, %v2824
        %v2861 = vadd.f32 %v2566, %v2827
        %v2862 = vld [vmem:[%s2567 + $0x1] sm:$0xff]
        %v2863 = vld [vmem:[%s2567 + $0x9] sm:$0xff]
        %v2864 = vld [vmem:[%s2567 + $0x19] sm:$0xff]
        %v2865 = vld [vmem:[%s2567 + $0x21] sm:$0xff]
        %v2866 = vld [vmem:[%s2567 + $0x31] sm:$0xff]
        %v2867 = vld [vmem:[%s2567 + $0x39] sm:$0xff]
        %v2868 = vld [vmem:[%s2567 + $0x49] sm:$0xff]
        %v2869 = vld [vmem:[%s2567 + $0x51] sm:$0xff]
        %v2870 = vld [vmem:[%s2567 + $0x61] sm:$0xff]
        %v2871 = vld [vmem:[%s2567 + $0x69] sm:$0xff]
        %v2872 = vld [vmem:[%s2567 + $0x79] sm:$0xff]
        %v2873 = vld [vmem:[%s2567 + $0x81] sm:$0xff]
        %v2874 = vld [vmem:[%s2567 + $0x91] sm:$0xff]
        %v2875 = vld [vmem:[%s2567 + $0x99] sm:$0xff]
        %v2876 = vld [vmem:[%s2567 + $0xa9] sm:$0xff]
        %v2877 = vld [vmem:[%s2567 + $0xb1] sm:$0xff]
        %v2878 = vld [vmem:[%s2567 + $0xc1] sm:$0xff]
        %v2879 = vld [vmem:[%s2567 + $0xc9] sm:$0xff]
        %v2880 = vld [vmem:[%s2567 + $0xd9] sm:$0xff]
        %v2881 = vld [vmem:[%s2567 + $0xe1] sm:$0xff]
        %v2882 = vld [vmem:[%s2567 + $0xf1] sm:$0xff]
        %v2883 = vld [vmem:[%s2567 + $0xf9] sm:$0xff]
        %v2884 = vld [vmem:[%s2567 + $0x109] sm:$0xff]
        %v2885 = vld [vmem:[%s2567 + $0x111] sm:$0xff]
        %v2886 = vld [vmem:[%s2567 + $0x121] sm:$0xff]
        %v2887 = vld [vmem:[%s2567 + $0x129] sm:$0xff]
        %v2888 = vld [vmem:[%s2567 + $0x139] sm:$0xff]
        %v2889 = vld [vmem:[%s2567 + $0x141] sm:$0xff]
        %v2890 = vld [vmem:[%s2567 + $0x151] sm:$0xff]
        %v2891 = vld [vmem:[%s2567 + $0x159] sm:$0xff]
        %v2892 = vld [vmem:[%s2567 + $0x169] sm:$0xff]
        %v2893 = vld [vmem:[%s2567 + $0x171] sm:$0xff]
        %v2894 = vpack.c.bf16 %v2863, %v2862
        %v2895 = vpack.c.bf16 %v2865, %v2864
        %v2896 = vpack.c.bf16 %v2867, %v2866
        %v2897 = vpack.c.bf16 %v2869, %v2868
        %v2898 = vpack.c.bf16 %v2871, %v2870
        %v2899 = vpack.c.bf16 %v2873, %v2872
        %v2900 = vpack.c.bf16 %v2875, %v2874
        %v2901 = vpack.c.bf16 %v2877, %v2876
        %v2902 = vpack.c.bf16 %v2879, %v2878
        %v2903 = vpack.c.bf16 %v2881, %v2880
        %v2904 = vpack.c.bf16 %v2883, %v2882
        %v2905 = vpack.c.bf16 %v2885, %v2884
        %v2906 = vpack.c.bf16 %v2887, %v2886
        %v2907 = vpack.c.bf16 %v2889, %v2888
        %v2908 = vpack.c.bf16 %v2891, %v2890
        %v2909 = vpack.c.bf16 %v2893, %v2892
        %s2910 = scalar_lea.vmem [#allocation16], 14
        %v2911 = vld [vmem:[%s2910] sm:$0x3]
        %v2913 = vsel %vm746, %v2894, 0
        %v2916 = vsel %vm746, %v2895, 0
        %v2919 = vsel %vm746, %v2896, 0
        %v2922 = vsel %vm746, %v2897, 0
        %v2925 = vsel %vm746, %v2898, 0
        %v2928 = vsel %vm746, %v2899, 0
        %v2931 = vsel %vm746, %v2900, 0
        %v2934 = vsel %vm746, %v2901, 0
        %v2937 = vsel %vm746, %v2902, 0
        %v2940 = vsel %vm746, %v2903, 0
        %v2943 = vsel %vm746, %v2904, 0
        %v2946 = vsel %vm746, %v2905, 0
        %v2949 = vsel %vm746, %v2906, 0
        %v2952 = vsel %vm746, %v2907, 0
        %v2955 = vsel %vm746, %v2908, 0
        %v2958 = vsel %vm746, %v2909, 0
        %v2961 = vsel %vm1014, %v2911, 0
        %2963 = vmatprep.subr.bf16.mxu0 0
        %2964 = vmatpush1.bf16.msra.mxu0 %v2961
        %2965 = vmatprep.subr.bf16.mxu0 0
        %2966 = vmatpush1.bf16.msra.mxu0 0
        %2967 = vmatprep.subr.bf16.mxu0 0
        %2968 = vmatpush1.bf16.msra.mxu0 0
        %2969 = vmatprep.subr.bf16.mxu0 0
        %2970 = vmatpush1.bf16.msra.mxu0 0
        %2971 = vmatprep.subr.bf16.mxu0 0
        %2972 = vmatpush1.bf16.msra.mxu0 0
        %2973 = vmatprep.subr.bf16.mxu0 0
        %2974 = vmatpush1.bf16.msra.mxu0 0
        %2975 = vmatprep.subr.bf16.mxu0 0
        %2976 = vmatpush1.bf16.msra.mxu0 0
        %2977 = vmatprep.subr.bf16.mxu0 0
        %2978 = vmatpush1.bf16.msra.mxu0 0
        %2979 = vmatprep.subr.bf16.mxu0 0
        %2980 = vmatpush1.bf16.msra.mxu0 0
        %2981 = vmatprep.subr.bf16.mxu0 0
        %2982 = vmatpush1.bf16.msra.mxu0 0
        %2983 = vmatprep.subr.bf16.mxu0 0
        %2984 = vmatpush1.bf16.msra.mxu0 0
        %2985 = vmatprep.subr.bf16.mxu0 0
        %2986 = vmatpush1.bf16.msra.mxu0 0
        %2987 = vmatprep.subr.bf16.mxu0 0
        %2988 = vmatpush1.bf16.msra.mxu0 0
        %2989 = vmatprep.subr.bf16.mxu0 0
        %2990 = vmatpush1.bf16.msra.mxu0 0
        %2991 = vmatprep.subr.bf16.mxu0 0
        %2992 = vmatpush1.bf16.msra.mxu0 0
        %2993 = vmatprep.subr.bf16.mxu0 0
        %2994 = vmatpush1.bf16.msra.mxu0 0
        %2995 = vmatprep.mubr.bf16.mxu0 0
        %2996 = vmatmul.mubr.bf16.gmra.mrb[0].mxu0 %v2913
        %v2997 = vpop.f32.mrb[0].mxu0
        %v2998 = vadd.f32 0.0, %v2997
        %v2999 = vpop.f32.mrb[0].mxu0
        %v3000 = vpop.f32.mrb[0].mxu0
        %v3001 = vadd.f32 0.0, %v3000
        %v3002 = vpop.f32.mrb[0].mxu0
        %3003 = vmatprep.mubr.bf16.mxu0 0
        %3004 = vmatmul.mubr.bf16.gmra.mrb[0].mxu0 %v2916
        %v3005 = vpop.f32.mrb[0].mxu0
        %v3006 = vadd.f32 0.0, %v3005
        %v3007 = vpop.f32.mrb[0].mxu0
        %v3008 = vpop.f32.mrb[0].mxu0
        %v3009 = vadd.f32 0.0, %v3008
        %v3010 = vpop.f32.mrb[0].mxu0
        %3011 = vmatprep.mubr.bf16.mxu0 0
        %3012 = vmatmul.mubr.bf16.gmra.mrb[0].mxu0 %v2919
        %v3013 = vpop.f32.mrb[0].mxu0
        %v3014 = vadd.f32 0.0, %v3013
        %v3015 = vpop.f32.mrb[0].mxu0
        %v3016 = vpop.f32.mrb[0].mxu0
        %v3017 = vadd.f32 0.0, %v3016
        %v3018 = vpop.f32.mrb[0].mxu0
        %3019 = vmatprep.mubr.bf16.mxu0 0
        %3020 = vmatmul.mubr.bf16.gmra.mrb[0].mxu0 %v2922
        %v3021 = vpop.f32.mrb[0].mxu0
        %v3022 = vadd.f32 0.0, %v3021
        %v3023 = vpop.f32.mrb[0].mxu0
        %v3024 = vpop.f32.mrb[0].mxu0
        %v3025 = vadd.f32 0.0, %v3024
        %v3026 = vpop.f32.mrb[0].mxu0
        %3027 = vmatprep.mubr.bf16.mxu0 0
        %3028 = vmatmul.mubr.bf16.gmra.mrb[0].mxu0 %v2925
        %v3029 = vpop.f32.mrb[0].mxu0
        %v3030 = vadd.f32 0.0, %v3029
        %v3031 = vpop.f32.mrb[0].mxu0
        %v3032 = vpop.f32.mrb[0].mxu0
        %v3033 = vadd.f32 0.0, %v3032
        %v3034 = vpop.f32.mrb[0].mxu0
        %3035 = vmatprep.mubr.bf16.mxu0 0
        %3036 = vmatmul.mubr.bf16.gmra.mrb[0].mxu0 %v2928
        %v3037 = vpop.f32.mrb[0].mxu0
        %v3038 = vadd.f32 0.0, %v3037
        %v3039 = vpop.f32.mrb[0].mxu0
        %v3040 = vpop.f32.mrb[0].mxu0
        %v3041 = vadd.f32 0.0, %v3040
        %v3042 = vpop.f32.mrb[0].mxu0
        %3043 = vmatprep.mubr.bf16.mxu0 0
        %3044 = vmatmul.mubr.bf16.gmra.mrb[0].mxu0 %v2931
        %v3045 = vpop.f32.mrb[0].mxu0
        %v3046 = vadd.f32 0.0, %v3045
        %v3047 = vpop.f32.mrb[0].mxu0
        %v3048 = vpop.f32.mrb[0].mxu0
        %v3049 = vadd.f32 0.0, %v3048
        %v3050 = vpop.f32.mrb[0].mxu0
        %3051 = vmatprep.mubr.bf16.mxu0 0
        %3052 = vmatmul.mubr.bf16.gmra.mrb[0].mxu0 %v2934
        %v3053 = vpop.f32.mrb[0].mxu0
        %v3054 = vadd.f32 0.0, %v3053
        %v3055 = vpop.f32.mrb[0].mxu0
        %v3056 = vpop.f32.mrb[0].mxu0
        %v3057 = vadd.f32 0.0, %v3056
        %v3058 = vpop.f32.mrb[0].mxu0
        %3059 = vmatprep.mubr.bf16.mxu0 0
        %3060 = vmatmul.mubr.bf16.gmra.mrb[0].mxu0 %v2937
        %v3061 = vpop.f32.mrb[0].mxu0
        %v3062 = vadd.f32 0.0, %v3061
        %v3063 = vpop.f32.mrb[0].mxu0
        %v3064 = vpop.f32.mrb[0].mxu0
        %v3065 = vadd.f32 0.0, %v3064
        %v3066 = vpop.f32.mrb[0].mxu0
        %3067 = vmatprep.mubr.bf16.mxu0 0
        %3068 = vmatmul.mubr.bf16.gmra.mrb[0].mxu0 %v2940
        %v3069 = vpop.f32.mrb[0].mxu0
        %v3070 = vadd.f32 0.0, %v3069
        %v3071 = vpop.f32.mrb[0].mxu0
        %v3072 = vpop.f32.mrb[0].mxu0
        %v3073 = vadd.f32 0.0, %v3072
        %v3074 = vpop.f32.mrb[0].mxu0
        %3075 = vmatprep.mubr.bf16.mxu0 0
        %3076 = vmatmul.mubr.bf16.gmra.mrb[0].mxu0 %v2943
        %v3077 = vpop.f32.mrb[0].mxu0
        %v3078 = vadd.f32 0.0, %v3077
        %v3079 = vpop.f32.mrb[0].mxu0
        %v3080 = vpop.f32.mrb[0].mxu0
        %v3081 = vadd.f32 0.0, %v3080
        %v3082 = vpop.f32.mrb[0].mxu0
        %3083 = vmatprep.mubr.bf16.mxu0 0
        %3084 = vmatmul.mubr.bf16.gmra.mrb[0].mxu0 %v2946
        %v3085 = vpop.f32.mrb[0].mxu0
        %v3086 = vadd.f32 0.0, %v3085
        %v3087 = vpop.f32.mrb[0].mxu0
        %v3088 = vpop.f32.mrb[0].mxu0
        %v3089 = vadd.f32 0.0, %v3088
        %v3090 = vpop.f32.mrb[0].mxu0
        %3091 = vmatprep.mubr.bf16.mxu0 0
        %3092 = vmatmul.mubr.bf16.gmra.mrb[0].mxu0 %v2949
        %v3093 = vpop.f32.mrb[0].mxu0
        %v3094 = vadd.f32 0.0, %v3093
        %v3095 = vpop.f32.mrb[0].mxu0
        %v3096 = vpop.f32.mrb[0].mxu0
        %v3097 = vadd.f32 0.0, %v3096
        %v3098 = vpop.f32.mrb[0].mxu0
        %3099 = vmatprep.mubr.bf16.mxu0 0
        %3100 = vmatmul.mubr.bf16.gmra.mrb[0].mxu0 %v2952
        %v3101 = vpop.f32.mrb[0].mxu0
        %v3102 = vadd.f32 0.0, %v3101
        %v3103 = vpop.f32.mrb[0].mxu0
        %v3104 = vpop.f32.mrb[0].mxu0
        %v3105 = vadd.f32 0.0, %v3104
        %v3106 = vpop.f32.mrb[0].mxu0
        %3107 = vmatprep.mubr.bf16.mxu0 0
        %3108 = vmatmul.mubr.bf16.gmra.mrb[0].mxu0 %v2955
        %v3109 = vpop.f32.mrb[0].mxu0
        %v3110 = vadd.f32 0.0, %v3109
        %v3111 = vpop.f32.mrb[0].mxu0
        %v3112 = vpop.f32.mrb[0].mxu0
        %v3113 = vadd.f32 0.0, %v3112
        %v3114 = vpop.f32.mrb[0].mxu0
        %3115 = vmatprep.mubr.bf16.mxu0 0
        %3116 = vmatmul.mubr.bf16.gmra.mrb[0].mxu0 %v2958
        %v3117 = vpop.f32.mrb[0].mxu0
        %v3118 = vadd.f32 0.0, %v3117
        %v3119 = vpop.f32.mrb[0].mxu0
        %v3120 = vpop.f32.mrb[0].mxu0
        %v3121 = vadd.f32 0.0, %v3120
        %v3122 = vpop.f32.mrb[0].mxu0
        %3123 = vdwg.mxu0
        %v3124 = vadd.f32 %v2830, %v2998
        %v3125 = vadd.f32 %v2831, %v3001
        %v3126 = vadd.f32 %v2832, %v3006
        %v3127 = vadd.f32 %v2833, %v3009
        %v3128 = vadd.f32 %v2834, %v3014
        %v3129 = vadd.f32 %v2835, %v3017
        %v3130 = vadd.f32 %v2836, %v3022
        %v3131 = vadd.f32 %v2837, %v3025
        %v3132 = vadd.f32 %v2838, %v3030
        %v3133 = vadd.f32 %v2839, %v3033
        %v3134 = vadd.f32 %v2840, %v3038
        %v3135 = vadd.f32 %v2841, %v3041
        %v3136 = vadd.f32 %v2842, %v3046
        %v3137 = vadd.f32 %v2843, %v3049
        %v3138 = vadd.f32 %v2844, %v3054
        %v3139 = vadd.f32 %v2845, %v3057
        %v3140 = vadd.f32 %v2846, %v3062
        %v3141 = vadd.f32 %v2847, %v3065
        %v3142 = vadd.f32 %v2848, %v3070
        %v3143 = vadd.f32 %v2849, %v3073
        %v3144 = vadd.f32 %v2850, %v3078
        %v3145 = vadd.f32 %v2851, %v3081
        %v3146 = vadd.f32 %v2852, %v3086
        %v3147 = vadd.f32 %v2853, %v3089
        %v3148 = vadd.f32 %v2854, %v3094
        %v3149 = vadd.f32 %v2855, %v3097
        %v3150 = vadd.f32 %v2856, %v3102
        %v3151 = vadd.f32 %v2857, %v3105
        %v3152 = vadd.f32 %v2858, %v3110
        %v3153 = vadd.f32 %v2859, %v3113
        %v3154 = vadd.f32 %v2860, %v3118
        %v3155 = vadd.f32 %v2861, %v3121
        %v3156 = vld [vmem:[%s2567 + $0x2] sm:$0xff]
        %v3157 = vld [vmem:[%s2567 + $0xa] sm:$0xff]
        %v3158 = vld [vmem:[%s2567 + $0x1a] sm:$0xff]
        %v3159 = vld [vmem:[%s2567 + $0x22] sm:$0xff]
        %v3160 = vld [vmem:[%s2567 + $0x32] sm:$0xff]
        %v3161 = vld [vmem:[%s2567 + $0x3a] sm:$0xff]
        %v3162 = vld [vmem:[%s2567 + $0x4a] sm:$0xff]
        %v3163 = vld [vmem:[%s2567 + $0x52] sm:$0xff]
        %v3164 = vld [vmem:[%s2567 + $0x62] sm:$0xff]
        %v3165 = vld [vmem:[%s2567 + $0x6a] sm:$0xff]
        %v3166 = vld [vmem:[%s2567 + $0x7a] sm:$0xff]
        %v3167 = vld [vmem:[%s2567 + $0x82] sm:$0xff]
        %v3168 = vld [vmem:[%s2567 + $0x92] sm:$0xff]
        %v3169 = vld [vmem:[%s2567 + $0x9a] sm:$0xff]
        %v3170 = vld [vmem:[%s2567 + $0xaa] sm:$0xff]
        %v3171 = vld [vmem:[%s2567 + $0xb2] sm:$0xff]
        %v3172 = vld [vmem:[%s2567 + $0xc2] sm:$0xff]
        %v3173 = vld [vmem:[%s2567 + $0xca] sm:$0xff]
        %v3174 = vld [vmem:[%s2567 + $0xda] sm:$0xff]
        %v3175 = vld [vmem:[%s2567 + $0xe2] sm:$0xff]
        %v3176 = vld [vmem:[%s2567 + $0xf2] sm:$0xff]
        %v3177 = vld [vmem:[%s2567 + $0xfa] sm:$0xff]
        %v3178 = vld [vmem:[%s2567 + $0x10a] sm:$0xff]
        %v3179 = vld [vmem:[%s2567 + $0x112] sm:$0xff]
        %v3180 = vld [vmem:[%s2567 + $0x122] sm:$0xff]
        %v3181 = vld [vmem:[%s2567 + $0x12a] sm:$0xff]
        %v3182 = vld [vmem:[%s2567 + $0x13a] sm:$0xff]
        %v3183 = vld [vmem:[%s2567 + $0x142] sm:$0xff]
        %v3184 = vld [vmem:[%s2567 + $0x152] sm:$0xff]
        %v3185 = vld [vmem:[%s2567 + $0x15a] sm:$0xff]
        %v3186 = vld [vmem:[%s2567 + $0x16a] sm:$0xff]
        %v3187 = vld [vmem:[%s2567 + $0x172] sm:$0xff]
        %v3188 = vpack.c.bf16 %v3157, %v3156
        %v3189 = vpack.c.bf16 %v3159, %v3158
        %v3190 = vpack.c.bf16 %v3161, %v3160
        %v3191 = vpack.c.bf16 %v3163, %v3162
        %v3192 = vpack.c.bf16 %v3165, %v3164
        %v3193 = vpack.c.bf16 %v3167, %v3166
        %v3194 = vpack.c.bf16 %v3169, %v3168
        %v3195 = vpack.c.bf16 %v3171, %v3170
        %v3196 = vpack.c.bf16 %v3173, %v3172
        %v3197 = vpack.c.bf16 %v3175, %v3174
        %v3198 = vpack.c.bf16 %v3177, %v3176
        %v3199 = vpack.c.bf16 %v3179, %v3178
        %v3200 = vpack.c.bf16 %v3181, %v3180
        %v3201 = vpack.c.bf16 %v3183, %v3182
        %v3202 = vpack.c.bf16 %v3185, %v3184
        %v3203 = vpack.c.bf16 %v3187, %v3186
        %s3204 = scalar_lea.vmem [#allocation16], 16
        %v3205 = vld [vmem:[%s3204] sm:$0x3]
        %v3207 = vsel %vm746, %v3188, 0
        %v3210 = vsel %vm746, %v3189, 0
        %v3213 = vsel %vm746, %v3190, 0
        %v3216 = vsel %vm746, %v3191, 0
        %v3219 = vsel %vm746, %v3192, 0
        %v3222 = vsel %vm746, %v3193, 0
        %v3225 = vsel %vm746, %v3194, 0
        %v3228 = vsel %vm746, %v3195, 0
        %v3231 = vsel %vm746, %v3196, 0
        %v3234 = vsel %vm746, %v3197, 0
        %v3237 = vsel %vm746, %v3198, 0
        %v3240 = vsel %vm746, %v3199, 0
        %v3243 = vsel %vm746, %v3200, 0
        %v3246 = vsel %vm746, %v3201, 0
        %v3249 = vsel %vm746, %v3202, 0
        %v3252 = vsel %vm746, %v3203, 0
        %v3255 = vsel %vm1014, %v3205, 0
        %3257 = vmatprep.subr.bf16.mxu0 0
        %3258 = vmatpush1.bf16.msra.mxu0 %v3255
        %3259 = vmatprep.subr.bf16.mxu0 0
        %3260 = vmatpush1.bf16.msra.mxu0 0
        %3261 = vmatprep.subr.bf16.mxu0 0
        %3262 = vmatpush1.bf16.msra.mxu0 0
        %3263 = vmatprep.subr.bf16.mxu0 0
        %3264 = vmatpush1.bf16.msra.mxu0 0
        %3265 = vmatprep.subr.bf16.mxu0 0
        %3266 = vmatpush1.bf16.msra.mxu0 0
        %3267 = vmatprep.subr.bf16.mxu0 0
        %3268 = vmatpush1.bf16.msra.mxu0 0
        %3269 = vmatprep.subr.bf16.mxu0 0
        %3270 = vmatpush1.bf16.msra.mxu0 0
        %3271 = vmatprep.subr.bf16.mxu0 0
        %3272 = vmatpush1.bf16.msra.mxu0 0
        %3273 = vmatprep.subr.bf16.mxu0 0
        %3274 = vmatpush1.bf16.msra.mxu0 0
        %3275 = vmatprep.subr.bf16.mxu0 0
        %3276 = vmatpush1.bf16.msra.mxu0 0
        %3277 = vmatprep.subr.bf16.mxu0 0
        %3278 = vmatpush1.bf16.msra.mxu0 0
        %3279 = vmatprep.subr.bf16.mxu0 0
        %3280 = vmatpush1.bf16.msra.mxu0 0
        %3281 = vmatprep.subr.bf16.mxu0 0
        %3282 = vmatpush1.bf16.msra.mxu0 0
        %3283 = vmatprep.subr.bf16.mxu0 0
        %3284 = vmatpush1.bf16.msra.mxu0 0
        %3285 = vmatprep.subr.bf16.mxu0 0
        %3286 = vmatpush1.bf16.msra.mxu0 0
        %3287 = vmatprep.subr.bf16.mxu0 0
        %3288 = vmatpush1.bf16.msra.mxu0 0
        %3289 = vmatprep.mubr.bf16.mxu0 0
        %3290 = vmatmul.mubr.bf16.gmra.mrb[0].mxu0 %v3207
        %v3291 = vpop.f32.mrb[0].mxu0
        %v3292 = vadd.f32 0.0, %v3291
        %v3293 = vpop.f32.mrb[0].mxu0
        %v3294 = vpop.f32.mrb[0].mxu0
        %v3295 = vadd.f32 0.0, %v3294
        %v3296 = vpop.f32.mrb[0].mxu0
        %3297 = vmatprep.mubr.bf16.mxu0 0
        %3298 = vmatmul.mubr.bf16.gmra.mrb[0].mxu0 %v3210
        %v3299 = vpop.f32.mrb[0].mxu0
        %v3300 = vadd.f32 0.0, %v3299
        %v3301 = vpop.f32.mrb[0].mxu0
        %v3302 = vpop.f32.mrb[0].mxu0
        %v3303 = vadd.f32 0.0, %v3302
        %v3304 = vpop.f32.mrb[0].mxu0
        %3305 = vmatprep.mubr.bf16.mxu0 0
        %3306 = vmatmul.mubr.bf16.gmra.mrb[0].mxu0 %v3213
        %v3307 = vpop.f32.mrb[0].mxu0
        %v3308 = vadd.f32 0.0, %v3307
        %v3309 = vpop.f32.mrb[0].mxu0
        %v3310 = vpop.f32.mrb[0].mxu0
        %v3311 = vadd.f32 0.0, %v3310
        %v3312 = vpop.f32.mrb[0].mxu0
        %3313 = vmatprep.mubr.bf16.mxu0 0
        %3314 = vmatmul.mubr.bf16.gmra.mrb[0].mxu0 %v3216
        %v3315 = vpop.f32.mrb[0].mxu0
        %v3316 = vadd.f32 0.0, %v3315
        %v3317 = vpop.f32.mrb[0].mxu0
        %v3318 = vpop.f32.mrb[0].mxu0
        %v3319 = vadd.f32 0.0, %v3318
        %v3320 = vpop.f32.mrb[0].mxu0
        %3321 = vmatprep.mubr.bf16.mxu0 0
        %3322 = vmatmul.mubr.bf16.gmra.mrb[0].mxu0 %v3219
        %v3323 = vpop.f32.mrb[0].mxu0
        %v3324 = vadd.f32 0.0, %v3323
        %v3325 = vpop.f32.mrb[0].mxu0
        %v3326 = vpop.f32.mrb[0].mxu0
        %v3327 = vadd.f32 0.0, %v3326
        %v3328 = vpop.f32.mrb[0].mxu0
        %3329 = vmatprep.mubr.bf16.mxu0 0
        %3330 = vmatmul.mubr.bf16.gmra.mrb[0].mxu0 %v3222
        %v3331 = vpop.f32.mrb[0].mxu0
        %v3332 = vadd.f32 0.0, %v3331
        %v3333 = vpop.f32.mrb[0].mxu0
        %v3334 = vpop.f32.mrb[0].mxu0
        %v3335 = vadd.f32 0.0, %v3334
        %v3336 = vpop.f32.mrb[0].mxu0
        %3337 = vmatprep.mubr.bf16.mxu0 0
        %3338 = vmatmul.mubr.bf16.gmra.mrb[0].mxu0 %v3225
        %v3339 = vpop.f32.mrb[0].mxu0
        %v3340 = vadd.f32 0.0, %v3339
        %v3341 = vpop.f32.mrb[0].mxu0
        %v3342 = vpop.f32.mrb[0].mxu0
        %v3343 = vadd.f32 0.0, %v3342
        %v3344 = vpop.f32.mrb[0].mxu0
        %3345 = vmatprep.mubr.bf16.mxu0 0
        %3346 = vmatmul.mubr.bf16.gmra.mrb[0].mxu0 %v3228
        %v3347 = vpop.f32.mrb[0].mxu0
        %v3348 = vadd.f32 0.0, %v3347
        %v3349 = vpop.f32.mrb[0].mxu0
        %v3350 = vpop.f32.mrb[0].mxu0
        %v3351 = vadd.f32 0.0, %v3350
        %v3352 = vpop.f32.mrb[0].mxu0
        %3353 = vmatprep.mubr.bf16.mxu0 0
        %3354 = vmatmul.mubr.bf16.gmra.mrb[0].mxu0 %v3231
        %v3355 = vpop.f32.mrb[0].mxu0
        %v3356 = vadd.f32 0.0, %v3355
        %v3357 = vpop.f32.mrb[0].mxu0
        %v3358 = vpop.f32.mrb[0].mxu0
        %v3359 = vadd.f32 0.0, %v3358
        %v3360 = vpop.f32.mrb[0].mxu0
        %3361 = vmatprep.mubr.bf16.mxu0 0
        %3362 = vmatmul.mubr.bf16.gmra.mrb[0].mxu0 %v3234
        %v3363 = vpop.f32.mrb[0].mxu0
        %v3364 = vadd.f32 0.0, %v3363
        %v3365 = vpop.f32.mrb[0].mxu0
        %v3366 = vpop.f32.mrb[0].mxu0
        %v3367 = vadd.f32 0.0, %v3366
        %v3368 = vpop.f32.mrb[0].mxu0
        %3369 = vmatprep.mubr.bf16.mxu0 0
        %3370 = vmatmul.mubr.bf16.gmra.mrb[0].mxu0 %v3237
        %v3371 = vpop.f32.mrb[0].mxu0
        %v3372 = vadd.f32 0.0, %v3371
        %v3373 = vpop.f32.mrb[0].mxu0
        %v3374 = vpop.f32.mrb[0].mxu0
        %v3375 = vadd.f32 0.0, %v3374
        %v3376 = vpop.f32.mrb[0].mxu0
        %3377 = vmatprep.mubr.bf16.mxu0 0
        %3378 = vmatmul.mubr.bf16.gmra.mrb[0].mxu0 %v3240
        %v3379 = vpop.f32.mrb[0].mxu0
        %v3380 = vadd.f32 0.0, %v3379
        %v3381 = vpop.f32.mrb[0].mxu0
        %v3382 = vpop.f32.mrb[0].mxu0
        %v3383 = vadd.f32 0.0, %v3382
        %v3384 = vpop.f32.mrb[0].mxu0
        %3385 = vmatprep.mubr.bf16.mxu0 0
        %3386 = vmatmul.mubr.bf16.gmra.mrb[0].mxu0 %v3243
        %v3387 = vpop.f32.mrb[0].mxu0
        %v3388 = vadd.f32 0.0, %v3387
        %v3389 = vpop.f32.mrb[0].mxu0
        %v3390 = vpop.f32.mrb[0].mxu0
        %v3391 = vadd.f32 0.0, %v3390
        %v3392 = vpop.f32.mrb[0].mxu0
        %3393 = vmatprep.mubr.bf16.mxu0 0
        %3394 = vmatmul.mubr.bf16.gmra.mrb[0].mxu0 %v3246
        %v3395 = vpop.f32.mrb[0].mxu0
        %v3396 = vadd.f32 0.0, %v3395
        %v3397 = vpop.f32.mrb[0].mxu0
        %v3398 = vpop.f32.mrb[0].mxu0
        %v3399 = vadd.f32 0.0, %v3398
        %v3400 = vpop.f32.mrb[0].mxu0
        %3401 = vmatprep.mubr.bf16.mxu0 0
        %3402 = vmatmul.mubr.bf16.gmra.mrb[0].mxu0 %v3249
        %v3403 = vpop.f32.mrb[0].mxu0
        %v3404 = vadd.f32 0.0, %v3403
        %v3405 = vpop.f32.mrb[0].mxu0
        %v3406 = vpop.f32.mrb[0].mxu0
        %v3407 = vadd.f32 0.0, %v3406
        %v3408 = vpop.f32.mrb[0].mxu0
        %3409 = vmatprep.mubr.bf16.mxu0 0
        %3410 = vmatmul.mubr.bf16.gmra.mrb[0].mxu0 %v3252
        %v3411 = vpop.f32.mrb[0].mxu0
        %v3412 = vadd.f32 0.0, %v3411
        %v3413 = vpop.f32.mrb[0].mxu0
        %v3414 = vpop.f32.mrb[0].mxu0
        %v3415 = vadd.f32 0.0, %v3414
        %v3416 = vpop.f32.mrb[0].mxu0
        %3417 = vdwg.mxu0
        %v3418 = vadd.f32 %v3124, %v3292
        %v3419 = vadd.f32 %v3125, %v3295
        %v3420 = vadd.f32 %v3126, %v3300
        %v3421 = vadd.f32 %v3127, %v3303
        %v3422 = vadd.f32 %v3128, %v3308
        %v3423 = vadd.f32 %v3129, %v3311
        %v3424 = vadd.f32 %v3130, %v3316
        %v3425 = vadd.f32 %v3131, %v3319
        %v3426 = vadd.f32 %v3132, %v3324
        %v3427 = vadd.f32 %v3133, %v3327
        %v3428 = vadd.f32 %v3134, %v3332
        %v3429 = vadd.f32 %v3135, %v3335
        %v3430 = vadd.f32 %v3136, %v3340
        %v3431 = vadd.f32 %v3137, %v3343
        %v3432 = vadd.f32 %v3138, %v3348
        %v3433 = vadd.f32 %v3139, %v3351
        %v3434 = vadd.f32 %v3140, %v3356
        %v3435 = vadd.f32 %v3141, %v3359
        %v3436 = vadd.f32 %v3142, %v3364
        %v3437 = vadd.f32 %v3143, %v3367
        %v3438 = vadd.f32 %v3144, %v3372
        %v3439 = vadd.f32 %v3145, %v3375
        %v3440 = vadd.f32 %v3146, %v3380
        %v3441 = vadd.f32 %v3147, %v3383
        %v3442 = vadd.f32 %v3148, %v3388
        %v3443 = vadd.f32 %v3149, %v3391
        %v3444 = vadd.f32 %v3150, %v3396
        %v3445 = vadd.f32 %v3151, %v3399
        %v3446 = vadd.f32 %v3152, %v3404
        %v3447 = vadd.f32 %v3153, %v3407
        %v3448 = vadd.f32 %v3154, %v3412
        %v3449 = vadd.f32 %v3155, %v3415
        %v3450 = vld [vmem:[#allocation18] sm:$0x1]
        %v3452 = vlaneseq
        %v3453 = vshrl.u32 %v3452, 7
        %v3454 = vsub.s32 0, %v3453
        %v3455 = vrot.slane %v3450, %v3454
        %v3457 = vadd.f32 %v3418, %v3455
        %v3458 = vadd.f32 %v3419, %v3455
        %v3459 = vadd.f32 %v3420, %v3455
        %v3460 = vadd.f32 %v3421, %v3455
        %v3461 = vadd.f32 %v3422, %v3455
        %v3462 = vadd.f32 %v3423, %v3455
        %v3463 = vadd.f32 %v3424, %v3455
        %v3464 = vadd.f32 %v3425, %v3455
        %v3465 = vadd.f32 %v3426, %v3455
        %v3466 = vadd.f32 %v3427, %v3455
        %v3467 = vadd.f32 %v3428, %v3455
        %v3468 = vadd.f32 %v3429, %v3455
        %v3469 = vadd.f32 %v3430, %v3455
        %v3470 = vadd.f32 %v3431, %v3455
        %v3471 = vadd.f32 %v3432, %v3455
        %v3472 = vadd.f32 %v3433, %v3455
        %v3473 = vadd.f32 %v3434, %v3455
        %v3474 = vadd.f32 %v3435, %v3455
        %v3475 = vadd.f32 %v3436, %v3455
        %v3476 = vadd.f32 %v3437, %v3455
        %v3477 = vadd.f32 %v3438, %v3455
        %v3478 = vadd.f32 %v3439, %v3455
        %v3479 = vadd.f32 %v3440, %v3455
        %v3480 = vadd.f32 %v3441, %v3455
        %v3481 = vadd.f32 %v3442, %v3455
        %v3482 = vadd.f32 %v3443, %v3455
        %v3483 = vadd.f32 %v3444, %v3455
        %v3484 = vadd.f32 %v3445, %v3455
        %v3485 = vadd.f32 %v3446, %v3455
        %v3486 = vadd.f32 %v3447, %v3455
        %v3487 = vadd.f32 %v3448, %v3455
        %v3488 = vadd.f32 %v3449, %v3455
        %v3489 = vld [vmem:[#allocation19] sm:$0x1]
        %v3490 = vld [vmem:[%s611] sm:$0xff]
        %v3491 = vld [vmem:[%s611 + $0x8] sm:$0xff]
        %v3492 = vld [vmem:[%s611 + $0x10] sm:$0xff]
        %v3493 = vld [vmem:[%s611 + $0x18] sm:$0xff]
        %v3494 = vld [vmem:[%s611 + $0x20] sm:$0xff]
        %v3495 = vld [vmem:[%s611 + $0x28] sm:$0xff]
        %v3496 = vld [vmem:[%s611 + $0x30] sm:$0xff]
        %v3497 = vld [vmem:[%s611 + $0x38] sm:$0xff]
        %v3498 = vld [vmem:[%s611 + $0x40] sm:$0xff]
        %v3499 = vld [vmem:[%s611 + $0x48] sm:$0xff]
        %v3500 = vld [vmem:[%s611 + $0x50] sm:$0xff]
        %v3501 = vld [vmem:[%s611 + $0x58] sm:$0xff]
        %v3502 = vld [vmem:[%s611 + $0x60] sm:$0xff]
        %v3503 = vld [vmem:[%s611 + $0x68] sm:$0xff]
        %v3504 = vld [vmem:[%s611 + $0x70] sm:$0xff]
        %v3505 = vld [vmem:[%s611 + $0x78] sm:$0xff]
        %v3506 = vld [vmem:[%s611 + $0x80] sm:$0xff]
        %v3507 = vld [vmem:[%s611 + $0x88] sm:$0xff]
        %v3508 = vld [vmem:[%s611 + $0x90] sm:$0xff]
        %v3509 = vld [vmem:[%s611 + $0x98] sm:$0xff]
        %v3510 = vld [vmem:[%s611 + $0xa0] sm:$0xff]
        %v3511 = vld [vmem:[%s611 + $0xa8] sm:$0xff]
        %v3512 = vld [vmem:[%s611 + $0xb0] sm:$0xff]
        %v3513 = vld [vmem:[%s611 + $0xb8] sm:$0xff]
        %v3514 = vld [vmem:[%s611 + $0xc0] sm:$0xff]
        %v3515 = vld [vmem:[%s611 + $0xc8] sm:$0xff]
        %v3516 = vld [vmem:[%s611 + $0xd0] sm:$0xff]
        %v3517 = vld [vmem:[%s611 + $0xd8] sm:$0xff]
        %v3518 = vld [vmem:[%s611 + $0xe0] sm:$0xff]
        %v3519 = vld [vmem:[%s611 + $0xe8] sm:$0xff]
        %v3520 = vld [vmem:[%s611 + $0xf0] sm:$0xff]
        %v3521 = vld [vmem:[%s611 + $0xf8] sm:$0xff]
        %v3523 = vlaneseq
        %v3524 = vshrl.u32 %v3523, 7
        %v3525 = vsub.s32 0, %v3524
        %v3526 = vrot.slane %v3489, %v3525
        %3529 = vset.pattern.permute.xlu0 0
        %3530 = vperm.xlu0 %3529, %v3490
        %v3531 = vpop.permute.xlu0 %3530
        %3534 = vset.pattern.permute.xlu0 0
        %3535 = vperm.xlu0 %3534, %v3491
        %v3536 = vpop.permute.xlu0 %3535
        %3539 = vset.pattern.permute.xlu0 0
        %3540 = vperm.xlu0 %3539, %v3492
        %v3541 = vpop.permute.xlu0 %3540
        %3544 = vset.pattern.permute.xlu0 0
        %3545 = vperm.xlu0 %3544, %v3493
        %v3546 = vpop.permute.xlu0 %3545
        %3549 = vset.pattern.permute.xlu0 0
        %3550 = vperm.xlu0 %3549, %v3494
        %v3551 = vpop.permute.xlu0 %3550
        %3554 = vset.pattern.permute.xlu0 0
        %3555 = vperm.xlu0 %3554, %v3495
        %v3556 = vpop.permute.xlu0 %3555
        %3559 = vset.pattern.permute.xlu0 0
        %3560 = vperm.xlu0 %3559, %v3496
        %v3561 = vpop.permute.xlu0 %3560
        %3564 = vset.pattern.permute.xlu0 0
        %3565 = vperm.xlu0 %3564, %v3497
        %v3566 = vpop.permute.xlu0 %3565
        %3569 = vset.pattern.permute.xlu0 0
        %3570 = vperm.xlu0 %3569, %v3498
        %v3571 = vpop.permute.xlu0 %3570
        %3574 = vset.pattern.permute.xlu0 0
        %3575 = vperm.xlu0 %3574, %v3499
        %v3576 = vpop.permute.xlu0 %3575
        %3579 = vset.pattern.permute.xlu0 0
        %3580 = vperm.xlu0 %3579, %v3500
        %v3581 = vpop.permute.xlu0 %3580
        %3584 = vset.pattern.permute.xlu0 0
        %3585 = vperm.xlu0 %3584, %v3501
        %v3586 = vpop.permute.xlu0 %3585
        %3589 = vset.pattern.permute.xlu0 0
        %3590 = vperm.xlu0 %3589, %v3502
        %v3591 = vpop.permute.xlu0 %3590
        %3594 = vset.pattern.permute.xlu0 0
        %3595 = vperm.xlu0 %3594, %v3503
        %v3596 = vpop.permute.xlu0 %3595
        %3599 = vset.pattern.permute.xlu0 0
        %3600 = vperm.xlu0 %3599, %v3504
        %v3601 = vpop.permute.xlu0 %3600
        %3604 = vset.pattern.permute.xlu0 0
        %3605 = vperm.xlu0 %3604, %v3505
        %v3606 = vpop.permute.xlu0 %3605
        %3609 = vset.pattern.permute.xlu0 0
        %3610 = vperm.xlu0 %3609, %v3506
        %v3611 = vpop.permute.xlu0 %3610
        %3614 = vset.pattern.permute.xlu0 0
        %3615 = vperm.xlu0 %3614, %v3507
        %v3616 = vpop.permute.xlu0 %3615
        %3619 = vset.pattern.permute.xlu0 0
        %3620 = vperm.xlu0 %3619, %v3508
        %v3621 = vpop.permute.xlu0 %3620
        %3624 = vset.pattern.permute.xlu0 0
        %3625 = vperm.xlu0 %3624, %v3509
        %v3626 = vpop.permute.xlu0 %3625
        %3629 = vset.pattern.permute.xlu0 0
        %3630 = vperm.xlu0 %3629, %v3510
        %v3631 = vpop.permute.xlu0 %3630
        %3634 = vset.pattern.permute.xlu0 0
        %3635 = vperm.xlu0 %3634, %v3511
        %v3636 = vpop.permute.xlu0 %3635
        %3639 = vset.pattern.permute.xlu0 0
        %3640 = vperm.xlu0 %3639, %v3512
        %v3641 = vpop.permute.xlu0 %3640
        %3644 = vset.pattern.permute.xlu0 0
        %3645 = vperm.xlu0 %3644, %v3513
        %v3646 = vpop.permute.xlu0 %3645
        %3649 = vset.pattern.permute.xlu0 0
        %3650 = vperm.xlu0 %3649, %v3514
        %v3651 = vpop.permute.xlu0 %3650
        %3654 = vset.pattern.permute.xlu0 0
        %3655 = vperm.xlu0 %3654, %v3515
        %v3656 = vpop.permute.xlu0 %3655
        %3659 = vset.pattern.permute.xlu0 0
        %3660 = vperm.xlu0 %3659, %v3516
        %v3661 = vpop.permute.xlu0 %3660
        %3664 = vset.pattern.permute.xlu0 0
        %3665 = vperm.xlu0 %3664, %v3517
        %v3666 = vpop.permute.xlu0 %3665
        %3669 = vset.pattern.permute.xlu0 0
        %3670 = vperm.xlu0 %3669, %v3518
        %v3671 = vpop.permute.xlu0 %3670
        %3674 = vset.pattern.permute.xlu0 0
        %3675 = vperm.xlu0 %3674, %v3519
        %v3676 = vpop.permute.xlu0 %3675
        %3679 = vset.pattern.permute.xlu0 0
        %3680 = vperm.xlu0 %3679, %v3520
        %v3681 = vpop.permute.xlu0 %3680
        %3684 = vset.pattern.permute.xlu0 0
        %3685 = vperm.xlu0 %3684, %v3521
        %v3686 = vpop.permute.xlu0 %3685
        %v3688 = vmul.f32 %v3526, %v3531
        %v3689 = vmul.f32 %v3526, %v3536
        %v3690 = vmul.f32 %v3526, %v3541
        %v3691 = vmul.f32 %v3526, %v3546
        %v3692 = vmul.f32 %v3526, %v3551
        %v3693 = vmul.f32 %v3526, %v3556
        %v3694 = vmul.f32 %v3526, %v3561
        %v3695 = vmul.f32 %v3526, %v3566
        %v3696 = vmul.f32 %v3526, %v3571
        %v3697 = vmul.f32 %v3526, %v3576
        %v3698 = vmul.f32 %v3526, %v3581
        %v3699 = vmul.f32 %v3526, %v3586
        %v3700 = vmul.f32 %v3526, %v3591
        %v3701 = vmul.f32 %v3526, %v3596
        %v3702 = vmul.f32 %v3526, %v3601
        %v3703 = vmul.f32 %v3526, %v3606
        %v3704 = vmul.f32 %v3526, %v3611
        %v3705 = vmul.f32 %v3526, %v3616
        %v3706 = vmul.f32 %v3526, %v3621
        %v3707 = vmul.f32 %v3526, %v3626
        %v3708 = vmul.f32 %v3526, %v3631
        %v3709 = vmul.f32 %v3526, %v3636
        %v3710 = vmul.f32 %v3526, %v3641
        %v3711 = vmul.f32 %v3526, %v3646
        %v3712 = vmul.f32 %v3526, %v3651
        %v3713 = vmul.f32 %v3526, %v3656
        %v3714 = vmul.f32 %v3526, %v3661
        %v3715 = vmul.f32 %v3526, %v3666
        %v3716 = vmul.f32 %v3526, %v3671
        %v3717 = vmul.f32 %v3526, %v3676
        %v3718 = vmul.f32 %v3526, %v3681
        %v3719 = vmul.f32 %v3526, %v3686
        %v3720 = vadd.f32 %v3457, %v3688
        %v3721 = vadd.f32 %v3458, %v3689
        %v3722 = vadd.f32 %v3459, %v3690
        %v3723 = vadd.f32 %v3460, %v3691
        %v3724 = vadd.f32 %v3461, %v3692
        %v3725 = vadd.f32 %v3462, %v3693
        %v3726 = vadd.f32 %v3463, %v3694
        %v3727 = vadd.f32 %v3464, %v3695
        %v3728 = vadd.f32 %v3465, %v3696
        %v3729 = vadd.f32 %v3466, %v3697
        %v3730 = vadd.f32 %v3467, %v3698
        %v3731 = vadd.f32 %v3468, %v3699
        %v3732 = vadd.f32 %v3469, %v3700
        %v3733 = vadd.f32 %v3470, %v3701
        %v3734 = vadd.f32 %v3471, %v3702
        %v3735 = vadd.f32 %v3472, %v3703
        %v3736 = vadd.f32 %v3473, %v3704
        %v3737 = vadd.f32 %v3474, %v3705
        %v3738 = vadd.f32 %v3475, %v3706
        %v3739 = vadd.f32 %v3476, %v3707
        %v3740 = vadd.f32 %v3477, %v3708
        %v3741 = vadd.f32 %v3478, %v3709
        %v3742 = vadd.f32 %v3479, %v3710
        %v3743 = vadd.f32 %v3480, %v3711
        %v3744 = vadd.f32 %v3481, %v3712
        %v3745 = vadd.f32 %v3482, %v3713
        %v3746 = vadd.f32 %v3483, %v3714
        %v3747 = vadd.f32 %v3484, %v3715
        %v3748 = vadd.f32 %v3485, %v3716
        %v3749 = vadd.f32 %v3486, %v3717
        %v3750 = vadd.f32 %v3487, %v3718
        %v3751 = vadd.f32 %v3488, %v3719
        %vm3752 = vcmp.ge.f32.partialorder %v3720, 0.0
        %vm3753 = vcmp.ge.f32.partialorder %v3721, 0.0
        %vm3754 = vcmp.ge.f32.partialorder %v3722, 0.0
        %vm3755 = vcmp.ge.f32.partialorder %v3723, 0.0
        %vm3756 = vcmp.ge.f32.partialorder %v3724, 0.0
        %vm3757 = vcmp.ge.f32.partialorder %v3725, 0.0
        %vm3758 = vcmp.ge.f32.partialorder %v3726, 0.0
        %vm3759 = vcmp.ge.f32.partialorder %v3727, 0.0
        %vm3760 = vcmp.ge.f32.partialorder %v3728, 0.0
        %vm3761 = vcmp.ge.f32.partialorder %v3729, 0.0
        %vm3762 = vcmp.ge.f32.partialorder %v3730, 0.0
        %vm3763 = vcmp.ge.f32.partialorder %v3731, 0.0
        %vm3764 = vcmp.ge.f32.partialorder %v3732, 0.0
        %vm3765 = vcmp.ge.f32.partialorder %v3733, 0.0
        %vm3766 = vcmp.ge.f32.partialorder %v3734, 0.0
        %vm3767 = vcmp.ge.f32.partialorder %v3735, 0.0
        %vm3768 = vcmp.ge.f32.partialorder %v3736, 0.0
        %vm3769 = vcmp.ge.f32.partialorder %v3737, 0.0
        %vm3770 = vcmp.ge.f32.partialorder %v3738, 0.0
        %vm3771 = vcmp.ge.f32.partialorder %v3739, 0.0
        %vm3772 = vcmp.ge.f32.partialorder %v3740, 0.0
        %vm3773 = vcmp.ge.f32.partialorder %v3741, 0.0
        %vm3774 = vcmp.ge.f32.partialorder %v3742, 0.0
        %vm3775 = vcmp.ge.f32.partialorder %v3743, 0.0
        %vm3776 = vcmp.ge.f32.partialorder %v3744, 0.0
        %vm3777 = vcmp.ge.f32.partialorder %v3745, 0.0
        %vm3778 = vcmp.ge.f32.partialorder %v3746, 0.0
        %vm3779 = vcmp.ge.f32.partialorder %v3747, 0.0
        %vm3780 = vcmp.ge.f32.partialorder %v3748, 0.0
        %vm3781 = vcmp.ge.f32.partialorder %v3749, 0.0
        %vm3782 = vcmp.ge.f32.partialorder %v3750, 0.0
        %vm3783 = vcmp.ge.f32.partialorder %v3751, 0.0
        %v3784 = vmul.f32 %v3720, 0.2
        %v3785 = vmul.f32 %v3721, 0.2
        %v3786 = vmul.f32 %v3722, 0.2
        %v3787 = vmul.f32 %v3723, 0.2
        %v3788 = vmul.f32 %v3724, 0.2
        %v3789 = vmul.f32 %v3725, 0.2
        %v3790 = vmul.f32 %v3726, 0.2
        %v3791 = vmul.f32 %v3727, 0.2
        %v3792 = vmul.f32 %v3728, 0.2
        %v3793 = vmul.f32 %v3729, 0.2
        %v3794 = vmul.f32 %v3730, 0.2
        %v3795 = vmul.f32 %v3731, 0.2
        %v3796 = vmul.f32 %v3732, 0.2
        %v3797 = vmul.f32 %v3733, 0.2
        %v3798 = vmul.f32 %v3734, 0.2
        %v3799 = vmul.f32 %v3735, 0.2
        %v3800 = vmul.f32 %v3736, 0.2
        %v3801 = vmul.f32 %v3737, 0.2
        %v3802 = vmul.f32 %v3738, 0.2
        %v3803 = vmul.f32 %v3739, 0.2
        %v3804 = vmul.f32 %v3740, 0.2
        %v3805 = vmul.f32 %v3741, 0.2
        %v3806 = vmul.f32 %v3742, 0.2
        %v3807 = vmul.f32 %v3743, 0.2
        %v3808 = vmul.f32 %v3744, 0.2
        %v3809 = vmul.f32 %v3745, 0.2
        %v3810 = vmul.f32 %v3746, 0.2
        %v3811 = vmul.f32 %v3747, 0.2
        %v3812 = vmul.f32 %v3748, 0.2
        %v3813 = vmul.f32 %v3749, 0.2
        %v3814 = vmul.f32 %v3750, 0.2
        %v3815 = vmul.f32 %v3751, 0.2
        %v3816 = vsel %vm3752, %v3720, %v3784
        %v3817 = vsel %vm3753, %v3721, %v3785
        %v3818 = vsel %vm3754, %v3722, %v3786
        %v3819 = vsel %vm3755, %v3723, %v3787
        %v3820 = vsel %vm3756, %v3724, %v3788
        %v3821 = vsel %vm3757, %v3725, %v3789
        %v3822 = vsel %vm3758, %v3726, %v3790
        %v3823 = vsel %vm3759, %v3727, %v3791
        %v3824 = vsel %vm3760, %v3728, %v3792
        %v3825 = vsel %vm3761, %v3729, %v3793
        %v3826 = vsel %vm3762, %v3730, %v3794
        %v3827 = vsel %vm3763, %v3731, %v3795
        %v3828 = vsel %vm3764, %v3732, %v3796
        %v3829 = vsel %vm3765, %v3733, %v3797
        %v3830 = vsel %vm3766, %v3734, %v3798
        %v3831 = vsel %vm3767, %v3735, %v3799
        %v3832 = vsel %vm3768, %v3736, %v3800
        %v3833 = vsel %vm3769, %v3737, %v3801
        %v3834 = vsel %vm3770, %v3738, %v3802
        %v3835 = vsel %vm3771, %v3739, %v3803
        %v3836 = vsel %vm3772, %v3740, %v3804
        %v3837 = vsel %vm3773, %v3741, %v3805
        %v3838 = vsel %vm3774, %v3742, %v3806
        %v3839 = vsel %vm3775, %v3743, %v3807
        %v3840 = vsel %vm3776, %v3744, %v3808
        %v3841 = vsel %vm3777, %v3745, %v3809
        %v3842 = vsel %vm3778, %v3746, %v3810
        %v3843 = vsel %vm3779, %v3747, %v3811
        %v3844 = vsel %vm3780, %v3748, %v3812
        %v3845 = vsel %vm3781, %v3749, %v3813
        %v3846 = vsel %vm3782, %v3750, %v3814
        %v3847 = vsel %vm3783, %v3751, %v3815
        %v3848 = vld [vmem:[%s628] sm:$0x1]
        %v3849 = vld [vmem:[%s636] sm:$0x1]
        %vm3850 = vcmask 64512
        %v3851 = vsel %vm3850, %v3816, 0.0
        %v3852 = vsel %vm3850, %v3817, 0.0
        %v3853 = vadd.f32 %v3851, %v3852
        %v3854 = vsel %vm3850, %v3818, 0.0
        %v3855 = vadd.f32 %v3853, %v3854
        %v3856 = vsel %vm3850, %v3819, 0.0
        %v3857 = vadd.f32 %v3855, %v3856
        %v3858 = vsel %vm3850, %v3820, 0.0
        %v3859 = vadd.f32 %v3857, %v3858
        %v3860 = vsel %vm3850, %v3821, 0.0
        %v3861 = vadd.f32 %v3859, %v3860
        %v3862 = vsel %vm3850, %v3822, 0.0
        %v3863 = vadd.f32 %v3861, %v3862
        %v3864 = vsel %vm3850, %v3823, 0.0
        %v3865 = vadd.f32 %v3863, %v3864
        %v3866 = vsel %vm3850, %v3824, 0.0
        %v3867 = vadd.f32 %v3865, %v3866
        %v3868 = vsel %vm3850, %v3825, 0.0
        %v3869 = vadd.f32 %v3867, %v3868
        %v3870 = vsel %vm3850, %v3826, 0.0
        %v3871 = vadd.f32 %v3869, %v3870
        %v3872 = vsel %vm3850, %v3827, 0.0
        %v3873 = vadd.f32 %v3871, %v3872
        %v3874 = vsel %vm3850, %v3828, 0.0
        %v3875 = vadd.f32 %v3873, %v3874
        %v3876 = vsel %vm3850, %v3829, 0.0
        %v3877 = vadd.f32 %v3875, %v3876
        %v3878 = vsel %vm3850, %v3830, 0.0
        %v3879 = vadd.f32 %v3877, %v3878
        %v3880 = vsel %vm3850, %v3831, 0.0
        %v3881 = vadd.f32 %v3879, %v3880
        %v3882 = vsel %vm3850, %v3832, 0.0
        %v3883 = vadd.f32 %v3881, %v3882
        %v3884 = vsel %vm3850, %v3833, 0.0
        %v3885 = vadd.f32 %v3883, %v3884
        %v3886 = vsel %vm3850, %v3834, 0.0
        %v3887 = vadd.f32 %v3885, %v3886
        %v3888 = vsel %vm3850, %v3835, 0.0
        %v3889 = vadd.f32 %v3887, %v3888
        %v3890 = vsel %vm3850, %v3836, 0.0
        %v3891 = vadd.f32 %v3889, %v3890
        %v3892 = vsel %vm3850, %v3837, 0.0
        %v3893 = vadd.f32 %v3891, %v3892
        %v3894 = vsel %vm3850, %v3838, 0.0
        %v3895 = vadd.f32 %v3893, %v3894
        %v3896 = vsel %vm3850, %v3839, 0.0
        %v3897 = vadd.f32 %v3895, %v3896
        %v3898 = vsel %vm3850, %v3840, 0.0
        %v3899 = vadd.f32 %v3897, %v3898
        %v3900 = vsel %vm3850, %v3841, 0.0
        %v3901 = vadd.f32 %v3899, %v3900
        %v3902 = vsel %vm3850, %v3842, 0.0
        %v3903 = vadd.f32 %v3901, %v3902
        %v3904 = vsel %vm3850, %v3843, 0.0
        %v3905 = vadd.f32 %v3903, %v3904
        %v3906 = vsel %vm3850, %v3844, 0.0
        %v3907 = vadd.f32 %v3905, %v3906
        %v3908 = vsel %vm3850, %v3845, 0.0
        %v3909 = vadd.f32 %v3907, %v3908
        %v3910 = vsel %vm3850, %v3846, 0.0
        %v3911 = vadd.f32 %v3909, %v3910
        %v3912 = vsel %vm3850, %v3847, 0.0
        %v3913 = vadd.f32 %v3911, %v3912
        %v3914 = vrot.slane %v3913, 4
        %v3915 = vadd.f32 %v3913, %v3914
        %v3916 = vrot.slane %v3915, 2
        %v3917 = vadd.f32 %v3915, %v3916
        %v3918 = vrot.slane %v3917, 1
        %v3919 = vadd.f32 %v3917, %v3918
        %v3920 = vrcp.pop 256.0
        %v3921 = vmul.f32 %v3919, %v3920
        %v3922 = vsub.f32 %v3816, %v3921
        %v3923 = vsub.f32 %v3817, %v3921
        %v3924 = vsub.f32 %v3818, %v3921
        %v3925 = vsub.f32 %v3819, %v3921
        %v3926 = vsub.f32 %v3820, %v3921
        %v3927 = vsub.f32 %v3821, %v3921
        %v3928 = vsub.f32 %v3822, %v3921
        %v3929 = vsub.f32 %v3823, %v3921
        %v3930 = vsub.f32 %v3824, %v3921
        %v3931 = vsub.f32 %v3825, %v3921
        %v3932 = vsub.f32 %v3826, %v3921
        %v3933 = vsub.f32 %v3827, %v3921
        %v3934 = vsub.f32 %v3828, %v3921
        %v3935 = vsub.f32 %v3829, %v3921
        %v3936 = vsub.f32 %v3830, %v3921
        %v3937 = vsub.f32 %v3831, %v3921
        %v3938 = vsub.f32 %v3832, %v3921
        %v3939 = vsub.f32 %v3833, %v3921
        %v3940 = vsub.f32 %v3834, %v3921
        %v3941 = vsub.f32 %v3835, %v3921
        %v3942 = vsub.f32 %v3836, %v3921
        %v3943 = vsub.f32 %v3837, %v3921
        %v3944 = vsub.f32 %v3838, %v3921
        %v3945 = vsub.f32 %v3839, %v3921
        %v3946 = vsub.f32 %v3840, %v3921
        %v3947 = vsub.f32 %v3841, %v3921
        %v3948 = vsub.f32 %v3842, %v3921
        %v3949 = vsub.f32 %v3843, %v3921
        %v3950 = vsub.f32 %v3844, %v3921
        %v3951 = vsub.f32 %v3845, %v3921
        %v3952 = vsub.f32 %v3846, %v3921
        %v3953 = vsub.f32 %v3847, %v3921
        %v3954 = vmul.f32 %v3922, %v3922
        %v3955 = vmul.f32 %v3923, %v3923
        %v3956 = vmul.f32 %v3924, %v3924
        %v3957 = vmul.f32 %v3925, %v3925
        %v3958 = vmul.f32 %v3926, %v3926
        %v3959 = vmul.f32 %v3927, %v3927
        %v3960 = vmul.f32 %v3928, %v3928
        %v3961 = vmul.f32 %v3929, %v3929
        %v3962 = vmul.f32 %v3930, %v3930
        %v3963 = vmul.f32 %v3931, %v3931
        %v3964 = vmul.f32 %v3932, %v3932
        %v3965 = vmul.f32 %v3933, %v3933
        %v3966 = vmul.f32 %v3934, %v3934
        %v3967 = vmul.f32 %v3935, %v3935
        %v3968 = vmul.f32 %v3936, %v3936
        %v3969 = vmul.f32 %v3937, %v3937
        %v3970 = vmul.f32 %v3938, %v3938
        %v3971 = vmul.f32 %v3939, %v3939
        %v3972 = vmul.f32 %v3940, %v3940
        %v3973 = vmul.f32 %v3941, %v3941
        %v3974 = vmul.f32 %v3942, %v3942
        %v3975 = vmul.f32 %v3943, %v3943
        %v3976 = vmul.f32 %v3944, %v3944
        %v3977 = vmul.f32 %v3945, %v3945
        %v3978 = vmul.f32 %v3946, %v3946
        %v3979 = vmul.f32 %v3947, %v3947
        %v3980 = vmul.f32 %v3948, %v3948
        %v3981 = vmul.f32 %v3949, %v3949
        %v3982 = vmul.f32 %v3950, %v3950
        %v3983 = vmul.f32 %v3951, %v3951
        %v3984 = vmul.f32 %v3952, %v3952
        %v3985 = vmul.f32 %v3953, %v3953
        %v3986 = vsel %vm3850, %v3954, 0.0
        %v3987 = vsel %vm3850, %v3955, 0.0
        %v3988 = vadd.f32 %v3986, %v3987
        %v3989 = vsel %vm3850, %v3956, 0.0
        %v3990 = vadd.f32 %v3988, %v3989
        %v3991 = vsel %vm3850, %v3957, 0.0
        %v3992 = vadd.f32 %v3990, %v3991
        %v3993 = vsel %vm3850, %v3958, 0.0
        %v3994 = vadd.f32 %v3992, %v3993
        %v3995 = vsel %vm3850, %v3959, 0.0
        %v3996 = vadd.f32 %v3994, %v3995
        %v3997 = vsel %vm3850, %v3960, 0.0
        %v3998 = vadd.f32 %v3996, %v3997
        %v3999 = vsel %vm3850, %v3961, 0.0
        %v4000 = vadd.f32 %v3998, %v3999
        %v4001 = vsel %vm3850, %v3962, 0.0
        %v4002 = vadd.f32 %v4000, %v4001
        %v4003 = vsel %vm3850, %v3963, 0.0
        %v4004 = vadd.f32 %v4002, %v4003
        %v4005 = vsel %vm3850, %v3964, 0.0
        %v4006 = vadd.f32 %v4004, %v4005
        %v4007 = vsel %vm3850, %v3965, 0.0
        %v4008 = vadd.f32 %v4006, %v4007
        %v4009 = vsel %vm3850, %v3966, 0.0
        %v4010 = vadd.f32 %v4008, %v4009
        %v4011 = vsel %vm3850, %v3967, 0.0
        %v4012 = vadd.f32 %v4010, %v4011
        %v4013 = vsel %vm3850, %v3968, 0.0
        %v4014 = vadd.f32 %v4012, %v4013
        %v4015 = vsel %vm3850, %v3969, 0.0
        %v4016 = vadd.f32 %v4014, %v4015
        %v4017 = vsel %vm3850, %v3970, 0.0
        %v4018 = vadd.f32 %v4016, %v4017
        %v4019 = vsel %vm3850, %v3971, 0.0
        %v4020 = vadd.f32 %v4018, %v4019
        %v4021 = vsel %vm3850, %v3972, 0.0
        %v4022 = vadd.f32 %v4020, %v4021
        %v4023 = vsel %vm3850, %v3973, 0.0
        %v4024 = vadd.f32 %v4022, %v4023
        %v4025 = vsel %vm3850, %v3974, 0.0
        %v4026 = vadd.f32 %v4024, %v4025
        %v4027 = vsel %vm3850, %v3975, 0.0
        %v4028 = vadd.f32 %v4026, %v4027
        %v4029 = vsel %vm3850, %v3976, 0.0
        %v4030 = vadd.f32 %v4028, %v4029
        %v4031 = vsel %vm3850, %v3977, 0.0
        %v4032 = vadd.f32 %v4030, %v4031
        %v4033 = vsel %vm3850, %v3978, 0.0
        %v4034 = vadd.f32 %v4032, %v4033
        %v4035 = vsel %vm3850, %v3979, 0.0
        %v4036 = vadd.f32 %v4034, %v4035
        %v4037 = vsel %vm3850, %v3980, 0.0
        %v4038 = vadd.f32 %v4036, %v4037
        %v4039 = vsel %vm3850, %v3981, 0.0
        %v4040 = vadd.f32 %v4038, %v4039
        %v4041 = vsel %vm3850, %v3982, 0.0
        %v4042 = vadd.f32 %v4040, %v4041
        %v4043 = vsel %vm3850, %v3983, 0.0
        %v4044 = vadd.f32 %v4042, %v4043
        %v4045 = vsel %vm3850, %v3984, 0.0
        %v4046 = vadd.f32 %v4044, %v4045
        %v4047 = vsel %vm3850, %v3985, 0.0
        %v4048 = vadd.f32 %v4046, %v4047
        %v4049 = vrot.slane %v4048, 4
        %v4050 = vadd.f32 %v4048, %v4049
        %v4051 = vrot.slane %v4050, 2
        %v4052 = vadd.f32 %v4050, %v4051
        %v4053 = vrot.slane %v4052, 1
        %v4054 = vadd.f32 %v4052, %v4053
        %v4055 = vmul.f32 %v4054, %v3920
        %v4056 = vadd.f32 %v4055, 1e-05
        %v4057 = vrsqrt.pop %v4056
        %v4058 = vmul.f32 %v4057, %v3848
        %v4059 = vlaneseq
        %v4060 = vshrl.u32 %v4059, 7
        %v4061 = vsub.s32 0, %v4060
        %v4062 = vrot.slane %v4058, %v4061
        %v4063 = vmul.f32 %v3922, %v4062
        %v4064 = vmul.f32 %v3923, %v4062
        %v4065 = vmul.f32 %v3924, %v4062
        %v4066 = vmul.f32 %v3925, %v4062
        %v4067 = vmul.f32 %v3926, %v4062
        %v4068 = vmul.f32 %v3927, %v4062
        %v4069 = vmul.f32 %v3928, %v4062
        %v4070 = vmul.f32 %v3929, %v4062
        %v4071 = vmul.f32 %v3930, %v4062
        %v4072 = vmul.f32 %v3931, %v4062
        %v4073 = vmul.f32 %v3932, %v4062
        %v4074 = vmul.f32 %v3933, %v4062
        %v4075 = vmul.f32 %v3934, %v4062
        %v4076 = vmul.f32 %v3935, %v4062
        %v4077 = vmul.f32 %v3936, %v4062
        %v4078 = vmul.f32 %v3937, %v4062
        %v4079 = vmul.f32 %v3938, %v4062
        %v4080 = vmul.f32 %v3939, %v4062
        %v4081 = vmul.f32 %v3940, %v4062
        %v4082 = vmul.f32 %v3941, %v4062
        %v4083 = vmul.f32 %v3942, %v4062
        %v4084 = vmul.f32 %v3943, %v4062
        %v4085 = vmul.f32 %v3944, %v4062
        %v4086 = vmul.f32 %v3945, %v4062
        %v4087 = vmul.f32 %v3946, %v4062
        %v4088 = vmul.f32 %v3947, %v4062
        %v4089 = vmul.f32 %v3948, %v4062
        %v4090 = vmul.f32 %v3949, %v4062
        %v4091 = vmul.f32 %v3950, %v4062
        %v4092 = vmul.f32 %v3951, %v4062
        %v4093 = vmul.f32 %v3952, %v4062
        %v4094 = vmul.f32 %v3953, %v4062
        %v4096 = vlaneseq
        %v4097 = vshrl.u32 %v4096, 7
        %v4098 = vsub.s32 0, %v4097
        %v4099 = vrot.slane %v3849, %v4098
        %v4101 = vadd.f32 %v4063, %v4099
        %v4102 = vadd.f32 %v4064, %v4099
        %v4103 = vadd.f32 %v4065, %v4099
        %v4104 = vadd.f32 %v4066, %v4099
        %v4105 = vadd.f32 %v4067, %v4099
        %v4106 = vadd.f32 %v4068, %v4099
        %v4107 = vadd.f32 %v4069, %v4099
        %v4108 = vadd.f32 %v4070, %v4099
        %v4109 = vadd.f32 %v4071, %v4099
        %v4110 = vadd.f32 %v4072, %v4099
        %v4111 = vadd.f32 %v4073, %v4099
        %v4112 = vadd.f32 %v4074, %v4099
        %v4113 = vadd.f32 %v4075, %v4099
        %v4114 = vadd.f32 %v4076, %v4099
        %v4115 = vadd.f32 %v4077, %v4099
        %v4116 = vadd.f32 %v4078, %v4099
        %v4117 = vadd.f32 %v4079, %v4099
        %v4118 = vadd.f32 %v4080, %v4099
        %v4119 = vadd.f32 %v4081, %v4099
        %v4120 = vadd.f32 %v4082, %v4099
        %v4121 = vadd.f32 %v4083, %v4099
        %v4122 = vadd.f32 %v4084, %v4099
        %v4123 = vadd.f32 %v4085, %v4099
        %v4124 = vadd.f32 %v4086, %v4099
        %v4125 = vadd.f32 %v4087, %v4099
        %v4126 = vadd.f32 %v4088, %v4099
        %v4127 = vadd.f32 %v4089, %v4099
        %v4128 = vadd.f32 %v4090, %v4099
        %v4129 = vadd.f32 %v4091, %v4099
        %v4130 = vadd.f32 %v4092, %v4099
        %v4131 = vadd.f32 %v4093, %v4099
        %v4132 = vadd.f32 %v4094, %v4099
        %4133 = vst.msk [vmem:[#allocation3] sm:$0xff] %vm3850, 0.0
        %4134 = vst.msk [vmem:[#allocation3 + $0x8] sm:$0xff] %vm3850, 0.0
        %vm4135 = vcmask 58368
        %4136 = vst.msk [vmem:[#allocation3 + $0x10] sm:$0x3] %vm4135, 0.0
        %4137 = vst.msk [vmem:[#allocation3 + $0x18] sm:$0xff] %vm3850, 0.0
        %4138 = vst.msk [vmem:[#allocation3 + $0x20] sm:$0xff] %vm3850, 0.0
        %4139 = vst.msk [vmem:[#allocation3 + $0x28] sm:$0x3] %vm4135, 0.0
        %4140 = vst.msk [vmem:[#allocation3 + $0x30] sm:$0xff] %vm3850, 0.0
        %4141 = vst.msk [vmem:[#allocation3 + $0x38] sm:$0xff] %vm3850, 0.0
        %4142 = vst.msk [vmem:[#allocation3 + $0x40] sm:$0x3] %vm4135, 0.0
        %4143 = vst.msk [vmem:[#allocation3 + $0x48] sm:$0xff] %vm3850, 0.0
        %4144 = vst.msk [vmem:[#allocation3 + $0x50] sm:$0xff] %vm3850, 0.0
        %4145 = vst.msk [vmem:[#allocation3 + $0x58] sm:$0x3] %vm4135, 0.0
        %4146 = vst.msk [vmem:[#allocation3 + $0x60] sm:$0xff] %vm3850, 0.0
        %4147 = vst.msk [vmem:[#allocation3 + $0x68] sm:$0xff] %vm3850, 0.0
        %4148 = vst.msk [vmem:[#allocation3 + $0x70] sm:$0x3] %vm4135, 0.0
        %4149 = vst.msk [vmem:[#allocation3 + $0x78] sm:$0xff] %vm3850, 0.0
        %4150 = vst.msk [vmem:[#allocation3 + $0x80] sm:$0xff] %vm3850, 0.0
        %4151 = vst.msk [vmem:[#allocation3 + $0x88] sm:$0x3] %vm4135, 0.0
        %4152 = vst.msk [vmem:[#allocation3 + $0x90] sm:$0xff] %vm3850, 0.0
        %4153 = vst.msk [vmem:[#allocation3 + $0x98] sm:$0xff] %vm3850, 0.0
        %4154 = vst.msk [vmem:[#allocation3 + $0xa0] sm:$0x3] %vm4135, 0.0
        %4155 = vst.msk [vmem:[#allocation3 + $0xa8] sm:$0xff] %vm3850, 0.0
        %4156 = vst.msk [vmem:[#allocation3 + $0xb0] sm:$0xff] %vm3850, 0.0
        %4157 = vst.msk [vmem:[#allocation3 + $0xb8] sm:$0x3] %vm4135, 0.0
        %4158 = vst.msk [vmem:[#allocation3 + $0xc0] sm:$0xff] %vm3850, 0.0
        %4159 = vst.msk [vmem:[#allocation3 + $0xc8] sm:$0xff] %vm3850, 0.0
        %4160 = vst.msk [vmem:[#allocation3 + $0xd0] sm:$0x3] %vm4135, 0.0
        %4161 = vst.msk [vmem:[#allocation3 + $0xd8] sm:$0xff] %vm3850, 0.0
        %4162 = vst.msk [vmem:[#allocation3 + $0xe0] sm:$0xff] %vm3850, 0.0
        %4163 = vst.msk [vmem:[#allocation3 + $0xe8] sm:$0x3] %vm4135, 0.0
        %4164 = vst.msk [vmem:[#allocation3 + $0xf0] sm:$0xff] %vm3850, 0.0
        %4165 = vst.msk [vmem:[#allocation3 + $0xf8] sm:$0xff] %vm3850, 0.0
        %4166 = vst.msk [vmem:[#allocation3 + $0x100] sm:$0x3] %vm4135, 0.0
        %4167 = vst.msk [vmem:[#allocation3 + $0x108] sm:$0xff] %vm3850, 0.0
        %4168 = vst.msk [vmem:[#allocation3 + $0x110] sm:$0xff] %vm3850, 0.0
        %4169 = vst.msk [vmem:[#allocation3 + $0x118] sm:$0x3] %vm4135, 0.0
        %4170 = vst.msk [vmem:[#allocation3 + $0x120] sm:$0xff] %vm3850, 0.0
        %4171 = vst.msk [vmem:[#allocation3 + $0x128] sm:$0xff] %vm3850, 0.0
        %4172 = vst.msk [vmem:[#allocation3 + $0x130] sm:$0x3] %vm4135, 0.0
        %4173 = vst.msk [vmem:[#allocation3 + $0x138] sm:$0xff] %vm3850, 0.0
        %4174 = vst.msk [vmem:[#allocation3 + $0x140] sm:$0xff] %vm3850, 0.0
        %4175 = vst.msk [vmem:[#allocation3 + $0x148] sm:$0x3] %vm4135, 0.0
        %4176 = vst.msk [vmem:[#allocation3 + $0x150] sm:$0xff] %vm3850, 0.0
        %4177 = vst.msk [vmem:[#allocation3 + $0x158] sm:$0xff] %vm3850, 0.0
        %4178 = vst.msk [vmem:[#allocation3 + $0x160] sm:$0x3] %vm4135, 0.0
        %4179 = vst.msk [vmem:[#allocation3 + $0x168] sm:$0xff] %vm3850, 0.0
        %4180 = vst.msk [vmem:[#allocation3 + $0x170] sm:$0xff] %vm3850, 0.0
        %4181 = vst.msk [vmem:[#allocation3 + $0x178] sm:$0x3] %vm4135, 0.0
        %4182 = vst.msk [vmem:[#allocation3 + $0x180] sm:$0xff] %vm3850, 0.0
        %4183 = vst.msk [vmem:[#allocation3 + $0x188] sm:$0xff] %vm3850, 0.0
        %4184 = vst.msk [vmem:[#allocation3 + $0x190] sm:$0x3] %vm4135, 0.0
        %4185 = vst.msk [vmem:[#allocation3 + $0x198] sm:$0xff] %vm3850, 0.0
        %4186 = vst.msk [vmem:[#allocation3 + $0x1a0] sm:$0xff] %vm3850, 0.0
        %4187 = vst.msk [vmem:[#allocation3 + $0x1a8] sm:$0x3] %vm4135, 0.0
        %s4188 = scalar_lea.vmem [#allocation3], 24
        %4189 = vst.msk [vmem:[%s4188 + $0x1] sm:$0xff] %vm3850, %v4101
        %4190 = vst.msk [vmem:[%s4188 + $0x9] sm:$0xff] %vm3850, %v4102
        %4191 = vst.msk [vmem:[%s4188 + $0x19] sm:$0xff] %vm3850, %v4103
        %4192 = vst.msk [vmem:[%s4188 + $0x21] sm:$0xff] %vm3850, %v4104
        %4193 = vst.msk [vmem:[%s4188 + $0x31] sm:$0xff] %vm3850, %v4105
        %4194 = vst.msk [vmem:[%s4188 + $0x39] sm:$0xff] %vm3850, %v4106
        %4195 = vst.msk [vmem:[%s4188 + $0x49] sm:$0xff] %vm3850, %v4107
        %4196 = vst.msk [vmem:[%s4188 + $0x51] sm:$0xff] %vm3850, %v4108
        %4197 = vst.msk [vmem:[%s4188 + $0x61] sm:$0xff] %vm3850, %v4109
        %4198 = vst.msk [vmem:[%s4188 + $0x69] sm:$0xff] %vm3850, %v4110
        %4199 = vst.msk [vmem:[%s4188 + $0x79] sm:$0xff] %vm3850, %v4111
        %4200 = vst.msk [vmem:[%s4188 + $0x81] sm:$0xff] %vm3850, %v4112
        %4201 = vst.msk [vmem:[%s4188 + $0x91] sm:$0xff] %vm3850, %v4113
        %4202 = vst.msk [vmem:[%s4188 + $0x99] sm:$0xff] %vm3850, %v4114
        %4203 = vst.msk [vmem:[%s4188 + $0xa9] sm:$0xff] %vm3850, %v4115
        %4204 = vst.msk [vmem:[%s4188 + $0xb1] sm:$0xff] %vm3850, %v4116
        %4205 = vst.msk [vmem:[%s4188 + $0xc1] sm:$0xff] %vm3850, %v4117
        %4206 = vst.msk [vmem:[%s4188 + $0xc9] sm:$0xff] %vm3850, %v4118
        %4207 = vst.msk [vmem:[%s4188 + $0xd9] sm:$0xff] %vm3850, %v4119
        %4208 = vst.msk [vmem:[%s4188 + $0xe1] sm:$0xff] %vm3850, %v4120
        %4209 = vst.msk [vmem:[%s4188 + $0xf1] sm:$0xff] %vm3850, %v4121
        %4210 = vst.msk [vmem:[%s4188 + $0xf9] sm:$0xff] %vm3850, %v4122
        %4211 = vst.msk [vmem:[%s4188 + $0x109] sm:$0xff] %vm3850, %v4123
        %4212 = vst.msk [vmem:[%s4188 + $0x111] sm:$0xff] %vm3850, %v4124
        %4213 = vst.msk [vmem:[%s4188 + $0x121] sm:$0xff] %vm3850, %v4125
        %4214 = vst.msk [vmem:[%s4188 + $0x129] sm:$0xff] %vm3850, %v4126
        %4215 = vst.msk [vmem:[%s4188 + $0x139] sm:$0xff] %vm3850, %v4127
        %4216 = vst.msk [vmem:[%s4188 + $0x141] sm:$0xff] %vm3850, %v4128
        %4217 = vst.msk [vmem:[%s4188 + $0x151] sm:$0xff] %vm3850, %v4129
        %4218 = vst.msk [vmem:[%s4188 + $0x159] sm:$0xff] %vm3850, %v4130
        %4219 = vst.msk [vmem:[%s4188 + $0x169] sm:$0xff] %vm3850, %v4131
        %4220 = vst.msk [vmem:[%s4188 + $0x171] sm:$0xff] %vm3850, %v4132
        %v4221 = vld [vmem:[#allocation3] sm:$0xff]
        %v4222 = vld [vmem:[#allocation3 + $0x8] sm:$0xff]
        %v4223 = vld [vmem:[#allocation3 + $0x18] sm:$0xff]
        %v4224 = vld [vmem:[#allocation3 + $0x20] sm:$0xff]
        %v4225 = vld [vmem:[#allocation3 + $0x30] sm:$0xff]
        %v4226 = vld [vmem:[#allocation3 + $0x38] sm:$0xff]
        %v4227 = vld [vmem:[#allocation3 + $0x48] sm:$0xff]
        %v4228 = vld [vmem:[#allocation3 + $0x50] sm:$0xff]
        %v4229 = vld [vmem:[#allocation3 + $0x60] sm:$0xff]
        %v4230 = vld [vmem:[#allocation3 + $0x68] sm:$0xff]
        %v4231 = vld [vmem:[#allocation3 + $0x78] sm:$0xff]
        %v4232 = vld [vmem:[#allocation3 + $0x80] sm:$0xff]
        %v4233 = vld [vmem:[#allocation3 + $0x90] sm:$0xff]
        %v4234 = vld [vmem:[#allocation3 + $0x98] sm:$0xff]
        %v4235 = vld [vmem:[#allocation3 + $0xa8] sm:$0xff]
        %v4236 = vld [vmem:[#allocation3 + $0xb0] sm:$0xff]
        %v4237 = vld [vmem:[#allocation3 + $0xc0] sm:$0xff]
        %v4238 = vld [vmem:[#allocation3 + $0xc8] sm:$0xff]
        %v4239 = vld [vmem:[#allocation3 + $0xd8] sm:$0xff]
        %v4240 = vld [vmem:[#allocation3 + $0xe0] sm:$0xff]
        %v4241 = vld [vmem:[#allocation3 + $0xf0] sm:$0xff]
        %v4242 = vld [vmem:[#allocation3 + $0xf8] sm:$0xff]
        %v4243 = vld [vmem:[#allocation3 + $0x108] sm:$0xff]
        %v4244 = vld [vmem:[#allocation3 + $0x110] sm:$0xff]
        %v4245 = vld [vmem:[#allocation3 + $0x120] sm:$0xff]
        %v4246 = vld [vmem:[#allocation3 + $0x128] sm:$0xff]
        %v4247 = vld [vmem:[#allocation3 + $0x138] sm:$0xff]
        %v4248 = vld [vmem:[#allocation3 + $0x140] sm:$0xff]
        %v4249 = vld [vmem:[#allocation3 + $0x150] sm:$0xff]
        %v4250 = vld [vmem:[#allocation3 + $0x158] sm:$0xff]
        %v4251 = vld [vmem:[#allocation3 + $0x168] sm:$0xff]
        %v4252 = vld [vmem:[#allocation3 + $0x170] sm:$0xff]
        %v4253 = vpack.c.bf16 %v4222, %v4221
        %v4254 = vpack.c.bf16 %v4224, %v4223
        %v4255 = vpack.c.bf16 %v4226, %v4225
        %v4256 = vpack.c.bf16 %v4228, %v4227
        %v4257 = vpack.c.bf16 %v4230, %v4229
        %v4258 = vpack.c.bf16 %v4232, %v4231
        %v4259 = vpack.c.bf16 %v4234, %v4233
        %v4260 = vpack.c.bf16 %v4236, %v4235
        %v4261 = vpack.c.bf16 %v4238, %v4237
        %v4262 = vpack.c.bf16 %v4240, %v4239
        %v4263 = vpack.c.bf16 %v4242, %v4241
        %v4264 = vpack.c.bf16 %v4244, %v4243
        %v4265 = vpack.c.bf16 %v4246, %v4245
        %v4266 = vpack.c.bf16 %v4248, %v4247
        %v4267 = vpack.c.bf16 %v4250, %v4249
        %v4268 = vpack.c.bf16 %v4252, %v4251
        %v4269 = vld [vmem:[#allocation21] sm:$0xf]
        %v4270 = vld [vmem:[#allocation3 + $0x1] sm:$0xff]
        %v4271 = vld [vmem:[#allocation3 + $0x9] sm:$0xff]
        %v4272 = vld [vmem:[#allocation3 + $0x19] sm:$0xff]
        %v4273 = vld [vmem:[#allocation3 + $0x21] sm:$0xff]
        %v4274 = vld [vmem:[#allocation3 + $0x31] sm:$0xff]
        %v4275 = vld [vmem:[#allocation3 + $0x39] sm:$0xff]
        %v4276 = vld [vmem:[#allocation3 + $0x49] sm:$0xff]
        %v4277 = vld [vmem:[#allocation3 + $0x51] sm:$0xff]
        %v4278 = vld [vmem:[#allocation3 + $0x61] sm:$0xff]
        %v4279 = vld [vmem:[#allocation3 + $0x69] sm:$0xff]
        %v4280 = vld [vmem:[#allocation3 + $0x79] sm:$0xff]
        %v4281 = vld [vmem:[#allocation3 + $0x81] sm:$0xff]
        %v4282 = vld [vmem:[#allocation3 + $0x91] sm:$0xff]
        %v4283 = vld [vmem:[#allocation3 + $0x99] sm:$0xff]
        %v4284 = vld [vmem:[#allocation3 + $0xa9] sm:$0xff]
        %v4285 = vld [vmem:[#allocation3 + $0xb1] sm:$0xff]
        %v4286 = vld [vmem:[#allocation3 + $0xc1] sm:$0xff]
        %v4287 = vld [vmem:[#allocation3 + $0xc9] sm:$0xff]
        %v4288 = vld [vmem:[#allocation3 + $0xd9] sm:$0xff]
        %v4289 = vld [vmem:[#allocation3 + $0xe1] sm:$0xff]
        %v4290 = vld [vmem:[#allocation3 + $0xf1] sm:$0xff]
        %v4291 = vld [vmem:[#allocation3 + $0xf9] sm:$0xff]
        %v4292 = vld [vmem:[#allocation3 + $0x109] sm:$0xff]
        %v4293 = vld [vmem:[#allocation3 + $0x111] sm:$0xff]
        %v4294 = vld [vmem:[#allocation3 + $0x121] sm:$0xff]
        %v4295 = vld [vmem:[#allocation3 + $0x129] sm:$0xff]
        %v4296 = vld [vmem:[#allocation3 + $0x139] sm:$0xff]
        %v4297 = vld [vmem:[#allocation3 + $0x141] sm:$0xff]
        %v4298 = vld [vmem:[#allocation3 + $0x151] sm:$0xff]
        %v4299 = vld [vmem:[#allocation3 + $0x159] sm:$0xff]
        %v4300 = vld [vmem:[#allocation3 + $0x169] sm:$0xff]
        %v4301 = vld [vmem:[#allocation3 + $0x171] sm:$0xff]
        %v4302 = vpack.c.bf16 %v4271, %v4270
        %v4303 = vpack.c.bf16 %v4273, %v4272
        %v4304 = vpack.c.bf16 %v4275, %v4274
        %v4305 = vpack.c.bf16 %v4277, %v4276
        %v4306 = vpack.c.bf16 %v4279, %v4278
        %v4307 = vpack.c.bf16 %v4281, %v4280
        %v4308 = vpack.c.bf16 %v4283, %v4282
        %v4309 = vpack.c.bf16 %v4285, %v4284
        %v4310 = vpack.c.bf16 %v4287, %v4286
        %v4311 = vpack.c.bf16 %v4289, %v4288
        %v4312 = vpack.c.bf16 %v4291, %v4290
        %v4313 = vpack.c.bf16 %v4293, %v4292
        %v4314 = vpack.c.bf16 %v4295, %v4294
        %v4315 = vpack.c.bf16 %v4297, %v4296
        %v4316 = vpack.c.bf16 %v4299, %v4298
        %v4317 = vpack.c.bf16 %v4301, %v4300
        %s4318 = scalar_lea.vmem [#allocation21], 4
        %v4319 = vld [vmem:[%s4318] sm:$0xf]
        %v4321 = vsel %vm3850, %v4302, 0
        %v4324 = vsel %vm3850, %v4303, 0
        %v4327 = vsel %vm3850, %v4304, 0
        %v4330 = vsel %vm3850, %v4305, 0
        %v4333 = vsel %vm3850, %v4306, 0
        %v4336 = vsel %vm3850, %v4307, 0
        %v4339 = vsel %vm3850, %v4308, 0
        %v4342 = vsel %vm3850, %v4309, 0
        %v4345 = vsel %vm3850, %v4310, 0
        %v4348 = vsel %vm3850, %v4311, 0
        %v4351 = vsel %vm3850, %v4312, 0
        %v4354 = vsel %vm3850, %v4313, 0
        %v4357 = vsel %vm3850, %v4314, 0
        %v4360 = vsel %vm3850, %v4315, 0
        %v4363 = vsel %vm3850, %v4316, 0
        %v4366 = vsel %vm3850, %v4317, 0
        %vm4368 = vcmask 1043456
        %v4370 = vsel %vm4368, %v4319, 0
        %4372 = vmatprep.subr.bf16.mxu0 0
        %4373 = vmatpush1.bf16.msra.mxu0 %v4370
        %4374 = vmatprep.subr.bf16.mxu0 0
        %4375 = vmatpush1.bf16.msra.mxu0 0
        %4376 = vmatprep.subr.bf16.mxu0 0
        %4377 = vmatpush1.bf16.msra.mxu0 0
        %4378 = vmatprep.subr.bf16.mxu0 0
        %4379 = vmatpush1.bf16.msra.mxu0 0
        %4380 = vmatprep.subr.bf16.mxu0 0
        %4381 = vmatpush1.bf16.msra.mxu0 0
        %4382 = vmatprep.subr.bf16.mxu0 0
        %4383 = vmatpush1.bf16.msra.mxu0 0
        %4384 = vmatprep.subr.bf16.mxu0 0
        %4385 = vmatpush1.bf16.msra.mxu0 0
        %4386 = vmatprep.subr.bf16.mxu0 0
        %4387 = vmatpush1.bf16.msra.mxu0 0
        %4388 = vmatprep.subr.bf16.mxu0 0
        %4389 = vmatpush1.bf16.msra.mxu0 0
        %4390 = vmatprep.subr.bf16.mxu0 0
        %4391 = vmatpush1.bf16.msra.mxu0 0
        %4392 = vmatprep.subr.bf16.mxu0 0
        %4393 = vmatpush1.bf16.msra.mxu0 0
        %4394 = vmatprep.subr.bf16.mxu0 0
        %4395 = vmatpush1.bf16.msra.mxu0 0
        %4396 = vmatprep.subr.bf16.mxu0 0
        %4397 = vmatpush1.bf16.msra.mxu0 0
        %4398 = vmatprep.subr.bf16.mxu0 0
        %4399 = vmatpush1.bf16.msra.mxu0 0
        %4400 = vmatprep.subr.bf16.mxu0 0
        %4401 = vmatpush1.bf16.msra.mxu0 0
        %4402 = vmatprep.subr.bf16.mxu0 0
        %4403 = vmatpush1.bf16.msra.mxu0 0
        %4404 = vmatprep.mubr.bf16.mxu0 0
        %4405 = vmatmul.mubr.bf16.gmra.mrb[0].mxu0 %v4321
        %v4406 = vpop.f32.mrb[0].mxu0
        %v4407 = vadd.f32 0.0, %v4406
        %v4408 = vpop.f32.mrb[0].mxu0
        %v4409 = vpop.f32.mrb[0].mxu0
        %v4410 = vadd.f32 0.0, %v4409
        %v4411 = vpop.f32.mrb[0].mxu0
        %4412 = vmatprep.mubr.bf16.mxu0 0
        %4413 = vmatmul.mubr.bf16.gmra.mrb[0].mxu0 %v4324
        %v4414 = vpop.f32.mrb[0].mxu0
        %v4415 = vadd.f32 0.0, %v4414
        %v4416 = vpop.f32.mrb[0].mxu0
        %v4417 = vpop.f32.mrb[0].mxu0
        %v4418 = vadd.f32 0.0, %v4417
        %v4419 = vpop.f32.mrb[0].mxu0
        %4420 = vmatprep.mubr.bf16.mxu0 0
        %4421 = vmatmul.mubr.bf16.gmra.mrb[0].mxu0 %v4327
        %v4422 = vpop.f32.mrb[0].mxu0
        %v4423 = vadd.f32 0.0, %v4422
        %v4424 = vpop.f32.mrb[0].mxu0
        %v4425 = vpop.f32.mrb[0].mxu0
        %v4426 = vadd.f32 0.0, %v4425
        %v4427 = vpop.f32.mrb[0].mxu0
        %4428 = vmatprep.mubr.bf16.mxu0 0
        %4429 = vmatmul.mubr.bf16.gmra.mrb[0].mxu0 %v4330
        %v4430 = vpop.f32.mrb[0].mxu0
        %v4431 = vadd.f32 0.0, %v4430
        %v4432 = vpop.f32.mrb[0].mxu0
        %v4433 = vpop.f32.mrb[0].mxu0
        %v4434 = vadd.f32 0.0, %v4433
        %v4435 = vpop.f32.mrb[0].mxu0
        %4436 = vmatprep.mubr.bf16.mxu0 0
        %4437 = vmatmul.mubr.bf16.gmra.mrb[0].mxu0 %v4333
        %v4438 = vpop.f32.mrb[0].mxu0
        %v4439 = vadd.f32 0.0, %v4438
        %v4440 = vpop.f32.mrb[0].mxu0
        %v4441 = vpop.f32.mrb[0].mxu0
        %v4442 = vadd.f32 0.0, %v4441
        %v4443 = vpop.f32.mrb[0].mxu0
        %4444 = vmatprep.mubr.bf16.mxu0 0
        %4445 = vmatmul.mubr.bf16.gmra.mrb[0].mxu0 %v4336
        %v4446 = vpop.f32.mrb[0].mxu0
        %v4447 = vadd.f32 0.0, %v4446
        %v4448 = vpop.f32.mrb[0].mxu0
        %v4449 = vpop.f32.mrb[0].mxu0
        %v4450 = vadd.f32 0.0, %v4449
        %v4451 = vpop.f32.mrb[0].mxu0
        %4452 = vmatprep.mubr.bf16.mxu0 0
        %4453 = vmatmul.mubr.bf16.gmra.mrb[0].mxu0 %v4339
        %v4454 = vpop.f32.mrb[0].mxu0
        %v4455 = vadd.f32 0.0, %v4454
        %v4456 = vpop.f32.mrb[0].mxu0
        %v4457 = vpop.f32.mrb[0].mxu0
        %v4458 = vadd.f32 0.0, %v4457
        %v4459 = vpop.f32.mrb[0].mxu0
        %4460 = vmatprep.mubr.bf16.mxu0 0
        %4461 = vmatmul.mubr.bf16.gmra.mrb[0].mxu0 %v4342
        %v4462 = vpop.f32.mrb[0].mxu0
        %v4463 = vadd.f32 0.0, %v4462
        %v4464 = vpop.f32.mrb[0].mxu0
        %v4465 = vpop.f32.mrb[0].mxu0
        %v4466 = vadd.f32 0.0, %v4465
        %v4467 = vpop.f32.mrb[0].mxu0
        %4468 = vmatprep.mubr.bf16.mxu0 0
        %4469 = vmatmul.mubr.bf16.gmra.mrb[0].mxu0 %v4345
        %v4470 = vpop.f32.mrb[0].mxu0
        %v4471 = vadd.f32 0.0, %v4470
        %v4472 = vpop.f32.mrb[0].mxu0
        %v4473 = vpop.f32.mrb[0].mxu0
        %v4474 = vadd.f32 0.0, %v4473
        %v4475 = vpop.f32.mrb[0].mxu0
        %4476 = vmatprep.mubr.bf16.mxu0 0
        %4477 = vmatmul.mubr.bf16.gmra.mrb[0].mxu0 %v4348
        %v4478 = vpop.f32.mrb[0].mxu0
        %v4479 = vadd.f32 0.0, %v4478
        %v4480 = vpop.f32.mrb[0].mxu0
        %v4481 = vpop.f32.mrb[0].mxu0
        %v4482 = vadd.f32 0.0, %v4481
        %v4483 = vpop.f32.mrb[0].mxu0
        %4484 = vmatprep.mubr.bf16.mxu0 0
        %4485 = vmatmul.mubr.bf16.gmra.mrb[0].mxu0 %v4351
        %v4486 = vpop.f32.mrb[0].mxu0
        %v4487 = vadd.f32 0.0, %v4486
        %v4488 = vpop.f32.mrb[0].mxu0
        %v4489 = vpop.f32.mrb[0].mxu0
        %v4490 = vadd.f32 0.0, %v4489
        %v4491 = vpop.f32.mrb[0].mxu0
        %4492 = vmatprep.mubr.bf16.mxu0 0
        %4493 = vmatmul.mubr.bf16.gmra.mrb[0].mxu0 %v4354
        %v4494 = vpop.f32.mrb[0].mxu0
        %v4495 = vadd.f32 0.0, %v4494
        %v4496 = vpop.f32.mrb[0].mxu0
        %v4497 = vpop.f32.mrb[0].mxu0
        %v4498 = vadd.f32 0.0, %v4497
        %v4499 = vpop.f32.mrb[0].mxu0
        %4500 = vmatprep.mubr.bf16.mxu0 0
        %4501 = vmatmul.mubr.bf16.gmra.mrb[0].mxu0 %v4357
        %v4502 = vpop.f32.mrb[0].mxu0
        %v4503 = vadd.f32 0.0, %v4502
        %v4504 = vpop.f32.mrb[0].mxu0
        %v4505 = vpop.f32.mrb[0].mxu0
        %v4506 = vadd.f32 0.0, %v4505
        %v4507 = vpop.f32.mrb[0].mxu0
        %4508 = vmatprep.mubr.bf16.mxu0 0
        %4509 = vmatmul.mubr.bf16.gmra.mrb[0].mxu0 %v4360
        %v4510 = vpop.f32.mrb[0].mxu0
        %v4511 = vadd.f32 0.0, %v4510
        %v4512 = vpop.f32.mrb[0].mxu0
        %v4513 = vpop.f32.mrb[0].mxu0
        %v4514 = vadd.f32 0.0, %v4513
        %v4515 = vpop.f32.mrb[0].mxu0
        %4516 = vmatprep.mubr.bf16.mxu0 0
        %4517 = vmatmul.mubr.bf16.gmra.mrb[0].mxu0 %v4363
        %v4518 = vpop.f32.mrb[0].mxu0
        %v4519 = vadd.f32 0.0, %v4518
        %v4520 = vpop.f32.mrb[0].mxu0
        %v4521 = vpop.f32.mrb[0].mxu0
        %v4522 = vadd.f32 0.0, %v4521
        %v4523 = vpop.f32.mrb[0].mxu0
        %4524 = vmatprep.mubr.bf16.mxu0 0
        %4525 = vmatmul.mubr.bf16.gmra.mrb[0].mxu0 %v4366
        %v4526 = vpop.f32.mrb[0].mxu0
        %v4527 = vadd.f32 0.0, %v4526
        %v4528 = vpop.f32.mrb[0].mxu0
        %v4529 = vpop.f32.mrb[0].mxu0
        %v4530 = vadd.f32 0.0, %v4529
        %v4531 = vpop.f32.mrb[0].mxu0
        %4532 = vdwg.mxu0
        %v4534 = vsel %vm3850, %v4253, 0
        %v4537 = vsel %vm3850, %v4254, 0
        %v4540 = vsel %vm3850, %v4255, 0
        %v4543 = vsel %vm3850, %v4256, 0
        %v4546 = vsel %vm3850, %v4257, 0
        %v4549 = vsel %vm3850, %v4258, 0
        %v4552 = vsel %vm3850, %v4259, 0
        %v4555 = vsel %vm3850, %v4260, 0
        %v4558 = vsel %vm3850, %v4261, 0
        %v4561 = vsel %vm3850, %v4262, 0
        %v4564 = vsel %vm3850, %v4263, 0
        %v4567 = vsel %vm3850, %v4264, 0
        %v4570 = vsel %vm3850, %v4265, 0
        %v4573 = vsel %vm3850, %v4266, 0
        %v4576 = vsel %vm3850, %v4267, 0
        %v4579 = vsel %vm3850, %v4268, 0
        %v4582 = vsel %vm4368, %v4269, 0
        %4584 = vmatprep.subr.bf16.mxu0 0
        %4585 = vmatpush1.bf16.msra.mxu0 %v4582
        %4586 = vmatprep.subr.bf16.mxu0 0
        %4587 = vmatpush1.bf16.msra.mxu0 0
        %4588 = vmatprep.subr.bf16.mxu0 0
        %4589 = vmatpush1.bf16.msra.mxu0 0
        %4590 = vmatprep.subr.bf16.mxu0 0
        %4591 = vmatpush1.bf16.msra.mxu0 0
        %4592 = vmatprep.subr.bf16.mxu0 0
        %4593 = vmatpush1.bf16.msra.mxu0 0
        %4594 = vmatprep.subr.bf16.mxu0 0
        %4595 = vmatpush1.bf16.msra.mxu0 0
        %4596 = vmatprep.subr.bf16.mxu0 0
        %4597 = vmatpush1.bf16.msra.mxu0 0
        %4598 = vmatprep.subr.bf16.mxu0 0
        %4599 = vmatpush1.bf16.msra.mxu0 0
        %4600 = vmatprep.subr.bf16.mxu0 0
        %4601 = vmatpush1.bf16.msra.mxu0 0
        %4602 = vmatprep.subr.bf16.mxu0 0
        %4603 = vmatpush1.bf16.msra.mxu0 0
        %4604 = vmatprep.subr.bf16.mxu0 0
        %4605 = vmatpush1.bf16.msra.mxu0 0
        %4606 = vmatprep.subr.bf16.mxu0 0
        %4607 = vmatpush1.bf16.msra.mxu0 0
        %4608 = vmatprep.subr.bf16.mxu0 0
        %4609 = vmatpush1.bf16.msra.mxu0 0
        %4610 = vmatprep.subr.bf16.mxu0 0
        %4611 = vmatpush1.bf16.msra.mxu0 0
        %4612 = vmatprep.subr.bf16.mxu0 0
        %4613 = vmatpush1.bf16.msra.mxu0 0
        %4614 = vmatprep.subr.bf16.mxu0 0
        %4615 = vmatpush1.bf16.msra.mxu0 0
        %4616 = vmatprep.mubr.bf16.mxu0 0
        %4617 = vmatmul.mubr.bf16.gmra.mrb[0].mxu0 %v4534
        %v4618 = vpop.f32.mrb[0].mxu0
        %v4619 = vadd.f32 %v4407, %v4618
        %v4620 = vpop.f32.mrb[0].mxu0
        %v4621 = vpop.f32.mrb[0].mxu0
        %v4622 = vadd.f32 %v4410, %v4621
        %v4623 = vpop.f32.mrb[0].mxu0
        %4624 = vmatprep.mubr.bf16.mxu0 0
        %4625 = vmatmul.mubr.bf16.gmra.mrb[0].mxu0 %v4537
        %v4626 = vpop.f32.mrb[0].mxu0
        %v4627 = vadd.f32 %v4415, %v4626
        %v4628 = vpop.f32.mrb[0].mxu0
        %v4629 = vpop.f32.mrb[0].mxu0
        %v4630 = vadd.f32 %v4418, %v4629
        %v4631 = vpop.f32.mrb[0].mxu0
        %4632 = vmatprep.mubr.bf16.mxu0 0
        %4633 = vmatmul.mubr.bf16.gmra.mrb[0].mxu0 %v4540
        %v4634 = vpop.f32.mrb[0].mxu0
        %v4635 = vadd.f32 %v4423, %v4634
        %v4636 = vpop.f32.mrb[0].mxu0
        %v4637 = vpop.f32.mrb[0].mxu0
        %v4638 = vadd.f32 %v4426, %v4637
        %v4639 = vpop.f32.mrb[0].mxu0
        %4640 = vmatprep.mubr.bf16.mxu0 0
        %4641 = vmatmul.mubr.bf16.gmra.mrb[0].mxu0 %v4543
        %v4642 = vpop.f32.mrb[0].mxu0
        %v4643 = vadd.f32 %v4431, %v4642
        %v4644 = vpop.f32.mrb[0].mxu0
        %v4645 = vpop.f32.mrb[0].mxu0
        %v4646 = vadd.f32 %v4434, %v4645
        %v4647 = vpop.f32.mrb[0].mxu0
        %4648 = vmatprep.mubr.bf16.mxu0 0
        %4649 = vmatmul.mubr.bf16.gmra.mrb[0].mxu0 %v4546
        %v4650 = vpop.f32.mrb[0].mxu0
        %v4651 = vadd.f32 %v4439, %v4650
        %v4652 = vpop.f32.mrb[0].mxu0
        %v4653 = vpop.f32.mrb[0].mxu0
        %v4654 = vadd.f32 %v4442, %v4653
        %v4655 = vpop.f32.mrb[0].mxu0
        %4656 = vmatprep.mubr.bf16.mxu0 0
        %4657 = vmatmul.mubr.bf16.gmra.mrb[0].mxu0 %v4549
        %v4658 = vpop.f32.mrb[0].mxu0
        %v4659 = vadd.f32 %v4447, %v4658
        %v4660 = vpop.f32.mrb[0].mxu0
        %v4661 = vpop.f32.mrb[0].mxu0
        %v4662 = vadd.f32 %v4450, %v4661
        %v4663 = vpop.f32.mrb[0].mxu0
        %4664 = vmatprep.mubr.bf16.mxu0 0
        %4665 = vmatmul.mubr.bf16.gmra.mrb[0].mxu0 %v4552
        %v4666 = vpop.f32.mrb[0].mxu0
        %v4667 = vadd.f32 %v4455, %v4666
        %v4668 = vpop.f32.mrb[0].mxu0
        %v4669 = vpop.f32.mrb[0].mxu0
        %v4670 = vadd.f32 %v4458, %v4669
        %v4671 = vpop.f32.mrb[0].mxu0
        %4672 = vmatprep.mubr.bf16.mxu0 0
        %4673 = vmatmul.mubr.bf16.gmra.mrb[0].mxu0 %v4555
        %v4674 = vpop.f32.mrb[0].mxu0
        %v4675 = vadd.f32 %v4463, %v4674
        %v4676 = vpop.f32.mrb[0].mxu0
        %v4677 = vpop.f32.mrb[0].mxu0
        %v4678 = vadd.f32 %v4466, %v4677
        %v4679 = vpop.f32.mrb[0].mxu0
        %4680 = vmatprep.mubr.bf16.mxu0 0
        %4681 = vmatmul.mubr.bf16.gmra.mrb[0].mxu0 %v4558
        %v4682 = vpop.f32.mrb[0].mxu0
        %v4683 = vadd.f32 %v4471, %v4682
        %v4684 = vpop.f32.mrb[0].mxu0
        %v4685 = vpop.f32.mrb[0].mxu0
        %v4686 = vadd.f32 %v4474, %v4685
        %v4687 = vpop.f32.mrb[0].mxu0
        %4688 = vmatprep.mubr.bf16.mxu0 0
        %4689 = vmatmul.mubr.bf16.gmra.mrb[0].mxu0 %v4561
        %v4690 = vpop.f32.mrb[0].mxu0
        %v4691 = vadd.f32 %v4479, %v4690
        %v4692 = vpop.f32.mrb[0].mxu0
        %v4693 = vpop.f32.mrb[0].mxu0
        %v4694 = vadd.f32 %v4482, %v4693
        %v4695 = vpop.f32.mrb[0].mxu0
        %4696 = vmatprep.mubr.bf16.mxu0 0
        %4697 = vmatmul.mubr.bf16.gmra.mrb[0].mxu0 %v4564
        %v4698 = vpop.f32.mrb[0].mxu0
        %v4699 = vadd.f32 %v4487, %v4698
        %v4700 = vpop.f32.mrb[0].mxu0
        %v4701 = vpop.f32.mrb[0].mxu0
        %v4702 = vadd.f32 %v4490, %v4701
        %v4703 = vpop.f32.mrb[0].mxu0
        %4704 = vmatprep.mubr.bf16.mxu0 0
        %4705 = vmatmul.mubr.bf16.gmra.mrb[0].mxu0 %v4567
        %v4706 = vpop.f32.mrb[0].mxu0
        %v4707 = vadd.f32 %v4495, %v4706
        %v4708 = vpop.f32.mrb[0].mxu0
        %v4709 = vpop.f32.mrb[0].mxu0
        %v4710 = vadd.f32 %v4498, %v4709
        %v4711 = vpop.f32.mrb[0].mxu0
        %4712 = vmatprep.mubr.bf16.mxu0 0
        %4713 = vmatmul.mubr.bf16.gmra.mrb[0].mxu0 %v4570
        %v4714 = vpop.f32.mrb[0].mxu0
        %v4715 = vadd.f32 %v4503, %v4714
        %v4716 = vpop.f32.mrb[0].mxu0
        %v4717 = vpop.f32.mrb[0].mxu0
        %v4718 = vadd.f32 %v4506, %v4717
        %v4719 = vpop.f32.mrb[0].mxu0
        %4720 = vmatprep.mubr.bf16.mxu0 0
        %4721 = vmatmul.mubr.bf16.gmra.mrb[0].mxu0 %v4573
        %v4722 = vpop.f32.mrb[0].mxu0
        %v4723 = vadd.f32 %v4511, %v4722
        %v4724 = vpop.f32.mrb[0].mxu0
        %v4725 = vpop.f32.mrb[0].mxu0
        %v4726 = vadd.f32 %v4514, %v4725
        %v4727 = vpop.f32.mrb[0].mxu0
        %4728 = vmatprep.mubr.bf16.mxu0 0
        %4729 = vmatmul.mubr.bf16.gmra.mrb[0].mxu0 %v4576
        %v4730 = vpop.f32.mrb[0].mxu0
        %v4731 = vadd.f32 %v4519, %v4730
        %v4732 = vpop.f32.mrb[0].mxu0
        %v4733 = vpop.f32.mrb[0].mxu0
        %v4734 = vadd.f32 %v4522, %v4733
        %v4735 = vpop.f32.mrb[0].mxu0
        %4736 = vmatprep.mubr.bf16.mxu0 0
        %4737 = vmatmul.mubr.bf16.gmra.mrb[0].mxu0 %v4579
        %v4738 = vpop.f32.mrb[0].mxu0
        %v4739 = vadd.f32 %v4527, %v4738
        %v4740 = vpop.f32.mrb[0].mxu0
        %v4741 = vpop.f32.mrb[0].mxu0
        %v4742 = vadd.f32 %v4530, %v4741
        %v4743 = vpop.f32.mrb[0].mxu0
        %4744 = vdwg.mxu0
        %v4745 = vld [vmem:[#allocation3 + $0x2] sm:$0xff]
        %v4746 = vld [vmem:[#allocation3 + $0xa] sm:$0xff]
        %v4747 = vld [vmem:[#allocation3 + $0x1a] sm:$0xff]
        %v4748 = vld [vmem:[#allocation3 + $0x22] sm:$0xff]
        %v4749 = vld [vmem:[#allocation3 + $0x32] sm:$0xff]
        %v4750 = vld [vmem:[#allocation3 + $0x3a] sm:$0xff]
        %v4751 = vld [vmem:[#allocation3 + $0x4a] sm:$0xff]
        %v4752 = vld [vmem:[#allocation3 + $0x52] sm:$0xff]
        %v4753 = vld [vmem:[#allocation3 + $0x62] sm:$0xff]
        %v4754 = vld [vmem:[#allocation3 + $0x6a] sm:$0xff]
        %v4755 = vld [vmem:[#allocation3 + $0x7a] sm:$0xff]
        %v4756 = vld [vmem:[#allocation3 + $0x82] sm:$0xff]
        %v4757 = vld [vmem:[#allocation3 + $0x92] sm:$0xff]
        %v4758 = vld [vmem:[#allocation3 + $0x9a] sm:$0xff]
        %v4759 = vld [vmem:[#allocation3 + $0xaa] sm:$0xff]
        %v4760 = vld [vmem:[#allocation3 + $0xb2] sm:$0xff]
        %v4761 = vld [vmem:[#allocation3 + $0xc2] sm:$0xff]
        %v4762 = vld [vmem:[#allocation3 + $0xca] sm:$0xff]
        %v4763 = vld [vmem:[#allocation3 + $0xda] sm:$0xff]
        %v4764 = vld [vmem:[#allocation3 + $0xe2] sm:$0xff]
        %v4765 = vld [vmem:[#allocation3 + $0xf2] sm:$0xff]
        %v4766 = vld [vmem:[#allocation3 + $0xfa] sm:$0xff]
        %v4767 = vld [vmem:[#allocation3 + $0x10a] sm:$0xff]
        %v4768 = vld [vmem:[#allocation3 + $0x112] sm:$0xff]
        %v4769 = vld [vmem:[#allocation3 + $0x122] sm:$0xff]
        %v4770 = vld [vmem:[#allocation3 + $0x12a] sm:$0xff]
        %v4771 = vld [vmem:[#allocation3 + $0x13a] sm:$0xff]
        %v4772 = vld [vmem:[#allocation3 + $0x142] sm:$0xff]
        %v4773 = vld [vmem:[#allocation3 + $0x152] sm:$0xff]
        %v4774 = vld [vmem:[#allocation3 + $0x15a] sm:$0xff]
        %v4775 = vld [vmem:[#allocation3 + $0x16a] sm:$0xff]
        %v4776 = vld [vmem:[#allocation3 + $0x172] sm:$0xff]
        %v4777 = vpack.c.bf16 %v4746, %v4745
        %v4778 = vpack.c.bf16 %v4748, %v4747
        %v4779 = vpack.c.bf16 %v4750, %v4749
        %v4780 = vpack.c.bf16 %v4752, %v4751
        %v4781 = vpack.c.bf16 %v4754, %v4753
        %v4782 = vpack.c.bf16 %v4756, %v4755
        %v4783 = vpack.c.bf16 %v4758, %v4757
        %v4784 = vpack.c.bf16 %v4760, %v4759
        %v4785 = vpack.c.bf16 %v4762, %v4761
        %v4786 = vpack.c.bf16 %v4764, %v4763
        %v4787 = vpack.c.bf16 %v4766, %v4765
        %v4788 = vpack.c.bf16 %v4768, %v4767
        %v4789 = vpack.c.bf16 %v4770, %v4769
        %v4790 = vpack.c.bf16 %v4772, %v4771
        %v4791 = vpack.c.bf16 %v4774, %v4773
        %v4792 = vpack.c.bf16 %v4776, %v4775
        %s4793 = scalar_lea.vmem [#allocation21], 8
        %v4794 = vld [vmem:[%s4793] sm:$0xf]
        %v4796 = vsel %vm3850, %v4777, 0
        %v4799 = vsel %vm3850, %v4778, 0
        %v4802 = vsel %vm3850, %v4779, 0
        %v4805 = vsel %vm3850, %v4780, 0
        %v4808 = vsel %vm3850, %v4781, 0
        %v4811 = vsel %vm3850, %v4782, 0
        %v4814 = vsel %vm3850, %v4783, 0
        %v4817 = vsel %vm3850, %v4784, 0
        %v4820 = vsel %vm3850, %v4785, 0
        %v4823 = vsel %vm3850, %v4786, 0
        %v4826 = vsel %vm3850, %v4787, 0
        %v4829 = vsel %vm3850, %v4788, 0
        %v4832 = vsel %vm3850, %v4789, 0
        %v4835 = vsel %vm3850, %v4790, 0
        %v4838 = vsel %vm3850, %v4791, 0
        %v4841 = vsel %vm3850, %v4792, 0
        %v4844 = vsel %vm4368, %v4794, 0
        %4846 = vmatprep.subr.bf16.mxu0 0
        %4847 = vmatpush1.bf16.msra.mxu0 %v4844
        %4848 = vmatprep.subr.bf16.mxu0 0
        %4849 = vmatpush1.bf16.msra.mxu0 0
        %4850 = vmatprep.subr.bf16.mxu0 0
        %4851 = vmatpush1.bf16.msra.mxu0 0
        %4852 = vmatprep.subr.bf16.mxu0 0
        %4853 = vmatpush1.bf16.msra.mxu0 0
        %4854 = vmatprep.subr.bf16.mxu0 0
        %4855 = vmatpush1.bf16.msra.mxu0 0
        %4856 = vmatprep.subr.bf16.mxu0 0
        %4857 = vmatpush1.bf16.msra.mxu0 0
        %4858 = vmatprep.subr.bf16.mxu0 0
        %4859 = vmatpush1.bf16.msra.mxu0 0
        %4860 = vmatprep.subr.bf16.mxu0 0
        %4861 = vmatpush1.bf16.msra.mxu0 0
        %4862 = vmatprep.subr.bf16.mxu0 0
        %4863 = vmatpush1.bf16.msra.mxu0 0
        %4864 = vmatprep.subr.bf16.mxu0 0
        %4865 = vmatpush1.bf16.msra.mxu0 0
        %4866 = vmatprep.subr.bf16.mxu0 0
        %4867 = vmatpush1.bf16.msra.mxu0 0
        %4868 = vmatprep.subr.bf16.mxu0 0
        %4869 = vmatpush1.bf16.msra.mxu0 0
        %4870 = vmatprep.subr.bf16.mxu0 0
        %4871 = vmatpush1.bf16.msra.mxu0 0
        %4872 = vmatprep.subr.bf16.mxu0 0
        %4873 = vmatpush1.bf16.msra.mxu0 0
        %4874 = vmatprep.subr.bf16.mxu0 0
        %4875 = vmatpush1.bf16.msra.mxu0 0
        %4876 = vmatprep.subr.bf16.mxu0 0
        %4877 = vmatpush1.bf16.msra.mxu0 0
        %4878 = vmatprep.mubr.bf16.mxu0 0
        %4879 = vmatmul.mubr.bf16.gmra.mrb[0].mxu0 %v4796
        %v4880 = vpop.f32.mrb[0].mxu0
        %v4881 = vadd.f32 0.0, %v4880
        %v4882 = vpop.f32.mrb[0].mxu0
        %v4883 = vpop.f32.mrb[0].mxu0
        %v4884 = vadd.f32 0.0, %v4883
        %v4885 = vpop.f32.mrb[0].mxu0
        %4886 = vmatprep.mubr.bf16.mxu0 0
        %4887 = vmatmul.mubr.bf16.gmra.mrb[0].mxu0 %v4799
        %v4888 = vpop.f32.mrb[0].mxu0
        %v4889 = vadd.f32 0.0, %v4888
        %v4890 = vpop.f32.mrb[0].mxu0
        %v4891 = vpop.f32.mrb[0].mxu0
        %v4892 = vadd.f32 0.0, %v4891
        %v4893 = vpop.f32.mrb[0].mxu0
        %4894 = vmatprep.mubr.bf16.mxu0 0
        %4895 = vmatmul.mubr.bf16.gmra.mrb[0].mxu0 %v4802
        %v4896 = vpop.f32.mrb[0].mxu0
        %v4897 = vadd.f32 0.0, %v4896
        %v4898 = vpop.f32.mrb[0].mxu0
        %v4899 = vpop.f32.mrb[0].mxu0
        %v4900 = vadd.f32 0.0, %v4899
        %v4901 = vpop.f32.mrb[0].mxu0
        %4902 = vmatprep.mubr.bf16.mxu0 0
        %4903 = vmatmul.mubr.bf16.gmra.mrb[0].mxu0 %v4805
        %v4904 = vpop.f32.mrb[0].mxu0
        %v4905 = vadd.f32 0.0, %v4904
        %v4906 = vpop.f32.mrb[0].mxu0
        %v4907 = vpop.f32.mrb[0].mxu0
        %v4908 = vadd.f32 0.0, %v4907
        %v4909 = vpop.f32.mrb[0].mxu0
        %4910 = vmatprep.mubr.bf16.mxu0 0
        %4911 = vmatmul.mubr.bf16.gmra.mrb[0].mxu0 %v4808
        %v4912 = vpop.f32.mrb[0].mxu0
        %v4913 = vadd.f32 0.0, %v4912
        %v4914 = vpop.f32.mrb[0].mxu0
        %v4915 = vpop.f32.mrb[0].mxu0
        %v4916 = vadd.f32 0.0, %v4915
        %v4917 = vpop.f32.mrb[0].mxu0
        %4918 = vmatprep.mubr.bf16.mxu0 0
        %4919 = vmatmul.mubr.bf16.gmra.mrb[0].mxu0 %v4811
        %v4920 = vpop.f32.mrb[0].mxu0
        %v4921 = vadd.f32 0.0, %v4920
        %v4922 = vpop.f32.mrb[0].mxu0
        %v4923 = vpop.f32.mrb[0].mxu0
        %v4924 = vadd.f32 0.0, %v4923
        %v4925 = vpop.f32.mrb[0].mxu0
        %4926 = vmatprep.mubr.bf16.mxu0 0
        %4927 = vmatmul.mubr.bf16.gmra.mrb[0].mxu0 %v4814
        %v4928 = vpop.f32.mrb[0].mxu0
        %v4929 = vadd.f32 0.0, %v4928
        %v4930 = vpop.f32.mrb[0].mxu0
        %v4931 = vpop.f32.mrb[0].mxu0
        %v4932 = vadd.f32 0.0, %v4931
        %v4933 = vpop.f32.mrb[0].mxu0
        %4934 = vmatprep.mubr.bf16.mxu0 0
        %4935 = vmatmul.mubr.bf16.gmra.mrb[0].mxu0 %v4817
        %v4936 = vpop.f32.mrb[0].mxu0
        %v4937 = vadd.f32 0.0, %v4936
        %v4938 = vpop.f32.mrb[0].mxu0
        %v4939 = vpop.f32.mrb[0].mxu0
        %v4940 = vadd.f32 0.0, %v4939
        %v4941 = vpop.f32.mrb[0].mxu0
        %4942 = vmatprep.mubr.bf16.mxu0 0
        %4943 = vmatmul.mubr.bf16.gmra.mrb[0].mxu0 %v4820
        %v4944 = vpop.f32.mrb[0].mxu0
        %v4945 = vadd.f32 0.0, %v4944
        %v4946 = vpop.f32.mrb[0].mxu0
        %v4947 = vpop.f32.mrb[0].mxu0
        %v4948 = vadd.f32 0.0, %v4947
        %v4949 = vpop.f32.mrb[0].mxu0
        %4950 = vmatprep.mubr.bf16.mxu0 0
        %4951 = vmatmul.mubr.bf16.gmra.mrb[0].mxu0 %v4823
        %v4952 = vpop.f32.mrb[0].mxu0
        %v4953 = vadd.f32 0.0, %v4952
        %v4954 = vpop.f32.mrb[0].mxu0
        %v4955 = vpop.f32.mrb[0].mxu0
        %v4956 = vadd.f32 0.0, %v4955
        %v4957 = vpop.f32.mrb[0].mxu0
        %4958 = vmatprep.mubr.bf16.mxu0 0
        %4959 = vmatmul.mubr.bf16.gmra.mrb[0].mxu0 %v4826
        %v4960 = vpop.f32.mrb[0].mxu0
        %v4961 = vadd.f32 0.0, %v4960
        %v4962 = vpop.f32.mrb[0].mxu0
        %v4963 = vpop.f32.mrb[0].mxu0
        %v4964 = vadd.f32 0.0, %v4963
        %v4965 = vpop.f32.mrb[0].mxu0
        %4966 = vmatprep.mubr.bf16.mxu0 0
        %4967 = vmatmul.mubr.bf16.gmra.mrb[0].mxu0 %v4829
        %v4968 = vpop.f32.mrb[0].mxu0
        %v4969 = vadd.f32 0.0, %v4968
        %v4970 = vpop.f32.mrb[0].mxu0
        %v4971 = vpop.f32.mrb[0].mxu0
        %v4972 = vadd.f32 0.0, %v4971
        %v4973 = vpop.f32.mrb[0].mxu0
        %4974 = vmatprep.mubr.bf16.mxu0 0
        %4975 = vmatmul.mubr.bf16.gmra.mrb[0].mxu0 %v4832
        %v4976 = vpop.f32.mrb[0].mxu0
        %v4977 = vadd.f32 0.0, %v4976
        %v4978 = vpop.f32.mrb[0].mxu0
        %v4979 = vpop.f32.mrb[0].mxu0
        %v4980 = vadd.f32 0.0, %v4979
        %v4981 = vpop.f32.mrb[0].mxu0
        %4982 = vmatprep.mubr.bf16.mxu0 0
        %4983 = vmatmul.mubr.bf16.gmra.mrb[0].mxu0 %v4835
        %v4984 = vpop.f32.mrb[0].mxu0
        %v4985 = vadd.f32 0.0, %v4984
        %v4986 = vpop.f32.mrb[0].mxu0
        %v4987 = vpop.f32.mrb[0].mxu0
        %v4988 = vadd.f32 0.0, %v4987
        %v4989 = vpop.f32.mrb[0].mxu0
        %4990 = vmatprep.mubr.bf16.mxu0 0
        %4991 = vmatmul.mubr.bf16.gmra.mrb[0].mxu0 %v4838
        %v4992 = vpop.f32.mrb[0].mxu0
        %v4993 = vadd.f32 0.0, %v4992
        %v4994 = vpop.f32.mrb[0].mxu0
        %v4995 = vpop.f32.mrb[0].mxu0
        %v4996 = vadd.f32 0.0, %v4995
        %v4997 = vpop.f32.mrb[0].mxu0
        %4998 = vmatprep.mubr.bf16.mxu0 0
        %4999 = vmatmul.mubr.bf16.gmra.mrb[0].mxu0 %v4841
        %v5000 = vpop.f32.mrb[0].mxu0
        %v5001 = vadd.f32 0.0, %v5000
        %v5002 = vpop.f32.mrb[0].mxu0
        %v5003 = vpop.f32.mrb[0].mxu0
        %v5004 = vadd.f32 0.0, %v5003
        %v5005 = vpop.f32.mrb[0].mxu0
        %5006 = vdwg.mxu0
        %v5007 = vadd.f32 %v4619, %v4881
        %v5008 = vadd.f32 %v4622, %v4884
        %v5009 = vadd.f32 %v4627, %v4889
        %v5010 = vadd.f32 %v4630, %v4892
        %v5011 = vadd.f32 %v4635, %v4897
        %v5012 = vadd.f32 %v4638, %v4900
        %v5013 = vadd.f32 %v4643, %v4905
        %v5014 = vadd.f32 %v4646, %v4908
        %v5015 = vadd.f32 %v4651, %v4913
        %v5016 = vadd.f32 %v4654, %v4916
        %v5017 = vadd.f32 %v4659, %v4921
        %v5018 = vadd.f32 %v4662, %v4924
        %v5019 = vadd.f32 %v4667, %v4929
        %v5020 = vadd.f32 %v4670, %v4932
        %v5021 = vadd.f32 %v4675, %v4937
        %v5022 = vadd.f32 %v4678, %v4940
        %v5023 = vadd.f32 %v4683, %v4945
        %v5024 = vadd.f32 %v4686, %v4948
        %v5025 = vadd.f32 %v4691, %v4953
        %v5026 = vadd.f32 %v4694, %v4956
        %v5027 = vadd.f32 %v4699, %v4961
        %v5028 = vadd.f32 %v4702, %v4964
        %v5029 = vadd.f32 %v4707, %v4969
        %v5030 = vadd.f32 %v4710, %v4972
        %v5031 = vadd.f32 %v4715, %v4977
        %v5032 = vadd.f32 %v4718, %v4980
        %v5033 = vadd.f32 %v4723, %v4985
        %v5034 = vadd.f32 %v4726, %v4988
        %v5035 = vadd.f32 %v4731, %v4993
        %v5036 = vadd.f32 %v4734, %v4996
        %v5037 = vadd.f32 %v4739, %v5001
        %v5038 = vadd.f32 %v4742, %v5004
        %v5039 = vld [vmem:[%s4188] sm:$0xff]
        %v5040 = vld [vmem:[%s4188 + $0x8] sm:$0xff]
        %v5041 = vld [vmem:[%s4188 + $0x18] sm:$0xff]
        %v5042 = vld [vmem:[%s4188 + $0x20] sm:$0xff]
        %v5043 = vld [vmem:[%s4188 + $0x30] sm:$0xff]
        %v5044 = vld [vmem:[%s4188 + $0x38] sm:$0xff]
        %v5045 = vld [vmem:[%s4188 + $0x48] sm:$0xff]
        %v5046 = vld [vmem:[%s4188 + $0x50] sm:$0xff]
        %v5047 = vld [vmem:[%s4188 + $0x60] sm:$0xff]
        %v5048 = vld [vmem:[%s4188 + $0x68] sm:$0xff]
        %v5049 = vld [vmem:[%s4188 + $0x78] sm:$0xff]
        %v5050 = vld [vmem:[%s4188 + $0x80] sm:$0xff]
        %v5051 = vld [vmem:[%s4188 + $0x90] sm:$0xff]
        %v5052 = vld [vmem:[%s4188 + $0x98] sm:$0xff]
        %v5053 = vld [vmem:[%s4188 + $0xa8] sm:$0xff]
        %v5054 = vld [vmem:[%s4188 + $0xb0] sm:$0xff]
        %v5055 = vld [vmem:[%s4188 + $0xc0] sm:$0xff]
        %v5056 = vld [vmem:[%s4188 + $0xc8] sm:$0xff]
        %v5057 = vld [vmem:[%s4188 + $0xd8] sm:$0xff]
        %v5058 = vld [vmem:[%s4188 + $0xe0] sm:$0xff]
        %v5059 = vld [vmem:[%s4188 + $0xf0] sm:$0xff]
        %v5060 = vld [vmem:[%s4188 + $0xf8] sm:$0xff]
        %v5061 = vld [vmem:[%s4188 + $0x108] sm:$0xff]
        %v5062 = vld [vmem:[%s4188 + $0x110] sm:$0xff]
        %v5063 = vld [vmem:[%s4188 + $0x120] sm:$0xff]
        %v5064 = vld [vmem:[%s4188 + $0x128] sm:$0xff]
        %v5065 = vld [vmem:[%s4188 + $0x138] sm:$0xff]
        %v5066 = vld [vmem:[%s4188 + $0x140] sm:$0xff]
        %v5067 = vld [vmem:[%s4188 + $0x150] sm:$0xff]
        %v5068 = vld [vmem:[%s4188 + $0x158] sm:$0xff]
        %v5069 = vld [vmem:[%s4188 + $0x168] sm:$0xff]
        %v5070 = vld [vmem:[%s4188 + $0x170] sm:$0xff]
        %v5071 = vpack.c.bf16 %v5040, %v5039
        %v5072 = vpack.c.bf16 %v5042, %v5041
        %v5073 = vpack.c.bf16 %v5044, %v5043
        %v5074 = vpack.c.bf16 %v5046, %v5045
        %v5075 = vpack.c.bf16 %v5048, %v5047
        %v5076 = vpack.c.bf16 %v5050, %v5049
        %v5077 = vpack.c.bf16 %v5052, %v5051
        %v5078 = vpack.c.bf16 %v5054, %v5053
        %v5079 = vpack.c.bf16 %v5056, %v5055
        %v5080 = vpack.c.bf16 %v5058, %v5057
        %v5081 = vpack.c.bf16 %v5060, %v5059
        %v5082 = vpack.c.bf16 %v5062, %v5061
        %v5083 = vpack.c.bf16 %v5064, %v5063
        %v5084 = vpack.c.bf16 %v5066, %v5065
        %v5085 = vpack.c.bf16 %v5068, %v5067
        %v5086 = vpack.c.bf16 %v5070, %v5069
        %s5087 = scalar_lea.vmem [#allocation21], 12
        %v5088 = vld [vmem:[%s5087] sm:$0xf]
        %v5090 = vsel %vm3850, %v5071, 0
        %v5093 = vsel %vm3850, %v5072, 0
        %v5096 = vsel %vm3850, %v5073, 0
        %v5099 = vsel %vm3850, %v5074, 0
        %v5102 = vsel %vm3850, %v5075, 0
        %v5105 = vsel %vm3850, %v5076, 0
        %v5108 = vsel %vm3850, %v5077, 0
        %v5111 = vsel %vm3850, %v5078, 0
        %v5114 = vsel %vm3850, %v5079, 0
        %v5117 = vsel %vm3850, %v5080, 0
        %v5120 = vsel %vm3850, %v5081, 0
        %v5123 = vsel %vm3850, %v5082, 0
        %v5126 = vsel %vm3850, %v5083, 0
        %v5129 = vsel %vm3850, %v5084, 0
        %v5132 = vsel %vm3850, %v5085, 0
        %v5135 = vsel %vm3850, %v5086, 0
        %v5138 = vsel %vm4368, %v5088, 0
        %5140 = vmatprep.subr.bf16.mxu0 0
        %5141 = vmatpush1.bf16.msra.mxu0 %v5138
        %5142 = vmatprep.subr.bf16.mxu0 0
        %5143 = vmatpush1.bf16.msra.mxu0 0
        %5144 = vmatprep.subr.bf16.mxu0 0
        %5145 = vmatpush1.bf16.msra.mxu0 0
        %5146 = vmatprep.subr.bf16.mxu0 0
        %5147 = vmatpush1.bf16.msra.mxu0 0
        %5148 = vmatprep.subr.bf16.mxu0 0
        %5149 = vmatpush1.bf16.msra.mxu0 0
        %5150 = vmatprep.subr.bf16.mxu0 0
        %5151 = vmatpush1.bf16.msra.mxu0 0
        %5152 = vmatprep.subr.bf16.mxu0 0
        %5153 = vmatpush1.bf16.msra.mxu0 0
        %5154 = vmatprep.subr.bf16.mxu0 0
        %5155 = vmatpush1.bf16.msra.mxu0 0
        %5156 = vmatprep.subr.bf16.mxu0 0
        %5157 = vmatpush1.bf16.msra.mxu0 0
        %5158 = vmatprep.subr.bf16.mxu0 0
        %5159 = vmatpush1.bf16.msra.mxu0 0
        %5160 = vmatprep.subr.bf16.mxu0 0
        %5161 = vmatpush1.bf16.msra.mxu0 0
        %5162 = vmatprep.subr.bf16.mxu0 0
        %5163 = vmatpush1.bf16.msra.mxu0 0
        %5164 = vmatprep.subr.bf16.mxu0 0
        %5165 = vmatpush1.bf16.msra.mxu0 0
        %5166 = vmatprep.subr.bf16.mxu0 0
        %5167 = vmatpush1.bf16.msra.mxu0 0
        %5168 = vmatprep.subr.bf16.mxu0 0
        %5169 = vmatpush1.bf16.msra.mxu0 0
        %5170 = vmatprep.subr.bf16.mxu0 0
        %5171 = vmatpush1.bf16.msra.mxu0 0
        %5172 = vmatprep.mubr.bf16.mxu0 0
        %5173 = vmatmul.mubr.bf16.gmra.mrb[0].mxu0 %v5090
        %v5174 = vpop.f32.mrb[0].mxu0
        %v5175 = vadd.f32 0.0, %v5174
        %v5176 = vpop.f32.mrb[0].mxu0
        %v5177 = vpop.f32.mrb[0].mxu0
        %v5178 = vadd.f32 0.0, %v5177
        %v5179 = vpop.f32.mrb[0].mxu0
        %5180 = vmatprep.mubr.bf16.mxu0 0
        %5181 = vmatmul.mubr.bf16.gmra.mrb[0].mxu0 %v5093
        %v5182 = vpop.f32.mrb[0].mxu0
        %v5183 = vadd.f32 0.0, %v5182
        %v5184 = vpop.f32.mrb[0].mxu0
        %v5185 = vpop.f32.mrb[0].mxu0
        %v5186 = vadd.f32 0.0, %v5185
        %v5187 = vpop.f32.mrb[0].mxu0
        %5188 = vmatprep.mubr.bf16.mxu0 0
        %5189 = vmatmul.mubr.bf16.gmra.mrb[0].mxu0 %v5096
        %v5190 = vpop.f32.mrb[0].mxu0
        %v5191 = vadd.f32 0.0, %v5190
        %v5192 = vpop.f32.mrb[0].mxu0
        %v5193 = vpop.f32.mrb[0].mxu0
        %v5194 = vadd.f32 0.0, %v5193
        %v5195 = vpop.f32.mrb[0].mxu0
        %5196 = vmatprep.mubr.bf16.mxu0 0
        %5197 = vmatmul.mubr.bf16.gmra.mrb[0].mxu0 %v5099
        %v5198 = vpop.f32.mrb[0].mxu0
        %v5199 = vadd.f32 0.0, %v5198
        %v5200 = vpop.f32.mrb[0].mxu0
        %v5201 = vpop.f32.mrb[0].mxu0
        %v5202 = vadd.f32 0.0, %v5201
        %v5203 = vpop.f32.mrb[0].mxu0
        %5204 = vmatprep.mubr.bf16.mxu0 0
        %5205 = vmatmul.mubr.bf16.gmra.mrb[0].mxu0 %v5102
        %v5206 = vpop.f32.mrb[0].mxu0
        %v5207 = vadd.f32 0.0, %v5206
        %v5208 = vpop.f32.mrb[0].mxu0
        %v5209 = vpop.f32.mrb[0].mxu0
        %v5210 = vadd.f32 0.0, %v5209
        %v5211 = vpop.f32.mrb[0].mxu0
        %5212 = vmatprep.mubr.bf16.mxu0 0
        %5213 = vmatmul.mubr.bf16.gmra.mrb[0].mxu0 %v5105
        %v5214 = vpop.f32.mrb[0].mxu0
        %v5215 = vadd.f32 0.0, %v5214
        %v5216 = vpop.f32.mrb[0].mxu0
        %v5217 = vpop.f32.mrb[0].mxu0
        %v5218 = vadd.f32 0.0, %v5217
        %v5219 = vpop.f32.mrb[0].mxu0
        %5220 = vmatprep.mubr.bf16.mxu0 0
        %5221 = vmatmul.mubr.bf16.gmra.mrb[0].mxu0 %v5108
        %v5222 = vpop.f32.mrb[0].mxu0
        %v5223 = vadd.f32 0.0, %v5222
        %v5224 = vpop.f32.mrb[0].mxu0
        %v5225 = vpop.f32.mrb[0].mxu0
        %v5226 = vadd.f32 0.0, %v5225
        %v5227 = vpop.f32.mrb[0].mxu0
        %5228 = vmatprep.mubr.bf16.mxu0 0
        %5229 = vmatmul.mubr.bf16.gmra.mrb[0].mxu0 %v5111
        %v5230 = vpop.f32.mrb[0].mxu0
        %v5231 = vadd.f32 0.0, %v5230
        %v5232 = vpop.f32.mrb[0].mxu0
        %v5233 = vpop.f32.mrb[0].mxu0
        %v5234 = vadd.f32 0.0, %v5233
        %v5235 = vpop.f32.mrb[0].mxu0
        %5236 = vmatprep.mubr.bf16.mxu0 0
        %5237 = vmatmul.mubr.bf16.gmra.mrb[0].mxu0 %v5114
        %v5238 = vpop.f32.mrb[0].mxu0
        %v5239 = vadd.f32 0.0, %v5238
        %v5240 = vpop.f32.mrb[0].mxu0
        %v5241 = vpop.f32.mrb[0].mxu0
        %v5242 = vadd.f32 0.0, %v5241
        %v5243 = vpop.f32.mrb[0].mxu0
        %5244 = vmatprep.mubr.bf16.mxu0 0
        %5245 = vmatmul.mubr.bf16.gmra.mrb[0].mxu0 %v5117
        %v5246 = vpop.f32.mrb[0].mxu0
        %v5247 = vadd.f32 0.0, %v5246
        %v5248 = vpop.f32.mrb[0].mxu0
        %v5249 = vpop.f32.mrb[0].mxu0
        %v5250 = vadd.f32 0.0, %v5249
        %v5251 = vpop.f32.mrb[0].mxu0
        %5252 = vmatprep.mubr.bf16.mxu0 0
        %5253 = vmatmul.mubr.bf16.gmra.mrb[0].mxu0 %v5120
        %v5254 = vpop.f32.mrb[0].mxu0
        %v5255 = vadd.f32 0.0, %v5254
        %v5256 = vpop.f32.mrb[0].mxu0
        %v5257 = vpop.f32.mrb[0].mxu0
        %v5258 = vadd.f32 0.0, %v5257
        %v5259 = vpop.f32.mrb[0].mxu0
        %5260 = vmatprep.mubr.bf16.mxu0 0
        %5261 = vmatmul.mubr.bf16.gmra.mrb[0].mxu0 %v5123
        %v5262 = vpop.f32.mrb[0].mxu0
        %v5263 = vadd.f32 0.0, %v5262
        %v5264 = vpop.f32.mrb[0].mxu0
        %v5265 = vpop.f32.mrb[0].mxu0
        %v5266 = vadd.f32 0.0, %v5265
        %v5267 = vpop.f32.mrb[0].mxu0
        %5268 = vmatprep.mubr.bf16.mxu0 0
        %5269 = vmatmul.mubr.bf16.gmra.mrb[0].mxu0 %v5126
        %v5270 = vpop.f32.mrb[0].mxu0
        %v5271 = vadd.f32 0.0, %v5270
        %v5272 = vpop.f32.mrb[0].mxu0
        %v5273 = vpop.f32.mrb[0].mxu0
        %v5274 = vadd.f32 0.0, %v5273
        %v5275 = vpop.f32.mrb[0].mxu0
        %5276 = vmatprep.mubr.bf16.mxu0 0
        %5277 = vmatmul.mubr.bf16.gmra.mrb[0].mxu0 %v5129
        %v5278 = vpop.f32.mrb[0].mxu0
        %v5279 = vadd.f32 0.0, %v5278
        %v5280 = vpop.f32.mrb[0].mxu0
        %v5281 = vpop.f32.mrb[0].mxu0
        %v5282 = vadd.f32 0.0, %v5281
        %v5283 = vpop.f32.mrb[0].mxu0
        %5284 = vmatprep.mubr.bf16.mxu0 0
        %5285 = vmatmul.mubr.bf16.gmra.mrb[0].mxu0 %v5132
        %v5286 = vpop.f32.mrb[0].mxu0
        %v5287 = vadd.f32 0.0, %v5286
        %v5288 = vpop.f32.mrb[0].mxu0
        %v5289 = vpop.f32.mrb[0].mxu0
        %v5290 = vadd.f32 0.0, %v5289
        %v5291 = vpop.f32.mrb[0].mxu0
        %5292 = vmatprep.mubr.bf16.mxu0 0
        %5293 = vmatmul.mubr.bf16.gmra.mrb[0].mxu0 %v5135
        %v5294 = vpop.f32.mrb[0].mxu0
        %v5295 = vadd.f32 0.0, %v5294
        %v5296 = vpop.f32.mrb[0].mxu0
        %v5297 = vpop.f32.mrb[0].mxu0
        %v5298 = vadd.f32 0.0, %v5297
        %v5299 = vpop.f32.mrb[0].mxu0
        %5300 = vdwg.mxu0
        %v5301 = vadd.f32 %v5007, %v5175
        %v5302 = vadd.f32 %v5008, %v5178
        %v5303 = vadd.f32 %v5009, %v5183
        %v5304 = vadd.f32 %v5010, %v5186
        %v5305 = vadd.f32 %v5011, %v5191
        %v5306 = vadd.f32 %v5012, %v5194
        %v5307 = vadd.f32 %v5013, %v5199
        %v5308 = vadd.f32 %v5014, %v5202
        %v5309 = vadd.f32 %v5015, %v5207
        %v5310 = vadd.f32 %v5016, %v5210
        %v5311 = vadd.f32 %v5017, %v5215
        %v5312 = vadd.f32 %v5018, %v5218
        %v5313 = vadd.f32 %v5019, %v5223
        %v5314 = vadd.f32 %v5020, %v5226
        %v5315 = vadd.f32 %v5021, %v5231
        %v5316 = vadd.f32 %v5022, %v5234
        %v5317 = vadd.f32 %v5023, %v5239
        %v5318 = vadd.f32 %v5024, %v5242
        %v5319 = vadd.f32 %v5025, %v5247
        %v5320 = vadd.f32 %v5026, %v5250
        %v5321 = vadd.f32 %v5027, %v5255
        %v5322 = vadd.f32 %v5028, %v5258
        %v5323 = vadd.f32 %v5029, %v5263
        %v5324 = vadd.f32 %v5030, %v5266
        %v5325 = vadd.f32 %v5031, %v5271
        %v5326 = vadd.f32 %v5032, %v5274
        %v5327 = vadd.f32 %v5033, %v5279
        %v5328 = vadd.f32 %v5034, %v5282
        %v5329 = vadd.f32 %v5035, %v5287
        %v5330 = vadd.f32 %v5036, %v5290
        %v5331 = vadd.f32 %v5037, %v5295
        %v5332 = vadd.f32 %v5038, %v5298
        %v5333 = vld [vmem:[%s4188 + $0x1] sm:$0xff]
        %v5334 = vld [vmem:[%s4188 + $0x9] sm:$0xff]
        %v5335 = vld [vmem:[%s4188 + $0x19] sm:$0xff]
        %v5336 = vld [vmem:[%s4188 + $0x21] sm:$0xff]
        %v5337 = vld [vmem:[%s4188 + $0x31] sm:$0xff]
        %v5338 = vld [vmem:[%s4188 + $0x39] sm:$0xff]
        %v5339 = vld [vmem:[%s4188 + $0x49] sm:$0xff]
        %v5340 = vld [vmem:[%s4188 + $0x51] sm:$0xff]
        %v5341 = vld [vmem:[%s4188 + $0x61] sm:$0xff]
        %v5342 = vld [vmem:[%s4188 + $0x69] sm:$0xff]
        %v5343 = vld [vmem:[%s4188 + $0x79] sm:$0xff]
        %v5344 = vld [vmem:[%s4188 + $0x81] sm:$0xff]
        %v5345 = vld [vmem:[%s4188 + $0x91] sm:$0xff]
        %v5346 = vld [vmem:[%s4188 + $0x99] sm:$0xff]
        %v5347 = vld [vmem:[%s4188 + $0xa9] sm:$0xff]
        %v5348 = vld [vmem:[%s4188 + $0xb1] sm:$0xff]
        %v5349 = vld [vmem:[%s4188 + $0xc1] sm:$0xff]
        %v5350 = vld [vmem:[%s4188 + $0xc9] sm:$0xff]
        %v5351 = vld [vmem:[%s4188 + $0xd9] sm:$0xff]
        %v5352 = vld [vmem:[%s4188 + $0xe1] sm:$0xff]
        %v5353 = vld [vmem:[%s4188 + $0xf1] sm:$0xff]
        %v5354 = vld [vmem:[%s4188 + $0xf9] sm:$0xff]
        %v5355 = vld [vmem:[%s4188 + $0x109] sm:$0xff]
        %v5356 = vld [vmem:[%s4188 + $0x111] sm:$0xff]
        %v5357 = vld [vmem:[%s4188 + $0x121] sm:$0xff]
        %v5358 = vld [vmem:[%s4188 + $0x129] sm:$0xff]
        %v5359 = vld [vmem:[%s4188 + $0x139] sm:$0xff]
        %v5360 = vld [vmem:[%s4188 + $0x141] sm:$0xff]
        %v5361 = vld [vmem:[%s4188 + $0x151] sm:$0xff]
        %v5362 = vld [vmem:[%s4188 + $0x159] sm:$0xff]
        %v5363 = vld [vmem:[%s4188 + $0x169] sm:$0xff]
        %v5364 = vld [vmem:[%s4188 + $0x171] sm:$0xff]
        %v5365 = vpack.c.bf16 %v5334, %v5333
        %v5366 = vpack.c.bf16 %v5336, %v5335
        %v5367 = vpack.c.bf16 %v5338, %v5337
        %v5368 = vpack.c.bf16 %v5340, %v5339
        %v5369 = vpack.c.bf16 %v5342, %v5341
        %v5370 = vpack.c.bf16 %v5344, %v5343
        %v5371 = vpack.c.bf16 %v5346, %v5345
        %v5372 = vpack.c.bf16 %v5348, %v5347
        %v5373 = vpack.c.bf16 %v5350, %v5349
        %v5374 = vpack.c.bf16 %v5352, %v5351
        %v5375 = vpack.c.bf16 %v5354, %v5353
        %v5376 = vpack.c.bf16 %v5356, %v5355
        %v5377 = vpack.c.bf16 %v5358, %v5357
        %v5378 = vpack.c.bf16 %v5360, %v5359
        %v5379 = vpack.c.bf16 %v5362, %v5361
        %v5380 = vpack.c.bf16 %v5364, %v5363
        %s5381 = scalar_lea.vmem [#allocation21], 16
        %v5382 = vld [vmem:[%s5381] sm:$0xf]
        %v5384 = vsel %vm3850, %v5365, 0
        %v5387 = vsel %vm3850, %v5366, 0
        %v5390 = vsel %vm3850, %v5367, 0
        %v5393 = vsel %vm3850, %v5368, 0
        %v5396 = vsel %vm3850, %v5369, 0
        %v5399 = vsel %vm3850, %v5370, 0
        %v5402 = vsel %vm3850, %v5371, 0
        %v5405 = vsel %vm3850, %v5372, 0
        %v5408 = vsel %vm3850, %v5373, 0
        %v5411 = vsel %vm3850, %v5374, 0
        %v5414 = vsel %vm3850, %v5375, 0
        %v5417 = vsel %vm3850, %v5376, 0
        %v5420 = vsel %vm3850, %v5377, 0
        %v5423 = vsel %vm3850, %v5378, 0
        %v5426 = vsel %vm3850, %v5379, 0
        %v5429 = vsel %vm3850, %v5380, 0
        %v5432 = vsel %vm4368, %v5382, 0
        %5434 = vmatprep.subr.bf16.mxu0 0
        %5435 = vmatpush1.bf16.msra.mxu0 %v5432
        %5436 = vmatprep.subr.bf16.mxu0 0
        %5437 = vmatpush1.bf16.msra.mxu0 0
        %5438 = vmatprep.subr.bf16.mxu0 0
        %5439 = vmatpush1.bf16.msra.mxu0 0
        %5440 = vmatprep.subr.bf16.mxu0 0
        %5441 = vmatpush1.bf16.msra.mxu0 0
        %5442 = vmatprep.subr.bf16.mxu0 0
        %5443 = vmatpush1.bf16.msra.mxu0 0
        %5444 = vmatprep.subr.bf16.mxu0 0
        %5445 = vmatpush1.bf16.msra.mxu0 0
        %5446 = vmatprep.subr.bf16.mxu0 0
        %5447 = vmatpush1.bf16.msra.mxu0 0
        %5448 = vmatprep.subr.bf16.mxu0 0
        %5449 = vmatpush1.bf16.msra.mxu0 0
        %5450 = vmatprep.subr.bf16.mxu0 0
        %5451 = vmatpush1.bf16.msra.mxu0 0
        %5452 = vmatprep.subr.bf16.mxu0 0
        %5453 = vmatpush1.bf16.msra.mxu0 0
        %5454 = vmatprep.subr.bf16.mxu0 0
        %5455 = vmatpush1.bf16.msra.mxu0 0
        %5456 = vmatprep.subr.bf16.mxu0 0
        %5457 = vmatpush1.bf16.msra.mxu0 0
        %5458 = vmatprep.subr.bf16.mxu0 0
        %5459 = vmatpush1.bf16.msra.mxu0 0
        %5460 = vmatprep.subr.bf16.mxu0 0
        %5461 = vmatpush1.bf16.msra.mxu0 0
        %5462 = vmatprep.subr.bf16.mxu0 0
        %5463 = vmatpush1.bf16.msra.mxu0 0
        %5464 = vmatprep.subr.bf16.mxu0 0
        %5465 = vmatpush1.bf16.msra.mxu0 0
        %5466 = vmatprep.mubr.bf16.mxu0 0
        %5467 = vmatmul.mubr.bf16.gmra.mrb[0].mxu0 %v5384
        %v5468 = vpop.f32.mrb[0].mxu0
        %v5469 = vadd.f32 0.0, %v5468
        %v5470 = vpop.f32.mrb[0].mxu0
        %v5471 = vpop.f32.mrb[0].mxu0
        %v5472 = vadd.f32 0.0, %v5471
        %v5473 = vpop.f32.mrb[0].mxu0
        %5474 = vmatprep.mubr.bf16.mxu0 0
        %5475 = vmatmul.mubr.bf16.gmra.mrb[0].mxu0 %v5387
        %v5476 = vpop.f32.mrb[0].mxu0
        %v5477 = vadd.f32 0.0, %v5476
        %v5478 = vpop.f32.mrb[0].mxu0
        %v5479 = vpop.f32.mrb[0].mxu0
        %v5480 = vadd.f32 0.0, %v5479
        %v5481 = vpop.f32.mrb[0].mxu0
        %5482 = vmatprep.mubr.bf16.mxu0 0
        %5483 = vmatmul.mubr.bf16.gmra.mrb[0].mxu0 %v5390
        %v5484 = vpop.f32.mrb[0].mxu0
        %v5485 = vadd.f32 0.0, %v5484
        %v5486 = vpop.f32.mrb[0].mxu0
        %v5487 = vpop.f32.mrb[0].mxu0
        %v5488 = vadd.f32 0.0, %v5487
        %v5489 = vpop.f32.mrb[0].mxu0
        %5490 = vmatprep.mubr.bf16.mxu0 0
        %5491 = vmatmul.mubr.bf16.gmra.mrb[0].mxu0 %v5393
        %v5492 = vpop.f32.mrb[0].mxu0
        %v5493 = vadd.f32 0.0, %v5492
        %v5494 = vpop.f32.mrb[0].mxu0
        %v5495 = vpop.f32.mrb[0].mxu0
        %v5496 = vadd.f32 0.0, %v5495
        %v5497 = vpop.f32.mrb[0].mxu0
        %5498 = vmatprep.mubr.bf16.mxu0 0
        %5499 = vmatmul.mubr.bf16.gmra.mrb[0].mxu0 %v5396
        %v5500 = vpop.f32.mrb[0].mxu0
        %v5501 = vadd.f32 0.0, %v5500
        %v5502 = vpop.f32.mrb[0].mxu0
        %v5503 = vpop.f32.mrb[0].mxu0
        %v5504 = vadd.f32 0.0, %v5503
        %v5505 = vpop.f32.mrb[0].mxu0
        %5506 = vmatprep.mubr.bf16.mxu0 0
        %5507 = vmatmul.mubr.bf16.gmra.mrb[0].mxu0 %v5399
        %v5508 = vpop.f32.mrb[0].mxu0
        %v5509 = vadd.f32 0.0, %v5508
        %v5510 = vpop.f32.mrb[0].mxu0
        %v5511 = vpop.f32.mrb[0].mxu0
        %v5512 = vadd.f32 0.0, %v5511
        %v5513 = vpop.f32.mrb[0].mxu0
        %5514 = vmatprep.mubr.bf16.mxu0 0
        %5515 = vmatmul.mubr.bf16.gmra.mrb[0].mxu0 %v5402
        %v5516 = vpop.f32.mrb[0].mxu0
        %v5517 = vadd.f32 0.0, %v5516
        %v5518 = vpop.f32.mrb[0].mxu0
        %v5519 = vpop.f32.mrb[0].mxu0
        %v5520 = vadd.f32 0.0, %v5519
        %v5521 = vpop.f32.mrb[0].mxu0
        %5522 = vmatprep.mubr.bf16.mxu0 0
        %5523 = vmatmul.mubr.bf16.gmra.mrb[0].mxu0 %v5405
        %v5524 = vpop.f32.mrb[0].mxu0
        %v5525 = vadd.f32 0.0, %v5524
        %v5526 = vpop.f32.mrb[0].mxu0
        %v5527 = vpop.f32.mrb[0].mxu0
        %v5528 = vadd.f32 0.0, %v5527
        %v5529 = vpop.f32.mrb[0].mxu0
        %5530 = vmatprep.mubr.bf16.mxu0 0
        %5531 = vmatmul.mubr.bf16.gmra.mrb[0].mxu0 %v5408
        %v5532 = vpop.f32.mrb[0].mxu0
        %v5533 = vadd.f32 0.0, %v5532
        %v5534 = vpop.f32.mrb[0].mxu0
        %v5535 = vpop.f32.mrb[0].mxu0
        %v5536 = vadd.f32 0.0, %v5535
        %v5537 = vpop.f32.mrb[0].mxu0
        %5538 = vmatprep.mubr.bf16.mxu0 0
        %5539 = vmatmul.mubr.bf16.gmra.mrb[0].mxu0 %v5411
        %v5540 = vpop.f32.mrb[0].mxu0
        %v5541 = vadd.f32 0.0, %v5540
        %v5542 = vpop.f32.mrb[0].mxu0
        %v5543 = vpop.f32.mrb[0].mxu0
        %v5544 = vadd.f32 0.0, %v5543
        %v5545 = vpop.f32.mrb[0].mxu0
        %5546 = vmatprep.mubr.bf16.mxu0 0
        %5547 = vmatmul.mubr.bf16.gmra.mrb[0].mxu0 %v5414
        %v5548 = vpop.f32.mrb[0].mxu0
        %v5549 = vadd.f32 0.0, %v5548
        %v5550 = vpop.f32.mrb[0].mxu0
        %v5551 = vpop.f32.mrb[0].mxu0
        %v5552 = vadd.f32 0.0, %v5551
        %v5553 = vpop.f32.mrb[0].mxu0
        %5554 = vmatprep.mubr.bf16.mxu0 0
        %5555 = vmatmul.mubr.bf16.gmra.mrb[0].mxu0 %v5417
        %v5556 = vpop.f32.mrb[0].mxu0
        %v5557 = vadd.f32 0.0, %v5556
        %v5558 = vpop.f32.mrb[0].mxu0
        %v5559 = vpop.f32.mrb[0].mxu0
        %v5560 = vadd.f32 0.0, %v5559
        %v5561 = vpop.f32.mrb[0].mxu0
        %5562 = vmatprep.mubr.bf16.mxu0 0
        %5563 = vmatmul.mubr.bf16.gmra.mrb[0].mxu0 %v5420
        %v5564 = vpop.f32.mrb[0].mxu0
        %v5565 = vadd.f32 0.0, %v5564
        %v5566 = vpop.f32.mrb[0].mxu0
        %v5567 = vpop.f32.mrb[0].mxu0
        %v5568 = vadd.f32 0.0, %v5567
        %v5569 = vpop.f32.mrb[0].mxu0
        %5570 = vmatprep.mubr.bf16.mxu0 0
        %5571 = vmatmul.mubr.bf16.gmra.mrb[0].mxu0 %v5423
        %v5572 = vpop.f32.mrb[0].mxu0
        %v5573 = vadd.f32 0.0, %v5572
        %v5574 = vpop.f32.mrb[0].mxu0
        %v5575 = vpop.f32.mrb[0].mxu0
        %v5576 = vadd.f32 0.0, %v5575
        %v5577 = vpop.f32.mrb[0].mxu0
        %5578 = vmatprep.mubr.bf16.mxu0 0
        %5579 = vmatmul.mubr.bf16.gmra.mrb[0].mxu0 %v5426
        %v5580 = vpop.f32.mrb[0].mxu0
        %v5581 = vadd.f32 0.0, %v5580
        %v5582 = vpop.f32.mrb[0].mxu0
        %v5583 = vpop.f32.mrb[0].mxu0
        %v5584 = vadd.f32 0.0, %v5583
        %v5585 = vpop.f32.mrb[0].mxu0
        %5586 = vmatprep.mubr.bf16.mxu0 0
        %5587 = vmatmul.mubr.bf16.gmra.mrb[0].mxu0 %v5429
        %v5588 = vpop.f32.mrb[0].mxu0
        %v5589 = vadd.f32 0.0, %v5588
        %v5590 = vpop.f32.mrb[0].mxu0
        %v5591 = vpop.f32.mrb[0].mxu0
        %v5592 = vadd.f32 0.0, %v5591
        %v5593 = vpop.f32.mrb[0].mxu0
        %5594 = vdwg.mxu0
        %v5595 = vadd.f32 %v5301, %v5469
        %v5596 = vadd.f32 %v5302, %v5472
        %v5597 = vadd.f32 %v5303, %v5477
        %v5598 = vadd.f32 %v5304, %v5480
        %v5599 = vadd.f32 %v5305, %v5485
        %v5600 = vadd.f32 %v5306, %v5488
        %v5601 = vadd.f32 %v5307, %v5493
        %v5602 = vadd.f32 %v5308, %v5496
        %v5603 = vadd.f32 %v5309, %v5501
        %v5604 = vadd.f32 %v5310, %v5504
        %v5605 = vadd.f32 %v5311, %v5509
        %v5606 = vadd.f32 %v5312, %v5512
        %v5607 = vadd.f32 %v5313, %v5517
        %v5608 = vadd.f32 %v5314, %v5520
        %v5609 = vadd.f32 %v5315, %v5525
        %v5610 = vadd.f32 %v5316, %v5528
        %v5611 = vadd.f32 %v5317, %v5533
        %v5612 = vadd.f32 %v5318, %v5536
        %v5613 = vadd.f32 %v5319, %v5541
        %v5614 = vadd.f32 %v5320, %v5544
        %v5615 = vadd.f32 %v5321, %v5549
        %v5616 = vadd.f32 %v5322, %v5552
        %v5617 = vadd.f32 %v5323, %v5557
        %v5618 = vadd.f32 %v5324, %v5560
        %v5619 = vadd.f32 %v5325, %v5565
        %v5620 = vadd.f32 %v5326, %v5568
        %v5621 = vadd.f32 %v5327, %v5573
        %v5622 = vadd.f32 %v5328, %v5576
        %v5623 = vadd.f32 %v5329, %v5581
        %v5624 = vadd.f32 %v5330, %v5584
        %v5625 = vadd.f32 %v5331, %v5589
        %v5626 = vadd.f32 %v5332, %v5592
        %v5627 = vld [vmem:[%s4188 + $0x2] sm:$0xff]
        %v5628 = vld [vmem:[%s4188 + $0xa] sm:$0xff]
        %v5629 = vld [vmem:[%s4188 + $0x1a] sm:$0xff]
        %v5630 = vld [vmem:[%s4188 + $0x22] sm:$0xff]
        %v5631 = vld [vmem:[%s4188 + $0x32] sm:$0xff]
        %v5632 = vld [vmem:[%s4188 + $0x3a] sm:$0xff]
        %v5633 = vld [vmem:[%s4188 + $0x4a] sm:$0xff]
        %v5634 = vld [vmem:[%s4188 + $0x52] sm:$0xff]
        %v5635 = vld [vmem:[%s4188 + $0x62] sm:$0xff]
        %v5636 = vld [vmem:[%s4188 + $0x6a] sm:$0xff]
        %v5637 = vld [vmem:[%s4188 + $0x7a] sm:$0xff]
        %v5638 = vld [vmem:[%s4188 + $0x82] sm:$0xff]
        %v5639 = vld [vmem:[%s4188 + $0x92] sm:$0xff]
        %v5640 = vld [vmem:[%s4188 + $0x9a] sm:$0xff]
        %v5641 = vld [vmem:[%s4188 + $0xaa] sm:$0xff]
        %v5642 = vld [vmem:[%s4188 + $0xb2] sm:$0xff]
        %v5643 = vld [vmem:[%s4188 + $0xc2] sm:$0xff]
        %v5644 = vld [vmem:[%s4188 + $0xca] sm:$0xff]
        %v5645 = vld [vmem:[%s4188 + $0xda] sm:$0xff]
        %v5646 = vld [vmem:[%s4188 + $0xe2] sm:$0xff]
        %v5647 = vld [vmem:[%s4188 + $0xf2] sm:$0xff]
        %v5648 = vld [vmem:[%s4188 + $0xfa] sm:$0xff]
        %v5649 = vld [vmem:[%s4188 + $0x10a] sm:$0xff]
        %v5650 = vld [vmem:[%s4188 + $0x112] sm:$0xff]
        %v5651 = vld [vmem:[%s4188 + $0x122] sm:$0xff]
        %v5652 = vld [vmem:[%s4188 + $0x12a] sm:$0xff]
        %v5653 = vld [vmem:[%s4188 + $0x13a] sm:$0xff]
        %v5654 = vld [vmem:[%s4188 + $0x142] sm:$0xff]
        %v5655 = vld [vmem:[%s4188 + $0x152] sm:$0xff]
        %v5656 = vld [vmem:[%s4188 + $0x15a] sm:$0xff]
        %v5657 = vld [vmem:[%s4188 + $0x16a] sm:$0xff]
        %v5658 = vld [vmem:[%s4188 + $0x172] sm:$0xff]
        %v5659 = vpack.c.bf16 %v5628, %v5627
        %v5660 = vpack.c.bf16 %v5630, %v5629
        %v5661 = vpack.c.bf16 %v5632, %v5631
        %v5662 = vpack.c.bf16 %v5634, %v5633
        %v5663 = vpack.c.bf16 %v5636, %v5635
        %v5664 = vpack.c.bf16 %v5638, %v5637
        %v5665 = vpack.c.bf16 %v5640, %v5639
        %v5666 = vpack.c.bf16 %v5642, %v5641
        %v5667 = vpack.c.bf16 %v5644, %v5643
        %v5668 = vpack.c.bf16 %v5646, %v5645
        %v5669 = vpack.c.bf16 %v5648, %v5647
        %v5670 = vpack.c.bf16 %v5650, %v5649
        %v5671 = vpack.c.bf16 %v5652, %v5651
        %v5672 = vpack.c.bf16 %v5654, %v5653
        %v5673 = vpack.c.bf16 %v5656, %v5655
        %v5674 = vpack.c.bf16 %v5658, %v5657
        %s5675 = scalar_lea.vmem [#allocation21], 20
        %v5676 = vld [vmem:[%s5675] sm:$0xf]
        %v5678 = vsel %vm3850, %v5659, 0
        %v5681 = vsel %vm3850, %v5660, 0
        %v5684 = vsel %vm3850, %v5661, 0
        %v5687 = vsel %vm3850, %v5662, 0
        %v5690 = vsel %vm3850, %v5663, 0
        %v5693 = vsel %vm3850, %v5664, 0
        %v5696 = vsel %vm3850, %v5665, 0
        %v5699 = vsel %vm3850, %v5666, 0
        %v5702 = vsel %vm3850, %v5667, 0
        %v5705 = vsel %vm3850, %v5668, 0
        %v5708 = vsel %vm3850, %v5669, 0
        %v5711 = vsel %vm3850, %v5670, 0
        %v5714 = vsel %vm3850, %v5671, 0
        %v5717 = vsel %vm3850, %v5672, 0
        %v5720 = vsel %vm3850, %v5673, 0
        %v5723 = vsel %vm3850, %v5674, 0
        %v5726 = vsel %vm4368, %v5676, 0
        %5728 = vmatprep.subr.bf16.mxu0 0
        %5729 = vmatpush1.bf16.msra.mxu0 %v5726
        %5730 = vmatprep.subr.bf16.mxu0 0
        %5731 = vmatpush1.bf16.msra.mxu0 0
        %5732 = vmatprep.subr.bf16.mxu0 0
        %5733 = vmatpush1.bf16.msra.mxu0 0
        %5734 = vmatprep.subr.bf16.mxu0 0
        %5735 = vmatpush1.bf16.msra.mxu0 0
        %5736 = vmatprep.subr.bf16.mxu0 0
        %5737 = vmatpush1.bf16.msra.mxu0 0
        %5738 = vmatprep.subr.bf16.mxu0 0
        %5739 = vmatpush1.bf16.msra.mxu0 0
        %5740 = vmatprep.subr.bf16.mxu0 0
        %5741 = vmatpush1.bf16.msra.mxu0 0
        %5742 = vmatprep.subr.bf16.mxu0 0
        %5743 = vmatpush1.bf16.msra.mxu0 0
        %5744 = vmatprep.subr.bf16.mxu0 0
        %5745 = vmatpush1.bf16.msra.mxu0 0
        %5746 = vmatprep.subr.bf16.mxu0 0
        %5747 = vmatpush1.bf16.msra.mxu0 0
        %5748 = vmatprep.subr.bf16.mxu0 0
        %5749 = vmatpush1.bf16.msra.mxu0 0
        %5750 = vmatprep.subr.bf16.mxu0 0
        %5751 = vmatpush1.bf16.msra.mxu0 0
        %5752 = vmatprep.subr.bf16.mxu0 0
        %5753 = vmatpush1.bf16.msra.mxu0 0
        %5754 = vmatprep.subr.bf16.mxu0 0
        %5755 = vmatpush1.bf16.msra.mxu0 0
        %5756 = vmatprep.subr.bf16.mxu0 0
        %5757 = vmatpush1.bf16.msra.mxu0 0
        %5758 = vmatprep.subr.bf16.mxu0 0
        %5759 = vmatpush1.bf16.msra.mxu0 0
        %5760 = vmatprep.mubr.bf16.mxu0 0
        %5761 = vmatmul.mubr.bf16.gmra.mrb[0].mxu0 %v5678
        %v5762 = vpop.f32.mrb[0].mxu0
        %v5763 = vadd.f32 0.0, %v5762
        %v5764 = vpop.f32.mrb[0].mxu0
        %v5765 = vpop.f32.mrb[0].mxu0
        %v5766 = vadd.f32 0.0, %v5765
        %v5767 = vpop.f32.mrb[0].mxu0
        %5768 = vmatprep.mubr.bf16.mxu0 0
        %5769 = vmatmul.mubr.bf16.gmra.mrb[0].mxu0 %v5681
        %v5770 = vpop.f32.mrb[0].mxu0
        %v5771 = vadd.f32 0.0, %v5770
        %v5772 = vpop.f32.mrb[0].mxu0
        %v5773 = vpop.f32.mrb[0].mxu0
        %v5774 = vadd.f32 0.0, %v5773
        %v5775 = vpop.f32.mrb[0].mxu0
        %5776 = vmatprep.mubr.bf16.mxu0 0
        %5777 = vmatmul.mubr.bf16.gmra.mrb[0].mxu0 %v5684
        %v5778 = vpop.f32.mrb[0].mxu0
        %v5779 = vadd.f32 0.0, %v5778
        %v5780 = vpop.f32.mrb[0].mxu0
        %v5781 = vpop.f32.mrb[0].mxu0
        %v5782 = vadd.f32 0.0, %v5781
        %v5783 = vpop.f32.mrb[0].mxu0
        %5784 = vmatprep.mubr.bf16.mxu0 0
        %5785 = vmatmul.mubr.bf16.gmra.mrb[0].mxu0 %v5687
        %v5786 = vpop.f32.mrb[0].mxu0
        %v5787 = vadd.f32 0.0, %v5786
        %v5788 = vpop.f32.mrb[0].mxu0
        %v5789 = vpop.f32.mrb[0].mxu0
        %v5790 = vadd.f32 0.0, %v5789
        %v5791 = vpop.f32.mrb[0].mxu0
        %5792 = vmatprep.mubr.bf16.mxu0 0
        %5793 = vmatmul.mubr.bf16.gmra.mrb[0].mxu0 %v5690
        %v5794 = vpop.f32.mrb[0].mxu0
        %v5795 = vadd.f32 0.0, %v5794
        %v5796 = vpop.f32.mrb[0].mxu0
        %v5797 = vpop.f32.mrb[0].mxu0
        %v5798 = vadd.f32 0.0, %v5797
        %v5799 = vpop.f32.mrb[0].mxu0
        %5800 = vmatprep.mubr.bf16.mxu0 0
        %5801 = vmatmul.mubr.bf16.gmra.mrb[0].mxu0 %v5693
        %v5802 = vpop.f32.mrb[0].mxu0
        %v5803 = vadd.f32 0.0, %v5802
        %v5804 = vpop.f32.mrb[0].mxu0
        %v5805 = vpop.f32.mrb[0].mxu0
        %v5806 = vadd.f32 0.0, %v5805
        %v5807 = vpop.f32.mrb[0].mxu0
        %5808 = vmatprep.mubr.bf16.mxu0 0
        %5809 = vmatmul.mubr.bf16.gmra.mrb[0].mxu0 %v5696
        %v5810 = vpop.f32.mrb[0].mxu0
        %v5811 = vadd.f32 0.0, %v5810
        %v5812 = vpop.f32.mrb[0].mxu0
        %v5813 = vpop.f32.mrb[0].mxu0
        %v5814 = vadd.f32 0.0, %v5813
        %v5815 = vpop.f32.mrb[0].mxu0
        %5816 = vmatprep.mubr.bf16.mxu0 0
        %5817 = vmatmul.mubr.bf16.gmra.mrb[0].mxu0 %v5699
        %v5818 = vpop.f32.mrb[0].mxu0
        %v5819 = vadd.f32 0.0, %v5818
        %v5820 = vpop.f32.mrb[0].mxu0
        %v5821 = vpop.f32.mrb[0].mxu0
        %v5822 = vadd.f32 0.0, %v5821
        %v5823 = vpop.f32.mrb[0].mxu0
        %5824 = vmatprep.mubr.bf16.mxu0 0
        %5825 = vmatmul.mubr.bf16.gmra.mrb[0].mxu0 %v5702
        %v5826 = vpop.f32.mrb[0].mxu0
        %v5827 = vadd.f32 0.0, %v5826
        %v5828 = vpop.f32.mrb[0].mxu0
        %v5829 = vpop.f32.mrb[0].mxu0
        %v5830 = vadd.f32 0.0, %v5829
        %v5831 = vpop.f32.mrb[0].mxu0
        %5832 = vmatprep.mubr.bf16.mxu0 0
        %5833 = vmatmul.mubr.bf16.gmra.mrb[0].mxu0 %v5705
        %v5834 = vpop.f32.mrb[0].mxu0
        %v5835 = vadd.f32 0.0, %v5834
        %v5836 = vpop.f32.mrb[0].mxu0
        %v5837 = vpop.f32.mrb[0].mxu0
        %v5838 = vadd.f32 0.0, %v5837
        %v5839 = vpop.f32.mrb[0].mxu0
        %5840 = vmatprep.mubr.bf16.mxu0 0
        %5841 = vmatmul.mubr.bf16.gmra.mrb[0].mxu0 %v5708
        %v5842 = vpop.f32.mrb[0].mxu0
        %v5843 = vadd.f32 0.0, %v5842
        %v5844 = vpop.f32.mrb[0].mxu0
        %v5845 = vpop.f32.mrb[0].mxu0
        %v5846 = vadd.f32 0.0, %v5845
        %v5847 = vpop.f32.mrb[0].mxu0
        %5848 = vmatprep.mubr.bf16.mxu0 0
        %5849 = vmatmul.mubr.bf16.gmra.mrb[0].mxu0 %v5711
        %v5850 = vpop.f32.mrb[0].mxu0
        %v5851 = vadd.f32 0.0, %v5850
        %v5852 = vpop.f32.mrb[0].mxu0
        %v5853 = vpop.f32.mrb[0].mxu0
        %v5854 = vadd.f32 0.0, %v5853
        %v5855 = vpop.f32.mrb[0].mxu0
        %5856 = vmatprep.mubr.bf16.mxu0 0
        %5857 = vmatmul.mubr.bf16.gmra.mrb[0].mxu0 %v5714
        %v5858 = vpop.f32.mrb[0].mxu0
        %v5859 = vadd.f32 0.0, %v5858
        %v5860 = vpop.f32.mrb[0].mxu0
        %v5861 = vpop.f32.mrb[0].mxu0
        %v5862 = vadd.f32 0.0, %v5861
        %v5863 = vpop.f32.mrb[0].mxu0
        %5864 = vmatprep.mubr.bf16.mxu0 0
        %5865 = vmatmul.mubr.bf16.gmra.mrb[0].mxu0 %v5717
        %v5866 = vpop.f32.mrb[0].mxu0
        %v5867 = vadd.f32 0.0, %v5866
        %v5868 = vpop.f32.mrb[0].mxu0
        %v5869 = vpop.f32.mrb[0].mxu0
        %v5870 = vadd.f32 0.0, %v5869
        %v5871 = vpop.f32.mrb[0].mxu0
        %5872 = vmatprep.mubr.bf16.mxu0 0
        %5873 = vmatmul.mubr.bf16.gmra.mrb[0].mxu0 %v5720
        %v5874 = vpop.f32.mrb[0].mxu0
        %v5875 = vadd.f32 0.0, %v5874
        %v5876 = vpop.f32.mrb[0].mxu0
        %v5877 = vpop.f32.mrb[0].mxu0
        %v5878 = vadd.f32 0.0, %v5877
        %v5879 = vpop.f32.mrb[0].mxu0
        %5880 = vmatprep.mubr.bf16.mxu0 0
        %5881 = vmatmul.mubr.bf16.gmra.mrb[0].mxu0 %v5723
        %v5882 = vpop.f32.mrb[0].mxu0
        %v5883 = vadd.f32 0.0, %v5882
        %v5884 = vpop.f32.mrb[0].mxu0
        %v5885 = vpop.f32.mrb[0].mxu0
        %v5886 = vadd.f32 0.0, %v5885
        %v5887 = vpop.f32.mrb[0].mxu0
        %5888 = vdwg.mxu0
        %v5889 = vadd.f32 %v5595, %v5763
        %v5890 = vadd.f32 %v5596, %v5766
        %v5891 = vadd.f32 %v5597, %v5771
        %v5892 = vadd.f32 %v5598, %v5774
        %v5893 = vadd.f32 %v5599, %v5779
        %v5894 = vadd.f32 %v5600, %v5782
        %v5895 = vadd.f32 %v5601, %v5787
        %v5896 = vadd.f32 %v5602, %v5790
        %v5897 = vadd.f32 %v5603, %v5795
        %v5898 = vadd.f32 %v5604, %v5798
        %v5899 = vadd.f32 %v5605, %v5803
        %v5900 = vadd.f32 %v5606, %v5806
        %v5901 = vadd.f32 %v5607, %v5811
        %v5902 = vadd.f32 %v5608, %v5814
        %v5903 = vadd.f32 %v5609, %v5819
        %v5904 = vadd.f32 %v5610, %v5822
        %v5905 = vadd.f32 %v5611, %v5827
        %v5906 = vadd.f32 %v5612, %v5830
        %v5907 = vadd.f32 %v5613, %v5835
        %v5908 = vadd.f32 %v5614, %v5838
        %v5909 = vadd.f32 %v5615, %v5843
        %v5910 = vadd.f32 %v5616, %v5846
        %v5911 = vadd.f32 %v5617, %v5851
        %v5912 = vadd.f32 %v5618, %v5854
        %v5913 = vadd.f32 %v5619, %v5859
        %v5914 = vadd.f32 %v5620, %v5862
        %v5915 = vadd.f32 %v5621, %v5867
        %v5916 = vadd.f32 %v5622, %v5870
        %v5917 = vadd.f32 %v5623, %v5875
        %v5918 = vadd.f32 %v5624, %v5878
        %v5919 = vadd.f32 %v5625, %v5883
        %v5920 = vadd.f32 %v5626, %v5886
        %s5921 = scalar_lea.vmem [#allocation3], 48
        %v5922 = vld [vmem:[%s5921] sm:$0xff]
        %v5923 = vld [vmem:[%s5921 + $0x8] sm:$0xff]
        %v5924 = vld [vmem:[%s5921 + $0x18] sm:$0xff]
        %v5925 = vld [vmem:[%s5921 + $0x20] sm:$0xff]
        %v5926 = vld [vmem:[%s5921 + $0x30] sm:$0xff]
        %v5927 = vld [vmem:[%s5921 + $0x38] sm:$0xff]
        %v5928 = vld [vmem:[%s5921 + $0x48] sm:$0xff]
        %v5929 = vld [vmem:[%s5921 + $0x50] sm:$0xff]
        %v5930 = vld [vmem:[%s5921 + $0x60] sm:$0xff]
        %v5931 = vld [vmem:[%s5921 + $0x68] sm:$0xff]
        %v5932 = vld [vmem:[%s5921 + $0x78] sm:$0xff]
        %v5933 = vld [vmem:[%s5921 + $0x80] sm:$0xff]
        %v5934 = vld [vmem:[%s5921 + $0x90] sm:$0xff]
        %v5935 = vld [vmem:[%s5921 + $0x98] sm:$0xff]
        %v5936 = vld [vmem:[%s5921 + $0xa8] sm:$0xff]
        %v5937 = vld [vmem:[%s5921 + $0xb0] sm:$0xff]
        %v5938 = vld [vmem:[%s5921 + $0xc0] sm:$0xff]
        %v5939 = vld [vmem:[%s5921 + $0xc8] sm:$0xff]
        %v5940 = vld [vmem:[%s5921 + $0xd8] sm:$0xff]
        %v5941 = vld [vmem:[%s5921 + $0xe0] sm:$0xff]
        %v5942 = vld [vmem:[%s5921 + $0xf0] sm:$0xff]
        %v5943 = vld [vmem:[%s5921 + $0xf8] sm:$0xff]
        %v5944 = vld [vmem:[%s5921 + $0x108] sm:$0xff]
        %v5945 = vld [vmem:[%s5921 + $0x110] sm:$0xff]
        %v5946 = vld [vmem:[%s5921 + $0x120] sm:$0xff]
        %v5947 = vld [vmem:[%s5921 + $0x128] sm:$0xff]
        %v5948 = vld [vmem:[%s5921 + $0x138] sm:$0xff]
        %v5949 = vld [vmem:[%s5921 + $0x140] sm:$0xff]
        %v5950 = vld [vmem:[%s5921 + $0x150] sm:$0xff]
        %v5951 = vld [vmem:[%s5921 + $0x158] sm:$0xff]
        %v5952 = vld [vmem:[%s5921 + $0x168] sm:$0xff]
        %v5953 = vld [vmem:[%s5921 + $0x170] sm:$0xff]
        %v5954 = vpack.c.bf16 %v5923, %v5922
        %v5955 = vpack.c.bf16 %v5925, %v5924
        %v5956 = vpack.c.bf16 %v5927, %v5926
        %v5957 = vpack.c.bf16 %v5929, %v5928
        %v5958 = vpack.c.bf16 %v5931, %v5930
        %v5959 = vpack.c.bf16 %v5933, %v5932
        %v5960 = vpack.c.bf16 %v5935, %v5934
        %v5961 = vpack.c.bf16 %v5937, %v5936
        %v5962 = vpack.c.bf16 %v5939, %v5938
        %v5963 = vpack.c.bf16 %v5941, %v5940
        %v5964 = vpack.c.bf16 %v5943, %v5942
        %v5965 = vpack.c.bf16 %v5945, %v5944
        %v5966 = vpack.c.bf16 %v5947, %v5946
        %v5967 = vpack.c.bf16 %v5949, %v5948
        %v5968 = vpack.c.bf16 %v5951, %v5950
        %v5969 = vpack.c.bf16 %v5953, %v5952
        %s5970 = scalar_lea.vmem [#allocation21], 24
        %v5971 = vld [vmem:[%s5970] sm:$0xf]
        %v5973 = vsel %vm3850, %v5954, 0
        %v5976 = vsel %vm3850, %v5955, 0
        %v5979 = vsel %vm3850, %v5956, 0
        %v5982 = vsel %vm3850, %v5957, 0
        %v5985 = vsel %vm3850, %v5958, 0
        %v5988 = vsel %vm3850, %v5959, 0
        %v5991 = vsel %vm3850, %v5960, 0
        %v5994 = vsel %vm3850, %v5961, 0
        %v5997 = vsel %vm3850, %v5962, 0
        %v6000 = vsel %vm3850, %v5963, 0
        %v6003 = vsel %vm3850, %v5964, 0
        %v6006 = vsel %vm3850, %v5965, 0
        %v6009 = vsel %vm3850, %v5966, 0
        %v6012 = vsel %vm3850, %v5967, 0
        %v6015 = vsel %vm3850, %v5968, 0
        %v6018 = vsel %vm3850, %v5969, 0
        %v6021 = vsel %vm4368, %v5971, 0
        %6023 = vmatprep.subr.bf16.mxu0 0
        %6024 = vmatpush1.bf16.msra.mxu0 %v6021
        %6025 = vmatprep.subr.bf16.mxu0 0
        %6026 = vmatpush1.bf16.msra.mxu0 0
        %6027 = vmatprep.subr.bf16.mxu0 0
        %6028 = vmatpush1.bf16.msra.mxu0 0
        %6029 = vmatprep.subr.bf16.mxu0 0
        %6030 = vmatpush1.bf16.msra.mxu0 0
        %6031 = vmatprep.subr.bf16.mxu0 0
        %6032 = vmatpush1.bf16.msra.mxu0 0
        %6033 = vmatprep.subr.bf16.mxu0 0
        %6034 = vmatpush1.bf16.msra.mxu0 0
        %6035 = vmatprep.subr.bf16.mxu0 0
        %6036 = vmatpush1.bf16.msra.mxu0 0
        %6037 = vmatprep.subr.bf16.mxu0 0
        %6038 = vmatpush1.bf16.msra.mxu0 0
        %6039 = vmatprep.subr.bf16.mxu0 0
        %6040 = vmatpush1.bf16.msra.mxu0 0
        %6041 = vmatprep.subr.bf16.mxu0 0
        %6042 = vmatpush1.bf16.msra.mxu0 0
        %6043 = vmatprep.subr.bf16.mxu0 0
        %6044 = vmatpush1.bf16.msra.mxu0 0
        %6045 = vmatprep.subr.bf16.mxu0 0
        %6046 = vmatpush1.bf16.msra.mxu0 0
        %6047 = vmatprep.subr.bf16.mxu0 0
        %6048 = vmatpush1.bf16.msra.mxu0 0
        %6049 = vmatprep.subr.bf16.mxu0 0
        %6050 = vmatpush1.bf16.msra.mxu0 0
        %6051 = vmatprep.subr.bf16.mxu0 0
        %6052 = vmatpush1.bf16.msra.mxu0 0
        %6053 = vmatprep.subr.bf16.mxu0 0
        %6054 = vmatpush1.bf16.msra.mxu0 0
        %6055 = vmatprep.mubr.bf16.mxu0 0
        %6056 = vmatmul.mubr.bf16.gmra.mrb[0].mxu0 %v5973
        %v6057 = vpop.f32.mrb[0].mxu0
        %v6058 = vadd.f32 0.0, %v6057
        %v6059 = vpop.f32.mrb[0].mxu0
        %v6060 = vpop.f32.mrb[0].mxu0
        %v6061 = vadd.f32 0.0, %v6060
        %v6062 = vpop.f32.mrb[0].mxu0
        %6063 = vmatprep.mubr.bf16.mxu0 0
        %6064 = vmatmul.mubr.bf16.gmra.mrb[0].mxu0 %v5976
        %v6065 = vpop.f32.mrb[0].mxu0
        %v6066 = vadd.f32 0.0, %v6065
        %v6067 = vpop.f32.mrb[0].mxu0
        %v6068 = vpop.f32.mrb[0].mxu0
        %v6069 = vadd.f32 0.0, %v6068
        %v6070 = vpop.f32.mrb[0].mxu0
        %6071 = vmatprep.mubr.bf16.mxu0 0
        %6072 = vmatmul.mubr.bf16.gmra.mrb[0].mxu0 %v5979
        %v6073 = vpop.f32.mrb[0].mxu0
        %v6074 = vadd.f32 0.0, %v6073
        %v6075 = vpop.f32.mrb[0].mxu0
        %v6076 = vpop.f32.mrb[0].mxu0
        %v6077 = vadd.f32 0.0, %v6076
        %v6078 = vpop.f32.mrb[0].mxu0
        %6079 = vmatprep.mubr.bf16.mxu0 0
        %6080 = vmatmul.mubr.bf16.gmra.mrb[0].mxu0 %v5982
        %v6081 = vpop.f32.mrb[0].mxu0
        %v6082 = vadd.f32 0.0, %v6081
        %v6083 = vpop.f32.mrb[0].mxu0
        %v6084 = vpop.f32.mrb[0].mxu0
        %v6085 = vadd.f32 0.0, %v6084
        %v6086 = vpop.f32.mrb[0].mxu0
        %6087 = vmatprep.mubr.bf16.mxu0 0
        %6088 = vmatmul.mubr.bf16.gmra.mrb[0].mxu0 %v5985
        %v6089 = vpop.f32.mrb[0].mxu0
        %v6090 = vadd.f32 0.0, %v6089
        %v6091 = vpop.f32.mrb[0].mxu0
        %v6092 = vpop.f32.mrb[0].mxu0
        %v6093 = vadd.f32 0.0, %v6092
        %v6094 = vpop.f32.mrb[0].mxu0
        %6095 = vmatprep.mubr.bf16.mxu0 0
        %6096 = vmatmul.mubr.bf16.gmra.mrb[0].mxu0 %v5988
        %v6097 = vpop.f32.mrb[0].mxu0
        %v6098 = vadd.f32 0.0, %v6097
        %v6099 = vpop.f32.mrb[0].mxu0
        %v6100 = vpop.f32.mrb[0].mxu0
        %v6101 = vadd.f32 0.0, %v6100
        %v6102 = vpop.f32.mrb[0].mxu0
        %6103 = vmatprep.mubr.bf16.mxu0 0
        %6104 = vmatmul.mubr.bf16.gmra.mrb[0].mxu0 %v5991
        %v6105 = vpop.f32.mrb[0].mxu0
        %v6106 = vadd.f32 0.0, %v6105
        %v6107 = vpop.f32.mrb[0].mxu0
        %v6108 = vpop.f32.mrb[0].mxu0
        %v6109 = vadd.f32 0.0, %v6108
        %v6110 = vpop.f32.mrb[0].mxu0
        %6111 = vmatprep.mubr.bf16.mxu0 0
        %6112 = vmatmul.mubr.bf16.gmra.mrb[0].mxu0 %v5994
        %v6113 = vpop.f32.mrb[0].mxu0
        %v6114 = vadd.f32 0.0, %v6113
        %v6115 = vpop.f32.mrb[0].mxu0
        %v6116 = vpop.f32.mrb[0].mxu0
        %v6117 = vadd.f32 0.0, %v6116
        %v6118 = vpop.f32.mrb[0].mxu0
        %6119 = vmatprep.mubr.bf16.mxu0 0
        %6120 = vmatmul.mubr.bf16.gmra.mrb[0].mxu0 %v5997
        %v6121 = vpop.f32.mrb[0].mxu0
        %v6122 = vadd.f32 0.0, %v6121
        %v6123 = vpop.f32.mrb[0].mxu0
        %v6124 = vpop.f32.mrb[0].mxu0
        %v6125 = vadd.f32 0.0, %v6124
        %v6126 = vpop.f32.mrb[0].mxu0
        %6127 = vmatprep.mubr.bf16.mxu0 0
        %6128 = vmatmul.mubr.bf16.gmra.mrb[0].mxu0 %v6000
        %v6129 = vpop.f32.mrb[0].mxu0
        %v6130 = vadd.f32 0.0, %v6129
        %v6131 = vpop.f32.mrb[0].mxu0
        %v6132 = vpop.f32.mrb[0].mxu0
        %v6133 = vadd.f32 0.0, %v6132
        %v6134 = vpop.f32.mrb[0].mxu0
        %6135 = vmatprep.mubr.bf16.mxu0 0
        %6136 = vmatmul.mubr.bf16.gmra.mrb[0].mxu0 %v6003
        %v6137 = vpop.f32.mrb[0].mxu0
        %v6138 = vadd.f32 0.0, %v6137
        %v6139 = vpop.f32.mrb[0].mxu0
        %v6140 = vpop.f32.mrb[0].mxu0
        %v6141 = vadd.f32 0.0, %v6140
        %v6142 = vpop.f32.mrb[0].mxu0
        %6143 = vmatprep.mubr.bf16.mxu0 0
        %6144 = vmatmul.mubr.bf16.gmra.mrb[0].mxu0 %v6006
        %v6145 = vpop.f32.mrb[0].mxu0
        %v6146 = vadd.f32 0.0, %v6145
        %v6147 = vpop.f32.mrb[0].mxu0
        %v6148 = vpop.f32.mrb[0].mxu0
        %v6149 = vadd.f32 0.0, %v6148
        %v6150 = vpop.f32.mrb[0].mxu0
        %6151 = vmatprep.mubr.bf16.mxu0 0
        %6152 = vmatmul.mubr.bf16.gmra.mrb[0].mxu0 %v6009
        %v6153 = vpop.f32.mrb[0].mxu0
        %v6154 = vadd.f32 0.0, %v6153
        %v6155 = vpop.f32.mrb[0].mxu0
        %v6156 = vpop.f32.mrb[0].mxu0
        %v6157 = vadd.f32 0.0, %v6156
        %v6158 = vpop.f32.mrb[0].mxu0
        %6159 = vmatprep.mubr.bf16.mxu0 0
        %6160 = vmatmul.mubr.bf16.gmra.mrb[0].mxu0 %v6012
        %v6161 = vpop.f32.mrb[0].mxu0
        %v6162 = vadd.f32 0.0, %v6161
        %v6163 = vpop.f32.mrb[0].mxu0
        %v6164 = vpop.f32.mrb[0].mxu0
        %v6165 = vadd.f32 0.0, %v6164
        %v6166 = vpop.f32.mrb[0].mxu0
        %6167 = vmatprep.mubr.bf16.mxu0 0
        %6168 = vmatmul.mubr.bf16.gmra.mrb[0].mxu0 %v6015
        %v6169 = vpop.f32.mrb[0].mxu0
        %v6170 = vadd.f32 0.0, %v6169
        %v6171 = vpop.f32.mrb[0].mxu0
        %v6172 = vpop.f32.mrb[0].mxu0
        %v6173 = vadd.f32 0.0, %v6172
        %v6174 = vpop.f32.mrb[0].mxu0
        %6175 = vmatprep.mubr.bf16.mxu0 0
        %6176 = vmatmul.mubr.bf16.gmra.mrb[0].mxu0 %v6018
        %v6177 = vpop.f32.mrb[0].mxu0
        %v6178 = vadd.f32 0.0, %v6177
        %v6179 = vpop.f32.mrb[0].mxu0
        %v6180 = vpop.f32.mrb[0].mxu0
        %v6181 = vadd.f32 0.0, %v6180
        %v6182 = vpop.f32.mrb[0].mxu0
        %6183 = vdwg.mxu0
        %v6184 = vadd.f32 %v5889, %v6058
        %v6185 = vadd.f32 %v5890, %v6061
        %v6186 = vadd.f32 %v5891, %v6066
        %v6187 = vadd.f32 %v5892, %v6069
        %v6188 = vadd.f32 %v5893, %v6074
        %v6189 = vadd.f32 %v5894, %v6077
        %v6190 = vadd.f32 %v5895, %v6082
        %v6191 = vadd.f32 %v5896, %v6085
        %v6192 = vadd.f32 %v5897, %v6090
        %v6193 = vadd.f32 %v5898, %v6093
        %v6194 = vadd.f32 %v5899, %v6098
        %v6195 = vadd.f32 %v5900, %v6101
        %v6196 = vadd.f32 %v5901, %v6106
        %v6197 = vadd.f32 %v5902, %v6109
        %v6198 = vadd.f32 %v5903, %v6114
        %v6199 = vadd.f32 %v5904, %v6117
        %v6200 = vadd.f32 %v5905, %v6122
        %v6201 = vadd.f32 %v5906, %v6125
        %v6202 = vadd.f32 %v5907, %v6130
        %v6203 = vadd.f32 %v5908, %v6133
        %v6204 = vadd.f32 %v5909, %v6138
        %v6205 = vadd.f32 %v5910, %v6141
        %v6206 = vadd.f32 %v5911, %v6146
        %v6207 = vadd.f32 %v5912, %v6149
        %v6208 = vadd.f32 %v5913, %v6154
        %v6209 = vadd.f32 %v5914, %v6157
        %v6210 = vadd.f32 %v5915, %v6162
        %v6211 = vadd.f32 %v5916, %v6165
        %v6212 = vadd.f32 %v5917, %v6170
        %v6213 = vadd.f32 %v5918, %v6173
        %v6214 = vadd.f32 %v5919, %v6178
        %v6215 = vadd.f32 %v5920, %v6181
        %v6216 = vld [vmem:[%s5921 + $0x1] sm:$0xff]
        %v6217 = vld [vmem:[%s5921 + $0x9] sm:$0xff]
        %v6218 = vld [vmem:[%s5921 + $0x19] sm:$0xff]
        %v6219 = vld [vmem:[%s5921 + $0x21] sm:$0xff]
        %v6220 = vld [vmem:[%s5921 + $0x31] sm:$0xff]
        %v6221 = vld [vmem:[%s5921 + $0x39] sm:$0xff]
        %v6222 = vld [vmem:[%s5921 + $0x49] sm:$0xff]
        %v6223 = vld [vmem:[%s5921 + $0x51] sm:$0xff]
        %v6224 = vld [vmem:[%s5921 + $0x61] sm:$0xff]
        %v6225 = vld [vmem:[%s5921 + $0x69] sm:$0xff]
        %v6226 = vld [vmem:[%s5921 + $0x79] sm:$0xff]
        %v6227 = vld [vmem:[%s5921 + $0x81] sm:$0xff]
        %v6228 = vld [vmem:[%s5921 + $0x91] sm:$0xff]
        %v6229 = vld [vmem:[%s5921 + $0x99] sm:$0xff]
        %v6230 = vld [vmem:[%s5921 + $0xa9] sm:$0xff]
        %v6231 = vld [vmem:[%s5921 + $0xb1] sm:$0xff]
        %v6232 = vld [vmem:[%s5921 + $0xc1] sm:$0xff]
        %v6233 = vld [vmem:[%s5921 + $0xc9] sm:$0xff]
        %v6234 = vld [vmem:[%s5921 + $0xd9] sm:$0xff]
        %v6235 = vld [vmem:[%s5921 + $0xe1] sm:$0xff]
        %v6236 = vld [vmem:[%s5921 + $0xf1] sm:$0xff]
        %v6237 = vld [vmem:[%s5921 + $0xf9] sm:$0xff]
        %v6238 = vld [vmem:[%s5921 + $0x109] sm:$0xff]
        %v6239 = vld [vmem:[%s5921 + $0x111] sm:$0xff]
        %v6240 = vld [vmem:[%s5921 + $0x121] sm:$0xff]
        %v6241 = vld [vmem:[%s5921 + $0x129] sm:$0xff]
        %v6242 = vld [vmem:[%s5921 + $0x139] sm:$0xff]
        %v6243 = vld [vmem:[%s5921 + $0x141] sm:$0xff]
        %v6244 = vld [vmem:[%s5921 + $0x151] sm:$0xff]
        %v6245 = vld [vmem:[%s5921 + $0x159] sm:$0xff]
        %v6246 = vld [vmem:[%s5921 + $0x169] sm:$0xff]
        %v6247 = vld [vmem:[%s5921 + $0x171] sm:$0xff]
        %v6248 = vpack.c.bf16 %v6217, %v6216
        %v6249 = vpack.c.bf16 %v6219, %v6218
        %v6250 = vpack.c.bf16 %v6221, %v6220
        %v6251 = vpack.c.bf16 %v6223, %v6222
        %v6252 = vpack.c.bf16 %v6225, %v6224
        %v6253 = vpack.c.bf16 %v6227, %v6226
        %v6254 = vpack.c.bf16 %v6229, %v6228
        %v6255 = vpack.c.bf16 %v6231, %v6230
        %v6256 = vpack.c.bf16 %v6233, %v6232
        %v6257 = vpack.c.bf16 %v6235, %v6234
        %v6258 = vpack.c.bf16 %v6237, %v6236
        %v6259 = vpack.c.bf16 %v6239, %v6238
        %v6260 = vpack.c.bf16 %v6241, %v6240
        %v6261 = vpack.c.bf16 %v6243, %v6242
        %v6262 = vpack.c.bf16 %v6245, %v6244
        %v6263 = vpack.c.bf16 %v6247, %v6246
        %s6264 = scalar_lea.vmem [#allocation21], 28
        %v6265 = vld [vmem:[%s6264] sm:$0xf]
        %v6267 = vsel %vm3850, %v6248, 0
        %v6270 = vsel %vm3850, %v6249, 0
        %v6273 = vsel %vm3850, %v6250, 0
        %v6276 = vsel %vm3850, %v6251, 0
        %v6279 = vsel %vm3850, %v6252, 0
        %v6282 = vsel %vm3850, %v6253, 0
        %v6285 = vsel %vm3850, %v6254, 0
        %v6288 = vsel %vm3850, %v6255, 0
        %v6291 = vsel %vm3850, %v6256, 0
        %v6294 = vsel %vm3850, %v6257, 0
        %v6297 = vsel %vm3850, %v6258, 0
        %v6300 = vsel %vm3850, %v6259, 0
        %v6303 = vsel %vm3850, %v6260, 0
        %v6306 = vsel %vm3850, %v6261, 0
        %v6309 = vsel %vm3850, %v6262, 0
        %v6312 = vsel %vm3850, %v6263, 0
        %v6315 = vsel %vm4368, %v6265, 0
        %6317 = vmatprep.subr.bf16.mxu0 0
        %6318 = vmatpush1.bf16.msra.mxu0 %v6315
        %6319 = vmatprep.subr.bf16.mxu0 0
        %6320 = vmatpush1.bf16.msra.mxu0 0
        %6321 = vmatprep.subr.bf16.mxu0 0
        %6322 = vmatpush1.bf16.msra.mxu0 0
        %6323 = vmatprep.subr.bf16.mxu0 0
        %6324 = vmatpush1.bf16.msra.mxu0 0
        %6325 = vmatprep.subr.bf16.mxu0 0
        %6326 = vmatpush1.bf16.msra.mxu0 0
        %6327 = vmatprep.subr.bf16.mxu0 0
        %6328 = vmatpush1.bf16.msra.mxu0 0
        %6329 = vmatprep.subr.bf16.mxu0 0
        %6330 = vmatpush1.bf16.msra.mxu0 0
        %6331 = vmatprep.subr.bf16.mxu0 0
        %6332 = vmatpush1.bf16.msra.mxu0 0
        %6333 = vmatprep.subr.bf16.mxu0 0
        %6334 = vmatpush1.bf16.msra.mxu0 0
        %6335 = vmatprep.subr.bf16.mxu0 0
        %6336 = vmatpush1.bf16.msra.mxu0 0
        %6337 = vmatprep.subr.bf16.mxu0 0
        %6338 = vmatpush1.bf16.msra.mxu0 0
        %6339 = vmatprep.subr.bf16.mxu0 0
        %6340 = vmatpush1.bf16.msra.mxu0 0
        %6341 = vmatprep.subr.bf16.mxu0 0
        %6342 = vmatpush1.bf16.msra.mxu0 0
        %6343 = vmatprep.subr.bf16.mxu0 0
        %6344 = vmatpush1.bf16.msra.mxu0 0
        %6345 = vmatprep.subr.bf16.mxu0 0
        %6346 = vmatpush1.bf16.msra.mxu0 0
        %6347 = vmatprep.subr.bf16.mxu0 0
        %6348 = vmatpush1.bf16.msra.mxu0 0
        %6349 = vmatprep.mubr.bf16.mxu0 0
        %6350 = vmatmul.mubr.bf16.gmra.mrb[0].mxu0 %v6267
        %v6351 = vpop.f32.mrb[0].mxu0
        %v6352 = vadd.f32 0.0, %v6351
        %v6353 = vpop.f32.mrb[0].mxu0
        %v6354 = vpop.f32.mrb[0].mxu0
        %v6355 = vadd.f32 0.0, %v6354
        %v6356 = vpop.f32.mrb[0].mxu0
        %6357 = vmatprep.mubr.bf16.mxu0 0
        %6358 = vmatmul.mubr.bf16.gmra.mrb[0].mxu0 %v6270
        %v6359 = vpop.f32.mrb[0].mxu0
        %v6360 = vadd.f32 0.0, %v6359
        %v6361 = vpop.f32.mrb[0].mxu0
        %v6362 = vpop.f32.mrb[0].mxu0
        %v6363 = vadd.f32 0.0, %v6362
        %v6364 = vpop.f32.mrb[0].mxu0
        %6365 = vmatprep.mubr.bf16.mxu0 0
        %6366 = vmatmul.mubr.bf16.gmra.mrb[0].mxu0 %v6273
        %v6367 = vpop.f32.mrb[0].mxu0
        %v6368 = vadd.f32 0.0, %v6367
        %v6369 = vpop.f32.mrb[0].mxu0
        %v6370 = vpop.f32.mrb[0].mxu0
        %v6371 = vadd.f32 0.0, %v6370
        %v6372 = vpop.f32.mrb[0].mxu0
        %6373 = vmatprep.mubr.bf16.mxu0 0
        %6374 = vmatmul.mubr.bf16.gmra.mrb[0].mxu0 %v6276
        %v6375 = vpop.f32.mrb[0].mxu0
        %v6376 = vadd.f32 0.0, %v6375
        %v6377 = vpop.f32.mrb[0].mxu0
        %v6378 = vpop.f32.mrb[0].mxu0
        %v6379 = vadd.f32 0.0, %v6378
        %v6380 = vpop.f32.mrb[0].mxu0
        %6381 = vmatprep.mubr.bf16.mxu0 0
        %6382 = vmatmul.mubr.bf16.gmra.mrb[0].mxu0 %v6279
        %v6383 = vpop.f32.mrb[0].mxu0
        %v6384 = vadd.f32 0.0, %v6383
        %v6385 = vpop.f32.mrb[0].mxu0
        %v6386 = vpop.f32.mrb[0].mxu0
        %v6387 = vadd.f32 0.0, %v6386
        %v6388 = vpop.f32.mrb[0].mxu0
        %6389 = vmatprep.mubr.bf16.mxu0 0
        %6390 = vmatmul.mubr.bf16.gmra.mrb[0].mxu0 %v6282
        %v6391 = vpop.f32.mrb[0].mxu0
        %v6392 = vadd.f32 0.0, %v6391
        %v6393 = vpop.f32.mrb[0].mxu0
        %v6394 = vpop.f32.mrb[0].mxu0
        %v6395 = vadd.f32 0.0, %v6394
        %v6396 = vpop.f32.mrb[0].mxu0
        %6397 = vmatprep.mubr.bf16.mxu0 0
        %6398 = vmatmul.mubr.bf16.gmra.mrb[0].mxu0 %v6285
        %v6399 = vpop.f32.mrb[0].mxu0
        %v6400 = vadd.f32 0.0, %v6399
        %v6401 = vpop.f32.mrb[0].mxu0
        %v6402 = vpop.f32.mrb[0].mxu0
        %v6403 = vadd.f32 0.0, %v6402
        %v6404 = vpop.f32.mrb[0].mxu0
        %6405 = vmatprep.mubr.bf16.mxu0 0
        %6406 = vmatmul.mubr.bf16.gmra.mrb[0].mxu0 %v6288
        %v6407 = vpop.f32.mrb[0].mxu0
        %v6408 = vadd.f32 0.0, %v6407
        %v6409 = vpop.f32.mrb[0].mxu0
        %v6410 = vpop.f32.mrb[0].mxu0
        %v6411 = vadd.f32 0.0, %v6410
        %v6412 = vpop.f32.mrb[0].mxu0
        %6413 = vmatprep.mubr.bf16.mxu0 0
        %6414 = vmatmul.mubr.bf16.gmra.mrb[0].mxu0 %v6291
        %v6415 = vpop.f32.mrb[0].mxu0
        %v6416 = vadd.f32 0.0, %v6415
        %v6417 = vpop.f32.mrb[0].mxu0
        %v6418 = vpop.f32.mrb[0].mxu0
        %v6419 = vadd.f32 0.0, %v6418
        %v6420 = vpop.f32.mrb[0].mxu0
        %6421 = vmatprep.mubr.bf16.mxu0 0
        %6422 = vmatmul.mubr.bf16.gmra.mrb[0].mxu0 %v6294
        %v6423 = vpop.f32.mrb[0].mxu0
        %v6424 = vadd.f32 0.0, %v6423
        %v6425 = vpop.f32.mrb[0].mxu0
        %v6426 = vpop.f32.mrb[0].mxu0
        %v6427 = vadd.f32 0.0, %v6426
        %v6428 = vpop.f32.mrb[0].mxu0
        %6429 = vmatprep.mubr.bf16.mxu0 0
        %6430 = vmatmul.mubr.bf16.gmra.mrb[0].mxu0 %v6297
        %v6431 = vpop.f32.mrb[0].mxu0
        %v6432 = vadd.f32 0.0, %v6431
        %v6433 = vpop.f32.mrb[0].mxu0
        %v6434 = vpop.f32.mrb[0].mxu0
        %v6435 = vadd.f32 0.0, %v6434
        %v6436 = vpop.f32.mrb[0].mxu0
        %6437 = vmatprep.mubr.bf16.mxu0 0
        %6438 = vmatmul.mubr.bf16.gmra.mrb[0].mxu0 %v6300
        %v6439 = vpop.f32.mrb[0].mxu0
        %v6440 = vadd.f32 0.0, %v6439
        %v6441 = vpop.f32.mrb[0].mxu0
        %v6442 = vpop.f32.mrb[0].mxu0
        %v6443 = vadd.f32 0.0, %v6442
        %v6444 = vpop.f32.mrb[0].mxu0
        %6445 = vmatprep.mubr.bf16.mxu0 0
        %6446 = vmatmul.mubr.bf16.gmra.mrb[0].mxu0 %v6303
        %v6447 = vpop.f32.mrb[0].mxu0
        %v6448 = vadd.f32 0.0, %v6447
        %v6449 = vpop.f32.mrb[0].mxu0
        %v6450 = vpop.f32.mrb[0].mxu0
        %v6451 = vadd.f32 0.0, %v6450
        %v6452 = vpop.f32.mrb[0].mxu0
        %6453 = vmatprep.mubr.bf16.mxu0 0
        %6454 = vmatmul.mubr.bf16.gmra.mrb[0].mxu0 %v6306
        %v6455 = vpop.f32.mrb[0].mxu0
        %v6456 = vadd.f32 0.0, %v6455
        %v6457 = vpop.f32.mrb[0].mxu0
        %v6458 = vpop.f32.mrb[0].mxu0
        %v6459 = vadd.f32 0.0, %v6458
        %v6460 = vpop.f32.mrb[0].mxu0
        %6461 = vmatprep.mubr.bf16.mxu0 0
        %6462 = vmatmul.mubr.bf16.gmra.mrb[0].mxu0 %v6309
        %v6463 = vpop.f32.mrb[0].mxu0
        %v6464 = vadd.f32 0.0, %v6463
        %v6465 = vpop.f32.mrb[0].mxu0
        %v6466 = vpop.f32.mrb[0].mxu0
        %v6467 = vadd.f32 0.0, %v6466
        %v6468 = vpop.f32.mrb[0].mxu0
        %6469 = vmatprep.mubr.bf16.mxu0 0
        %6470 = vmatmul.mubr.bf16.gmra.mrb[0].mxu0 %v6312
        %v6471 = vpop.f32.mrb[0].mxu0
        %v6472 = vadd.f32 0.0, %v6471
        %v6473 = vpop.f32.mrb[0].mxu0
        %v6474 = vpop.f32.mrb[0].mxu0
        %v6475 = vadd.f32 0.0, %v6474
        %v6476 = vpop.f32.mrb[0].mxu0
        %6477 = vdwg.mxu0
        %v6478 = vadd.f32 %v6184, %v6352
        %v6479 = vadd.f32 %v6185, %v6355
        %v6480 = vadd.f32 %v6186, %v6360
        %v6481 = vadd.f32 %v6187, %v6363
        %v6482 = vadd.f32 %v6188, %v6368
        %v6483 = vadd.f32 %v6189, %v6371
        %v6484 = vadd.f32 %v6190, %v6376
        %v6485 = vadd.f32 %v6191, %v6379
        %v6486 = vadd.f32 %v6192, %v6384
        %v6487 = vadd.f32 %v6193, %v6387
        %v6488 = vadd.f32 %v6194, %v6392
        %v6489 = vadd.f32 %v6195, %v6395
        %v6490 = vadd.f32 %v6196, %v6400
        %v6491 = vadd.f32 %v6197, %v6403
        %v6492 = vadd.f32 %v6198, %v6408
        %v6493 = vadd.f32 %v6199, %v6411
        %v6494 = vadd.f32 %v6200, %v6416
        %v6495 = vadd.f32 %v6201, %v6419
        %v6496 = vadd.f32 %v6202, %v6424
        %v6497 = vadd.f32 %v6203, %v6427
        %v6498 = vadd.f32 %v6204, %v6432
        %v6499 = vadd.f32 %v6205, %v6435
        %v6500 = vadd.f32 %v6206, %v6440
        %v6501 = vadd.f32 %v6207, %v6443
        %v6502 = vadd.f32 %v6208, %v6448
        %v6503 = vadd.f32 %v6209, %v6451
        %v6504 = vadd.f32 %v6210, %v6456
        %v6505 = vadd.f32 %v6211, %v6459
        %v6506 = vadd.f32 %v6212, %v6464
        %v6507 = vadd.f32 %v6213, %v6467
        %v6508 = vadd.f32 %v6214, %v6472
        %v6509 = vadd.f32 %v6215, %v6475
        %v6510 = vld [vmem:[%s5921 + $0x2] sm:$0xff]
        %v6511 = vld [vmem:[%s5921 + $0xa] sm:$0xff]
        %v6512 = vld [vmem:[%s5921 + $0x1a] sm:$0xff]
        %v6513 = vld [vmem:[%s5921 + $0x22] sm:$0xff]
        %v6514 = vld [vmem:[%s5921 + $0x32] sm:$0xff]
        %v6515 = vld [vmem:[%s5921 + $0x3a] sm:$0xff]
        %v6516 = vld [vmem:[%s5921 + $0x4a] sm:$0xff]
        %v6517 = vld [vmem:[%s5921 + $0x52] sm:$0xff]
        %v6518 = vld [vmem:[%s5921 + $0x62] sm:$0xff]
        %v6519 = vld [vmem:[%s5921 + $0x6a] sm:$0xff]
        %v6520 = vld [vmem:[%s5921 + $0x7a] sm:$0xff]
        %v6521 = vld [vmem:[%s5921 + $0x82] sm:$0xff]
        %v6522 = vld [vmem:[%s5921 + $0x92] sm:$0xff]
        %v6523 = vld [vmem:[%s5921 + $0x9a] sm:$0xff]
        %v6524 = vld [vmem:[%s5921 + $0xaa] sm:$0xff]
        %v6525 = vld [vmem:[%s5921 + $0xb2] sm:$0xff]
        %v6526 = vld [vmem:[%s5921 + $0xc2] sm:$0xff]
        %v6527 = vld [vmem:[%s5921 + $0xca] sm:$0xff]
        %v6528 = vld [vmem:[%s5921 + $0xda] sm:$0xff]
        %v6529 = vld [vmem:[%s5921 + $0xe2] sm:$0xff]
        %v6530 = vld [vmem:[%s5921 + $0xf2] sm:$0xff]
        %v6531 = vld [vmem:[%s5921 + $0xfa] sm:$0xff]
        %v6532 = vld [vmem:[%s5921 + $0x10a] sm:$0xff]
        %v6533 = vld [vmem:[%s5921 + $0x112] sm:$0xff]
        %v6534 = vld [vmem:[%s5921 + $0x122] sm:$0xff]
        %v6535 = vld [vmem:[%s5921 + $0x12a] sm:$0xff]
        %v6536 = vld [vmem:[%s5921 + $0x13a] sm:$0xff]
        %v6537 = vld [vmem:[%s5921 + $0x142] sm:$0xff]
        %v6538 = vld [vmem:[%s5921 + $0x152] sm:$0xff]
        %v6539 = vld [vmem:[%s5921 + $0x15a] sm:$0xff]
        %v6540 = vld [vmem:[%s5921 + $0x16a] sm:$0xff]
        %v6541 = vld [vmem:[%s5921 + $0x172] sm:$0xff]
        %v6542 = vpack.c.bf16 %v6511, %v6510
        %v6543 = vpack.c.bf16 %v6513, %v6512
        %v6544 = vpack.c.bf16 %v6515, %v6514
        %v6545 = vpack.c.bf16 %v6517, %v6516
        %v6546 = vpack.c.bf16 %v6519, %v6518
        %v6547 = vpack.c.bf16 %v6521, %v6520
        %v6548 = vpack.c.bf16 %v6523, %v6522
        %v6549 = vpack.c.bf16 %v6525, %v6524
        %v6550 = vpack.c.bf16 %v6527, %v6526
        %v6551 = vpack.c.bf16 %v6529, %v6528
        %v6552 = vpack.c.bf16 %v6531, %v6530
        %v6553 = vpack.c.bf16 %v6533, %v6532
        %v6554 = vpack.c.bf16 %v6535, %v6534
        %v6555 = vpack.c.bf16 %v6537, %v6536
        %v6556 = vpack.c.bf16 %v6539, %v6538
        %v6557 = vpack.c.bf16 %v6541, %v6540
        %s6558 = scalar_lea.vmem [#allocation21], 32
        %v6559 = vld [vmem:[%s6558] sm:$0xf]
        %v6561 = vsel %vm3850, %v6542, 0
        %v6564 = vsel %vm3850, %v6543, 0
        %v6567 = vsel %vm3850, %v6544, 0
        %v6570 = vsel %vm3850, %v6545, 0
        %v6573 = vsel %vm3850, %v6546, 0
        %v6576 = vsel %vm3850, %v6547, 0
        %v6579 = vsel %vm3850, %v6548, 0
        %v6582 = vsel %vm3850, %v6549, 0
        %v6585 = vsel %vm3850, %v6550, 0
        %v6588 = vsel %vm3850, %v6551, 0
        %v6591 = vsel %vm3850, %v6552, 0
        %v6594 = vsel %vm3850, %v6553, 0
        %v6597 = vsel %vm3850, %v6554, 0
        %v6600 = vsel %vm3850, %v6555, 0
        %v6603 = vsel %vm3850, %v6556, 0
        %v6606 = vsel %vm3850, %v6557, 0
        %v6609 = vsel %vm4368, %v6559, 0
        %6611 = vmatprep.subr.bf16.mxu0 0
        %6612 = vmatpush1.bf16.msra.mxu0 %v6609
        %6613 = vmatprep.subr.bf16.mxu0 0
        %6614 = vmatpush1.bf16.msra.mxu0 0
        %6615 = vmatprep.subr.bf16.mxu0 0
        %6616 = vmatpush1.bf16.msra.mxu0 0
        %6617 = vmatprep.subr.bf16.mxu0 0
        %6618 = vmatpush1.bf16.msra.mxu0 0
        %6619 = vmatprep.subr.bf16.mxu0 0
        %6620 = vmatpush1.bf16.msra.mxu0 0
        %6621 = vmatprep.subr.bf16.mxu0 0
        %6622 = vmatpush1.bf16.msra.mxu0 0
        %6623 = vmatprep.subr.bf16.mxu0 0
        %6624 = vmatpush1.bf16.msra.mxu0 0
        %6625 = vmatprep.subr.bf16.mxu0 0
        %6626 = vmatpush1.bf16.msra.mxu0 0
        %6627 = vmatprep.subr.bf16.mxu0 0
        %6628 = vmatpush1.bf16.msra.mxu0 0
        %6629 = vmatprep.subr.bf16.mxu0 0
        %6630 = vmatpush1.bf16.msra.mxu0 0
        %6631 = vmatprep.subr.bf16.mxu0 0
        %6632 = vmatpush1.bf16.msra.mxu0 0
        %6633 = vmatprep.subr.bf16.mxu0 0
        %6634 = vmatpush1.bf16.msra.mxu0 0
        %6635 = vmatprep.subr.bf16.mxu0 0
        %6636 = vmatpush1.bf16.msra.mxu0 0
        %6637 = vmatprep.subr.bf16.mxu0 0
        %6638 = vmatpush1.bf16.msra.mxu0 0
        %6639 = vmatprep.subr.bf16.mxu0 0
        %6640 = vmatpush1.bf16.msra.mxu0 0
        %6641 = vmatprep.subr.bf16.mxu0 0
        %6642 = vmatpush1.bf16.msra.mxu0 0
        %6643 = vmatprep.mubr.bf16.mxu0 0
        %6644 = vmatmul.mubr.bf16.gmra.mrb[0].mxu0 %v6561
        %v6645 = vpop.f32.mrb[0].mxu0
        %v6646 = vadd.f32 0.0, %v6645
        %v6647 = vpop.f32.mrb[0].mxu0
        %v6648 = vpop.f32.mrb[0].mxu0
        %v6649 = vadd.f32 0.0, %v6648
        %v6650 = vpop.f32.mrb[0].mxu0
        %6651 = vmatprep.mubr.bf16.mxu0 0
        %6652 = vmatmul.mubr.bf16.gmra.mrb[0].mxu0 %v6564
        %v6653 = vpop.f32.mrb[0].mxu0
        %v6654 = vadd.f32 0.0, %v6653
        %v6655 = vpop.f32.mrb[0].mxu0
        %v6656 = vpop.f32.mrb[0].mxu0
        %v6657 = vadd.f32 0.0, %v6656
        %v6658 = vpop.f32.mrb[0].mxu0
        %6659 = vmatprep.mubr.bf16.mxu0 0
        %6660 = vmatmul.mubr.bf16.gmra.mrb[0].mxu0 %v6567
        %v6661 = vpop.f32.mrb[0].mxu0
        %v6662 = vadd.f32 0.0, %v6661
        %v6663 = vpop.f32.mrb[0].mxu0
        %v6664 = vpop.f32.mrb[0].mxu0
        %v6665 = vadd.f32 0.0, %v6664
        %v6666 = vpop.f32.mrb[0].mxu0
        %6667 = vmatprep.mubr.bf16.mxu0 0
        %6668 = vmatmul.mubr.bf16.gmra.mrb[0].mxu0 %v6570
        %v6669 = vpop.f32.mrb[0].mxu0
        %v6670 = vadd.f32 0.0, %v6669
        %v6671 = vpop.f32.mrb[0].mxu0
        %v6672 = vpop.f32.mrb[0].mxu0
        %v6673 = vadd.f32 0.0, %v6672
        %v6674 = vpop.f32.mrb[0].mxu0
        %6675 = vmatprep.mubr.bf16.mxu0 0
        %6676 = vmatmul.mubr.bf16.gmra.mrb[0].mxu0 %v6573
        %v6677 = vpop.f32.mrb[0].mxu0
        %v6678 = vadd.f32 0.0, %v6677
        %v6679 = vpop.f32.mrb[0].mxu0
        %v6680 = vpop.f32.mrb[0].mxu0
        %v6681 = vadd.f32 0.0, %v6680
        %v6682 = vpop.f32.mrb[0].mxu0
        %6683 = vmatprep.mubr.bf16.mxu0 0
        %6684 = vmatmul.mubr.bf16.gmra.mrb[0].mxu0 %v6576
        %v6685 = vpop.f32.mrb[0].mxu0
        %v6686 = vadd.f32 0.0, %v6685
        %v6687 = vpop.f32.mrb[0].mxu0
        %v6688 = vpop.f32.mrb[0].mxu0
        %v6689 = vadd.f32 0.0, %v6688
        %v6690 = vpop.f32.mrb[0].mxu0
        %6691 = vmatprep.mubr.bf16.mxu0 0
        %6692 = vmatmul.mubr.bf16.gmra.mrb[0].mxu0 %v6579
        %v6693 = vpop.f32.mrb[0].mxu0
        %v6694 = vadd.f32 0.0, %v6693
        %v6695 = vpop.f32.mrb[0].mxu0
        %v6696 = vpop.f32.mrb[0].mxu0
        %v6697 = vadd.f32 0.0, %v6696
        %v6698 = vpop.f32.mrb[0].mxu0
        %6699 = vmatprep.mubr.bf16.mxu0 0
        %6700 = vmatmul.mubr.bf16.gmra.mrb[0].mxu0 %v6582
        %v6701 = vpop.f32.mrb[0].mxu0
        %v6702 = vadd.f32 0.0, %v6701
        %v6703 = vpop.f32.mrb[0].mxu0
        %v6704 = vpop.f32.mrb[0].mxu0
        %v6705 = vadd.f32 0.0, %v6704
        %v6706 = vpop.f32.mrb[0].mxu0
        %6707 = vmatprep.mubr.bf16.mxu0 0
        %6708 = vmatmul.mubr.bf16.gmra.mrb[0].mxu0 %v6585
        %v6709 = vpop.f32.mrb[0].mxu0
        %v6710 = vadd.f32 0.0, %v6709
        %v6711 = vpop.f32.mrb[0].mxu0
        %v6712 = vpop.f32.mrb[0].mxu0
        %v6713 = vadd.f32 0.0, %v6712
        %v6714 = vpop.f32.mrb[0].mxu0
        %6715 = vmatprep.mubr.bf16.mxu0 0
        %6716 = vmatmul.mubr.bf16.gmra.mrb[0].mxu0 %v6588
        %v6717 = vpop.f32.mrb[0].mxu0
        %v6718 = vadd.f32 0.0, %v6717
        %v6719 = vpop.f32.mrb[0].mxu0
        %v6720 = vpop.f32.mrb[0].mxu0
        %v6721 = vadd.f32 0.0, %v6720
        %v6722 = vpop.f32.mrb[0].mxu0
        %6723 = vmatprep.mubr.bf16.mxu0 0
        %6724 = vmatmul.mubr.bf16.gmra.mrb[0].mxu0 %v6591
        %v6725 = vpop.f32.mrb[0].mxu0
        %v6726 = vadd.f32 0.0, %v6725
        %v6727 = vpop.f32.mrb[0].mxu0
        %v6728 = vpop.f32.mrb[0].mxu0
        %v6729 = vadd.f32 0.0, %v6728
        %v6730 = vpop.f32.mrb[0].mxu0
        %6731 = vmatprep.mubr.bf16.mxu0 0
        %6732 = vmatmul.mubr.bf16.gmra.mrb[0].mxu0 %v6594
        %v6733 = vpop.f32.mrb[0].mxu0
        %v6734 = vadd.f32 0.0, %v6733
        %v6735 = vpop.f32.mrb[0].mxu0
        %v6736 = vpop.f32.mrb[0].mxu0
        %v6737 = vadd.f32 0.0, %v6736
        %v6738 = vpop.f32.mrb[0].mxu0
        %6739 = vmatprep.mubr.bf16.mxu0 0
        %6740 = vmatmul.mubr.bf16.gmra.mrb[0].mxu0 %v6597
        %v6741 = vpop.f32.mrb[0].mxu0
        %v6742 = vadd.f32 0.0, %v6741
        %v6743 = vpop.f32.mrb[0].mxu0
        %v6744 = vpop.f32.mrb[0].mxu0
        %v6745 = vadd.f32 0.0, %v6744
        %v6746 = vpop.f32.mrb[0].mxu0
        %6747 = vmatprep.mubr.bf16.mxu0 0
        %6748 = vmatmul.mubr.bf16.gmra.mrb[0].mxu0 %v6600
        %v6749 = vpop.f32.mrb[0].mxu0
        %v6750 = vadd.f32 0.0, %v6749
        %v6751 = vpop.f32.mrb[0].mxu0
        %v6752 = vpop.f32.mrb[0].mxu0
        %v6753 = vadd.f32 0.0, %v6752
        %v6754 = vpop.f32.mrb[0].mxu0
        %6755 = vmatprep.mubr.bf16.mxu0 0
        %6756 = vmatmul.mubr.bf16.gmra.mrb[0].mxu0 %v6603
        %v6757 = vpop.f32.mrb[0].mxu0
        %v6758 = vadd.f32 0.0, %v6757
        %v6759 = vpop.f32.mrb[0].mxu0
        %v6760 = vpop.f32.mrb[0].mxu0
        %v6761 = vadd.f32 0.0, %v6760
        %v6762 = vpop.f32.mrb[0].mxu0
        %6763 = vmatprep.mubr.bf16.mxu0 0
        %6764 = vmatmul.mubr.bf16.gmra.mrb[0].mxu0 %v6606
        %v6765 = vpop.f32.mrb[0].mxu0
        %v6766 = vadd.f32 0.0, %v6765
        %v6767 = vpop.f32.mrb[0].mxu0
        %v6768 = vpop.f32.mrb[0].mxu0
        %v6769 = vadd.f32 0.0, %v6768
        %v6770 = vpop.f32.mrb[0].mxu0
        %6771 = vdwg.mxu0
        %v6772 = vadd.f32 %v6478, %v6646
        %v6773 = vadd.f32 %v6479, %v6649
        %v6774 = vadd.f32 %v6480, %v6654
        %v6775 = vadd.f32 %v6481, %v6657
        %v6776 = vadd.f32 %v6482, %v6662
        %v6777 = vadd.f32 %v6483, %v6665
        %v6778 = vadd.f32 %v6484, %v6670
        %v6779 = vadd.f32 %v6485, %v6673
        %v6780 = vadd.f32 %v6486, %v6678
        %v6781 = vadd.f32 %v6487, %v6681
        %v6782 = vadd.f32 %v6488, %v6686
        %v6783 = vadd.f32 %v6489, %v6689
        %v6784 = vadd.f32 %v6490, %v6694
        %v6785 = vadd.f32 %v6491, %v6697
        %v6786 = vadd.f32 %v6492, %v6702
        %v6787 = vadd.f32 %v6493, %v6705
        %v6788 = vadd.f32 %v6494, %v6710
        %v6789 = vadd.f32 %v6495, %v6713
        %v6790 = vadd.f32 %v6496, %v6718
        %v6791 = vadd.f32 %v6497, %v6721
        %v6792 = vadd.f32 %v6498, %v6726
        %v6793 = vadd.f32 %v6499, %v6729
        %v6794 = vadd.f32 %v6500, %v6734
        %v6795 = vadd.f32 %v6501, %v6737
        %v6796 = vadd.f32 %v6502, %v6742
        %v6797 = vadd.f32 %v6503, %v6745
        %v6798 = vadd.f32 %v6504, %v6750
        %v6799 = vadd.f32 %v6505, %v6753
        %v6800 = vadd.f32 %v6506, %v6758
        %v6801 = vadd.f32 %v6507, %v6761
        %v6802 = vadd.f32 %v6508, %v6766
        %v6803 = vadd.f32 %v6509, %v6769
        %v6804 = vld [vmem:[#allocation22] sm:$0x1]
        %v6806 = vlaneseq
        %v6807 = vshrl.u32 %v6806, 7
        %v6808 = vsub.s32 0, %v6807
        %v6809 = vrot.slane %v6804, %v6808
        %v6811 = vadd.f32 %v6772, %v6809
        %v6812 = vadd.f32 %v6773, %v6809
        %v6813 = vadd.f32 %v6774, %v6809
        %v6814 = vadd.f32 %v6775, %v6809
        %v6815 = vadd.f32 %v6776, %v6809
        %v6816 = vadd.f32 %v6777, %v6809
        %v6817 = vadd.f32 %v6778, %v6809
        %v6818 = vadd.f32 %v6779, %v6809
        %v6819 = vadd.f32 %v6780, %v6809
        %v6820 = vadd.f32 %v6781, %v6809
        %v6821 = vadd.f32 %v6782, %v6809
        %v6822 = vadd.f32 %v6783, %v6809
        %v6823 = vadd.f32 %v6784, %v6809
        %v6824 = vadd.f32 %v6785, %v6809
        %v6825 = vadd.f32 %v6786, %v6809
        %v6826 = vadd.f32 %v6787, %v6809
        %v6827 = vadd.f32 %v6788, %v6809
        %v6828 = vadd.f32 %v6789, %v6809
        %v6829 = vadd.f32 %v6790, %v6809
        %v6830 = vadd.f32 %v6791, %v6809
        %v6831 = vadd.f32 %v6792, %v6809
        %v6832 = vadd.f32 %v6793, %v6809
        %v6833 = vadd.f32 %v6794, %v6809
        %v6834 = vadd.f32 %v6795, %v6809
        %v6835 = vadd.f32 %v6796, %v6809
        %v6836 = vadd.f32 %v6797, %v6809
        %v6837 = vadd.f32 %v6798, %v6809
        %v6838 = vadd.f32 %v6799, %v6809
        %v6839 = vadd.f32 %v6800, %v6809
        %v6840 = vadd.f32 %v6801, %v6809
        %v6841 = vadd.f32 %v6802, %v6809
        %v6842 = vadd.f32 %v6803, %v6809
        %v6843 = vld [vmem:[#allocation24] sm:$0x1]
        %v6844 = vld [vmem:[%s620] sm:$0xff]
        %v6845 = vld [vmem:[%s620 + $0x8] sm:$0xff]
        %v6846 = vld [vmem:[%s620 + $0x10] sm:$0xff]
        %v6847 = vld [vmem:[%s620 + $0x18] sm:$0xff]
        %v6848 = vld [vmem:[%s620 + $0x20] sm:$0xff]
        %v6849 = vld [vmem:[%s620 + $0x28] sm:$0xff]
        %v6850 = vld [vmem:[%s620 + $0x30] sm:$0xff]
        %v6851 = vld [vmem:[%s620 + $0x38] sm:$0xff]
        %v6852 = vld [vmem:[%s620 + $0x40] sm:$0xff]
        %v6853 = vld [vmem:[%s620 + $0x48] sm:$0xff]
        %v6854 = vld [vmem:[%s620 + $0x50] sm:$0xff]
        %v6855 = vld [vmem:[%s620 + $0x58] sm:$0xff]
        %v6856 = vld [vmem:[%s620 + $0x60] sm:$0xff]
        %v6857 = vld [vmem:[%s620 + $0x68] sm:$0xff]
        %v6858 = vld [vmem:[%s620 + $0x70] sm:$0xff]
        %v6859 = vld [vmem:[%s620 + $0x78] sm:$0xff]
        %v6860 = vld [vmem:[%s620 + $0x80] sm:$0xff]
        %v6861 = vld [vmem:[%s620 + $0x88] sm:$0xff]
        %v6862 = vld [vmem:[%s620 + $0x90] sm:$0xff]
        %v6863 = vld [vmem:[%s620 + $0x98] sm:$0xff]
        %v6864 = vld [vmem:[%s620 + $0xa0] sm:$0xff]
        %v6865 = vld [vmem:[%s620 + $0xa8] sm:$0xff]
        %v6866 = vld [vmem:[%s620 + $0xb0] sm:$0xff]
        %v6867 = vld [vmem:[%s620 + $0xb8] sm:$0xff]
        %v6868 = vld [vmem:[%s620 + $0xc0] sm:$0xff]
        %v6869 = vld [vmem:[%s620 + $0xc8] sm:$0xff]
        %v6870 = vld [vmem:[%s620 + $0xd0] sm:$0xff]
        %v6871 = vld [vmem:[%s620 + $0xd8] sm:$0xff]
        %v6872 = vld [vmem:[%s620 + $0xe0] sm:$0xff]
        %v6873 = vld [vmem:[%s620 + $0xe8] sm:$0xff]
        %v6874 = vld [vmem:[%s620 + $0xf0] sm:$0xff]
        %v6875 = vld [vmem:[%s620 + $0xf8] sm:$0xff]
        %v6877 = vlaneseq
        %v6878 = vshrl.u32 %v6877, 7
        %v6879 = vsub.s32 0, %v6878
        %v6880 = vrot.slane %v6843, %v6879
        %6883 = vset.pattern.permute.xlu0 0
        %6884 = vperm.xlu0 %6883, %v6844
        %v6885 = vpop.permute.xlu0 %6884
        %6888 = vset.pattern.permute.xlu0 0
        %6889 = vperm.xlu0 %6888, %v6845
        %v6890 = vpop.permute.xlu0 %6889
        %6893 = vset.pattern.permute.xlu0 0
        %6894 = vperm.xlu0 %6893, %v6846
        %v6895 = vpop.permute.xlu0 %6894
        %6898 = vset.pattern.permute.xlu0 0
        %6899 = vperm.xlu0 %6898, %v6847
        %v6900 = vpop.permute.xlu0 %6899
        %6903 = vset.pattern.permute.xlu0 0
        %6904 = vperm.xlu0 %6903, %v6848
        %v6905 = vpop.permute.xlu0 %6904
        %6908 = vset.pattern.permute.xlu0 0
        %6909 = vperm.xlu0 %6908, %v6849
        %v6910 = vpop.permute.xlu0 %6909
        %6913 = vset.pattern.permute.xlu0 0
        %6914 = vperm.xlu0 %6913, %v6850
        %v6915 = vpop.permute.xlu0 %6914
        %6918 = vset.pattern.permute.xlu0 0
        %6919 = vperm.xlu0 %6918, %v6851
        %v6920 = vpop.permute.xlu0 %6919
        %6923 = vset.pattern.permute.xlu0 0
        %6924 = vperm.xlu0 %6923, %v6852
        %v6925 = vpop.permute.xlu0 %6924
        %6928 = vset.pattern.permute.xlu0 0
        %6929 = vperm.xlu0 %6928, %v6853
        %v6930 = vpop.permute.xlu0 %6929
        %6933 = vset.pattern.permute.xlu0 0
        %6934 = vperm.xlu0 %6933, %v6854
        %v6935 = vpop.permute.xlu0 %6934
        %6938 = vset.pattern.permute.xlu0 0
        %6939 = vperm.xlu0 %6938, %v6855
        %v6940 = vpop.permute.xlu0 %6939
        %6943 = vset.pattern.permute.xlu0 0
        %6944 = vperm.xlu0 %6943, %v6856
        %v6945 = vpop.permute.xlu0 %6944
        %6948 = vset.pattern.permute.xlu0 0
        %6949 = vperm.xlu0 %6948, %v6857
        %v6950 = vpop.permute.xlu0 %6949
        %6953 = vset.pattern.permute.xlu0 0
        %6954 = vperm.xlu0 %6953, %v6858
        %v6955 = vpop.permute.xlu0 %6954
        %6958 = vset.pattern.permute.xlu0 0
        %6959 = vperm.xlu0 %6958, %v6859
        %v6960 = vpop.permute.xlu0 %6959
        %6963 = vset.pattern.permute.xlu0 0
        %6964 = vperm.xlu0 %6963, %v6860
        %v6965 = vpop.permute.xlu0 %6964
        %6968 = vset.pattern.permute.xlu0 0
        %6969 = vperm.xlu0 %6968, %v6861
        %v6970 = vpop.permute.xlu0 %6969
        %6973 = vset.pattern.permute.xlu0 0
        %6974 = vperm.xlu0 %6973, %v6862
        %v6975 = vpop.permute.xlu0 %6974
        %6978 = vset.pattern.permute.xlu0 0
        %6979 = vperm.xlu0 %6978, %v6863
        %v6980 = vpop.permute.xlu0 %6979
        %6983 = vset.pattern.permute.xlu0 0
        %6984 = vperm.xlu0 %6983, %v6864
        %v6985 = vpop.permute.xlu0 %6984
        %6988 = vset.pattern.permute.xlu0 0
        %6989 = vperm.xlu0 %6988, %v6865
        %v6990 = vpop.permute.xlu0 %6989
        %6993 = vset.pattern.permute.xlu0 0
        %6994 = vperm.xlu0 %6993, %v6866
        %v6995 = vpop.permute.xlu0 %6994
        %6998 = vset.pattern.permute.xlu0 0
        %6999 = vperm.xlu0 %6998, %v6867
        %v7000 = vpop.permute.xlu0 %6999
        %7003 = vset.pattern.permute.xlu0 0
        %7004 = vperm.xlu0 %7003, %v6868
        %v7005 = vpop.permute.xlu0 %7004
        %7008 = vset.pattern.permute.xlu0 0
        %7009 = vperm.xlu0 %7008, %v6869
        %v7010 = vpop.permute.xlu0 %7009
        %7013 = vset.pattern.permute.xlu0 0
        %7014 = vperm.xlu0 %7013, %v6870
        %v7015 = vpop.permute.xlu0 %7014
        %7018 = vset.pattern.permute.xlu0 0
        %7019 = vperm.xlu0 %7018, %v6871
        %v7020 = vpop.permute.xlu0 %7019
        %7023 = vset.pattern.permute.xlu0 0
        %7024 = vperm.xlu0 %7023, %v6872
        %v7025 = vpop.permute.xlu0 %7024
        %7028 = vset.pattern.permute.xlu0 0
        %7029 = vperm.xlu0 %7028, %v6873
        %v7030 = vpop.permute.xlu0 %7029
        %7033 = vset.pattern.permute.xlu0 0
        %7034 = vperm.xlu0 %7033, %v6874
        %v7035 = vpop.permute.xlu0 %7034
        %7038 = vset.pattern.permute.xlu0 0
        %7039 = vperm.xlu0 %7038, %v6875
        %v7040 = vpop.permute.xlu0 %7039
        %v7042 = vmul.f32 %v6880, %v6885
        %v7043 = vmul.f32 %v6880, %v6890
        %v7044 = vmul.f32 %v6880, %v6895
        %v7045 = vmul.f32 %v6880, %v6900
        %v7046 = vmul.f32 %v6880, %v6905
        %v7047 = vmul.f32 %v6880, %v6910
        %v7048 = vmul.f32 %v6880, %v6915
        %v7049 = vmul.f32 %v6880, %v6920
        %v7050 = vmul.f32 %v6880, %v6925
        %v7051 = vmul.f32 %v6880, %v6930
        %v7052 = vmul.f32 %v6880, %v6935
        %v7053 = vmul.f32 %v6880, %v6940
        %v7054 = vmul.f32 %v6880, %v6945
        %v7055 = vmul.f32 %v6880, %v6950
        %v7056 = vmul.f32 %v6880, %v6955
        %v7057 = vmul.f32 %v6880, %v6960
        %v7058 = vmul.f32 %v6880, %v6965
        %v7059 = vmul.f32 %v6880, %v6970
        %v7060 = vmul.f32 %v6880, %v6975
        %v7061 = vmul.f32 %v6880, %v6980
        %v7062 = vmul.f32 %v6880, %v6985
        %v7063 = vmul.f32 %v6880, %v6990
        %v7064 = vmul.f32 %v6880, %v6995
        %v7065 = vmul.f32 %v6880, %v7000
        %v7066 = vmul.f32 %v6880, %v7005
        %v7067 = vmul.f32 %v6880, %v7010
        %v7068 = vmul.f32 %v6880, %v7015
        %v7069 = vmul.f32 %v6880, %v7020
        %v7070 = vmul.f32 %v6880, %v7025
        %v7071 = vmul.f32 %v6880, %v7030
        %v7072 = vmul.f32 %v6880, %v7035
        %v7073 = vmul.f32 %v6880, %v7040
        %v7074 = vadd.f32 %v6811, %v7042
        %v7075 = vadd.f32 %v6812, %v7043
        %v7076 = vadd.f32 %v6813, %v7044
        %v7077 = vadd.f32 %v6814, %v7045
        %v7078 = vadd.f32 %v6815, %v7046
        %v7079 = vadd.f32 %v6816, %v7047
        %v7080 = vadd.f32 %v6817, %v7048
        %v7081 = vadd.f32 %v6818, %v7049
        %v7082 = vadd.f32 %v6819, %v7050
        %v7083 = vadd.f32 %v6820, %v7051
        %v7084 = vadd.f32 %v6821, %v7052
        %v7085 = vadd.f32 %v6822, %v7053
        %v7086 = vadd.f32 %v6823, %v7054
        %v7087 = vadd.f32 %v6824, %v7055
        %v7088 = vadd.f32 %v6825, %v7056
        %v7089 = vadd.f32 %v6826, %v7057
        %v7090 = vadd.f32 %v6827, %v7058
        %v7091 = vadd.f32 %v6828, %v7059
        %v7092 = vadd.f32 %v6829, %v7060
        %v7093 = vadd.f32 %v6830, %v7061
        %v7094 = vadd.f32 %v6831, %v7062
        %v7095 = vadd.f32 %v6832, %v7063
        %v7096 = vadd.f32 %v6833, %v7064
        %v7097 = vadd.f32 %v6834, %v7065
        %v7098 = vadd.f32 %v6835, %v7066
        %v7099 = vadd.f32 %v6836, %v7067
        %v7100 = vadd.f32 %v6837, %v7068
        %v7101 = vadd.f32 %v6838, %v7069
        %v7102 = vadd.f32 %v6839, %v7070
        %v7103 = vadd.f32 %v6840, %v7071
        %v7104 = vadd.f32 %v6841, %v7072
        %v7105 = vadd.f32 %v6842, %v7073
        %vm7106 = vcmp.ge.f32.partialorder %v7074, 0.0
        %vm7107 = vcmp.ge.f32.partialorder %v7075, 0.0
        %vm7108 = vcmp.ge.f32.partialorder %v7076, 0.0
        %vm7109 = vcmp.ge.f32.partialorder %v7077, 0.0
        %vm7110 = vcmp.ge.f32.partialorder %v7078, 0.0
        %vm7111 = vcmp.ge.f32.partialorder %v7079, 0.0
        %vm7112 = vcmp.ge.f32.partialorder %v7080, 0.0
        %vm7113 = vcmp.ge.f32.partialorder %v7081, 0.0
        %vm7114 = vcmp.ge.f32.partialorder %v7082, 0.0
        %vm7115 = vcmp.ge.f32.partialorder %v7083, 0.0
        %vm7116 = vcmp.ge.f32.partialorder %v7084, 0.0
        %vm7117 = vcmp.ge.f32.partialorder %v7085, 0.0
        %vm7118 = vcmp.ge.f32.partialorder %v7086, 0.0
        %vm7119 = vcmp.ge.f32.partialorder %v7087, 0.0
        %vm7120 = vcmp.ge.f32.partialorder %v7088, 0.0
        %vm7121 = vcmp.ge.f32.partialorder %v7089, 0.0
        %vm7122 = vcmp.ge.f32.partialorder %v7090, 0.0
        %vm7123 = vcmp.ge.f32.partialorder %v7091, 0.0
        %vm7124 = vcmp.ge.f32.partialorder %v7092, 0.0
        %vm7125 = vcmp.ge.f32.partialorder %v7093, 0.0
        %vm7126 = vcmp.ge.f32.partialorder %v7094, 0.0
        %vm7127 = vcmp.ge.f32.partialorder %v7095, 0.0
        %vm7128 = vcmp.ge.f32.partialorder %v7096, 0.0
        %vm7129 = vcmp.ge.f32.partialorder %v7097, 0.0
        %vm7130 = vcmp.ge.f32.partialorder %v7098, 0.0
        %vm7131 = vcmp.ge.f32.partialorder %v7099, 0.0
        %vm7132 = vcmp.ge.f32.partialorder %v7100, 0.0
        %vm7133 = vcmp.ge.f32.partialorder %v7101, 0.0
        %vm7134 = vcmp.ge.f32.partialorder %v7102, 0.0
        %vm7135 = vcmp.ge.f32.partialorder %v7103, 0.0
        %vm7136 = vcmp.ge.f32.partialorder %v7104, 0.0
        %vm7137 = vcmp.ge.f32.partialorder %v7105, 0.0
        %v7138 = vmul.f32 %v7074, 0.2
        %v7139 = vmul.f32 %v7075, 0.2
        %v7140 = vmul.f32 %v7076, 0.2
        %v7141 = vmul.f32 %v7077, 0.2
        %v7142 = vmul.f32 %v7078, 0.2
        %v7143 = vmul.f32 %v7079, 0.2
        %v7144 = vmul.f32 %v7080, 0.2
        %v7145 = vmul.f32 %v7081, 0.2
        %v7146 = vmul.f32 %v7082, 0.2
        %v7147 = vmul.f32 %v7083, 0.2
        %v7148 = vmul.f32 %v7084, 0.2
        %v7149 = vmul.f32 %v7085, 0.2
        %v7150 = vmul.f32 %v7086, 0.2
        %v7151 = vmul.f32 %v7087, 0.2
        %v7152 = vmul.f32 %v7088, 0.2
        %v7153 = vmul.f32 %v7089, 0.2
        %v7154 = vmul.f32 %v7090, 0.2
        %v7155 = vmul.f32 %v7091, 0.2
        %v7156 = vmul.f32 %v7092, 0.2
        %v7157 = vmul.f32 %v7093, 0.2
        %v7158 = vmul.f32 %v7094, 0.2
        %v7159 = vmul.f32 %v7095, 0.2
        %v7160 = vmul.f32 %v7096, 0.2
        %v7161 = vmul.f32 %v7097, 0.2
        %v7162 = vmul.f32 %v7098, 0.2
        %v7163 = vmul.f32 %v7099, 0.2
        %v7164 = vmul.f32 %v7100, 0.2
        %v7165 = vmul.f32 %v7101, 0.2
        %v7166 = vmul.f32 %v7102, 0.2
        %v7167 = vmul.f32 %v7103, 0.2
        %v7168 = vmul.f32 %v7104, 0.2
        %v7169 = vmul.f32 %v7105, 0.2
        %v7170 = vsel %vm7106, %v7074, %v7138
        %v7171 = vsel %vm7107, %v7075, %v7139
        %v7172 = vsel %vm7108, %v7076, %v7140
        %v7173 = vsel %vm7109, %v7077, %v7141
        %v7174 = vsel %vm7110, %v7078, %v7142
        %v7175 = vsel %vm7111, %v7079, %v7143
        %v7176 = vsel %vm7112, %v7080, %v7144
        %v7177 = vsel %vm7113, %v7081, %v7145
        %v7178 = vsel %vm7114, %v7082, %v7146
        %v7179 = vsel %vm7115, %v7083, %v7147
        %v7180 = vsel %vm7116, %v7084, %v7148
        %v7181 = vsel %vm7117, %v7085, %v7149
        %v7182 = vsel %vm7118, %v7086, %v7150
        %v7183 = vsel %vm7119, %v7087, %v7151
        %v7184 = vsel %vm7120, %v7088, %v7152
        %v7185 = vsel %vm7121, %v7089, %v7153
        %v7186 = vsel %vm7122, %v7090, %v7154
        %v7187 = vsel %vm7123, %v7091, %v7155
        %v7188 = vsel %vm7124, %v7092, %v7156
        %v7189 = vsel %vm7125, %v7093, %v7157
        %v7190 = vsel %vm7126, %v7094, %v7158
        %v7191 = vsel %vm7127, %v7095, %v7159
        %v7192 = vsel %vm7128, %v7096, %v7160
        %v7193 = vsel %vm7129, %v7097, %v7161
        %v7194 = vsel %vm7130, %v7098, %v7162
        %v7195 = vsel %vm7131, %v7099, %v7163
        %v7196 = vsel %vm7132, %v7100, %v7164
        %v7197 = vsel %vm7133, %v7101, %v7165
        %v7198 = vsel %vm7134, %v7102, %v7166
        %v7199 = vsel %vm7135, %v7103, %v7167
        %v7200 = vsel %vm7136, %v7104, %v7168
        %v7201 = vsel %vm7137, %v7105, %v7169
        %v7202 = vld [vmem:[%s644] sm:$0x1]
        %v7203 = vld [vmem:[%s652] sm:$0x1]
        %v7204 = vsel %vm3850, %v7170, 0.0
        %v7205 = vsel %vm3850, %v7171, 0.0
        %v7206 = vadd.f32 %v7204, %v7205
        %v7207 = vsel %vm3850, %v7172, 0.0
        %v7208 = vadd.f32 %v7206, %v7207
        %v7209 = vsel %vm3850, %v7173, 0.0
        %v7210 = vadd.f32 %v7208, %v7209
        %v7211 = vsel %vm3850, %v7174, 0.0
        %v7212 = vadd.f32 %v7210, %v7211
        %v7213 = vsel %vm3850, %v7175, 0.0
        %v7214 = vadd.f32 %v7212, %v7213
        %v7215 = vsel %vm3850, %v7176, 0.0
        %v7216 = vadd.f32 %v7214, %v7215
        %v7217 = vsel %vm3850, %v7177, 0.0
        %v7218 = vadd.f32 %v7216, %v7217
        %v7219 = vsel %vm3850, %v7178, 0.0
        %v7220 = vadd.f32 %v7218, %v7219
        %v7221 = vsel %vm3850, %v7179, 0.0
        %v7222 = vadd.f32 %v7220, %v7221
        %v7223 = vsel %vm3850, %v7180, 0.0
        %v7224 = vadd.f32 %v7222, %v7223
        %v7225 = vsel %vm3850, %v7181, 0.0
        %v7226 = vadd.f32 %v7224, %v7225
        %v7227 = vsel %vm3850, %v7182, 0.0
        %v7228 = vadd.f32 %v7226, %v7227
        %v7229 = vsel %vm3850, %v7183, 0.0
        %v7230 = vadd.f32 %v7228, %v7229
        %v7231 = vsel %vm3850, %v7184, 0.0
        %v7232 = vadd.f32 %v7230, %v7231
        %v7233 = vsel %vm3850, %v7185, 0.0
        %v7234 = vadd.f32 %v7232, %v7233
        %v7235 = vsel %vm3850, %v7186, 0.0
        %v7236 = vadd.f32 %v7234, %v7235
        %v7237 = vsel %vm3850, %v7187, 0.0
        %v7238 = vadd.f32 %v7236, %v7237
        %v7239 = vsel %vm3850, %v7188, 0.0
        %v7240 = vadd.f32 %v7238, %v7239
        %v7241 = vsel %vm3850, %v7189, 0.0
        %v7242 = vadd.f32 %v7240, %v7241
        %v7243 = vsel %vm3850, %v7190, 0.0
        %v7244 = vadd.f32 %v7242, %v7243
        %v7245 = vsel %vm3850, %v7191, 0.0
        %v7246 = vadd.f32 %v7244, %v7245
        %v7247 = vsel %vm3850, %v7192, 0.0
        %v7248 = vadd.f32 %v7246, %v7247
        %v7249 = vsel %vm3850, %v7193, 0.0
        %v7250 = vadd.f32 %v7248, %v7249
        %v7251 = vsel %vm3850, %v7194, 0.0
        %v7252 = vadd.f32 %v7250, %v7251
        %v7253 = vsel %vm3850, %v7195, 0.0
        %v7254 = vadd.f32 %v7252, %v7253
        %v7255 = vsel %vm3850, %v7196, 0.0
        %v7256 = vadd.f32 %v7254, %v7255
        %v7257 = vsel %vm3850, %v7197, 0.0
        %v7258 = vadd.f32 %v7256, %v7257
        %v7259 = vsel %vm3850, %v7198, 0.0
        %v7260 = vadd.f32 %v7258, %v7259
        %v7261 = vsel %vm3850, %v7199, 0.0
        %v7262 = vadd.f32 %v7260, %v7261
        %v7263 = vsel %vm3850, %v7200, 0.0
        %v7264 = vadd.f32 %v7262, %v7263
        %v7265 = vsel %vm3850, %v7201, 0.0
        %v7266 = vadd.f32 %v7264, %v7265
        %v7267 = vrot.slane %v7266, 4
        %v7268 = vadd.f32 %v7266, %v7267
        %v7269 = vrot.slane %v7268, 2
        %v7270 = vadd.f32 %v7268, %v7269
        %v7271 = vrot.slane %v7270, 1
        %v7272 = vadd.f32 %v7270, %v7271
        %v7273 = vmul.f32 %v7272, %v3920
        %v7274 = vsub.f32 %v7170, %v7273
        %v7275 = vsub.f32 %v7171, %v7273
        %v7276 = vsub.f32 %v7172, %v7273
        %v7277 = vsub.f32 %v7173, %v7273
        %v7278 = vsub.f32 %v7174, %v7273
        %v7279 = vsub.f32 %v7175, %v7273
        %v7280 = vsub.f32 %v7176, %v7273
        %v7281 = vsub.f32 %v7177, %v7273
        %v7282 = vsub.f32 %v7178, %v7273
        %v7283 = vsub.f32 %v7179, %v7273
        %v7284 = vsub.f32 %v7180, %v7273
        %v7285 = vsub.f32 %v7181, %v7273
        %v7286 = vsub.f32 %v7182, %v7273
        %v7287 = vsub.f32 %v7183, %v7273
        %v7288 = vsub.f32 %v7184, %v7273
        %v7289 = vsub.f32 %v7185, %v7273
        %v7290 = vsub.f32 %v7186, %v7273
        %v7291 = vsub.f32 %v7187, %v7273
        %v7292 = vsub.f32 %v7188, %v7273
        %v7293 = vsub.f32 %v7189, %v7273
        %v7294 = vsub.f32 %v7190, %v7273
        %v7295 = vsub.f32 %v7191, %v7273
        %v7296 = vsub.f32 %v7192, %v7273
        %v7297 = vsub.f32 %v7193, %v7273
        %v7298 = vsub.f32 %v7194, %v7273
        %v7299 = vsub.f32 %v7195, %v7273
        %v7300 = vsub.f32 %v7196, %v7273
        %v7301 = vsub.f32 %v7197, %v7273
        %v7302 = vsub.f32 %v7198, %v7273
        %v7303 = vsub.f32 %v7199, %v7273
        %v7304 = vsub.f32 %v7200, %v7273
        %v7305 = vsub.f32 %v7201, %v7273
        %v7306 = vmul.f32 %v7274, %v7274
        %v7307 = vmul.f32 %v7275, %v7275
        %v7308 = vmul.f32 %v7276, %v7276
        %v7309 = vmul.f32 %v7277, %v7277
        %v7310 = vmul.f32 %v7278, %v7278
        %v7311 = vmul.f32 %v7279, %v7279
        %v7312 = vmul.f32 %v7280, %v7280
        %v7313 = vmul.f32 %v7281, %v7281
        %v7314 = vmul.f32 %v7282, %v7282
        %v7315 = vmul.f32 %v7283, %v7283
        %v7316 = vmul.f32 %v7284, %v7284
        %v7317 = vmul.f32 %v7285, %v7285
        %v7318 = vmul.f32 %v7286, %v7286
        %v7319 = vmul.f32 %v7287, %v7287
        %v7320 = vmul.f32 %v7288, %v7288
        %v7321 = vmul.f32 %v7289, %v7289
        %v7322 = vmul.f32 %v7290, %v7290
        %v7323 = vmul.f32 %v7291, %v7291
        %v7324 = vmul.f32 %v7292, %v7292
        %v7325 = vmul.f32 %v7293, %v7293
        %v7326 = vmul.f32 %v7294, %v7294
        %v7327 = vmul.f32 %v7295, %v7295
        %v7328 = vmul.f32 %v7296, %v7296
        %v7329 = vmul.f32 %v7297, %v7297
        %v7330 = vmul.f32 %v7298, %v7298
        %v7331 = vmul.f32 %v7299, %v7299
        %v7332 = vmul.f32 %v7300, %v7300
        %v7333 = vmul.f32 %v7301, %v7301
        %v7334 = vmul.f32 %v7302, %v7302
        %v7335 = vmul.f32 %v7303, %v7303
        %v7336 = vmul.f32 %v7304, %v7304
        %v7337 = vmul.f32 %v7305, %v7305
        %v7338 = vsel %vm3850, %v7306, 0.0
        %v7339 = vsel %vm3850, %v7307, 0.0
        %v7340 = vadd.f32 %v7338, %v7339
        %v7341 = vsel %vm3850, %v7308, 0.0
        %v7342 = vadd.f32 %v7340, %v7341
        %v7343 = vsel %vm3850, %v7309, 0.0
        %v7344 = vadd.f32 %v7342, %v7343
        %v7345 = vsel %vm3850, %v7310, 0.0
        %v7346 = vadd.f32 %v7344, %v7345
        %v7347 = vsel %vm3850, %v7311, 0.0
        %v7348 = vadd.f32 %v7346, %v7347
        %v7349 = vsel %vm3850, %v7312, 0.0
        %v7350 = vadd.f32 %v7348, %v7349
        %v7351 = vsel %vm3850, %v7313, 0.0
        %v7352 = vadd.f32 %v7350, %v7351
        %v7353 = vsel %vm3850, %v7314, 0.0
        %v7354 = vadd.f32 %v7352, %v7353
        %v7355 = vsel %vm3850, %v7315, 0.0
        %v7356 = vadd.f32 %v7354, %v7355
        %v7357 = vsel %vm3850, %v7316, 0.0
        %v7358 = vadd.f32 %v7356, %v7357
        %v7359 = vsel %vm3850, %v7317, 0.0
        %v7360 = vadd.f32 %v7358, %v7359
        %v7361 = vsel %vm3850, %v7318, 0.0
        %v7362 = vadd.f32 %v7360, %v7361
        %v7363 = vsel %vm3850, %v7319, 0.0
        %v7364 = vadd.f32 %v7362, %v7363
        %v7365 = vsel %vm3850, %v7320, 0.0
        %v7366 = vadd.f32 %v7364, %v7365
        %v7367 = vsel %vm3850, %v7321, 0.0
        %v7368 = vadd.f32 %v7366, %v7367
        %v7369 = vsel %vm3850, %v7322, 0.0
        %v7370 = vadd.f32 %v7368, %v7369
        %v7371 = vsel %vm3850, %v7323, 0.0
        %v7372 = vadd.f32 %v7370, %v7371
        %v7373 = vsel %vm3850, %v7324, 0.0
        %v7374 = vadd.f32 %v7372, %v7373
        %v7375 = vsel %vm3850, %v7325, 0.0
        %v7376 = vadd.f32 %v7374, %v7375
        %v7377 = vsel %vm3850, %v7326, 0.0
        %v7378 = vadd.f32 %v7376, %v7377
        %v7379 = vsel %vm3850, %v7327, 0.0
        %v7380 = vadd.f32 %v7378, %v7379
        %v7381 = vsel %vm3850, %v7328, 0.0
        %v7382 = vadd.f32 %v7380, %v7381
        %v7383 = vsel %vm3850, %v7329, 0.0
        %v7384 = vadd.f32 %v7382, %v7383
        %v7385 = vsel %vm3850, %v7330, 0.0
        %v7386 = vadd.f32 %v7384, %v7385
        %v7387 = vsel %vm3850, %v7331, 0.0
        %v7388 = vadd.f32 %v7386, %v7387
        %v7389 = vsel %vm3850, %v7332, 0.0
        %v7390 = vadd.f32 %v7388, %v7389
        %v7391 = vsel %vm3850, %v7333, 0.0
        %v7392 = vadd.f32 %v7390, %v7391
        %v7393 = vsel %vm3850, %v7334, 0.0
        %v7394 = vadd.f32 %v7392, %v7393
        %v7395 = vsel %vm3850, %v7335, 0.0
        %v7396 = vadd.f32 %v7394, %v7395
        %v7397 = vsel %vm3850, %v7336, 0.0
        %v7398 = vadd.f32 %v7396, %v7397
        %v7399 = vsel %vm3850, %v7337, 0.0
        %v7400 = vadd.f32 %v7398, %v7399
        %v7401 = vrot.slane %v7400, 4
        %v7402 = vadd.f32 %v7400, %v7401
        %v7403 = vrot.slane %v7402, 2
        %v7404 = vadd.f32 %v7402, %v7403
        %v7405 = vrot.slane %v7404, 1
        %v7406 = vadd.f32 %v7404, %v7405
        %v7407 = vmul.f32 %v7406, %v3920
        %v7408 = vadd.f32 %v7407, 1e-05
        %v7409 = vrsqrt.pop %v7408
        %v7410 = vmul.f32 %v7409, %v7202
        %v7411 = vlaneseq
        %v7412 = vshrl.u32 %v7411, 7
        %v7413 = vsub.s32 0, %v7412
        %v7414 = vrot.slane %v7410, %v7413
        %v7415 = vmul.f32 %v7274, %v7414
        %v7416 = vmul.f32 %v7275, %v7414
        %v7417 = vmul.f32 %v7276, %v7414
        %v7418 = vmul.f32 %v7277, %v7414
        %v7419 = vmul.f32 %v7278, %v7414
        %v7420 = vmul.f32 %v7279, %v7414
        %v7421 = vmul.f32 %v7280, %v7414
        %v7422 = vmul.f32 %v7281, %v7414
        %v7423 = vmul.f32 %v7282, %v7414
        %v7424 = vmul.f32 %v7283, %v7414
        %v7425 = vmul.f32 %v7284, %v7414
        %v7426 = vmul.f32 %v7285, %v7414
        %v7427 = vmul.f32 %v7286, %v7414
        %v7428 = vmul.f32 %v7287, %v7414
        %v7429 = vmul.f32 %v7288, %v7414
        %v7430 = vmul.f32 %v7289, %v7414
        %v7431 = vmul.f32 %v7290, %v7414
        %v7432 = vmul.f32 %v7291, %v7414
        %v7433 = vmul.f32 %v7292, %v7414
        %v7434 = vmul.f32 %v7293, %v7414
        %v7435 = vmul.f32 %v7294, %v7414
        %v7436 = vmul.f32 %v7295, %v7414
        %v7437 = vmul.f32 %v7296, %v7414
        %v7438 = vmul.f32 %v7297, %v7414
        %v7439 = vmul.f32 %v7298, %v7414
        %v7440 = vmul.f32 %v7299, %v7414
        %v7441 = vmul.f32 %v7300, %v7414
        %v7442 = vmul.f32 %v7301, %v7414
        %v7443 = vmul.f32 %v7302, %v7414
        %v7444 = vmul.f32 %v7303, %v7414
        %v7445 = vmul.f32 %v7304, %v7414
        %v7446 = vmul.f32 %v7305, %v7414
        %v7448 = vlaneseq
        %v7449 = vshrl.u32 %v7448, 7
        %v7450 = vsub.s32 0, %v7449
        %v7451 = vrot.slane %v7203, %v7450
        %v7453 = vadd.f32 %v7415, %v7451
        %v7454 = vadd.f32 %v7416, %v7451
        %v7455 = vadd.f32 %v7417, %v7451
        %v7456 = vadd.f32 %v7418, %v7451
        %v7457 = vadd.f32 %v7419, %v7451
        %v7458 = vadd.f32 %v7420, %v7451
        %v7459 = vadd.f32 %v7421, %v7451
        %v7460 = vadd.f32 %v7422, %v7451
        %v7461 = vadd.f32 %v7423, %v7451
        %v7462 = vadd.f32 %v7424, %v7451
        %v7463 = vadd.f32 %v7425, %v7451
        %v7464 = vadd.f32 %v7426, %v7451
        %v7465 = vadd.f32 %v7427, %v7451
        %v7466 = vadd.f32 %v7428, %v7451
        %v7467 = vadd.f32 %v7429, %v7451
        %v7468 = vadd.f32 %v7430, %v7451
        %v7469 = vadd.f32 %v7431, %v7451
        %v7470 = vadd.f32 %v7432, %v7451
        %v7471 = vadd.f32 %v7433, %v7451
        %v7472 = vadd.f32 %v7434, %v7451
        %v7473 = vadd.f32 %v7435, %v7451
        %v7474 = vadd.f32 %v7436, %v7451
        %v7475 = vadd.f32 %v7437, %v7451
        %v7476 = vadd.f32 %v7438, %v7451
        %v7477 = vadd.f32 %v7439, %v7451
        %v7478 = vadd.f32 %v7440, %v7451
        %v7479 = vadd.f32 %v7441, %v7451
        %v7480 = vadd.f32 %v7442, %v7451
        %v7481 = vadd.f32 %v7443, %v7451
        %v7482 = vadd.f32 %v7444, %v7451
        %v7483 = vadd.f32 %v7445, %v7451
        %v7484 = vadd.f32 %v7446, %v7451
        %7485 = vst.msk [vmem:[%s744] sm:$0xff] %vm3850, %v7453
        %7486 = vst.msk [vmem:[%s744 + $0x8] sm:$0xff] %vm3850, %v7454
        %7487 = vst.msk [vmem:[%s744 + $0x10] sm:$0xff] %vm3850, %v7455
        %7488 = vst.msk [vmem:[%s744 + $0x18] sm:$0xff] %vm3850, %v7456
        %7489 = vst.msk [vmem:[%s744 + $0x20] sm:$0xff] %vm3850, %v7457
        %7490 = vst.msk [vmem:[%s744 + $0x28] sm:$0xff] %vm3850, %v7458
        %7491 = vst.msk [vmem:[%s744 + $0x30] sm:$0xff] %vm3850, %v7459
        %7492 = vst.msk [vmem:[%s744 + $0x38] sm:$0xff] %vm3850, %v7460
        %7493 = vst.msk [vmem:[%s744 + $0x40] sm:$0xff] %vm3850, %v7461
        %7494 = vst.msk [vmem:[%s744 + $0x48] sm:$0xff] %vm3850, %v7462
        %7495 = vst.msk [vmem:[%s744 + $0x50] sm:$0xff] %vm3850, %v7463
        %7496 = vst.msk [vmem:[%s744 + $0x58] sm:$0xff] %vm3850, %v7464
        %7497 = vst.msk [vmem:[%s744 + $0x60] sm:$0xff] %vm3850, %v7465
        %7498 = vst.msk [vmem:[%s744 + $0x68] sm:$0xff] %vm3850, %v7466
        %7499 = vst.msk [vmem:[%s744 + $0x70] sm:$0xff] %vm3850, %v7467
        %7500 = vst.msk [vmem:[%s744 + $0x78] sm:$0xff] %vm3850, %v7468
        %7501 = vst.msk [vmem:[%s744 + $0x80] sm:$0xff] %vm3850, %v7469
        %7502 = vst.msk [vmem:[%s744 + $0x88] sm:$0xff] %vm3850, %v7470
        %7503 = vst.msk [vmem:[%s744 + $0x90] sm:$0xff] %vm3850, %v7471
        %7504 = vst.msk [vmem:[%s744 + $0x98] sm:$0xff] %vm3850, %v7472
        %7505 = vst.msk [vmem:[%s744 + $0xa0] sm:$0xff] %vm3850, %v7473
        %7506 = vst.msk [vmem:[%s744 + $0xa8] sm:$0xff] %vm3850, %v7474
        %7507 = vst.msk [vmem:[%s744 + $0xb0] sm:$0xff] %vm3850, %v7475
        %7508 = vst.msk [vmem:[%s744 + $0xb8] sm:$0xff] %vm3850, %v7476
        %7509 = vst.msk [vmem:[%s744 + $0xc0] sm:$0xff] %vm3850, %v7477
        %7510 = vst.msk [vmem:[%s744 + $0xc8] sm:$0xff] %vm3850, %v7478
        %7511 = vst.msk [vmem:[%s744 + $0xd0] sm:$0xff] %vm3850, %v7479
        %7512 = vst.msk [vmem:[%s744 + $0xd8] sm:$0xff] %vm3850, %v7480
        %7513 = vst.msk [vmem:[%s744 + $0xe0] sm:$0xff] %vm3850, %v7481
        %7514 = vst.msk [vmem:[%s744 + $0xe8] sm:$0xff] %vm3850, %v7482
        %7515 = vst.msk [vmem:[%s744 + $0xf0] sm:$0xff] %vm3850, %v7483
        %7516 = vst.msk [vmem:[%s744 + $0xf8] sm:$0xff] %vm3850, %v7484
        %s7517 = sand.u32 %s358, 1
        %s7518 = scalar_lea.sflag [#allocation6], %s7517
        %s7519 = sand.u32 %s358, 1
        %s7520 = smul.addr %s7519, 256
        %s7521 = scalar_lea.vmem [#allocation25], %s7520
        // Predicated region
        $region125: #{gen_block.1} parent=71 // pred_check
          %p7522 = pneg %p368
        $region126: #{gen_block.1} parent=71 // pred_check_branch
          %7524 = sbr.rel (%p7522) target = $region128
        $region127: #{gen_block.1} parent=71 // pred_region
          %s7526 = ssub.s32 4096, 4096
          %7527 = vsyncadd %s7518, %s7526
          %s7528 = smul.addr %s42, 32
          %s7529 = smul.addr %s7528, 128
          %s7530 = scalar_lea.hbm %s13, %s7529
          %s7531 = sshll.u32 %s7521, 4
          %s7532 = int_to_ptr.vmem [resolvable:$true] %s7531
          %7537 = dma.vmem_to_hbm [thread:$0]  %s7532, 4096, %s7530, %s7518, 128, 128, 8
        $region128: #{gen_block.1} parent=71 // pred_fallthru
          _
      $region72: #{gen_block.1} parent=5 // pred_fallthru
        _
      %p7538 = scmp.le.s32.totalorder 2, %s37
      // Predicated region
      $region129: #{gen_block.1} parent=5 // pred_check
        %p7539 = pneg %p7538
      $region130: #{gen_block.1} parent=5 // pred_check_branch
        %7541 = sbr.rel (%p7539) target = $region132
      $region131: #{gen_block.1} parent=5 // pred_region
        %s7542 = ssub.s32 %s37, 2
        // Predicated region
        $region133: #{gen_block.1} parent=131 // pred_check
          %p7543 = pneg %p374
        $region134: #{gen_block.1} parent=131 // pred_check_branch
          %7545 = sbr.rel (%p7543) target = $region136
        $region135: #{gen_block.1} parent=131 // pred_region
          %s7546 = sand.u32 %s359, 1
          %s7547 = scalar_lea.sflag [#allocation6], %s7546
          %s7548 = sand.u32 %s359, 1
          %s7549 = smul.addr %s7548, 256
          %s7550 = scalar_lea.vmem [#allocation25], %s7549
          %7551 = dma.done %s7547, 4096
        $region136: #{gen_block.1} parent=131 // pred_fallthru
          _
      $region132: #{gen_block.1} parent=5 // pred_fallthru
        _
    $region6: #{gen_block.1} parent=1 // loop_footer
      %s41 = sadd.s32 1, %s37
    $region7: #{gen_block.1} parent=1 // loop_footer_branch
      %36 = sbr.rel target = $region3
    $region8: #{gen_block.1} parent=1 // loop_exit
      _
    %7552 = vsyncpa [#allocation5], 1
    %s7553 = scalar_lea.sflag [#allocation5], 1
    %7554 = vsyncpa %s7553, 1
    %7555 = vsyncpa [#allocation8], 1
    %s7556 = scalar_lea.sflag [#allocation8], 1
    %7557 = vsyncpa %s7556, 1
    %7558 = vsyncpa [#allocation11], 1
    %s7559 = scalar_lea.sflag [#allocation11], 1
    %7560 = vsyncpa %s7559, 1
    %7561 = vsyncpa [#allocation14], 1
    %s7562 = scalar_lea.sflag [#allocation14], 1
    %7563 = vsyncpa %s7562, 1
    %7564 = vsyncpa [#allocation17], 1
    %7565 = vsyncpa [#allocation20], 1
    %7566 = vsyncpa [#allocation23], 1
    %7567 = vsyncpa [#allocation6], 1
    %s7568 = scalar_lea.sflag [#allocation6], 1
    %7569 = vsyncpa %s7568, 1

</llo_original>
